<compile_context>
chip_gen: v7x
topology: tpu7x:2x2x1
jax: 0.10.0
libtpu: 0.0.40
codegen_flags: <defaults>
</compile_context>

<pallas_src>
import math

import jax
import jax.numpy as jnp
from jax.experimental import pallas as pl
from jax.experimental.pallas import tpu as pltpu

# ----------------------------- configuration --------------------------------
B_DEFAULT = 2
IMG = 16                    # small synthetic image size
PATCH = 2
GRID_HW = IMG // PATCH      # 8
S = GRID_HW * GRID_HW       # 64 context tokens
CTX_C = 32                  # backbone feature channels (stand-in)
DIM = 32                    # decpose.in_features (stand-in for 1024)
GPV = 1                     # gaussians_per_vertex (default)
NV = 778 * GPV              # num_vertices
CHUNKS = 2                  # num_vertices_chunks
NVT = NV // CHUNKS          # num_vertices_per_token = 389
NVTP = 512                  # NVT padded to a multiple of 128 (aligned lanes)
NUM_TASKS = 5
NUM_TOKENS = NUM_TASKS * CHUNKS   # 10
NJ = 21                     # MANO joints
NJP = 128                   # joints padded to one full lane group
TRAIN_RES = 256.0           # cfg.data.training_resolution

# fused-head layout: [features(3), rotation(4), opacity(1), scale(3), offset(3)]
HEAD_COMPS = (3, 4, 1, 3, 3)
NSEG = sum(HEAD_COMPS)      # 14 component segments of NVTP lanes each
WTOT = NSEG * NVTP          # 7168 fused output columns
NSCAL = 25                  # per-batch scalar pack: [tx,ty,tz, rx,ry, q(4), M(16)]
VMEM_LIMIT = 32 * 1024 * 1024   # explicit scoped-VMEM budget (safe on v5e/v6e/v7x)


# ----------------------------- Pallas kernels --------------------------------
def decoder_kernel(tok_ref, ctx_ref, ctxT_ref, wq_ref, wkT_ref, wv_ref, wo_ref,
                   wcam_ref, bcam_ref, tokout_ref, cam_ref):
    # TODO(synk): the real HAMER TransformerCrossAttn decoder (multi layer,
    # self-attn, FFN, LayerNorm) is an external module; a single cross-attention
    # block stand-in is implemented here.  At real sizes (S~256, DIM=1024) this
    # should become an S-tiled flash-attention style kernel with bf16 q/k/v.
    tokens = tok_ref[...]                                   # (T, D) f32, shared
    ctx = ctx_ref[...]                                      # (B, S, C) f32
    nb, s, c = ctx.shape
    t = tokens.shape[0]
    d = tokens.shape[1]
    ctx_flat = ctx.reshape(nb * s, c)

    # batch-stacked / shared projections: weight pushed through the MXU once.
    q = jnp.dot(tokens.astype(jnp.bfloat16), wq_ref[...],
                preferred_element_type=jnp.float32)          # (T, D)
    # K produced already transposed (D, B*S): wk^T (D,C) @ ctx^T (C,B*S) is a
    # canonical MXU contraction -> no in-kernel XLU transpose of K.
    kT = jnp.dot(wkT_ref[...], ctxT_ref[...].astype(jnp.bfloat16),
                 preferred_element_type=jnp.float32)         # (D, B*S)
    v = jnp.dot(ctx_flat.astype(jnp.bfloat16), wv_ref[...],
                preferred_element_type=jnp.float32)          # (B*S, D)

    q16 = q.astype(jnp.bfloat16)
    kT16 = kT.astype(jnp.bfloat16)
    v16 = v.astype(jnp.bfloat16)
    scale = 1.0 / math.sqrt(d)

    attn_rows = []
    pooled_rows = []
    for b in range(nb):                                      # static, small B
        scores = jnp.dot(q16, kT16[:, b * s:(b + 1) * s],
                         preferred_element_type=jnp.float32) * scale   # (T, S)
        m = jnp.max(scores, axis=-1, keepdims=True)
        p = jnp.exp(scores - m)
        denom = jnp.sum(p, axis=-1, keepdims=True)
        p = p * pl.reciprocal(denom, approx=True)            # divide -> EUP slot
        attn_rows.append(jnp.dot(p.astype(jnp.bfloat16), v16[b * s:(b + 1) * s, :],
                                 preferred_element_type=jnp.float32))
        pooled_rows.append(jnp.mean(ctx[b], axis=0, keepdims=True))   # (1, C)

    # batch-stacked output projection (single weight push), then residual.
    attn_all = jnp.concatenate(attn_rows, axis=0)            # (B*T, D)
    out_all = jnp.dot(attn_all.astype(jnp.bfloat16), wo_ref[...],
                      preferred_element_type=jnp.float32)    # (B*T, D)
    for b in range(nb):
        tokout_ref[b] = out_all[b * t:(b + 1) * t, :] + tokens

    # pred_cam stand-in head (base MANOTransformerDecoderHead output).
    pooled = jnp.concatenate(pooled_rows, axis=0)            # (B, C)
    cam_ref[...] = (jnp.dot(pooled, wcam_ref[...],
                            preferred_element_type=jnp.float32) + bcam_ref[...])


def fused_heads_predictor_kernel(scl_ref, tok_ref, w_ref, b_ref, vert_ref, kp_ref,
                                 feat_ref, rot_ref, op_ref, scale_ref, off_ref,
                                 xyz_ref, wv_ref, wkp_ref):
    """All 5 Gaussian heads + GaussianHaMeRPredictor math, ALL batch elements.

    Vertex-domain data layout: (CHUNKS=2, comps*NVTP) with the chunk-local
    vertex index on LANES and every component in its own aligned 512-lane
    segment (pad lanes are zero-weight / zero-bias, sliced off in the wrapper).

    The 5 heads x B batch elements are ONE bf16 MXU matmul with f32
    accumulation; the per-batch vector epilogue loops over row pairs.
    """
    # ---- all 5 heads, all batches, as one lane-dense MXU matmul --------------
    tok = tok_ref[...]                                       # (B*10, DIM) bf16
    H = jnp.dot(tok, w_ref[...],
                preferred_element_type=jnp.float32) + b_ref[...]   # (B*10, WTOT) f32
    nb = feat_ref.shape[0]

    for b in range(nb):                                      # static, small B
        # per-batch scalars (SMEM): pred_cam_t, pp/focal ratios, quat, view->world.
        tx = scl_ref[b, 0]
        ty = scl_ref[b, 1]
        tz = scl_ref[b, 2]
        rx = scl_ref[b, 3]
        ry = scl_ref[b, 4]
        qw = scl_ref[b, 5]
        qx = scl_ref[b, 6]
        qy = scl_ref[b, 7]
        qz = scl_ref[b, 8]

        def m(k, j, _b=b):                                   # view_to_world[k, j]
            return scl_ref[_b, 9 + 4 * k + j]

        r0 = b * NUM_TOKENS

        def seg(head, s0, ncomp, _r0=r0):
            # rows of the two chunk tokens of this head for this batch element,
            # columns of `ncomp` consecutive 512-lane component segments.
            return H[_r0 + 2 * head:_r0 + 2 * head + 2,
                     s0 * NVTP:(s0 + ncomp) * NVTP]

        feat_ref[b] = seg(0, 0, 3)                           # features_dc (raw)
        op_ref[b] = jax.nn.sigmoid(seg(2, 7, 1))             # opacity_activation
        scale_ref[b] = jnp.exp(seg(3, 8, 3))                 # scaling_activation
        off = seg(4, 11, 3)                                  # (2, 3*NVTP)
        off_ref[b] = off                                     # raw xyz offsets

        # ---- rotation: F.normalize (dim=1 == vertex axis, faithful to the
        # module's torch.nn.functional.normalize default), then
        # quaternion_raw_multiply(Mq, rotations).  Direct aligned slice stores.
        bw = seg(1, 3, 1)
        bx = seg(1, 4, 1)
        by = seg(1, 5, 1)
        bz = seg(1, 6, 1)

        def vnorm(cmp):                                      # pad lanes are 0
            n = jnp.sqrt(jnp.sum(cmp * cmp))
            return cmp * (1.0 / jnp.maximum(n, 1e-12))

        bw = vnorm(bw)
        bx = vnorm(bx)
        by = vnorm(by)
        bz = vnorm(bz)
        rot_ref[b, :, 0 * NVTP:1 * NVTP] = qw * bw - qx * bx - qy * by - qz * bz
        rot_ref[b, :, 1 * NVTP:2 * NVTP] = qw * bx + qx * bw + qy * bz - qz * by
        rot_ref[b, :, 2 * NVTP:3 * NVTP] = qw * by - qx * bz + qy * bw + qz * bx
        rot_ref[b, :, 3 * NVTP:4 * NVTP] = qw * bz + qx * by - qy * bx + qz * bw

        # ---- camera-space -> world-space (pred_cam_t shift, principal-point
        # correction, homogeneous 4x4 transform) as full-vreg row ops ----------
        def to_world(px, py, pz):
            px = px + tx
            py = py + ty
            pz = pz + tz
            px = px - pz * rx
            py = py - pz * ry
            wx = px * m(0, 0) + py * m(1, 0) + pz * m(2, 0) + m(3, 0)
            wy = px * m(0, 1) + py * m(1, 1) + pz * m(2, 1) + m(3, 1)
            wz = px * m(0, 2) + py * m(1, 2) + pz * m(2, 2) + m(3, 2)
            return wx, wy, wz

        v = vert_ref[b]                                      # (2, 3*NVTP)
        wvx, wvy, wvz = to_world(v[:, 0:NVTP], v[:, NVTP:2 * NVTP],
                                 v[:, 2 * NVTP:3 * NVTP])
        wv_ref[b, :, 0:NVTP] = wvx
        wv_ref[b, :, NVTP:2 * NVTP] = wvy
        wv_ref[b, :, 2 * NVTP:3 * NVTP] = wvz
        # gaussians_per_vertex == 1 -> repeat_interleave is identity.
        # TODO(synk): for GPV > 1 the world vertices must be repeated before
        # adding the offsets.
        xyz_ref[b, :, 0:NVTP] = wvx + off[:, 0:NVTP]
        xyz_ref[b, :, NVTP:2 * NVTP] = wvy + off[:, NVTP:2 * NVTP]
        xyz_ref[b, :, 2 * NVTP:3 * NVTP] = wvz + off[:, 2 * NVTP:3 * NVTP]

        kp = kp_ref[b]                                       # (3, NJP)
        wkx, wky, wkz = to_world(kp[0:1], kp[1:2], kp[2:3])
        wkp_ref[b, 0:1, :] = wkx
        wkp_ref[b, 1:2, :] = wky
        wkp_ref[b, 2:3, :] = wkz


# ----------------------------- pallas_call wrappers ---------------------------
def run_decoder(params, ctx):
    b = ctx.shape[0]
    # ctx^T in (C, B*S) layout so K is produced already transposed in-kernel
    # (XLA layout plumbing, done once outside the kernel).
    ctxT = ctx.transpose(2, 0, 1).reshape(CTX_C, b * S)
    z2 = lambda i: (0, 0)
    z3 = lambda i: (0, 0, 0)
    return pl.pallas_call(
        decoder_kernel,
        grid=(1,),
        in_specs=[
            pl.BlockSpec((NUM_TOKENS, DIM), z2),             # shared tokens (f32)
            pl.BlockSpec((b, S, CTX_C), z3),                 # context
            pl.BlockSpec((CTX_C, b * S), z2),                # context^T
            pl.BlockSpec((DIM, DIM), z2),                    # wq  (bf16)
            pl.BlockSpec((DIM, CTX_C), z2),                  # wk^T (bf16)
            pl.BlockSpec((CTX_C, DIM), z2),                  # wv  (bf16)
            pl.BlockSpec((DIM, DIM), z2),                    # wo  (bf16)
            pl.BlockSpec((CTX_C, 3), z2),                    # wcam (f32)
            pl.BlockSpec((1, 3), z2),                        # bcam (f32)
        ],
        out_specs=[
            pl.BlockSpec((b, NUM_TOKENS, DIM), z3),
            pl.BlockSpec((b, 3), z2),
        ],
        out_shape=(
            jax.ShapeDtypeStruct((b, NUM_TOKENS, DIM), jnp.float32),
            jax.ShapeDtypeStruct((b, 3), jnp.float32),
        ),
        compiler_params=pltpu.CompilerParams(
            dimension_semantics=("arbitrary",),
            vmem_limit_bytes=VMEM_LIMIT),
    )(params['tokens'], ctx, ctxT, params['wq_bf16'], params['wkT_bf16'],
      params['wv_bf16'], params['wo_bf16'], params['wcam'], params['bcam'])


def run_fused(params, token_out, verts_ck, kps_t, scalars):
    """Fused Gaussian heads + predictor math: single pallas_call, single grid
    step, batch stacked into the matmul M dimension (weight pushed once)."""
    b = verts_ck.shape[0]
    tok_all = token_out.reshape(b * NUM_TOKENS, DIM).astype(jnp.bfloat16)
    z2 = lambda i: (0, 0)
    z3 = lambda i: (0, 0, 0)
    out_defs = [
        (b, CHUNKS, 3 * NVTP),   # features_dc (raw head output)
        (b, CHUNKS, 4 * NVTP),   # world-space rotations
        (b, CHUNKS, 1 * NVTP),   # opacity (sigmoid applied)
        (b, CHUNKS, 3 * NVTP),   # scaling (exp applied)
        (b, CHUNKS, 3 * NVTP),   # raw xyz offsets
        (b, CHUNKS, 3 * NVTP),   # xyz = world vertices + offsets
        (b, CHUNKS, 3 * NVTP),   # world vertices
        (b, 3, NJP),             # world keypoints
    ]
    # NOTE: with a single grid step the bf16 weight is resident once (no
    # multi-buffering to amortize).  For a batch-tiled production variant
    # (e.g. v7x 2-TC split) mark the weight/bias specs
    # pipeline_mode=pl.Buffered(1) and keep vmem_limit_bytes explicit.
    return pl.pallas_call(
        fused_heads_predictor_kernel,
        grid=(1,),
        in_specs=[
            pl.BlockSpec(memory_space=pltpu.MemorySpace.SMEM),   # per-batch scalars
            pl.BlockSpec((b * NUM_TOKENS, DIM), z2),             # stacked tokens (bf16)
            pl.BlockSpec((DIM, WTOT), z2),                       # fused head weight (bf16)
            pl.BlockSpec((1, WTOT), z2),                         # fused head bias (f32)
            pl.BlockSpec((b, CHUNKS, 3 * NVTP), z3),             # vertices (chunk layout)
            pl.BlockSpec((b, 3, NJP), z3),                       # keypoints (lanes=joints)
        ],
        out_specs=[pl.BlockSpec(s, z3) for s in out_defs],
        out_shape=tuple(jax.ShapeDtypeStruct(s, jnp.float32) for s in out_defs),
        compiler_params=pltpu.CompilerParams(
            dimension_semantics=("arbitrary",),
            vmem_limit_bytes=VMEM_LIMIT),
    )(scalars, tok_all, params['w_heads_fused_bf16'], params['b_heads_fused'],
      verts_ck, kps_t)


# ----------------------------- layout helpers ---------------------------------
def chunk_pack(a, comps):
    """(B, NV, comps) -> (B, CHUNKS, comps*NVTP), lanes = chunk-local vertex."""
    bsz = a.shape[0]
    a = a.reshape(bsz, CHUNKS, NVT, comps).transpose(0, 1, 3, 2)
    a = jnp.pad(a, ((0, 0), (0, 0), (0, 0), (0, NVTP - NVT)))
    return a.reshape(bsz, CHUNKS, comps * NVTP)


def unchunk(a, comps):
    """(B, CHUNKS, comps*NVTP) -> (B, NV, comps) (drops lane padding)."""
    bsz = a.shape[0]
    a = a.reshape(bsz, CHUNKS, comps, NVTP)[:, :, :, :NVT]
    return a.transpose(0, 1, 3, 2).reshape(bsz, NV, comps)


def pack_keypoints(kp):
    """(B, NJ, 3) -> (B, 3, NJP), joints on lanes."""
    kp = kp.transpose(0, 2, 1)
    return jnp.pad(kp, ((0, 0), (0, 0), (0, NJP - NJ)))


# ----------------------------- parameters ------------------------------------
def xavier_uniform(key, shape, gain=1.0):
    fan_in, fan_out = shape[0], shape[1]
    a = gain * math.sqrt(6.0 / (fan_in + fan_out))
    return jax.random.uniform(key, shape, jnp.float32, -a, a)


def _fuse_gaussian_heads(p):
    """Repack the 5 head weights into one component-major, 512-lane-padded
    (DIM, WTOT) matrix + (1, WTOT) bias so the kernel does a single matmul and
    every component is an aligned lane-dense 512-wide segment."""
    heads = [(p['wf'], p['bf'], 3), (p['wr'], p['br'], 4), (p['wop'], p['bop'], 1),
             (p['ws'], p['bs'], 3), (p['woff'], p['boff'], 3)]
    w_cols, b_cols = [], []
    for w, bvec, c in heads:
        wp = w.reshape(DIM, NVT, c).transpose(0, 2, 1)            # (DIM, c, NVT)
        wp = jnp.pad(wp, ((0, 0), (0, 0), (0, NVTP - NVT))).reshape(DIM, c * NVTP)
        bp = bvec.reshape(NVT, c).T                                # (c, NVT)
        bp = jnp.pad(bp, ((0, 0), (0, NVTP - NVT))).reshape(1, c * NVTP)
        w_cols.append(wp)
        b_cols.append(bp)
    return jnp.concatenate(w_cols, axis=1), jnp.concatenate(b_cols, axis=1)


def init_params(key):
    ks = jax.random.split(key, 24)
    scale_bias = math.log(0.01)   # cfg.model.scale_bias -> log(scale_bias)
    p = {
        'tokens': jax.random.uniform(ks[0], (NUM_TOKENS, DIM), jnp.float32),
        # kept for parity with the module; unused in the given forward():
        'vertices_positional_encoding':
            jax.random.uniform(ks[1], (1, 1, 44, 1), jnp.float32),
        # decoder stand-in
        'wq': xavier_uniform(ks[2], (DIM, DIM)),
        'wk': xavier_uniform(ks[3], (CTX_C, DIM)),
        'wv': xavier_uniform(ks[4], (CTX_C, DIM)),
        'wo': xavier_uniform(ks[5], (DIM, DIM)),
        'wcam': xavier_uniform(ks[6], (CTX_C, 3), 0.1),
        'bcam': jnp.ones((1, 3), jnp.float32),
        # gaussian heads (xavier with gain 0.01, per the module init), PyTorch layout
        'wf': xavier_uniform(ks[7], (DIM, NVT * 3), 0.01),
        'bf': jnp.zeros((1, NVT * 3), jnp.float32),
        'wr': xavier_uniform(ks[8], (DIM, NVT * 4), 0.01),
        'br': jnp.zeros((1, NVT * 4), jnp.float32),
        'wop': xavier_uniform(ks[9], (DIM, NVT), 0.01),
        'bop': jnp.zeros((1, NVT), jnp.float32),
        'ws': xavier_uniform(ks[10], (DIM, NVT * 3), 0.01),
        'bs': jnp.full((1, NVT * 3), scale_bias, jnp.float32),
        'woff': xavier_uniform(ks[11], (DIM, NVT * 3), 0.01),
        'boff': jnp.zeros((1, NVT * 3), jnp.float32),
        # backbone / MANO stand-ins
        'w_patch': xavier_uniform(ks[12], (3 * PATCH * PATCH, CTX_C)),
        'template_verts': 0.05 * jax.random.normal(ks[13], (NV, 3), jnp.float32),
        'w_vert': xavier_uniform(ks[14], (CTX_C, NV * 3), 0.1),
        'template_joints': 0.05 * jax.random.normal(ks[15], (NJ, 3), jnp.float32),
        'w_joint': xavier_uniform(ks[16], (CTX_C, NJ * 3), 0.1),
        'w_betas': xavier_uniform(ks[17], (CTX_C, 10), 0.1),
    }
    # one-time repack of the 5 heads for the fused lane-dense kernel; weight is
    # stored bf16 (MXU-native, halves VMEM), bias kept f32 (tiny; feeds exp /
    # sigmoid so full precision is cheap insurance).
    w_fused, b_fused = _fuse_gaussian_heads(p)
    p['w_heads_fused_bf16'] = w_fused.astype(jnp.bfloat16)
    p['b_heads_fused'] = b_fused
    # bf16 decoder projection weights (wk pre-transposed so K is produced
    # already transposed in-kernel).
    p['wq_bf16'] = p['wq'].astype(jnp.bfloat16)
    p['wkT_bf16'] = p['wk'].T.astype(jnp.bfloat16)
    p['wv_bf16'] = p['wv'].astype(jnp.bfloat16)
    p['wo_bf16'] = p['wo'].astype(jnp.bfloat16)
    return p


# ----------------------------- forward ---------------------------------------
def gaussian_hamer_predictor_forward(params, x, source_cameras_view_to_world,
                                     source_cv2wT_quat, focals_pixels,
                                     pps_pixels):
    b = x.shape[0]
    n_views = x.shape[1]
    img = x[:, 0].astype(jnp.float32)                       # squeeze(1), NCHW

    # TODO(synk): real HAMER ViT backbone (resize-to-256 + crop) is external;
    # deterministic 2x2 patch-embed stand-in producing (B, S, C) context.
    patches = img.reshape(b, 3, GRID_HW, PATCH, GRID_HW, PATCH)
    patches = patches.transpose(0, 2, 4, 1, 3, 5).reshape(b, S, 3 * PATCH * PATCH)
    ctx = jnp.tanh(patches @ params['w_patch'])             # (B, S, C)

    # token cross-attention decoder + pred_cam (Pallas kernel 1)
    token_out, pred_cam = run_decoder(params, ctx)          # (B,10,D), (B,3)

    # TODO(synk): MANO parametric model and base MANOTransformerDecoderHead are
    # external; deterministic stand-ins for pred_vertices / keypoints / params.
    pooled = jnp.mean(ctx, axis=1)                          # (B, C)
    pred_vertices = (params['template_verts'][None] +
                     0.01 * jnp.tanh(pooled @ params['w_vert']).reshape(b, NV, 3))
    pred_keypoints_3d = (params['template_joints'][None] +
                         0.01 * jnp.tanh(pooled @ params['w_joint']).reshape(b, NJ, 3))
    pred_mano_params = {
        'global_orient': jnp.broadcast_to(jnp.eye(3, dtype=jnp.float32),
                                          (b, 1, 3, 3)),
        'hand_pose': jnp.broadcast_to(jnp.eye(3, dtype=jnp.float32),
                                      (b, 15, 3, 3)),
        'betas': pooled @ params['w_betas'],
    }

    # pack the per-batch scalars for SMEM: pred_cam_t, pp/focal ratios, quat, M.
    focals = focals_pixels[:, 0, 0].astype(jnp.float32)
    cam = pred_cam                                          # (B, 3)
    pred_cam_t = jnp.stack(
        [cam[:, 1], cam[:, 2],
         2.0 * focals / (TRAIN_RES * cam[:, 0] + 1e-9)], axis=-1)   # (B, 3)
    rx = pps_pixels[:, 0, 0].astype(jnp.float32) / focals
    ry = pps_pixels[:, 0, 1].astype(jnp.float32) / focals
    # TODO(synk): this reshape assumes n_views == 1, matching the upstream
    # x.squeeze(1) usage; for n_views > 1 the quat / batch pairing would differ.
    quat = source_cv2wT_quat.reshape(b * n_views, 4).astype(jnp.float32)
    M = source_cameras_view_to_world[:, 0].astype(jnp.float32).reshape(b, 16)
    scalars = jnp.concatenate([pred_cam_t, rx[:, None], ry[:, None], quat, M],
                              axis=1)                       # (B, NSCAL)

    # lane-dense (chunk, component*NVTP) layouts for the fused kernel
    verts_ck = chunk_pack(pred_vertices, 3)                 # (B, 2, 3*NVTP)
    kps_t = pack_keypoints(pred_keypoints_3d)               # (B, 3, NJP)

    (feat_o, rot_o, op_o, scale_o, off_o, xyz_o, wv_o, wkp_o) = run_fused(
        params, token_out, verts_ck, kps_t, scalars)

    # wrapper-side layout plumbing back to the module's (B, NV, C) outputs
    gaussians_output = {
        'xyz_offsets': unchunk(off_o, 3),
        'xyz': unchunk(xyz_o, 3),
        'rotation': unchunk(rot_o, 4),
        'opacity': unchunk(op_o, 1),
        'scaling': unchunk(scale_o, 3),
        'features_dc': unchunk(feat_o, 3)[:, :, None, :],   # unsqueeze(-2)
    }
    mano_out = {
        'pred_vertices': pred_vertices,
        'pred_cam': pred_cam_t,
        'pred_keypoints_3d': pred_keypoints_3d,
        'pred_mano_params': pred_mano_params,
        'world_vertices': unchunk(wv_o, 3),
        'world_keypoints_3d': wkp_o.transpose(0, 2, 1)[:, :NJ, :],
    }
    return gaussians_output, mano_out


# ----------------------------- main -------------------------------------------
if __name__ == "__main__":
    params = init_params(jax.random.PRNGKey(1))

    key = jax.random.PRNGKey(0)
    k1, k2, k3, k4, k5 = jax.random.split(key, 5)
    B = B_DEFAULT
    x = jax.random.normal(k1, (B, 1, 3, IMG, IMG), jnp.float32)
    focals_pixels = jax.random.uniform(k2, (B, 1, 2), jnp.float32, 200.0, 300.0)
    pps_pixels = 2.0 * jax.random.normal(k3, (B, 1, 2), jnp.float32)
    source_cameras_view_to_world = (
        jnp.broadcast_to(jnp.eye(4, dtype=jnp.float32), (B, 1, 4, 4)) +
        0.01 * jax.random.normal(k4, (B, 1, 4, 4), jnp.float32))
    q = jax.random.normal(k5, (B, 1, 4), jnp.float32)
    source_cv2wT_quat = q / jnp.linalg.norm(q, axis=-1, keepdims=True)

    forward = jax.jit(gaussian_hamer_predictor_forward)
    gaussians_output, mano_out = forward(
        params, x, source_cameras_view_to_world, source_cv2wT_quat,
        focals_pixels, pps_pixels)

    jax.block_until_ready((gaussians_output, mano_out))
    assert gaussians_output['xyz'].shape == (B, NV, 3)
    assert gaussians_output['rotation'].shape == (B, NV, 4)
    assert gaussians_output['opacity'].shape == (B, NV, 1)
    assert gaussians_output['scaling'].shape == (B, NV, 3)
    assert gaussians_output['features_dc'].shape == (B, NV, 1, 3)
    assert gaussians_output['xyz_offsets'].shape == (B, NV, 3)
    assert mano_out['pred_cam'].shape == (B, 3)
    assert mano_out['world_vertices'].shape == (B, NV, 3)
    assert mano_out['world_keypoints_3d'].shape == (B, NJ, 3)
    print("KERNEL_OK")
</pallas_src>

<mosaic_0001>
module attributes {stable_mosaic.version = 11 : i64} {
  func.func @decoder_kernel(%arg0: i32, %arg1: memref<10x32xf32, #tpu.memory_space<vmem>>, %arg2: memref<2x64x32xf32, #tpu.memory_space<vmem>>, %arg3: memref<32x128xf32, #tpu.memory_space<vmem>>, %arg4: memref<32x32xbf16, #tpu.memory_space<vmem>>, %arg5: memref<32x32xbf16, #tpu.memory_space<vmem>>, %arg6: memref<32x32xbf16, #tpu.memory_space<vmem>>, %arg7: memref<32x32xbf16, #tpu.memory_space<vmem>>, %arg8: memref<32x3xf32, #tpu.memory_space<vmem>>, %arg9: memref<1x3xf32, #tpu.memory_space<vmem>>, %arg10: memref<2x10x32xf32, #tpu.memory_space<vmem>>, %arg11: memref<2x3xf32, #tpu.memory_space<vmem>>) attributes {dimension_semantics = [#tpu.dimension_semantics<arbitrary>], iteration_bounds = array<i64: 1>, scalar_prefetch = 0 : i64, scratch_operands = 0 : i64, tpu.core_type = #tpu.core_type<tc>, window_params = [{pipeline_mode = #tpu.pipeline_mode<synchronous>, transform_indices = @transform_0, window_bounds = array<i64: 10, 32>}, {pipeline_mode = #tpu.pipeline_mode<synchronous>, transform_indices = @transform_1, window_bounds = array<i64: 2, 64, 32>}, {pipeline_mode = #tpu.pipeline_mode<synchronous>, transform_indices = @transform_2, window_bounds = array<i64: 32, 128>}, {pipeline_mode = #tpu.pipeline_mode<synchronous>, transform_indices = @transform_3, window_bounds = array<i64: 32, 32>}, {pipeline_mode = #tpu.pipeline_mode<synchronous>, transform_indices = @transform_4, window_bounds = array<i64: 32, 32>}, {pipeline_mode = #tpu.pipeline_mode<synchronous>, transform_indices = @transform_5, window_bounds = array<i64: 32, 32>}, {pipeline_mode = #tpu.pipeline_mode<synchronous>, transform_indices = @transform_6, window_bounds = array<i64: 32, 32>}, {pipeline_mode = #tpu.pipeline_mode<synchronous>, transform_indices = @transform_7, window_bounds = array<i64: 32, 3>}, {pipeline_mode = #tpu.pipeline_mode<synchronous>, transform_indices = @transform_8, window_bounds = array<i64: 1, 3>}, {pipeline_mode = #tpu.pipeline_mode<synchronous>, transform_indices = @transform_9, window_bounds = array<i64: 2, 10, 32>}, {pipeline_mode = #tpu.pipeline_mode<synchronous>, transform_indices = @transform_10, window_bounds = array<i64: 2, 3>}]} {
    %c0 = arith.constant 0 : index
    %c0_0 = arith.constant 0 : index
    %0 = vector.load %arg1[%c0, %c0_0] : memref<10x32xf32, #tpu.memory_space<vmem>>, vector<10x32xf32>
    %c0_1 = arith.constant 0 : index
    %c0_2 = arith.constant 0 : index
    %c0_3 = arith.constant 0 : index
    %1 = vector.load %arg2[%c0_1, %c0_2, %c0_3] : memref<2x64x32xf32, #tpu.memory_space<vmem>>, vector<2x64x32xf32>
    %2 = vector.shape_cast %1 : vector<2x64x32xf32> to vector<128x32xf32>
    %3 = arith.truncf %0 : vector<10x32xf32> to vector<10x32xbf16>
    %c0_4 = arith.constant 0 : index
    %c0_5 = arith.constant 0 : index
    %4 = vector.load %arg4[%c0_4, %c0_5] : memref<32x32xbf16, #tpu.memory_space<vmem>>, vector<32x32xbf16>
    %cst = arith.constant dense<0.000000e+00> : vector<10x32xf32>
    %5 = tpu.matmul %3, %4, %cst {dimension_numbers = #tpu.dot_dimension_numbers<[1], [0], [0], [1], [0, 0, 1, 1], [], []>} : vector<10x32xbf16>, vector<32x32xbf16>, vector<10x32xf32> -> vector<10x32xf32>
    %c0_6 = arith.constant 0 : index
    %c0_7 = arith.constant 0 : index
    %6 = vector.load %arg5[%c0_6, %c0_7] : memref<32x32xbf16, #tpu.memory_space<vmem>>, vector<32x32xbf16>
    %c0_8 = arith.constant 0 : index
    %c0_9 = arith.constant 0 : index
    %7 = vector.load %arg3[%c0_8, %c0_9] : memref<32x128xf32, #tpu.memory_space<vmem>>, vector<32x128xf32>
    %8 = arith.truncf %7 : vector<32x128xf32> to vector<32x128xbf16>
    %cst_10 = arith.constant dense<0.000000e+00> : vector<32x128xf32>
    %9 = tpu.matmul %6, %8, %cst_10 {dimension_numbers = #tpu.dot_dimension_numbers<[1], [0], [0], [1], [0, 0, 1, 1], [], []>} : vector<32x32xbf16>, vector<32x128xbf16>, vector<32x128xf32> -> vector<32x128xf32>
    %10 = arith.truncf %2 : vector<128x32xf32> to vector<128x32xbf16>
    %c0_11 = arith.constant 0 : index
    %c0_12 = arith.constant 0 : index
    %11 = vector.load %arg6[%c0_11, %c0_12] : memref<32x32xbf16, #tpu.memory_space<vmem>>, vector<32x32xbf16>
    %cst_13 = arith.constant dense<0.000000e+00> : vector<128x32xf32>
    %12 = tpu.matmul %10, %11, %cst_13 {dimension_numbers = #tpu.dot_dimension_numbers<[1], [0], [0], [1], [0, 0, 1, 1], [], []>} : vector<128x32xbf16>, vector<32x32xbf16>, vector<128x32xf32> -> vector<128x32xf32>
    %13 = arith.truncf %5 : vector<10x32xf32> to vector<10x32xbf16>
    %14 = arith.truncf %9 : vector<32x128xf32> to vector<32x128xbf16>
    %15 = arith.truncf %12 : vector<128x32xf32> to vector<128x32xbf16>
    %16 = vector.extract_strided_slice %14 {offsets = [0, 0], sizes = [32, 64], strides = [1, 1]} : vector<32x128xbf16> to vector<32x64xbf16>
    %cst_14 = arith.constant dense<0.000000e+00> : vector<10x64xf32>
    %17 = tpu.matmul %13, %16, %cst_14 {dimension_numbers = #tpu.dot_dimension_numbers<[1], [0], [0], [1], [0, 0, 1, 1], [], []>} : vector<10x32xbf16>, vector<32x64xbf16>, vector<10x64xf32> -> vector<10x64xf32>
    %cst_15 = arith.constant 0.176776692 : f32
    %18 = vector.broadcast %cst_15 : f32 to vector<10x64xf32>
    %19 = arith.mulf %17, %18 : vector<10x64xf32>
    %cst_16 = arith.constant dense<0xFF800000> : vector<10xf32>
    %20 = vector.multi_reduction <maximumf>, %19, %cst_16 [1] : vector<10x64xf32> to vector<10xf32>
    %21 = vector.shape_cast %20 : vector<10xf32> to vector<10x1xf32>
    %22 = vector.broadcast %21 : vector<10x1xf32> to vector<10x64xf32>
    %23 = arith.subf %19, %22 : vector<10x64xf32>
    %24 = math.exp %23 : vector<10x64xf32>
    %cst_17 = arith.constant dense<0.000000e+00> : vector<10xf32>
    %25 = vector.multi_reduction <add>, %24, %cst_17 [1] : vector<10x64xf32> to vector<10xf32>
    %26 = vector.shape_cast %25 : vector<10xf32> to vector<10x1xf32>
    %27 = tpu.reciprocal %26 {approx = true} : vector<10x1xf32> -> vector<10x1xf32>
    %28 = vector.broadcast %27 : vector<10x1xf32> to vector<10x64xf32>
    %29 = arith.mulf %24, %28 : vector<10x64xf32>
    %30 = arith.truncf %29 : vector<10x64xf32> to vector<10x64xbf16>
    %31 = vector.extract_strided_slice %15 {offsets = [0, 0], sizes = [64, 32], strides = [1, 1]} : vector<128x32xbf16> to vector<64x32xbf16>
    %cst_18 = arith.constant dense<0.000000e+00> : vector<10x32xf32>
    %32 = tpu.matmul %30, %31, %cst_18 {dimension_numbers = #tpu.dot_dimension_numbers<[1], [0], [0], [1], [0, 0, 1, 1], [], []>} : vector<10x64xbf16>, vector<64x32xbf16>, vector<10x32xf32> -> vector<10x32xf32>
    %33 = vector.extract_strided_slice %1 {offsets = [0, 0, 0], sizes = [1, 64, 32], strides = [1, 1, 1]} : vector<2x64x32xf32> to vector<1x64x32xf32>
    %34 = vector.shape_cast %33 : vector<1x64x32xf32> to vector<64x32xf32>
    %cst_19 = arith.constant dense<0.000000e+00> : vector<32xf32>
    %35 = vector.multi_reduction <add>, %34, %cst_19 [0] : vector<64x32xf32> to vector<32xf32>
    %36 = vector.shape_cast %35 : vector<32xf32> to vector<1x32xf32>
    %cst_20 = arith.constant 6.400000e+01 : f32
    %37 = vector.broadcast %cst_20 : f32 to vector<1x32xf32>
    %38 = arith.divf %36, %37 : vector<1x32xf32>
    %39 = vector.extract_strided_slice %14 {offsets = [0, 64], sizes = [32, 64], strides = [1, 1]} : vector<32x128xbf16> to vector<32x64xbf16>
    %cst_21 = arith.constant dense<0.000000e+00> : vector<10x64xf32>
    %40 = tpu.matmul %13, %39, %cst_21 {dimension_numbers = #tpu.dot_dimension_numbers<[1], [0], [0], [1], [0, 0, 1, 1], [], []>} : vector<10x32xbf16>, vector<32x64xbf16>, vector<10x64xf32> -> vector<10x64xf32>
    %cst_22 = arith.constant 0.176776692 : f32
    %41 = vector.broadcast %cst_22 : f32 to vector<10x64xf32>
    %42 = arith.mulf %40, %41 : vector<10x64xf32>
    %cst_23 = arith.constant dense<0xFF800000> : vector<10xf32>
    %43 = vector.multi_reduction <maximumf>, %42, %cst_23 [1] : vector<10x64xf32> to vector<10xf32>
    %44 = vector.shape_cast %43 : vector<10xf32> to vector<10x1xf32>
    %45 = vector.broadcast %44 : vector<10x1xf32> to vector<10x64xf32>
    %46 = arith.subf %42, %45 : vector<10x64xf32>
    %47 = math.exp %46 : vector<10x64xf32>
    %cst_24 = arith.constant dense<0.000000e+00> : vector<10xf32>
    %48 = vector.multi_reduction <add>, %47, %cst_24 [1] : vector<10x64xf32> to vector<10xf32>
    %49 = vector.shape_cast %48 : vector<10xf32> to vector<10x1xf32>
    %50 = tpu.reciprocal %49 {approx = true} : vector<10x1xf32> -> vector<10x1xf32>
    %51 = vector.broadcast %50 : vector<10x1xf32> to vector<10x64xf32>
    %52 = arith.mulf %47, %51 : vector<10x64xf32>
    %53 = arith.truncf %52 : vector<10x64xf32> to vector<10x64xbf16>
    %54 = vector.extract_strided_slice %15 {offsets = [64, 0], sizes = [64, 32], strides = [1, 1]} : vector<128x32xbf16> to vector<64x32xbf16>
    %cst_25 = arith.constant dense<0.000000e+00> : vector<10x32xf32>
    %55 = tpu.matmul %53, %54, %cst_25 {dimension_numbers = #tpu.dot_dimension_numbers<[1], [0], [0], [1], [0, 0, 1, 1], [], []>} : vector<10x64xbf16>, vector<64x32xbf16>, vector<10x32xf32> -> vector<10x32xf32>
    %56 = vector.extract_strided_slice %1 {offsets = [1, 0, 0], sizes = [1, 64, 32], strides = [1, 1, 1]} : vector<2x64x32xf32> to vector<1x64x32xf32>
    %57 = vector.shape_cast %56 : vector<1x64x32xf32> to vector<64x32xf32>
    %cst_26 = arith.constant dense<0.000000e+00> : vector<32xf32>
    %58 = vector.multi_reduction <add>, %57, %cst_26 [0] : vector<64x32xf32> to vector<32xf32>
    %59 = vector.shape_cast %58 : vector<32xf32> to vector<1x32xf32>
    %cst_27 = arith.constant 6.400000e+01 : f32
    %60 = vector.broadcast %cst_27 : f32 to vector<1x32xf32>
    %61 = arith.divf %59, %60 : vector<1x32xf32>
    %62 = tpu.concatenate %32, %55 in 0 : vector<10x32xf32>, vector<10x32xf32> -> vector<20x32xf32>
    %63 = arith.truncf %62 : vector<20x32xf32> to vector<20x32xbf16>
    %c0_28 = arith.constant 0 : index
    %c0_29 = arith.constant 0 : index
    %64 = vector.load %arg7[%c0_28, %c0_29] : memref<32x32xbf16, #tpu.memory_space<vmem>>, vector<32x32xbf16>
    %cst_30 = arith.constant dense<0.000000e+00> : vector<20x32xf32>
    %65 = tpu.matmul %63, %64, %cst_30 {dimension_numbers = #tpu.dot_dimension_numbers<[1], [0], [0], [1], [0, 0, 1, 1], [], []>} : vector<20x32xbf16>, vector<32x32xbf16>, vector<20x32xf32> -> vector<20x32xf32>
    %66 = vector.extract_strided_slice %65 {offsets = [0, 0], sizes = [10, 32], strides = [1, 1]} : vector<20x32xf32> to vector<10x32xf32>
    %67 = arith.addf %66, %0 : vector<10x32xf32>
    %c0_31 = arith.constant 0 : index
    %c0_32 = arith.constant 0 : index
    %c0_33 = arith.constant 0 : index
    %68 = vector.load %arg10[%c0_31, %c0_32, %c0_33] : memref<2x10x32xf32, #tpu.memory_space<vmem>>, vector<1x10x32xf32>
    %69 = vector.shape_cast %68 : vector<1x10x32xf32> to vector<10x32xf32>
    %70 = vector.shape_cast %67 : vector<10x32xf32> to vector<1x10x32xf32>
    tpu.vector_store %arg10[%c0_31, %c0_32, %c0_33], %70 {strides = array<i32>} : memref<2x10x32xf32, #tpu.memory_space<vmem>>, vector<1x10x32xf32>,
    %71 = vector.extract_strided_slice %65 {offsets = [10, 0], sizes = [10, 32], strides = [1, 1]} : vector<20x32xf32> to vector<10x32xf32>
    %72 = arith.addf %71, %0 : vector<10x32xf32>
    %c1 = arith.constant 1 : index
    %c0_34 = arith.constant 0 : index
    %c0_35 = arith.constant 0 : index
    %73 = vector.load %arg10[%c1, %c0_34, %c0_35] : memref<2x10x32xf32, #tpu.memory_space<vmem>>, vector<1x10x32xf32>
    %74 = vector.shape_cast %73 : vector<1x10x32xf32> to vector<10x32xf32>
    %75 = vector.shape_cast %72 : vector<10x32xf32> to vector<1x10x32xf32>
    tpu.vector_store %arg10[%c1, %c0_34, %c0_35], %75 {strides = array<i32>} : memref<2x10x32xf32, #tpu.memory_space<vmem>>, vector<1x10x32xf32>,
    %76 = tpu.concatenate %38, %61 in 0 : vector<1x32xf32>, vector<1x32xf32> -> vector<2x32xf32>
    %c0_36 = arith.constant 0 : index
    %c0_37 = arith.constant 0 : index
    %77 = vector.load %arg8[%c0_36, %c0_37] : memref<32x3xf32, #tpu.memory_space<vmem>>, vector<32x3xf32>
    %cst_38 = arith.constant dense<0.000000e+00> : vector<2x3xf32>
    %78 = tpu.matmul %76, %77, %cst_38 {dimension_numbers = #tpu.dot_dimension_numbers<[1], [0], [0], [1], [0, 0, 1, 1], [], []>} : vector<2x32xf32>, vector<32x3xf32>, vector<2x3xf32> -> vector<2x3xf32>
    %c0_39 = arith.constant 0 : index
    %c0_40 = arith.constant 0 : index
    %79 = vector.load %arg9[%c0_39, %c0_40] : memref<1x3xf32, #tpu.memory_space<vmem>>, vector<1x3xf32>
    %80 = vector.broadcast %79 : vector<1x3xf32> to vector<2x3xf32>
    %81 = arith.addf %78, %80 : vector<2x3xf32>
    %c0_41 = arith.constant 0 : index
    %c0_42 = arith.constant 0 : index
    %82 = vector.load %arg11[%c0_41, %c0_42] : memref<2x3xf32, #tpu.memory_space<vmem>>, vector<2x3xf32>
    tpu.vector_store %arg11[%c0_41, %c0_42], %81 {strides = array<i32>} : memref<2x3xf32, #tpu.memory_space<vmem>>, vector<2x3xf32>,
    return
  }
  func.func @transform_0(%arg0: i32) -> (i32, i32) {
    %c0_i32 = arith.constant 0 : i32
    %c0_i32_0 = arith.constant 0 : i32
    %c0_i32_1 = arith.constant 0 : i32
    return %c0_i32, %c0_i32_0 : i32, i32
  }
  func.func @transform_1(%arg0: i32) -> (i32, i32, i32) {
    %c0_i32 = arith.constant 0 : i32
    %c0_i32_0 = arith.constant 0 : i32
    %c0_i32_1 = arith.constant 0 : i32
    %c0_i32_2 = arith.constant 0 : i32
    return %c0_i32, %c0_i32_0, %c0_i32_1 : i32, i32, i32
  }
  func.func @transform_2(%arg0: i32) -> (i32, i32) {
    %c0_i32 = arith.constant 0 : i32
    %c0_i32_0 = arith.constant 0 : i32
    %c0_i32_1 = arith.constant 0 : i32
    return %c0_i32, %c0_i32_0 : i32, i32
  }
  func.func @transform_3(%arg0: i32) -> (i32, i32) {
    %c0_i32 = arith.constant 0 : i32
    %c0_i32_0 = arith.constant 0 : i32
    %c0_i32_1 = arith.constant 0 : i32
    return %c0_i32, %c0_i32_0 : i32, i32
  }
  func.func @transform_4(%arg0: i32) -> (i32, i32) {
    %c0_i32 = arith.constant 0 : i32
    %c0_i32_0 = arith.constant 0 : i32
    %c0_i32_1 = arith.constant 0 : i32
    return %c0_i32, %c0_i32_0 : i32, i32
  }
  func.func @transform_5(%arg0: i32) -> (i32, i32) {
    %c0_i32 = arith.constant 0 : i32
    %c0_i32_0 = arith.constant 0 : i32
    %c0_i32_1 = arith.constant 0 : i32
    return %c0_i32, %c0_i32_0 : i32, i32
  }
  func.func @transform_6(%arg0: i32) -> (i32, i32) {
    %c0_i32 = arith.constant 0 : i32
    %c0_i32_0 = arith.constant 0 : i32
    %c0_i32_1 = arith.constant 0 : i32
    return %c0_i32, %c0_i32_0 : i32, i32
  }
  func.func @transform_7(%arg0: i32) -> (i32, i32) {
    %c0_i32 = arith.constant 0 : i32
    %c0_i32_0 = arith.constant 0 : i32
    %c0_i32_1 = arith.constant 0 : i32
    return %c0_i32, %c0_i32_0 : i32, i32
  }
  func.func @transform_8(%arg0: i32) -> (i32, i32) {
    %c0_i32 = arith.constant 0 : i32
    %c0_i32_0 = arith.constant 0 : i32
    %c0_i32_1 = arith.constant 0 : i32
    return %c0_i32, %c0_i32_0 : i32, i32
  }
  func.func @transform_9(%arg0: i32) -> (i32, i32, i32) {
    %c0_i32 = arith.constant 0 : i32
    %c0_i32_0 = arith.constant 0 : i32
    %c0_i32_1 = arith.constant 0 : i32
    %c0_i32_2 = arith.constant 0 : i32
    return %c0_i32, %c0_i32_0, %c0_i32_1 : i32, i32, i32
  }
  func.func @transform_10(%arg0: i32) -> (i32, i32) {
    %c0_i32 = arith.constant 0 : i32
    %c0_i32_0 = arith.constant 0 : i32
    %c0_i32_1 = arith.constant 0 : i32
    return %c0_i32, %c0_i32_0 : i32, i32
  }
}

module attributes {stable_mosaic.version = 11 : i64} {
  func.func @fused_heads_predictor_kernel(%arg0: i32, %arg1: memref<2x25xf32, #tpu.memory_space<smem>>, %arg2: memref<20x32xbf16, #tpu.memory_space<vmem>>, %arg3: memref<32x7168xbf16, #tpu.memory_space<vmem>>, %arg4: memref<1x7168xf32, #tpu.memory_space<vmem>>, %arg5: memref<2x2x1536xf32, #tpu.memory_space<vmem>>, %arg6: memref<2x3x128xf32, #tpu.memory_space<vmem>>, %arg7: memref<2x2x1536xf32, #tpu.memory_space<vmem>>, %arg8: memref<2x2x2048xf32, #tpu.memory_space<vmem>>, %arg9: memref<2x2x512xf32, #tpu.memory_space<vmem>>, %arg10: memref<2x2x1536xf32, #tpu.memory_space<vmem>>, %arg11: memref<2x2x1536xf32, #tpu.memory_space<vmem>>, %arg12: memref<2x2x1536xf32, #tpu.memory_space<vmem>>, %arg13: memref<2x2x1536xf32, #tpu.memory_space<vmem>>, %arg14: memref<2x3x128xf32, #tpu.memory_space<vmem>>) attributes {dimension_semantics = [#tpu.dimension_semantics<arbitrary>], iteration_bounds = array<i64: 1>, scalar_prefetch = 0 : i64, scratch_operands = 0 : i64, tpu.core_type = #tpu.core_type<tc>, window_params = [{transform_indices = @transform_0, window_bounds = array<i64: 2, 25>}, {pipeline_mode = #tpu.pipeline_mode<synchronous>, transform_indices = @transform_1, window_bounds = array<i64: 20, 32>}, {pipeline_mode = #tpu.pipeline_mode<synchronous>, transform_indices = @transform_2, window_bounds = array<i64: 32, 7168>}, {pipeline_mode = #tpu.pipeline_mode<synchronous>, transform_indices = @transform_3, window_bounds = array<i64: 1, 7168>}, {pipeline_mode = #tpu.pipeline_mode<synchronous>, transform_indices = @transform_4, window_bounds = array<i64: 2, 2, 1536>}, {pipeline_mode = #tpu.pipeline_mode<synchronous>, transform_indices = @transform_5, window_bounds = array<i64: 2, 3, 128>}, {pipeline_mode = #tpu.pipeline_mode<synchronous>, transform_indices = @transform_6, window_bounds = array<i64: 2, 2, 1536>}, {pipeline_mode = #tpu.pipeline_mode<synchronous>, transform_indices = @transform_7, window_bounds = array<i64: 2, 2, 2048>}, {pipeline_mode = #tpu.pipeline_mode<synchronous>, transform_indices = @transform_8, window_bounds = array<i64: 2, 2, 512>}, {pipeline_mode = #tpu.pipeline_mode<synchronous>, transform_indices = @transform_9, window_bounds = array<i64: 2, 2, 1536>}, {pipeline_mode = #tpu.pipeline_mode<synchronous>, transform_indices = @transform_10, window_bounds = array<i64: 2, 2, 1536>}, {pipeline_mode = #tpu.pipeline_mode<synchronous>, transform_indices = @transform_11, window_bounds = array<i64: 2, 2, 1536>}, {pipeline_mode = #tpu.pipeline_mode<synchronous>, transform_indices = @transform_12, window_bounds = array<i64: 2, 2, 1536>}, {pipeline_mode = #tpu.pipeline_mode<synchronous>, transform_indices = @transform_13, window_bounds = array<i64: 2, 3, 128>}]} {
    %c0 = arith.constant 0 : index
    %c0_0 = arith.constant 0 : index
    %0 = vector.load %arg2[%c0, %c0_0] : memref<20x32xbf16, #tpu.memory_space<vmem>>, vector<20x32xbf16>
    %c0_1 = arith.constant 0 : index
    %c0_2 = arith.constant 0 : index
    %1 = vector.load %arg3[%c0_1, %c0_2] : memref<32x7168xbf16, #tpu.memory_space<vmem>>, vector<32x7168xbf16>
    %cst = arith.constant dense<0.000000e+00> : vector<20x7168xf32>
    %2 = tpu.matmul %0, %1, %cst {dimension_numbers = #tpu.dot_dimension_numbers<[1], [0], [0], [1], [0, 0, 1, 1], [], []>} : vector<20x32xbf16>, vector<32x7168xbf16>, vector<20x7168xf32> -> vector<20x7168xf32>
    %c0_3 = arith.constant 0 : index
    %c0_4 = arith.constant 0 : index
    %3 = vector.load %arg4[%c0_3, %c0_4] : memref<1x7168xf32, #tpu.memory_space<vmem>>, vector<1x7168xf32>
    %4 = vector.broadcast %3 : vector<1x7168xf32> to vector<20x7168xf32>
    %5 = arith.addf %2, %4 : vector<20x7168xf32>
    %c0_5 = arith.constant 0 : index
    %c0_6 = arith.constant 0 : index
    %6 = memref.load %arg1[%c0_5, %c0_6] : memref<2x25xf32, #tpu.memory_space<smem>>
    %c0_7 = arith.constant 0 : index
    %c1 = arith.constant 1 : index
    %7 = memref.load %arg1[%c0_7, %c1] : memref<2x25xf32, #tpu.memory_space<smem>>
    %c0_8 = arith.constant 0 : index
    %c2 = arith.constant 2 : index
    %8 = memref.load %arg1[%c0_8, %c2] : memref<2x25xf32, #tpu.memory_space<smem>>
    %c0_9 = arith.constant 0 : index
    %c3 = arith.constant 3 : index
    %9 = memref.load %arg1[%c0_9, %c3] : memref<2x25xf32, #tpu.memory_space<smem>>
    %c0_10 = arith.constant 0 : index
    %c4 = arith.constant 4 : index
    %10 = memref.load %arg1[%c0_10, %c4] : memref<2x25xf32, #tpu.memory_space<smem>>
    %c0_11 = arith.constant 0 : index
    %c5 = arith.constant 5 : index
    %11 = memref.load %arg1[%c0_11, %c5] : memref<2x25xf32, #tpu.memory_space<smem>>
    %c0_12 = arith.constant 0 : index
    %c6 = arith.constant 6 : index
    %12 = memref.load %arg1[%c0_12, %c6] : memref<2x25xf32, #tpu.memory_space<smem>>
    %c0_13 = arith.constant 0 : index
    %c7 = arith.constant 7 : index
    %13 = memref.load %arg1[%c0_13, %c7] : memref<2x25xf32, #tpu.memory_space<smem>>
    %c0_14 = arith.constant 0 : index
    %c8 = arith.constant 8 : index
    %14 = memref.load %arg1[%c0_14, %c8] : memref<2x25xf32, #tpu.memory_space<smem>>
    %15 = vector.extract_strided_slice %5 {offsets = [0, 0], sizes = [2, 1536], strides = [1, 1]} : vector<20x7168xf32> to vector<2x1536xf32>
    %c0_15 = arith.constant 0 : index
    %c0_16 = arith.constant 0 : index
    %c0_17 = arith.constant 0 : index
    %16 = vector.load %arg7[%c0_15, %c0_16, %c0_17] : memref<2x2x1536xf32, #tpu.memory_space<vmem>>, vector<1x2x1536xf32>
    %17 = vector.shape_cast %16 : vector<1x2x1536xf32> to vector<2x1536xf32>
    %18 = vector.shape_cast %15 : vector<2x1536xf32> to vector<1x2x1536xf32>
    tpu.vector_store %arg7[%c0_15, %c0_16, %c0_17], %18 {strides = array<i32>} : memref<2x2x1536xf32, #tpu.memory_space<vmem>>, vector<1x2x1536xf32>,
    %19 = vector.extract_strided_slice %5 {offsets = [4, 3584], sizes = [2, 512], strides = [1, 1]} : vector<20x7168xf32> to vector<2x512xf32>
    %20 = arith.negf %19 : vector<2x512xf32>
    %21 = math.exp %20 : vector<2x512xf32>
    %cst_18 = arith.constant 1.000000e+00 : f32
    %22 = vector.broadcast %cst_18 : f32 to vector<2x512xf32>
    %23 = arith.addf %22, %21 : vector<2x512xf32>
    %24 = arith.divf %22, %23 : vector<2x512xf32>
    %c0_19 = arith.constant 0 : index
    %c0_20 = arith.constant 0 : index
    %c0_21 = arith.constant 0 : index
    %25 = vector.load %arg9[%c0_19, %c0_20, %c0_21] : memref<2x2x512xf32, #tpu.memory_space<vmem>>, vector<1x2x512xf32>
    %26 = vector.shape_cast %25 : vector<1x2x512xf32> to vector<2x512xf32>
    %27 = vector.shape_cast %24 : vector<2x512xf32> to vector<1x2x512xf32>
    tpu.vector_store %arg9[%c0_19, %c0_20, %c0_21], %27 {strides = array<i32>} : memref<2x2x512xf32, #tpu.memory_space<vmem>>, vector<1x2x512xf32>,
    %28 = vector.extract_strided_slice %5 {offsets = [6, 4096], sizes = [2, 1536], strides = [1, 1]} : vector<20x7168xf32> to vector<2x1536xf32>
    %29 = math.exp %28 : vector<2x1536xf32>
    %c0_22 = arith.constant 0 : index
    %c0_23 = arith.constant 0 : index
    %c0_24 = arith.constant 0 : index
    %30 = vector.load %arg10[%c0_22, %c0_23, %c0_24] : memref<2x2x1536xf32, #tpu.memory_space<vmem>>, vector<1x2x1536xf32>
    %31 = vector.shape_cast %30 : vector<1x2x1536xf32> to vector<2x1536xf32>
    %32 = vector.shape_cast %29 : vector<2x1536xf32> to vector<1x2x1536xf32>
    tpu.vector_store %arg10[%c0_22, %c0_23, %c0_24], %32 {strides = array<i32>} : memref<2x2x1536xf32, #tpu.memory_space<vmem>>, vector<1x2x1536xf32>,
    %33 = vector.extract_strided_slice %5 {offsets = [8, 5632], sizes = [2, 1536], strides = [1, 1]} : vector<20x7168xf32> to vector<2x1536xf32>
    %c0_25 = arith.constant 0 : index
    %c0_26 = arith.constant 0 : index
    %c0_27 = arith.constant 0 : index
    %34 = vector.load %arg11[%c0_25, %c0_26, %c0_27] : memref<2x2x1536xf32, #tpu.memory_space<vmem>>, vector<1x2x1536xf32>
    %35 = vector.shape_cast %34 : vector<1x2x1536xf32> to vector<2x1536xf32>
    %36 = vector.shape_cast %33 : vector<2x1536xf32> to vector<1x2x1536xf32>
    tpu.vector_store %arg11[%c0_25, %c0_26, %c0_27], %36 {strides = array<i32>} : memref<2x2x1536xf32, #tpu.memory_space<vmem>>, vector<1x2x1536xf32>,
    %37 = vector.extract_strided_slice %5 {offsets = [2, 1536], sizes = [2, 512], strides = [1, 1]} : vector<20x7168xf32> to vector<2x512xf32>
    %38 = vector.extract_strided_slice %5 {offsets = [2, 2048], sizes = [2, 512], strides = [1, 1]} : vector<20x7168xf32> to vector<2x512xf32>
    %39 = vector.extract_strided_slice %5 {offsets = [2, 2560], sizes = [2, 512], strides = [1, 1]} : vector<20x7168xf32> to vector<2x512xf32>
    %40 = vector.extract_strided_slice %5 {offsets = [2, 3072], sizes = [2, 512], strides = [1, 1]} : vector<20x7168xf32> to vector<2x512xf32>
    %41 = arith.mulf %37, %37 : vector<2x512xf32>
    %42 = vector.shape_cast %41 : vector<2x512xf32> to vector<1x2x512xf32>
    %cst_28 = arith.constant dense<0.000000e+00> : vector<1xf32>
    %43 = vector.multi_reduction <add>, %42, %cst_28 [1, 2] : vector<1x2x512xf32> to vector<1xf32>
    %44 = vector.shape_cast %43 : vector<1xf32> to vector<1x1x1xf32>
    %45 = vector.extract %44[0, 0, 0] : f32 from vector<1x1x1xf32>
    %46 = math.sqrt %45 : f32
    %cst_29 = arith.constant 9.99999996E-13 : f32
    %47 = arith.maximumf %46, %cst_29 : f32
    %cst_30 = arith.constant 1.000000e+00 : f32
    %48 = arith.divf %cst_30, %47 : f32
    %49 = vector.broadcast %48 : f32 to vector<2x512xf32>
    %50 = arith.mulf %37, %49 : vector<2x512xf32>
    %51 = arith.mulf %38, %38 : vector<2x512xf32>
    %52 = vector.shape_cast %51 : vector<2x512xf32> to vector<1x2x512xf32>
    %cst_31 = arith.constant dense<0.000000e+00> : vector<1xf32>
    %53 = vector.multi_reduction <add>, %52, %cst_31 [1, 2] : vector<1x2x512xf32> to vector<1xf32>
    %54 = vector.shape_cast %53 : vector<1xf32> to vector<1x1x1xf32>
    %55 = vector.extract %54[0, 0, 0] : f32 from vector<1x1x1xf32>
    %56 = math.sqrt %55 : f32
    %cst_32 = arith.constant 9.99999996E-13 : f32
    %57 = arith.maximumf %56, %cst_32 : f32
    %cst_33 = arith.constant 1.000000e+00 : f32
    %58 = arith.divf %cst_33, %57 : f32
    %59 = vector.broadcast %58 : f32 to vector<2x512xf32>
    %60 = arith.mulf %38, %59 : vector<2x512xf32>
    %61 = arith.mulf %39, %39 : vector<2x512xf32>
    %62 = vector.shape_cast %61 : vector<2x512xf32> to vector<1x2x512xf32>
    %cst_34 = arith.constant dense<0.000000e+00> : vector<1xf32>
    %63 = vector.multi_reduction <add>, %62, %cst_34 [1, 2] : vector<1x2x512xf32> to vector<1xf32>
    %64 = vector.shape_cast %63 : vector<1xf32> to vector<1x1x1xf32>
    %65 = vector.extract %64[0, 0, 0] : f32 from vector<1x1x1xf32>
    %66 = math.sqrt %65 : f32
    %cst_35 = arith.constant 9.99999996E-13 : f32
    %67 = arith.maximumf %66, %cst_35 : f32
    %cst_36 = arith.constant 1.000000e+00 : f32
    %68 = arith.divf %cst_36, %67 : f32
    %69 = vector.broadcast %68 : f32 to vector<2x512xf32>
    %70 = arith.mulf %39, %69 : vector<2x512xf32>
    %71 = arith.mulf %40, %40 : vector<2x512xf32>
    %72 = vector.shape_cast %71 : vector<2x512xf32> to vector<1x2x512xf32>
    %cst_37 = arith.constant dense<0.000000e+00> : vector<1xf32>
    %73 = vector.multi_reduction <add>, %72, %cst_37 [1, 2] : vector<1x2x512xf32> to vector<1xf32>
    %74 = vector.shape_cast %73 : vector<1xf32> to vector<1x1x1xf32>
    %75 = vector.extract %74[0, 0, 0] : f32 from vector<1x1x1xf32>
    %76 = math.sqrt %75 : f32
    %cst_38 = arith.constant 9.99999996E-13 : f32
    %77 = arith.maximumf %76, %cst_38 : f32
    %cst_39 = arith.constant 1.000000e+00 : f32
    %78 = arith.divf %cst_39, %77 : f32
    %79 = vector.broadcast %78 : f32 to vector<2x512xf32>
    %80 = arith.mulf %40, %79 : vector<2x512xf32>
    %81 = vector.broadcast %11 : f32 to vector<2x512xf32>
    %82 = arith.mulf %81, %50 : vector<2x512xf32>
    %83 = vector.broadcast %12 : f32 to vector<2x512xf32>
    %84 = arith.mulf %83, %60 : vector<2x512xf32>
    %85 = arith.subf %82, %84 : vector<2x512xf32>
    %86 = vector.broadcast %13 : f32 to vector<2x512xf32>
    %87 = arith.mulf %86, %70 : vector<2x512xf32>
    %88 = arith.subf %85, %87 : vector<2x512xf32>
    %89 = vector.broadcast %14 : f32 to vector<2x512xf32>
    %90 = arith.mulf %89, %80 : vector<2x512xf32>
    %91 = arith.subf %88, %90 : vector<2x512xf32>
    %c0_40 = arith.constant 0 : index
    %c0_41 = arith.constant 0 : index
    %c0_42 = arith.constant 0 : index
    %92 = vector.load %arg8[%c0_40, %c0_41, %c0_42] : memref<2x2x2048xf32, #tpu.memory_space<vmem>>, vector<1x2x512xf32>
    %93 = vector.shape_cast %92 : vector<1x2x512xf32> to vector<2x512xf32>
    %94 = vector.shape_cast %91 : vector<2x512xf32> to vector<1x2x512xf32>
    tpu.vector_store %arg8[%c0_40, %c0_41, %c0_42], %94 {strides = array<i32>} : memref<2x2x2048xf32, #tpu.memory_space<vmem>>, vector<1x2x512xf32>,
    %95 = vector.broadcast %11 : f32 to vector<2x512xf32>
    %96 = arith.mulf %95, %60 : vector<2x512xf32>
    %97 = vector.broadcast %12 : f32 to vector<2x512xf32>
    %98 = arith.mulf %97, %50 : vector<2x512xf32>
    %99 = arith.addf %96, %98 : vector<2x512xf32>
    %100 = vector.broadcast %13 : f32 to vector<2x512xf32>
    %101 = arith.mulf %100, %80 : vector<2x512xf32>
    %102 = arith.addf %99, %101 : vector<2x512xf32>
    %103 = vector.broadcast %14 : f32 to vector<2x512xf32>
    %104 = arith.mulf %103, %70 : vector<2x512xf32>
    %105 = arith.subf %102, %104 : vector<2x512xf32>
    %c0_43 = arith.constant 0 : index
    %c0_44 = arith.constant 0 : index
    %c512 = arith.constant 512 : index
    %106 = vector.load %arg8[%c0_43, %c0_44, %c512] : memref<2x2x2048xf32, #tpu.memory_space<vmem>>, vector<1x2x512xf32>
    %107 = vector.shape_cast %106 : vector<1x2x512xf32> to vector<2x512xf32>
    %108 = vector.shape_cast %105 : vector<2x512xf32> to vector<1x2x512xf32>
    tpu.vector_store %arg8[%c0_43, %c0_44, %c512], %108 {strides = array<i32>} : memref<2x2x2048xf32, #tpu.memory_space<vmem>>, vector<1x2x512xf32>,
    %109 = vector.broadcast %11 : f32 to vector<2x512xf32>
    %110 = arith.mulf %109, %70 : vector<2x512xf32>
    %111 = vector.broadcast %12 : f32 to vector<2x512xf32>
    %112 = arith.mulf %111, %80 : vector<2x512xf32>
    %113 = arith.subf %110, %112 : vector<2x512xf32>
    %114 = vector.broadcast %13 : f32 to vector<2x512xf32>
    %115 = arith.mulf %114, %50 : vector<2x512xf32>
    %116 = arith.addf %113, %115 : vector<2x512xf32>
    %117 = vector.broadcast %14 : f32 to vector<2x512xf32>
    %118 = arith.mulf %117, %60 : vector<2x512xf32>
    %119 = arith.addf %116, %118 : vector<2x512xf32>
    %c0_45 = arith.constant 0 : index
    %c0_46 = arith.constant 0 : index
    %c1024 = arith.constant 1024 : index
    %120 = vector.load %arg8[%c0_45, %c0_46, %c1024] : memref<2x2x2048xf32, #tpu.memory_space<vmem>>, vector<1x2x512xf32>
    %121 = vector.shape_cast %120 : vector<1x2x512xf32> to vector<2x512xf32>
    %122 = vector.shape_cast %119 : vector<2x512xf32> to vector<1x2x512xf32>
    tpu.vector_store %arg8[%c0_45, %c0_46, %c1024], %122 {strides = array<i32>} : memref<2x2x2048xf32, #tpu.memory_space<vmem>>, vector<1x2x512xf32>,
    %123 = vector.broadcast %11 : f32 to vector<2x512xf32>
    %124 = arith.mulf %123, %80 : vector<2x512xf32>
    %125 = vector.broadcast %12 : f32 to vector<2x512xf32>
    %126 = arith.mulf %125, %70 : vector<2x512xf32>
    %127 = arith.addf %124, %126 : vector<2x512xf32>
    %128 = vector.broadcast %13 : f32 to vector<2x512xf32>
    %129 = arith.mulf %128, %60 : vector<2x512xf32>
    %130 = arith.subf %127, %129 : vector<2x512xf32>
    %131 = vector.broadcast %14 : f32 to vector<2x512xf32>
    %132 = arith.mulf %131, %50 : vector<2x512xf32>
    %133 = arith.addf %130, %132 : vector<2x512xf32>
    %c0_47 = arith.constant 0 : index
    %c0_48 = arith.constant 0 : index
    %c1536 = arith.constant 1536 : index
    %134 = vector.load %arg8[%c0_47, %c0_48, %c1536] : memref<2x2x2048xf32, #tpu.memory_space<vmem>>, vector<1x2x512xf32>
    %135 = vector.shape_cast %134 : vector<1x2x512xf32> to vector<2x512xf32>
    %136 = vector.shape_cast %133 : vector<2x512xf32> to vector<1x2x512xf32>
    tpu.vector_store %arg8[%c0_47, %c0_48, %c1536], %136 {strides = array<i32>} : memref<2x2x2048xf32, #tpu.memory_space<vmem>>, vector<1x2x512xf32>,
    %c0_49 = arith.constant 0 : index
    %c0_50 = arith.constant 0 : index
    %c0_51 = arith.constant 0 : index
    %137 = vector.load %arg5[%c0_49, %c0_50, %c0_51] : memref<2x2x1536xf32, #tpu.memory_space<vmem>>, vector<1x2x1536xf32>
    %138 = vector.shape_cast %137 : vector<1x2x1536xf32> to vector<2x1536xf32>
    %139 = vector.extract_strided_slice %138 {offsets = [0, 0], sizes = [2, 512], strides = [1, 1]} : vector<2x1536xf32> to vector<2x512xf32>
    %140 = vector.extract_strided_slice %138 {offsets = [0, 512], sizes = [2, 512], strides = [1, 1]} : vector<2x1536xf32> to vector<2x512xf32>
    %141 = vector.extract_strided_slice %138 {offsets = [0, 1024], sizes = [2, 512], strides = [1, 1]} : vector<2x1536xf32> to vector<2x512xf32>
    %142 = vector.broadcast %6 : f32 to vector<2x512xf32>
    %143 = arith.addf %139, %142 : vector<2x512xf32>
    %144 = vector.broadcast %7 : f32 to vector<2x512xf32>
    %145 = arith.addf %140, %144 : vector<2x512xf32>
    %146 = vector.broadcast %8 : f32 to vector<2x512xf32>
    %147 = arith.addf %141, %146 : vector<2x512xf32>
    %148 = vector.broadcast %9 : f32 to vector<2x512xf32>
    %149 = arith.mulf %147, %148 : vector<2x512xf32>
    %150 = arith.subf %143, %149 : vector<2x512xf32>
    %151 = vector.broadcast %10 : f32 to vector<2x512xf32>
    %152 = arith.mulf %147, %151 : vector<2x512xf32>
    %153 = arith.subf %145, %152 : vector<2x512xf32>
    %c0_52 = arith.constant 0 : index
    %c9 = arith.constant 9 : index
    %154 = memref.load %arg1[%c0_52, %c9] : memref<2x25xf32, #tpu.memory_space<smem>>
    %155 = vector.broadcast %154 : f32 to vector<2x512xf32>
    %156 = arith.mulf %150, %155 : vector<2x512xf32>
    %c0_53 = arith.constant 0 : index
    %c13 = arith.constant 13 : index
    %157 = memref.load %arg1[%c0_53, %c13] : memref<2x25xf32, #tpu.memory_space<smem>>
    %158 = vector.broadcast %157 : f32 to vector<2x512xf32>
    %159 = arith.mulf %153, %158 : vector<2x512xf32>
    %160 = arith.addf %156, %159 : vector<2x512xf32>
    %c0_54 = arith.constant 0 : index
    %c17 = arith.constant 17 : index
    %161 = memref.load %arg1[%c0_54, %c17] : memref<2x25xf32, #tpu.memory_space<smem>>
    %162 = vector.broadcast %161 : f32 to vector<2x512xf32>
    %163 = arith.mulf %147, %162 : vector<2x512xf32>
    %164 = arith.addf %160, %163 : vector<2x512xf32>
    %c0_55 = arith.constant 0 : index
    %c21 = arith.constant 21 : index
    %165 = memref.load %arg1[%c0_55, %c21] : memref<2x25xf32, #tpu.memory_space<smem>>
    %166 = vector.broadcast %165 : f32 to vector<2x512xf32>
    %167 = arith.addf %164, %166 : vector<2x512xf32>
    %c0_56 = arith.constant 0 : index
    %c10 = arith.constant 10 : index
    %168 = memref.load %arg1[%c0_56, %c10] : memref<2x25xf32, #tpu.memory_space<smem>>
    %169 = vector.broadcast %168 : f32 to vector<2x512xf32>
    %170 = arith.mulf %150, %169 : vector<2x512xf32>
    %c0_57 = arith.constant 0 : index
    %c14 = arith.constant 14 : index
    %171 = memref.load %arg1[%c0_57, %c14] : memref<2x25xf32, #tpu.memory_space<smem>>
    %172 = vector.broadcast %171 : f32 to vector<2x512xf32>
    %173 = arith.mulf %153, %172 : vector<2x512xf32>
    %174 = arith.addf %170, %173 : vector<2x512xf32>
    %c0_58 = arith.constant 0 : index
    %c18 = arith.constant 18 : index
    %175 = memref.load %arg1[%c0_58, %c18] : memref<2x25xf32, #tpu.memory_space<smem>>
    %176 = vector.broadcast %175 : f32 to vector<2x512xf32>
    %177 = arith.mulf %147, %176 : vector<2x512xf32>
    %178 = arith.addf %174, %177 : vector<2x512xf32>
    %c0_59 = arith.constant 0 : index
    %c22 = arith.constant 22 : index
    %179 = memref.load %arg1[%c0_59, %c22] : memref<2x25xf32, #tpu.memory_space<smem>>
    %180 = vector.broadcast %179 : f32 to vector<2x512xf32>
    %181 = arith.addf %178, %180 : vector<2x512xf32>
    %c0_60 = arith.constant 0 : index
    %c11 = arith.constant 11 : index
    %182 = memref.load %arg1[%c0_60, %c11] : memref<2x25xf32, #tpu.memory_space<smem>>
    %183 = vector.broadcast %182 : f32 to vector<2x512xf32>
    %184 = arith.mulf %150, %183 : vector<2x512xf32>
    %c0_61 = arith.constant 0 : index
    %c15 = arith.constant 15 : index
    %185 = memref.load %arg1[%c0_61, %c15] : memref<2x25xf32, #tpu.memory_space<smem>>
    %186 = vector.broadcast %185 : f32 to vector<2x512xf32>
    %187 = arith.mulf %153, %186 : vector<2x512xf32>
    %188 = arith.addf %184, %187 : vector<2x512xf32>
    %c0_62 = arith.constant 0 : index
    %c19 = arith.constant 19 : index
    %189 = memref.load %arg1[%c0_62, %c19] : memref<2x25xf32, #tpu.memory_space<smem>>
    %190 = vector.broadcast %189 : f32 to vector<2x512xf32>
    %191 = arith.mulf %147, %190 : vector<2x512xf32>
    %192 = arith.addf %188, %191 : vector<2x512xf32>
    %c0_63 = arith.constant 0 : index
    %c23 = arith.constant 23 : index
    %193 = memref.load %arg1[%c0_63, %c23] : memref<2x25xf32, #tpu.memory_space<smem>>
    %194 = vector.broadcast %193 : f32 to vector<2x512xf32>
    %195 = arith.addf %192, %194 : vector<2x512xf32>
    %c0_64 = arith.constant 0 : index
    %c0_65 = arith.constant 0 : index
    %c0_66 = arith.constant 0 : index
    %196 = vector.load %arg13[%c0_64, %c0_65, %c0_66] : memref<2x2x1536xf32, #tpu.memory_space<vmem>>, vector<1x2x512xf32>
    %197 = vector.shape_cast %196 : vector<1x2x512xf32> to vector<2x512xf32>
    %198 = vector.shape_cast %167 : vector<2x512xf32> to vector<1x2x512xf32>
    tpu.vector_store %arg13[%c0_64, %c0_65, %c0_66], %198 {strides = array<i32>} : memref<2x2x1536xf32, #tpu.memory_space<vmem>>, vector<1x2x512xf32>,
    %c0_67 = arith.constant 0 : index
    %c0_68 = arith.constant 0 : index
    %c512_69 = arith.constant 512 : index
    %199 = vector.load %arg13[%c0_67, %c0_68, %c512_69] : memref<2x2x1536xf32, #tpu.memory_space<vmem>>, vector<1x2x512xf32>
    %200 = vector.shape_cast %199 : vector<1x2x512xf32> to vector<2x512xf32>
    %201 = vector.shape_cast %181 : vector<2x512xf32> to vector<1x2x512xf32>
    tpu.vector_store %arg13[%c0_67, %c0_68, %c512_69], %201 {strides = array<i32>} : memref<2x2x1536xf32, #tpu.memory_space<vmem>>, vector<1x2x512xf32>,
    %c0_70 = arith.constant 0 : index
    %c0_71 = arith.constant 0 : index
    %c1024_72 = arith.constant 1024 : index
    %202 = vector.load %arg13[%c0_70, %c0_71, %c1024_72] : memref<2x2x1536xf32, #tpu.memory_space<vmem>>, vector<1x2x512xf32>
    %203 = vector.shape_cast %202 : vector<1x2x512xf32> to vector<2x512xf32>
    %204 = vector.shape_cast %195 : vector<2x512xf32> to vector<1x2x512xf32>
    tpu.vector_store %arg13[%c0_70, %c0_71, %c1024_72], %204 {strides = array<i32>} : memref<2x2x1536xf32, #tpu.memory_space<vmem>>, vector<1x2x512xf32>,
    %205 = vector.extract_strided_slice %33 {offsets = [0, 0], sizes = [2, 512], strides = [1, 1]} : vector<2x1536xf32> to vector<2x512xf32>
    %206 = arith.addf %167, %205 : vector<2x512xf32>
    %c0_73 = arith.constant 0 : index
    %c0_74 = arith.constant 0 : index
    %c0_75 = arith.constant 0 : index
    %207 = vector.load %arg12[%c0_73, %c0_74, %c0_75] : memref<2x2x1536xf32, #tpu.memory_space<vmem>>, vector<1x2x512xf32>
    %208 = vector.shape_cast %207 : vector<1x2x512xf32> to vector<2x512xf32>
    %209 = vector.shape_cast %206 : vector<2x512xf32> to vector<1x2x512xf32>
    tpu.vector_store %arg12[%c0_73, %c0_74, %c0_75], %209 {strides = array<i32>} : memref<2x2x1536xf32, #tpu.memory_space<vmem>>, vector<1x2x512xf32>,
    %210 = vector.extract_strided_slice %33 {offsets = [0, 512], sizes = [2, 512], strides = [1, 1]} : vector<2x1536xf32> to vector<2x512xf32>
    %211 = arith.addf %181, %210 : vector<2x512xf32>
    %c0_76 = arith.constant 0 : index
    %c0_77 = arith.constant 0 : index
    %c512_78 = arith.constant 512 : index
    %212 = vector.load %arg12[%c0_76, %c0_77, %c512_78] : memref<2x2x1536xf32, #tpu.memory_space<vmem>>, vector<1x2x512xf32>
    %213 = vector.shape_cast %212 : vector<1x2x512xf32> to vector<2x512xf32>
    %214 = vector.shape_cast %211 : vector<2x512xf32> to vector<1x2x512xf32>
    tpu.vector_store %arg12[%c0_76, %c0_77, %c512_78], %214 {strides = array<i32>} : memref<2x2x1536xf32, #tpu.memory_space<vmem>>, vector<1x2x512xf32>,
    %215 = vector.extract_strided_slice %33 {offsets = [0, 1024], sizes = [2, 512], strides = [1, 1]} : vector<2x1536xf32> to vector<2x512xf32>
    %216 = arith.addf %195, %215 : vector<2x512xf32>
    %c0_79 = arith.constant 0 : index
    %c0_80 = arith.constant 0 : index
    %c1024_81 = arith.constant 1024 : index
    %217 = vector.load %arg12[%c0_79, %c0_80, %c1024_81] : memref<2x2x1536xf32, #tpu.memory_space<vmem>>, vector<1x2x512xf32>
    %218 = vector.shape_cast %217 : vector<1x2x512xf32> to vector<2x512xf32>
    %219 = vector.shape_cast %216 : vector<2x512xf32> to vector<1x2x512xf32>
    tpu.vector_store %arg12[%c0_79, %c0_80, %c1024_81], %219 {strides = array<i32>} : memref<2x2x1536xf32, #tpu.memory_space<vmem>>, vector<1x2x512xf32>,
    %c0_82 = arith.constant 0 : index
    %c0_83 = arith.constant 0 : index
    %c0_84 = arith.constant 0 : index
    %220 = vector.load %arg6[%c0_82, %c0_83, %c0_84] : memref<2x3x128xf32, #tpu.memory_space<vmem>>, vector<1x3x128xf32>
    %221 = vector.shape_cast %220 : vector<1x3x128xf32> to vector<3x128xf32>
    %222 = vector.extract_strided_slice %221 {offsets = [0, 0], sizes = [1, 128], strides = [1, 1]} : vector<3x128xf32> to vector<1x128xf32>
    %223 = vector.extract_strided_slice %221 {offsets = [1, 0], sizes = [1, 128], strides = [1, 1]} : vector<3x128xf32> to vector<1x128xf32>
    %224 = vector.extract_strided_slice %221 {offsets = [2, 0], sizes = [1, 128], strides = [1, 1]} : vector<3x128xf32> to vector<1x128xf32>
    %225 = vector.broadcast %6 : f32 to vector<1x128xf32>
    %226 = arith.addf %222, %225 : vector<1x128xf32>
    %227 = vector.broadcast %7 : f32 to vector<1x128xf32>
    %228 = arith.addf %223, %227 : vector<1x128xf32>
    %229 = vector.broadcast %8 : f32 to vector<1x128xf32>
    %230 = arith.addf %224, %229 : vector<1x128xf32>
    %231 = vector.broadcast %9 : f32 to vector<1x128xf32>
    %232 = arith.mulf %230, %231 : vector<1x128xf32>
    %233 = arith.subf %226, %232 : vector<1x128xf32>
    %234 = vector.broadcast %10 : f32 to vector<1x128xf32>
    %235 = arith.mulf %230, %234 : vector<1x128xf32>
    %236 = arith.subf %228, %235 : vector<1x128xf32>
    %c0_85 = arith.constant 0 : index
    %c9_86 = arith.constant 9 : index
    %237 = memref.load %arg1[%c0_85, %c9_86] : memref<2x25xf32, #tpu.memory_space<smem>>
    %238 = vector.broadcast %237 : f32 to vector<1x128xf32>
    %239 = arith.mulf %233, %238 : vector<1x128xf32>
    %c0_87 = arith.constant 0 : index
    %c13_88 = arith.constant 13 : index
    %240 = memref.load %arg1[%c0_87, %c13_88] : memref<2x25xf32, #tpu.memory_space<smem>>
    %241 = vector.broadcast %240 : f32 to vector<1x128xf32>
    %242 = arith.mulf %236, %241 : vector<1x128xf32>
    %243 = arith.addf %239, %242 : vector<1x128xf32>
    %c0_89 = arith.constant 0 : index
    %c17_90 = arith.constant 17 : index
    %244 = memref.load %arg1[%c0_89, %c17_90] : memref<2x25xf32, #tpu.memory_space<smem>>
    %245 = vector.broadcast %244 : f32 to vector<1x128xf32>
    %246 = arith.mulf %230, %245 : vector<1x128xf32>
    %247 = arith.addf %243, %246 : vector<1x128xf32>
    %c0_91 = arith.constant 0 : index
    %c21_92 = arith.constant 21 : index
    %248 = memref.load %arg1[%c0_91, %c21_92] : memref<2x25xf32, #tpu.memory_space<smem>>
    %249 = vector.broadcast %248 : f32 to vector<1x128xf32>
    %250 = arith.addf %247, %249 : vector<1x128xf32>
    %c0_93 = arith.constant 0 : index
    %c10_94 = arith.constant 10 : index
    %251 = memref.load %arg1[%c0_93, %c10_94] : memref<2x25xf32, #tpu.memory_space<smem>>
    %252 = vector.broadcast %251 : f32 to vector<1x128xf32>
    %253 = arith.mulf %233, %252 : vector<1x128xf32>
    %c0_95 = arith.constant 0 : index
    %c14_96 = arith.constant 14 : index
    %254 = memref.load %arg1[%c0_95, %c14_96] : memref<2x25xf32, #tpu.memory_space<smem>>
    %255 = vector.broadcast %254 : f32 to vector<1x128xf32>
    %256 = arith.mulf %236, %255 : vector<1x128xf32>
    %257 = arith.addf %253, %256 : vector<1x128xf32>
    %c0_97 = arith.constant 0 : index
    %c18_98 = arith.constant 18 : index
    %258 = memref.load %arg1[%c0_97, %c18_98] : memref<2x25xf32, #tpu.memory_space<smem>>
    %259 = vector.broadcast %258 : f32 to vector<1x128xf32>
    %260 = arith.mulf %230, %259 : vector<1x128xf32>
    %261 = arith.addf %257, %260 : vector<1x128xf32>
    %c0_99 = arith.constant 0 : index
    %c22_100 = arith.constant 22 : index
    %262 = memref.load %arg1[%c0_99, %c22_100] : memref<2x25xf32, #tpu.memory_space<smem>>
    %263 = vector.broadcast %262 : f32 to vector<1x128xf32>
    %264 = arith.addf %261, %263 : vector<1x128xf32>
    %c0_101 = arith.constant 0 : index
    %c11_102 = arith.constant 11 : index
    %265 = memref.load %arg1[%c0_101, %c11_102] : memref<2x25xf32, #tpu.memory_space<smem>>
    %266 = vector.broadcast %265 : f32 to vector<1x128xf32>
    %267 = arith.mulf %233, %266 : vector<1x128xf32>
    %c0_103 = arith.constant 0 : index
    %c15_104 = arith.constant 15 : index
    %268 = memref.load %arg1[%c0_103, %c15_104] : memref<2x25xf32, #tpu.memory_space<smem>>
    %269 = vector.broadcast %268 : f32 to vector<1x128xf32>
    %270 = arith.mulf %236, %269 : vector<1x128xf32>
    %271 = arith.addf %267, %270 : vector<1x128xf32>
    %c0_105 = arith.constant 0 : index
    %c19_106 = arith.constant 19 : index
    %272 = memref.load %arg1[%c0_105, %c19_106] : memref<2x25xf32, #tpu.memory_space<smem>>
    %273 = vector.broadcast %272 : f32 to vector<1x128xf32>
    %274 = arith.mulf %230, %273 : vector<1x128xf32>
    %275 = arith.addf %271, %274 : vector<1x128xf32>
    %c0_107 = arith.constant 0 : index
    %c23_108 = arith.constant 23 : index
    %276 = memref.load %arg1[%c0_107, %c23_108] : memref<2x25xf32, #tpu.memory_space<smem>>
    %277 = vector.broadcast %276 : f32 to vector<1x128xf32>
    %278 = arith.addf %275, %277 : vector<1x128xf32>
    %c0_109 = arith.constant 0 : index
    %c0_110 = arith.constant 0 : index
    %c0_111 = arith.constant 0 : index
    %279 = vector.load %arg14[%c0_109, %c0_110, %c0_111] : memref<2x3x128xf32, #tpu.memory_space<vmem>>, vector<1x1x128xf32>
    %280 = vector.shape_cast %279 : vector<1x1x128xf32> to vector<1x128xf32>
    %281 = vector.shape_cast %250 : vector<1x128xf32> to vector<1x1x128xf32>
    tpu.vector_store %arg14[%c0_109, %c0_110, %c0_111], %281 {strides = array<i32>} : memref<2x3x128xf32, #tpu.memory_space<vmem>>, vector<1x1x128xf32>,
    %c0_112 = arith.constant 0 : index
    %c1_113 = arith.constant 1 : index
    %c0_114 = arith.constant 0 : index
    %282 = vector.load %arg14[%c0_112, %c1_113, %c0_114] : memref<2x3x128xf32, #tpu.memory_space<vmem>>, vector<1x1x128xf32>
    %283 = vector.shape_cast %282 : vector<1x1x128xf32> to vector<1x128xf32>
    %284 = vector.shape_cast %264 : vector<1x128xf32> to vector<1x1x128xf32>
    tpu.vector_store %arg14[%c0_112, %c1_113, %c0_114], %284 {strides = array<i32>} : memref<2x3x128xf32, #tpu.memory_space<vmem>>, vector<1x1x128xf32>,
    %c0_115 = arith.constant 0 : index
    %c2_116 = arith.constant 2 : index
    %c0_117 = arith.constant 0 : index
    %285 = vector.load %arg14[%c0_115, %c2_116, %c0_117] : memref<2x3x128xf32, #tpu.memory_space<vmem>>, vector<1x1x128xf32>
    %286 = vector.shape_cast %285 : vector<1x1x128xf32> to vector<1x128xf32>
    %287 = vector.shape_cast %278 : vector<1x128xf32> to vector<1x1x128xf32>
    tpu.vector_store %arg14[%c0_115, %c2_116, %c0_117], %287 {strides = array<i32>} : memref<2x3x128xf32, #tpu.memory_space<vmem>>, vector<1x1x128xf32>,
    %c1_118 = arith.constant 1 : index
    %c0_119 = arith.constant 0 : index
    %288 = memref.load %arg1[%c1_118, %c0_119] : memref<2x25xf32, #tpu.memory_space<smem>>
    %c1_120 = arith.constant 1 : index
    %c1_121 = arith.constant 1 : index
    %289 = memref.load %arg1[%c1_120, %c1_121] : memref<2x25xf32, #tpu.memory_space<smem>>
    %c1_122 = arith.constant 1 : index
    %c2_123 = arith.constant 2 : index
    %290 = memref.load %arg1[%c1_122, %c2_123] : memref<2x25xf32, #tpu.memory_space<smem>>
    %c1_124 = arith.constant 1 : index
    %c3_125 = arith.constant 3 : index
    %291 = memref.load %arg1[%c1_124, %c3_125] : memref<2x25xf32, #tpu.memory_space<smem>>
    %c1_126 = arith.constant 1 : index
    %c4_127 = arith.constant 4 : index
    %292 = memref.load %arg1[%c1_126, %c4_127] : memref<2x25xf32, #tpu.memory_space<smem>>
    %c1_128 = arith.constant 1 : index
    %c5_129 = arith.constant 5 : index
    %293 = memref.load %arg1[%c1_128, %c5_129] : memref<2x25xf32, #tpu.memory_space<smem>>
    %c1_130 = arith.constant 1 : index
    %c6_131 = arith.constant 6 : index
    %294 = memref.load %arg1[%c1_130, %c6_131] : memref<2x25xf32, #tpu.memory_space<smem>>
    %c1_132 = arith.constant 1 : index
    %c7_133 = arith.constant 7 : index
    %295 = memref.load %arg1[%c1_132, %c7_133] : memref<2x25xf32, #tpu.memory_space<smem>>
    %c1_134 = arith.constant 1 : index
    %c8_135 = arith.constant 8 : index
    %296 = memref.load %arg1[%c1_134, %c8_135] : memref<2x25xf32, #tpu.memory_space<smem>>
    %297 = vector.extract_strided_slice %5 {offsets = [10, 0], sizes = [2, 1536], strides = [1, 1]} : vector<20x7168xf32> to vector<2x1536xf32>
    %c1_136 = arith.constant 1 : index
    %c0_137 = arith.constant 0 : index
    %c0_138 = arith.constant 0 : index
    %298 = vector.load %arg7[%c1_136, %c0_137, %c0_138] : memref<2x2x1536xf32, #tpu.memory_space<vmem>>, vector<1x2x1536xf32>
    %299 = vector.shape_cast %298 : vector<1x2x1536xf32> to vector<2x1536xf32>
    %300 = vector.shape_cast %297 : vector<2x1536xf32> to vector<1x2x1536xf32>
    tpu.vector_store %arg7[%c1_136, %c0_137, %c0_138], %300 {strides = array<i32>} : memref<2x2x1536xf32, #tpu.memory_space<vmem>>, vector<1x2x1536xf32>,
    %301 = vector.extract_strided_slice %5 {offsets = [14, 3584], sizes = [2, 512], strides = [1, 1]} : vector<20x7168xf32> to vector<2x512xf32>
    %302 = arith.negf %301 : vector<2x512xf32>
    %303 = math.exp %302 : vector<2x512xf32>
    %cst_139 = arith.constant 1.000000e+00 : f32
    %304 = vector.broadcast %cst_139 : f32 to vector<2x512xf32>
    %305 = arith.addf %304, %303 : vector<2x512xf32>
    %306 = arith.divf %304, %305 : vector<2x512xf32>
    %c1_140 = arith.constant 1 : index
    %c0_141 = arith.constant 0 : index
    %c0_142 = arith.constant 0 : index
    %307 = vector.load %arg9[%c1_140, %c0_141, %c0_142] : memref<2x2x512xf32, #tpu.memory_space<vmem>>, vector<1x2x512xf32>
    %308 = vector.shape_cast %307 : vector<1x2x512xf32> to vector<2x512xf32>
    %309 = vector.shape_cast %306 : vector<2x512xf32> to vector<1x2x512xf32>
    tpu.vector_store %arg9[%c1_140, %c0_141, %c0_142], %309 {strides = array<i32>} : memref<2x2x512xf32, #tpu.memory_space<vmem>>, vector<1x2x512xf32>,
    %310 = vector.extract_strided_slice %5 {offsets = [16, 4096], sizes = [2, 1536], strides = [1, 1]} : vector<20x7168xf32> to vector<2x1536xf32>
    %311 = math.exp %310 : vector<2x1536xf32>
    %c1_143 = arith.constant 1 : index
    %c0_144 = arith.constant 0 : index
    %c0_145 = arith.constant 0 : index
    %312 = vector.load %arg10[%c1_143, %c0_144, %c0_145] : memref<2x2x1536xf32, #tpu.memory_space<vmem>>, vector<1x2x1536xf32>
    %313 = vector.shape_cast %312 : vector<1x2x1536xf32> to vector<2x1536xf32>
    %314 = vector.shape_cast %311 : vector<2x1536xf32> to vector<1x2x1536xf32>
    tpu.vector_store %arg10[%c1_143, %c0_144, %c0_145], %314 {strides = array<i32>} : memref<2x2x1536xf32, #tpu.memory_space<vmem>>, vector<1x2x1536xf32>,
    %315 = vector.extract_strided_slice %5 {offsets = [18, 5632], sizes = [2, 1536], strides = [1, 1]} : vector<20x7168xf32> to vector<2x1536xf32>
    %c1_146 = arith.constant 1 : index
    %c0_147 = arith.constant 0 : index
    %c0_148 = arith.constant 0 : index
    %316 = vector.load %arg11[%c1_146, %c0_147, %c0_148] : memref<2x2x1536xf32, #tpu.memory_space<vmem>>, vector<1x2x1536xf32>
    %317 = vector.shape_cast %316 : vector<1x2x1536xf32> to vector<2x1536xf32>
    %318 = vector.shape_cast %315 : vector<2x1536xf32> to vector<1x2x1536xf32>
    tpu.vector_store %arg11[%c1_146, %c0_147, %c0_148], %318 {strides = array<i32>} : memref<2x2x1536xf32, #tpu.memory_space<vmem>>, vector<1x2x1536xf32>,
    %319 = vector.extract_strided_slice %5 {offsets = [12, 1536], sizes = [2, 512], strides = [1, 1]} : vector<20x7168xf32> to vector<2x512xf32>
    %320 = vector.extract_strided_slice %5 {offsets = [12, 2048], sizes = [2, 512], strides = [1, 1]} : vector<20x7168xf32> to vector<2x512xf32>
    %321 = vector.extract_strided_slice %5 {offsets = [12, 2560], sizes = [2, 512], strides = [1, 1]} : vector<20x7168xf32> to vector<2x512xf32>
    %322 = vector.extract_strided_slice %5 {offsets = [12, 3072], sizes = [2, 512], strides = [1, 1]} : vector<20x7168xf32> to vector<2x512xf32>
    %323 = arith.mulf %319, %319 : vector<2x512xf32>
    %324 = vector.shape_cast %323 : vector<2x512xf32> to vector<1x2x512xf32>
    %cst_149 = arith.constant dense<0.000000e+00> : vector<1xf32>
    %325 = vector.multi_reduction <add>, %324, %cst_149 [1, 2] : vector<1x2x512xf32> to vector<1xf32>
    %326 = vector.shape_cast %325 : vector<1xf32> to vector<1x1x1xf32>
    %327 = vector.extract %326[0, 0, 0] : f32 from vector<1x1x1xf32>
    %328 = math.sqrt %327 : f32
    %cst_150 = arith.constant 9.99999996E-13 : f32
    %329 = arith.maximumf %328, %cst_150 : f32
    %cst_151 = arith.constant 1.000000e+00 : f32
    %330 = arith.divf %cst_151, %329 : f32
    %331 = vector.broadcast %330 : f32 to vector<2x512xf32>
    %332 = arith.mulf %319, %331 : vector<2x512xf32>
    %333 = arith.mulf %320, %320 : vector<2x512xf32>
    %334 = vector.shape_cast %333 : vector<2x512xf32> to vector<1x2x512xf32>
    %cst_152 = arith.constant dense<0.000000e+00> : vector<1xf32>
    %335 = vector.multi_reduction <add>, %334, %cst_152 [1, 2] : vector<1x2x512xf32> to vector<1xf32>
    %336 = vector.shape_cast %335 : vector<1xf32> to vector<1x1x1xf32>
    %337 = vector.extract %336[0, 0, 0] : f32 from vector<1x1x1xf32>
    %338 = math.sqrt %337 : f32
    %cst_153 = arith.constant 9.99999996E-13 : f32
    %339 = arith.maximumf %338, %cst_153 : f32
    %cst_154 = arith.constant 1.000000e+00 : f32
    %340 = arith.divf %cst_154, %339 : f32
    %341 = vector.broadcast %340 : f32 to vector<2x512xf32>
    %342 = arith.mulf %320, %341 : vector<2x512xf32>
    %343 = arith.mulf %321, %321 : vector<2x512xf32>
    %344 = vector.shape_cast %343 : vector<2x512xf32> to vector<1x2x512xf32>
    %cst_155 = arith.constant dense<0.000000e+00> : vector<1xf32>
    %345 = vector.multi_reduction <add>, %344, %cst_155 [1, 2] : vector<1x2x512xf32> to vector<1xf32>
    %346 = vector.shape_cast %345 : vector<1xf32> to vector<1x1x1xf32>
    %347 = vector.extract %346[0, 0, 0] : f32 from vector<1x1x1xf32>
    %348 = math.sqrt %347 : f32
    %cst_156 = arith.constant 9.99999996E-13 : f32
    %349 = arith.maximumf %348, %cst_156 : f32
    %cst_157 = arith.constant 1.000000e+00 : f32
    %350 = arith.divf %cst_157, %349 : f32
    %351 = vector.broadcast %350 : f32 to vector<2x512xf32>
    %352 = arith.mulf %321, %351 : vector<2x512xf32>
    %353 = arith.mulf %322, %322 : vector<2x512xf32>
    %354 = vector.shape_cast %353 : vector<2x512xf32> to vector<1x2x512xf32>
    %cst_158 = arith.constant dense<0.000000e+00> : vector<1xf32>
    %355 = vector.multi_reduction <add>, %354, %cst_158 [1, 2] : vector<1x2x512xf32> to vector<1xf32>
    %356 = vector.shape_cast %355 : vector<1xf32> to vector<1x1x1xf32>
    %357 = vector.extract %356[0, 0, 0] : f32 from vector<1x1x1xf32>
    %358 = math.sqrt %357 : f32
    %cst_159 = arith.constant 9.99999996E-13 : f32
    %359 = arith.maximumf %358, %cst_159 : f32
    %cst_160 = arith.constant 1.000000e+00 : f32
    %360 = arith.divf %cst_160, %359 : f32
    %361 = vector.broadcast %360 : f32 to vector<2x512xf32>
    %362 = arith.mulf %322, %361 : vector<2x512xf32>
    %363 = vector.broadcast %293 : f32 to vector<2x512xf32>
    %364 = arith.mulf %363, %332 : vector<2x512xf32>
    %365 = vector.broadcast %294 : f32 to vector<2x512xf32>
    %366 = arith.mulf %365, %342 : vector<2x512xf32>
    %367 = arith.subf %364, %366 : vector<2x512xf32>
    %368 = vector.broadcast %295 : f32 to vector<2x512xf32>
    %369 = arith.mulf %368, %352 : vector<2x512xf32>
    %370 = arith.subf %367, %369 : vector<2x512xf32>
    %371 = vector.broadcast %296 : f32 to vector<2x512xf32>
    %372 = arith.mulf %371, %362 : vector<2x512xf32>
    %373 = arith.subf %370, %372 : vector<2x512xf32>
    %c1_161 = arith.constant 1 : index
    %c0_162 = arith.constant 0 : index
    %c0_163 = arith.constant 0 : index
    %374 = vector.load %arg8[%c1_161, %c0_162, %c0_163] : memref<2x2x2048xf32, #tpu.memory_space<vmem>>, vector<1x2x512xf32>
    %375 = vector.shape_cast %374 : vector<1x2x512xf32> to vector<2x512xf32>
    %376 = vector.shape_cast %373 : vector<2x512xf32> to vector<1x2x512xf32>
    tpu.vector_store %arg8[%c1_161, %c0_162, %c0_163], %376 {strides = array<i32>} : memref<2x2x2048xf32, #tpu.memory_space<vmem>>, vector<1x2x512xf32>,
    %377 = vector.broadcast %293 : f32 to vector<2x512xf32>
    %378 = arith.mulf %377, %342 : vector<2x512xf32>
    %379 = vector.broadcast %294 : f32 to vector<2x512xf32>
    %380 = arith.mulf %379, %332 : vector<2x512xf32>
    %381 = arith.addf %378, %380 : vector<2x512xf32>
    %382 = vector.broadcast %295 : f32 to vector<2x512xf32>
    %383 = arith.mulf %382, %362 : vector<2x512xf32>
    %384 = arith.addf %381, %383 : vector<2x512xf32>
    %385 = vector.broadcast %296 : f32 to vector<2x512xf32>
    %386 = arith.mulf %385, %352 : vector<2x512xf32>
    %387 = arith.subf %384, %386 : vector<2x512xf32>
    %c1_164 = arith.constant 1 : index
    %c0_165 = arith.constant 0 : index
    %c512_166 = arith.constant 512 : index
    %388 = vector.load %arg8[%c1_164, %c0_165, %c512_166] : memref<2x2x2048xf32, #tpu.memory_space<vmem>>, vector<1x2x512xf32>
    %389 = vector.shape_cast %388 : vector<1x2x512xf32> to vector<2x512xf32>
    %390 = vector.shape_cast %387 : vector<2x512xf32> to vector<1x2x512xf32>
    tpu.vector_store %arg8[%c1_164, %c0_165, %c512_166], %390 {strides = array<i32>} : memref<2x2x2048xf32, #tpu.memory_space<vmem>>, vector<1x2x512xf32>,
    %391 = vector.broadcast %293 : f32 to vector<2x512xf32>
    %392 = arith.mulf %391, %352 : vector<2x512xf32>
    %393 = vector.broadcast %294 : f32 to vector<2x512xf32>
    %394 = arith.mulf %393, %362 : vector<2x512xf32>
    %395 = arith.subf %392, %394 : vector<2x512xf32>
    %396 = vector.broadcast %295 : f32 to vector<2x512xf32>
    %397 = arith.mulf %396, %332 : vector<2x512xf32>
    %398 = arith.addf %395, %397 : vector<2x512xf32>
    %399 = vector.broadcast %296 : f32 to vector<2x512xf32>
    %400 = arith.mulf %399, %342 : vector<2x512xf32>
    %401 = arith.addf %398, %400 : vector<2x512xf32>
    %c1_167 = arith.constant 1 : index
    %c0_168 = arith.constant 0 : index
    %c1024_169 = arith.constant 1024 : index
    %402 = vector.load %arg8[%c1_167, %c0_168, %c1024_169] : memref<2x2x2048xf32, #tpu.memory_space<vmem>>, vector<1x2x512xf32>
    %403 = vector.shape_cast %402 : vector<1x2x512xf32> to vector<2x512xf32>
    %404 = vector.shape_cast %401 : vector<2x512xf32> to vector<1x2x512xf32>
    tpu.vector_store %arg8[%c1_167, %c0_168, %c1024_169], %404 {strides = array<i32>} : memref<2x2x2048xf32, #tpu.memory_space<vmem>>, vector<1x2x512xf32>,
    %405 = vector.broadcast %293 : f32 to vector<2x512xf32>
    %406 = arith.mulf %405, %362 : vector<2x512xf32>
    %407 = vector.broadcast %294 : f32 to vector<2x512xf32>
    %408 = arith.mulf %407, %352 : vector<2x512xf32>
    %409 = arith.addf %406, %408 : vector<2x512xf32>
    %410 = vector.broadcast %295 : f32 to vector<2x512xf32>
    %411 = arith.mulf %410, %342 : vector<2x512xf32>
    %412 = arith.subf %409, %411 : vector<2x512xf32>
    %413 = vector.broadcast %296 : f32 to vector<2x512xf32>
    %414 = arith.mulf %413, %332 : vector<2x512xf32>
    %415 = arith.addf %412, %414 : vector<2x512xf32>
    %c1_170 = arith.constant 1 : index
    %c0_171 = arith.constant 0 : index
    %c1536_172 = arith.constant 1536 : index
    %416 = vector.load %arg8[%c1_170, %c0_171, %c1536_172] : memref<2x2x2048xf32, #tpu.memory_space<vmem>>, vector<1x2x512xf32>
    %417 = vector.shape_cast %416 : vector<1x2x512xf32> to vector<2x512xf32>
    %418 = vector.shape_cast %415 : vector<2x512xf32> to vector<1x2x512xf32>
    tpu.vector_store %arg8[%c1_170, %c0_171, %c1536_172], %418 {strides = array<i32>} : memref<2x2x2048xf32, #tpu.memory_space<vmem>>, vector<1x2x512xf32>,
    %c1_173 = arith.constant 1 : index
    %c0_174 = arith.constant 0 : index
    %c0_175 = arith.constant 0 : index
    %419 = vector.load %arg5[%c1_173, %c0_174, %c0_175] : memref<2x2x1536xf32, #tpu.memory_space<vmem>>, vector<1x2x1536xf32>
    %420 = vector.shape_cast %419 : vector<1x2x1536xf32> to vector<2x1536xf32>
    %421 = vector.extract_strided_slice %420 {offsets = [0, 0], sizes = [2, 512], strides = [1, 1]} : vector<2x1536xf32> to vector<2x512xf32>
    %422 = vector.extract_strided_slice %420 {offsets = [0, 512], sizes = [2, 512], strides = [1, 1]} : vector<2x1536xf32> to vector<2x512xf32>
    %423 = vector.extract_strided_slice %420 {offsets = [0, 1024], sizes = [2, 512], strides = [1, 1]} : vector<2x1536xf32> to vector<2x512xf32>
    %424 = vector.broadcast %288 : f32 to vector<2x512xf32>
    %425 = arith.addf %421, %424 : vector<2x512xf32>
    %426 = vector.broadcast %289 : f32 to vector<2x512xf32>
    %427 = arith.addf %422, %426 : vector<2x512xf32>
    %428 = vector.broadcast %290 : f32 to vector<2x512xf32>
    %429 = arith.addf %423, %428 : vector<2x512xf32>
    %430 = vector.broadcast %291 : f32 to vector<2x512xf32>
    %431 = arith.mulf %429, %430 : vector<2x512xf32>
    %432 = arith.subf %425, %431 : vector<2x512xf32>
    %433 = vector.broadcast %292 : f32 to vector<2x512xf32>
    %434 = arith.mulf %429, %433 : vector<2x512xf32>
    %435 = arith.subf %427, %434 : vector<2x512xf32>
    %c1_176 = arith.constant 1 : index
    %c9_177 = arith.constant 9 : index
    %436 = memref.load %arg1[%c1_176, %c9_177] : memref<2x25xf32, #tpu.memory_space<smem>>
    %437 = vector.broadcast %436 : f32 to vector<2x512xf32>
    %438 = arith.mulf %432, %437 : vector<2x512xf32>
    %c1_178 = arith.constant 1 : index
    %c13_179 = arith.constant 13 : index
    %439 = memref.load %arg1[%c1_178, %c13_179] : memref<2x25xf32, #tpu.memory_space<smem>>
    %440 = vector.broadcast %439 : f32 to vector<2x512xf32>
    %441 = arith.mulf %435, %440 : vector<2x512xf32>
    %442 = arith.addf %438, %441 : vector<2x512xf32>
    %c1_180 = arith.constant 1 : index
    %c17_181 = arith.constant 17 : index
    %443 = memref.load %arg1[%c1_180, %c17_181] : memref<2x25xf32, #tpu.memory_space<smem>>
    %444 = vector.broadcast %443 : f32 to vector<2x512xf32>
    %445 = arith.mulf %429, %444 : vector<2x512xf32>
    %446 = arith.addf %442, %445 : vector<2x512xf32>
    %c1_182 = arith.constant 1 : index
    %c21_183 = arith.constant 21 : index
    %447 = memref.load %arg1[%c1_182, %c21_183] : memref<2x25xf32, #tpu.memory_space<smem>>
    %448 = vector.broadcast %447 : f32 to vector<2x512xf32>
    %449 = arith.addf %446, %448 : vector<2x512xf32>
    %c1_184 = arith.constant 1 : index
    %c10_185 = arith.constant 10 : index
    %450 = memref.load %arg1[%c1_184, %c10_185] : memref<2x25xf32, #tpu.memory_space<smem>>
    %451 = vector.broadcast %450 : f32 to vector<2x512xf32>
    %452 = arith.mulf %432, %451 : vector<2x512xf32>
    %c1_186 = arith.constant 1 : index
    %c14_187 = arith.constant 14 : index
    %453 = memref.load %arg1[%c1_186, %c14_187] : memref<2x25xf32, #tpu.memory_space<smem>>
    %454 = vector.broadcast %453 : f32 to vector<2x512xf32>
    %455 = arith.mulf %435, %454 : vector<2x512xf32>
    %456 = arith.addf %452, %455 : vector<2x512xf32>
    %c1_188 = arith.constant 1 : index
    %c18_189 = arith.constant 18 : index
    %457 = memref.load %arg1[%c1_188, %c18_189] : memref<2x25xf32, #tpu.memory_space<smem>>
    %458 = vector.broadcast %457 : f32 to vector<2x512xf32>
    %459 = arith.mulf %429, %458 : vector<2x512xf32>
    %460 = arith.addf %456, %459 : vector<2x512xf32>
    %c1_190 = arith.constant 1 : index
    %c22_191 = arith.constant 22 : index
    %461 = memref.load %arg1[%c1_190, %c22_191] : memref<2x25xf32, #tpu.memory_space<smem>>
    %462 = vector.broadcast %461 : f32 to vector<2x512xf32>
    %463 = arith.addf %460, %462 : vector<2x512xf32>
    %c1_192 = arith.constant 1 : index
    %c11_193 = arith.constant 11 : index
    %464 = memref.load %arg1[%c1_192, %c11_193] : memref<2x25xf32, #tpu.memory_space<smem>>
    %465 = vector.broadcast %464 : f32 to vector<2x512xf32>
    %466 = arith.mulf %432, %465 : vector<2x512xf32>
    %c1_194 = arith.constant 1 : index
    %c15_195 = arith.constant 15 : index
    %467 = memref.load %arg1[%c1_194, %c15_195] : memref<2x25xf32, #tpu.memory_space<smem>>
    %468 = vector.broadcast %467 : f32 to vector<2x512xf32>
    %469 = arith.mulf %435, %468 : vector<2x512xf32>
    %470 = arith.addf %466, %469 : vector<2x512xf32>
    %c1_196 = arith.constant 1 : index
    %c19_197 = arith.constant 19 : index
    %471 = memref.load %arg1[%c1_196, %c19_197] : memref<2x25xf32, #tpu.memory_space<smem>>
    %472 = vector.broadcast %471 : f32 to vector<2x512xf32>
    %473 = arith.mulf %429, %472 : vector<2x512xf32>
    %474 = arith.addf %470, %473 : vector<2x512xf32>
    %c1_198 = arith.constant 1 : index
    %c23_199 = arith.constant 23 : index
    %475 = memref.load %arg1[%c1_198, %c23_199] : memref<2x25xf32, #tpu.memory_space<smem>>
    %476 = vector.broadcast %475 : f32 to vector<2x512xf32>
    %477 = arith.addf %474, %476 : vector<2x512xf32>
    %c1_200 = arith.constant 1 : index
    %c0_201 = arith.constant 0 : index
    %c0_202 = arith.constant 0 : index
    %478 = vector.load %arg13[%c1_200, %c0_201, %c0_202] : memref<2x2x1536xf32, #tpu.memory_space<vmem>>, vector<1x2x512xf32>
    %479 = vector.shape_cast %478 : vector<1x2x512xf32> to vector<2x512xf32>
    %480 = vector.shape_cast %449 : vector<2x512xf32> to vector<1x2x512xf32>
    tpu.vector_store %arg13[%c1_200, %c0_201, %c0_202], %480 {strides = array<i32>} : memref<2x2x1536xf32, #tpu.memory_space<vmem>>, vector<1x2x512xf32>,
    %c1_203 = arith.constant 1 : index
    %c0_204 = arith.constant 0 : index
    %c512_205 = arith.constant 512 : index
    %481 = vector.load %arg13[%c1_203, %c0_204, %c512_205] : memref<2x2x1536xf32, #tpu.memory_space<vmem>>, vector<1x2x512xf32>
    %482 = vector.shape_cast %481 : vector<1x2x512xf32> to vector<2x512xf32>
    %483 = vector.shape_cast %463 : vector<2x512xf32> to vector<1x2x512xf32>
    tpu.vector_store %arg13[%c1_203, %c0_204, %c512_205], %483 {strides = array<i32>} : memref<2x2x1536xf32, #tpu.memory_space<vmem>>, vector<1x2x512xf32>,
    %c1_206 = arith.constant 1 : index
    %c0_207 = arith.constant 0 : index
    %c1024_208 = arith.constant 1024 : index
    %484 = vector.load %arg13[%c1_206, %c0_207, %c1024_208] : memref<2x2x1536xf32, #tpu.memory_space<vmem>>, vector<1x2x512xf32>
    %485 = vector.shape_cast %484 : vector<1x2x512xf32> to vector<2x512xf32>
    %486 = vector.shape_cast %477 : vector<2x512xf32> to vector<1x2x512xf32>
    tpu.vector_store %arg13[%c1_206, %c0_207, %c1024_208], %486 {strides = array<i32>} : memref<2x2x1536xf32, #tpu.memory_space<vmem>>, vector<1x2x512xf32>,
    %487 = vector.extract_strided_slice %315 {offsets = [0, 0], sizes = [2, 512], strides = [1, 1]} : vector<2x1536xf32> to vector<2x512xf32>
    %488 = arith.addf %449, %487 : vector<2x512xf32>
    %c1_209 = arith.constant 1 : index
    %c0_210 = arith.constant 0 : index
    %c0_211 = arith.constant 0 : index
    %489 = vector.load %arg12[%c1_209, %c0_210, %c0_211] : memref<2x2x1536xf32, #tpu.memory_space<vmem>>, vector<1x2x512xf32>
    %490 = vector.shape_cast %489 : vector<1x2x512xf32> to vector<2x512xf32>
    %491 = vector.shape_cast %488 : vector<2x512xf32> to vector<1x2x512xf32>
    tpu.vector_store %arg12[%c1_209, %c0_210, %c0_211], %491 {strides = array<i32>} : memref<2x2x1536xf32, #tpu.memory_space<vmem>>, vector<1x2x512xf32>,
    %492 = vector.extract_strided_slice %315 {offsets = [0, 512], sizes = [2, 512], strides = [1, 1]} : vector<2x1536xf32> to vector<2x512xf32>
    %493 = arith.addf %463, %492 : vector<2x512xf32>
    %c1_212 = arith.constant 1 : index
    %c0_213 = arith.constant 0 : index
    %c512_214 = arith.constant 512 : index
    %494 = vector.load %arg12[%c1_212, %c0_213, %c512_214] : memref<2x2x1536xf32, #tpu.memory_space<vmem>>, vector<1x2x512xf32>
    %495 = vector.shape_cast %494 : vector<1x2x512xf32> to vector<2x512xf32>
    %496 = vector.shape_cast %493 : vector<2x512xf32> to vector<1x2x512xf32>
    tpu.vector_store %arg12[%c1_212, %c0_213, %c512_214], %496 {strides = array<i32>} : memref<2x2x1536xf32, #tpu.memory_space<vmem>>, vector<1x2x512xf32>,
    %497 = vector.extract_strided_slice %315 {offsets = [0, 1024], sizes = [2, 512], strides = [1, 1]} : vector<2x1536xf32> to vector<2x512xf32>
    %498 = arith.addf %477, %497 : vector<2x512xf32>
    %c1_215 = arith.constant 1 : index
    %c0_216 = arith.constant 0 : index
    %c1024_217 = arith.constant 1024 : index
    %499 = vector.load %arg12[%c1_215, %c0_216, %c1024_217] : memref<2x2x1536xf32, #tpu.memory_space<vmem>>, vector<1x2x512xf32>
    %500 = vector.shape_cast %499 : vector<1x2x512xf32> to vector<2x512xf32>
    %501 = vector.shape_cast %498 : vector<2x512xf32> to vector<1x2x512xf32>
    tpu.vector_store %arg12[%c1_215, %c0_216, %c1024_217], %501 {strides = array<i32>} : memref<2x2x1536xf32, #tpu.memory_space<vmem>>, vector<1x2x512xf32>,
    %c1_218 = arith.constant 1 : index
    %c0_219 = arith.constant 0 : index
    %c0_220 = arith.constant 0 : index
    %502 = vector.load %arg6[%c1_218, %c0_219, %c0_220] : memref<2x3x128xf32, #tpu.memory_space<vmem>>, vector<1x3x128xf32>
    %503 = vector.shape_cast %502 : vector<1x3x128xf32> to vector<3x128xf32>
    %504 = vector.extract_strided_slice %503 {offsets = [0, 0], sizes = [1, 128], strides = [1, 1]} : vector<3x128xf32> to vector<1x128xf32>
    %505 = vector.extract_strided_slice %503 {offsets = [1, 0], sizes = [1, 128], strides = [1, 1]} : vector<3x128xf32> to vector<1x128xf32>
    %506 = vector.extract_strided_slice %503 {offsets = [2, 0], sizes = [1, 128], strides = [1, 1]} : vector<3x128xf32> to vector<1x128xf32>
    %507 = vector.broadcast %288 : f32 to vector<1x128xf32>
    %508 = arith.addf %504, %507 : vector<1x128xf32>
    %509 = vector.broadcast %289 : f32 to vector<1x128xf32>
    %510 = arith.addf %505, %509 : vector<1x128xf32>
    %511 = vector.broadcast %290 : f32 to vector<1x128xf32>
    %512 = arith.addf %506, %511 : vector<1x128xf32>
    %513 = vector.broadcast %291 : f32 to vector<1x128xf32>
    %514 = arith.mulf %512, %513 : vector<1x128xf32>
    %515 = arith.subf %508, %514 : vector<1x128xf32>
    %516 = vector.broadcast %292 : f32 to vector<1x128xf32>
    %517 = arith.mulf %512, %516 : vector<1x128xf32>
    %518 = arith.subf %510, %517 : vector<1x128xf32>
    %c1_221 = arith.constant 1 : index
    %c9_222 = arith.constant 9 : index
    %519 = memref.load %arg1[%c1_221, %c9_222] : memref<2x25xf32, #tpu.memory_space<smem>>
    %520 = vector.broadcast %519 : f32 to vector<1x128xf32>
    %521 = arith.mulf %515, %520 : vector<1x128xf32>
    %c1_223 = arith.constant 1 : index
    %c13_224 = arith.constant 13 : index
    %522 = memref.load %arg1[%c1_223, %c13_224] : memref<2x25xf32, #tpu.memory_space<smem>>
    %523 = vector.broadcast %522 : f32 to vector<1x128xf32>
    %524 = arith.mulf %518, %523 : vector<1x128xf32>
    %525 = arith.addf %521, %524 : vector<1x128xf32>
    %c1_225 = arith.constant 1 : index
    %c17_226 = arith.constant 17 : index
    %526 = memref.load %arg1[%c1_225, %c17_226] : memref<2x25xf32, #tpu.memory_space<smem>>
    %527 = vector.broadcast %526 : f32 to vector<1x128xf32>
    %528 = arith.mulf %512, %527 : vector<1x128xf32>
    %529 = arith.addf %525, %528 : vector<1x128xf32>
    %c1_227 = arith.constant 1 : index
    %c21_228 = arith.constant 21 : index
    %530 = memref.load %arg1[%c1_227, %c21_228] : memref<2x25xf32, #tpu.memory_space<smem>>
    %531 = vector.broadcast %530 : f32 to vector<1x128xf32>
    %532 = arith.addf %529, %531 : vector<1x128xf32>
    %c1_229 = arith.constant 1 : index
    %c10_230 = arith.constant 10 : index
    %533 = memref.load %arg1[%c1_229, %c10_230] : memref<2x25xf32, #tpu.memory_space<smem>>
    %534 = vector.broadcast %533 : f32 to vector<1x128xf32>
    %535 = arith.mulf %515, %534 : vector<1x128xf32>
    %c1_231 = arith.constant 1 : index
    %c14_232 = arith.constant 14 : index
    %536 = memref.load %arg1[%c1_231, %c14_232] : memref<2x25xf32, #tpu.memory_space<smem>>
    %537 = vector.broadcast %536 : f32 to vector<1x128xf32>
    %538 = arith.mulf %518, %537 : vector<1x128xf32>
    %539 = arith.addf %535, %538 : vector<1x128xf32>
    %c1_233 = arith.constant 1 : index
    %c18_234 = arith.constant 18 : index
    %540 = memref.load %arg1[%c1_233, %c18_234] : memref<2x25xf32, #tpu.memory_space<smem>>
    %541 = vector.broadcast %540 : f32 to vector<1x128xf32>
    %542 = arith.mulf %512, %541 : vector<1x128xf32>
    %543 = arith.addf %539, %542 : vector<1x128xf32>
    %c1_235 = arith.constant 1 : index
    %c22_236 = arith.constant 22 : index
    %544 = memref.load %arg1[%c1_235, %c22_236] : memref<2x25xf32, #tpu.memory_space<smem>>
    %545 = vector.broadcast %544 : f32 to vector<1x128xf32>
    %546 = arith.addf %543, %545 : vector<1x128xf32>
    %c1_237 = arith.constant 1 : index
    %c11_238 = arith.constant 11 : index
    %547 = memref.load %arg1[%c1_237, %c11_238] : memref<2x25xf32, #tpu.memory_space<smem>>
    %548 = vector.broadcast %547 : f32 to vector<1x128xf32>
    %549 = arith.mulf %515, %548 : vector<1x128xf32>
    %c1_239 = arith.constant 1 : index
    %c15_240 = arith.constant 15 : index
    %550 = memref.load %arg1[%c1_239, %c15_240] : memref<2x25xf32, #tpu.memory_space<smem>>
    %551 = vector.broadcast %550 : f32 to vector<1x128xf32>
    %552 = arith.mulf %518, %551 : vector<1x128xf32>
    %553 = arith.addf %549, %552 : vector<1x128xf32>
    %c1_241 = arith.constant 1 : index
    %c19_242 = arith.constant 19 : index
    %554 = memref.load %arg1[%c1_241, %c19_242] : memref<2x25xf32, #tpu.memory_space<smem>>
    %555 = vector.broadcast %554 : f32 to vector<1x128xf32>
    %556 = arith.mulf %512, %555 : vector<1x128xf32>
    %557 = arith.addf %553, %556 : vector<1x128xf32>
    %c1_243 = arith.constant 1 : index
    %c23_244 = arith.constant 23 : index
    %558 = memref.load %arg1[%c1_243, %c23_244] : memref<2x25xf32, #tpu.memory_space<smem>>
    %559 = vector.broadcast %558 : f32 to vector<1x128xf32>
    %560 = arith.addf %557, %559 : vector<1x128xf32>
    %c1_245 = arith.constant 1 : index
    %c0_246 = arith.constant 0 : index
    %c0_247 = arith.constant 0 : index
    %561 = vector.load %arg14[%c1_245, %c0_246, %c0_247] : memref<2x3x128xf32, #tpu.memory_space<vmem>>, vector<1x1x128xf32>
    %562 = vector.shape_cast %561 : vector<1x1x128xf32> to vector<1x128xf32>
    %563 = vector.shape_cast %532 : vector<1x128xf32> to vector<1x1x128xf32>
    tpu.vector_store %arg14[%c1_245, %c0_246, %c0_247], %563 {strides = array<i32>} : memref<2x3x128xf32, #tpu.memory_space<vmem>>, vector<1x1x128xf32>,
    %c1_248 = arith.constant 1 : index
    %c1_249 = arith.constant 1 : index
    %c0_250 = arith.constant 0 : index
    %564 = vector.load %arg14[%c1_248, %c1_249, %c0_250] : memref<2x3x128xf32, #tpu.memory_space<vmem>>, vector<1x1x128xf32>
    %565 = vector.shape_cast %564 : vector<1x1x128xf32> to vector<1x128xf32>
    %566 = vector.shape_cast %546 : vector<1x128xf32> to vector<1x1x128xf32>
    tpu.vector_store %arg14[%c1_248, %c1_249, %c0_250], %566 {strides = array<i32>} : memref<2x3x128xf32, #tpu.memory_space<vmem>>, vector<1x1x128xf32>,
    %c1_251 = arith.constant 1 : index
    %c2_252 = arith.constant 2 : index
    %c0_253 = arith.constant 0 : index
    %567 = vector.load %arg14[%c1_251, %c2_252, %c0_253] : memref<2x3x128xf32, #tpu.memory_space<vmem>>, vector<1x1x128xf32>
    %568 = vector.shape_cast %567 : vector<1x1x128xf32> to vector<1x128xf32>
    %569 = vector.shape_cast %560 : vector<1x128xf32> to vector<1x1x128xf32>
    tpu.vector_store %arg14[%c1_251, %c2_252, %c0_253], %569 {strides = array<i32>} : memref<2x3x128xf32, #tpu.memory_space<vmem>>, vector<1x1x128xf32>,
    return
  }
  func.func @transform_0(%arg0: i32) -> (i32, i32) {
    %c0_i32 = arith.constant 0 : i32
    %c0_i32_0 = arith.constant 0 : i32
    %c0_i32_1 = arith.constant 0 : i32
    return %c0_i32, %c0_i32_0 : i32, i32
  }
  func.func @transform_1(%arg0: i32) -> (i32, i32) {
    %c0_i32 = arith.constant 0 : i32
    %c0_i32_0 = arith.constant 0 : i32
    %c0_i32_1 = arith.constant 0 : i32
    return %c0_i32, %c0_i32_0 : i32, i32
  }
  func.func @transform_2(%arg0: i32) -> (i32, i32) {
    %c0_i32 = arith.constant 0 : i32
    %c0_i32_0 = arith.constant 0 : i32
    %c0_i32_1 = arith.constant 0 : i32
    return %c0_i32, %c0_i32_0 : i32, i32
  }
  func.func @transform_3(%arg0: i32) -> (i32, i32) {
    %c0_i32 = arith.constant 0 : i32
    %c0_i32_0 = arith.constant 0 : i32
    %c0_i32_1 = arith.constant 0 : i32
    return %c0_i32, %c0_i32_0 : i32, i32
  }
  func.func @transform_4(%arg0: i32) -> (i32, i32, i32) {
    %c0_i32 = arith.constant 0 : i32
    %c0_i32_0 = arith.constant 0 : i32
    %c0_i32_1 = arith.constant 0 : i32
    %c0_i32_2 = arith.constant 0 : i32
    return %c0_i32, %c0_i32_0, %c0_i32_1 : i32, i32, i32
  }
  func.func @transform_5(%arg0: i32) -> (i32, i32, i32) {
    %c0_i32 = arith.constant 0 : i32
    %c0_i32_0 = arith.constant 0 : i32
    %c0_i32_1 = arith.constant 0 : i32
    %c0_i32_2 = arith.constant 0 : i32
    return %c0_i32, %c0_i32_0, %c0_i32_1 : i32, i32, i32
  }
  func.func @transform_6(%arg0: i32) -> (i32, i32, i32) {
    %c0_i32 = arith.constant 0 : i32
    %c0_i32_0 = arith.constant 0 : i32
    %c0_i32_1 = arith.constant 0 : i32
    %c0_i32_2 = arith.constant 0 : i32
    return %c0_i32, %c0_i32_0, %c0_i32_1 : i32, i32, i32
  }
  func.func @transform_7(%arg0: i32) -> (i32, i32, i32) {
    %c0_i32 = arith.constant 0 : i32
    %c0_i32_0 = arith.constant 0 : i32
    %c0_i32_1 = arith.constant 0 : i32
    %c0_i32_2 = arith.constant 0 : i32
    return %c0_i32, %c0_i32_0, %c0_i32_1 : i32, i32, i32
  }
  func.func @transform_8(%arg0: i32) -> (i32, i32, i32) {
    %c0_i32 = arith.constant 0 : i32
    %c0_i32_0 = arith.constant 0 : i32
    %c0_i32_1 = arith.constant 0 : i32
    %c0_i32_2 = arith.constant 0 : i32
    return %c0_i32, %c0_i32_0, %c0_i32_1 : i32, i32, i32
  }
  func.func @transform_9(%arg0: i32) -> (i32, i32, i32) {
    %c0_i32 = arith.constant 0 : i32
    %c0_i32_0 = arith.constant 0 : i32
    %c0_i32_1 = arith.constant 0 : i32
    %c0_i32_2 = arith.constant 0 : i32
    return %c0_i32, %c0_i32_0, %c0_i32_1 : i32, i32, i32
  }
  func.func @transform_10(%arg0: i32) -> (i32, i32, i32) {
    %c0_i32 = arith.constant 0 : i32
    %c0_i32_0 = arith.constant 0 : i32
    %c0_i32_1 = arith.constant 0 : i32
    %c0_i32_2 = arith.constant 0 : i32
    return %c0_i32, %c0_i32_0, %c0_i32_1 : i32, i32, i32
  }
  func.func @transform_11(%arg0: i32) -> (i32, i32, i32) {
    %c0_i32 = arith.constant 0 : i32
    %c0_i32_0 = arith.constant 0 : i32
    %c0_i32_1 = arith.constant 0 : i32
    %c0_i32_2 = arith.constant 0 : i32
    return %c0_i32, %c0_i32_0, %c0_i32_1 : i32, i32, i32
  }
  func.func @transform_12(%arg0: i32) -> (i32, i32, i32) {
    %c0_i32 = arith.constant 0 : i32
    %c0_i32_0 = arith.constant 0 : i32
    %c0_i32_1 = arith.constant 0 : i32
    %c0_i32_2 = arith.constant 0 : i32
    return %c0_i32, %c0_i32_0, %c0_i32_1 : i32, i32, i32
  }
  func.func @transform_13(%arg0: i32) -> (i32, i32, i32) {
    %c0_i32 = arith.constant 0 : i32
    %c0_i32_0 = arith.constant 0 : i32
    %c0_i32_1 = arith.constant 0 : i32
    %c0_i32_2 = arith.constant 0 : i32
    return %c0_i32, %c0_i32_0, %c0_i32_1 : i32, i32, i32
  }
}

</mosaic_0001>

<llo_original>
// kernel: squeeze.6
$region0: #{squeeze.6}
  %s0 = inlined_call_operand.hbm [shape: f32[2,1,3,16,16], index: 0, kind: input, shape index: {}]
  %s1 = inlined_call_operand.vmem [shape: bf16[2,3,8,2,8,2], index: 1, kind: output, shape index: {}]
  $region1: #{squeeze.6} parent=0
    #allocation0 [shape = 'u8[49152]{0}', space=vmem, size = 0xc000, scoped, tag = 'operand span for operand 0']
    #allocation1 [shape = 's32[1]{0}', space=sflag, size = 0x4, scoped, tag = 'scoped memory for squeeze.6']
    #allocation2 [shape = 'u8[393216]{0}', space=vmem, size = 0x60000, scoped, tag = 'scoped mem for output reshape']
    %2 = vsyncpa [#allocation1], 0
    %s4 = ssub.s32 1536, 1536
    %5 = vsyncadd [#allocation1], %s4
    %s7 = sshll.u32 [#allocation0], 4
    %s8 = int_to_ptr.vmem [resolvable:$true] %s7
    %10 = dma.hbm_to_vmem [thread:$0]  %s0, 1536, %s8, [#allocation1]
    %11 = dma.done [#allocation1], 1536
    %v12 = vld [vmem:[#allocation0] sm:$0xff]
    %vm13 = vcmask 15360
    %14 = vst.msk [vmem:[#allocation2] ss:$8 sm:$0xf] %vm13, %v12
    %15 = vst.msk [vmem:[#allocation2] ss:$8 sm:$0xf0] %vm13, %v12
    %s16 = scalar_lea.vmem [#allocation0], 8
    %v17 = vld [vmem:[%s16] sm:$0xff]
    %vm18 = vcmask 15360
    %s19 = scalar_lea.vmem [#allocation2], 64
    %20 = vst.msk [vmem:[%s19] ss:$8 sm:$0xf] %vm18, %v17
    %s21 = scalar_lea.vmem [#allocation2], 64
    %22 = vst.msk [vmem:[%s21] ss:$8 sm:$0xf0] %vm18, %v17
    %s23 = scalar_lea.vmem [#allocation0], 16
    %v24 = vld [vmem:[%s23] sm:$0xff]
    %vm25 = vcmask 15360
    %s26 = scalar_lea.vmem [#allocation2], 128
    %27 = vst.msk [vmem:[%s26] ss:$8 sm:$0xf] %vm25, %v24
    %s28 = scalar_lea.vmem [#allocation2], 128
    %29 = vst.msk [vmem:[%s28] ss:$8 sm:$0xf0] %vm25, %v24
    %s30 = scalar_lea.vmem [#allocation0], 24
    %v31 = vld [vmem:[%s30] sm:$0xff]
    %vm32 = vcmask 15360
    %s33 = scalar_lea.vmem [#allocation2], 192
    %34 = vst.msk [vmem:[%s33] ss:$8 sm:$0xf] %vm32, %v31
    %s35 = scalar_lea.vmem [#allocation2], 192
    %36 = vst.msk [vmem:[%s35] ss:$8 sm:$0xf0] %vm32, %v31
    %s37 = scalar_lea.vmem [#allocation0], 32
    %v38 = vld [vmem:[%s37] sm:$0xff]
    %vm39 = vcmask 15360
    %s40 = scalar_lea.vmem [#allocation2], 256
    %41 = vst.msk [vmem:[%s40] ss:$8 sm:$0xf] %vm39, %v38
    %s42 = scalar_lea.vmem [#allocation2], 256
    %43 = vst.msk [vmem:[%s42] ss:$8 sm:$0xf0] %vm39, %v38
    %s44 = scalar_lea.vmem [#allocation0], 40
    %v45 = vld [vmem:[%s44] sm:$0xff]
    %vm46 = vcmask 15360
    %s47 = scalar_lea.vmem [#allocation2], 320
    %48 = vst.msk [vmem:[%s47] ss:$8 sm:$0xf] %vm46, %v45
    %s49 = scalar_lea.vmem [#allocation2], 320
    %50 = vst.msk [vmem:[%s49] ss:$8 sm:$0xf0] %vm46, %v45
    %s51 = scalar_lea.vmem [#allocation0], 48
    %v52 = vld [vmem:[%s51] sm:$0xff]
    %vm53 = vcmask 15360
    %s54 = scalar_lea.vmem [#allocation2], 384
    %55 = vst.msk [vmem:[%s54] ss:$8 sm:$0xf] %vm53, %v52
    %s56 = scalar_lea.vmem [#allocation2], 384
    %57 = vst.msk [vmem:[%s56] ss:$8 sm:$0xf0] %vm53, %v52
    %s58 = scalar_lea.vmem [#allocation0], 56
    %v59 = vld [vmem:[%s58] sm:$0xff]
    %vm60 = vcmask 15360
    %s61 = scalar_lea.vmem [#allocation2], 448
    %62 = vst.msk [vmem:[%s61] ss:$8 sm:$0xf] %vm60, %v59
    %s63 = scalar_lea.vmem [#allocation2], 448
    %64 = vst.msk [vmem:[%s63] ss:$8 sm:$0xf0] %vm60, %v59
    %s65 = scalar_lea.vmem [#allocation0], 64
    %v66 = vld [vmem:[%s65] sm:$0xff]
    %vm67 = vcmask 15360
    %s68 = scalar_lea.vmem [#allocation2], 512
    %69 = vst.msk [vmem:[%s68] ss:$8 sm:$0xf] %vm67, %v66
    %s70 = scalar_lea.vmem [#allocation2], 512
    %71 = vst.msk [vmem:[%s70] ss:$8 sm:$0xf0] %vm67, %v66
    %s72 = scalar_lea.vmem [#allocation0], 72
    %v73 = vld [vmem:[%s72] sm:$0xff]
    %vm74 = vcmask 15360
    %s75 = scalar_lea.vmem [#allocation2], 576
    %76 = vst.msk [vmem:[%s75] ss:$8 sm:$0xf] %vm74, %v73
    %s77 = scalar_lea.vmem [#allocation2], 576
    %78 = vst.msk [vmem:[%s77] ss:$8 sm:$0xf0] %vm74, %v73
    %s79 = scalar_lea.vmem [#allocation0], 80
    %v80 = vld [vmem:[%s79] sm:$0xff]
    %vm81 = vcmask 15360
    %s82 = scalar_lea.vmem [#allocation2], 640
    %83 = vst.msk [vmem:[%s82] ss:$8 sm:$0xf] %vm81, %v80
    %s84 = scalar_lea.vmem [#allocation2], 640
    %85 = vst.msk [vmem:[%s84] ss:$8 sm:$0xf0] %vm81, %v80
    %s86 = scalar_lea.vmem [#allocation0], 88
    %v87 = vld [vmem:[%s86] sm:$0xff]
    %vm88 = vcmask 15360
    %s89 = scalar_lea.vmem [#allocation2], 704
    %90 = vst.msk [vmem:[%s89] ss:$8 sm:$0xf] %vm88, %v87
    %s91 = scalar_lea.vmem [#allocation2], 704
    %92 = vst.msk [vmem:[%s91] ss:$8 sm:$0xf0] %vm88, %v87
    %v93 = vld [vmem:[#allocation0] sm:$0xff]
    %94 = vrot.lane.b32.xlu0 %v93, 126
    %v95 = vpop.permute.xlu0 %94
    %vm96 = vcmask 15360
    %s97 = scalar_lea.vmem [#allocation2], 1
    %98 = vst.msk [vmem:[%s97] ss:$8 sm:$0xf] %vm96, %v95
    %s99 = scalar_lea.vmem [#allocation2], 1
    %100 = vst.msk [vmem:[%s99] ss:$8 sm:$0xf0] %vm96, %v95
    %s101 = scalar_lea.vmem [#allocation0], 8
    %v102 = vld [vmem:[%s101] sm:$0xff]
    %103 = vrot.lane.b32.xlu0 %v102, 126
    %v104 = vpop.permute.xlu0 %103
    %vm105 = vcmask 15360
    %s106 = scalar_lea.vmem [#allocation2], 65
    %107 = vst.msk [vmem:[%s106] ss:$8 sm:$0xf] %vm105, %v104
    %s108 = scalar_lea.vmem [#allocation2], 65
    %109 = vst.msk [vmem:[%s108] ss:$8 sm:$0xf0] %vm105, %v104
    %s110 = scalar_lea.vmem [#allocation0], 16
    %v111 = vld [vmem:[%s110] sm:$0xff]
    %112 = vrot.lane.b32.xlu0 %v111, 126
    %v113 = vpop.permute.xlu0 %112
    %vm114 = vcmask 15360
    %s115 = scalar_lea.vmem [#allocation2], 129
    %116 = vst.msk [vmem:[%s115] ss:$8 sm:$0xf] %vm114, %v113
    %s117 = scalar_lea.vmem [#allocation2], 129
    %118 = vst.msk [vmem:[%s117] ss:$8 sm:$0xf0] %vm114, %v113
    %s119 = scalar_lea.vmem [#allocation0], 24
    %v120 = vld [vmem:[%s119] sm:$0xff]
    %121 = vrot.lane.b32.xlu0 %v120, 126
    %v122 = vpop.permute.xlu0 %121
    %vm123 = vcmask 15360
    %s124 = scalar_lea.vmem [#allocation2], 193
    %125 = vst.msk [vmem:[%s124] ss:$8 sm:$0xf] %vm123, %v122
    %s126 = scalar_lea.vmem [#allocation2], 193
    %127 = vst.msk [vmem:[%s126] ss:$8 sm:$0xf0] %vm123, %v122
    %s128 = scalar_lea.vmem [#allocation0], 32
    %v129 = vld [vmem:[%s128] sm:$0xff]
    %130 = vrot.lane.b32.xlu0 %v129, 126
    %v131 = vpop.permute.xlu0 %130
    %vm132 = vcmask 15360
    %s133 = scalar_lea.vmem [#allocation2], 257
    %134 = vst.msk [vmem:[%s133] ss:$8 sm:$0xf] %vm132, %v131
    %s135 = scalar_lea.vmem [#allocation2], 257
    %136 = vst.msk [vmem:[%s135] ss:$8 sm:$0xf0] %vm132, %v131
    %s137 = scalar_lea.vmem [#allocation0], 40
    %v138 = vld [vmem:[%s137] sm:$0xff]
    %139 = vrot.lane.b32.xlu0 %v138, 126
    %v140 = vpop.permute.xlu0 %139
    %vm141 = vcmask 15360
    %s142 = scalar_lea.vmem [#allocation2], 321
    %143 = vst.msk [vmem:[%s142] ss:$8 sm:$0xf] %vm141, %v140
    %s144 = scalar_lea.vmem [#allocation2], 321
    %145 = vst.msk [vmem:[%s144] ss:$8 sm:$0xf0] %vm141, %v140
    %s146 = scalar_lea.vmem [#allocation0], 48
    %v147 = vld [vmem:[%s146] sm:$0xff]
    %148 = vrot.lane.b32.xlu0 %v147, 126
    %v149 = vpop.permute.xlu0 %148
    %vm150 = vcmask 15360
    %s151 = scalar_lea.vmem [#allocation2], 385
    %152 = vst.msk [vmem:[%s151] ss:$8 sm:$0xf] %vm150, %v149
    %s153 = scalar_lea.vmem [#allocation2], 385
    %154 = vst.msk [vmem:[%s153] ss:$8 sm:$0xf0] %vm150, %v149
    %s155 = scalar_lea.vmem [#allocation0], 56
    %v156 = vld [vmem:[%s155] sm:$0xff]
    %157 = vrot.lane.b32.xlu0 %v156, 126
    %v158 = vpop.permute.xlu0 %157
    %vm159 = vcmask 15360
    %s160 = scalar_lea.vmem [#allocation2], 449
    %161 = vst.msk [vmem:[%s160] ss:$8 sm:$0xf] %vm159, %v158
    %s162 = scalar_lea.vmem [#allocation2], 449
    %163 = vst.msk [vmem:[%s162] ss:$8 sm:$0xf0] %vm159, %v158
    %s164 = scalar_lea.vmem [#allocation0], 64
    %v165 = vld [vmem:[%s164] sm:$0xff]
    %166 = vrot.lane.b32.xlu0 %v165, 126
    %v167 = vpop.permute.xlu0 %166
    %vm168 = vcmask 15360
    %s169 = scalar_lea.vmem [#allocation2], 513
    %170 = vst.msk [vmem:[%s169] ss:$8 sm:$0xf] %vm168, %v167
    %s171 = scalar_lea.vmem [#allocation2], 513
    %172 = vst.msk [vmem:[%s171] ss:$8 sm:$0xf0] %vm168, %v167
    %s173 = scalar_lea.vmem [#allocation0], 72
    %v174 = vld [vmem:[%s173] sm:$0xff]
    %175 = vrot.lane.b32.xlu0 %v174, 126
    %v176 = vpop.permute.xlu0 %175
    %vm177 = vcmask 15360
    %s178 = scalar_lea.vmem [#allocation2], 577
    %179 = vst.msk [vmem:[%s178] ss:$8 sm:$0xf] %vm177, %v176
    %s180 = scalar_lea.vmem [#allocation2], 577
    %181 = vst.msk [vmem:[%s180] ss:$8 sm:$0xf0] %vm177, %v176
    %s182 = scalar_lea.vmem [#allocation0], 80
    %v183 = vld [vmem:[%s182] sm:$0xff]
    %184 = vrot.lane.b32.xlu0 %v183, 126
    %v185 = vpop.permute.xlu0 %184
    %vm186 = vcmask 15360
    %s187 = scalar_lea.vmem [#allocation2], 641
    %188 = vst.msk [vmem:[%s187] ss:$8 sm:$0xf] %vm186, %v185
    %s189 = scalar_lea.vmem [#allocation2], 641
    %190 = vst.msk [vmem:[%s189] ss:$8 sm:$0xf0] %vm186, %v185
    %s191 = scalar_lea.vmem [#allocation0], 88
    %v192 = vld [vmem:[%s191] sm:$0xff]
    %193 = vrot.lane.b32.xlu0 %v192, 126
    %v194 = vpop.permute.xlu0 %193
    %vm195 = vcmask 15360
    %s196 = scalar_lea.vmem [#allocation2], 705
    %197 = vst.msk [vmem:[%s196] ss:$8 sm:$0xf] %vm195, %v194
    %s198 = scalar_lea.vmem [#allocation2], 705
    %199 = vst.msk [vmem:[%s198] ss:$8 sm:$0xf0] %vm195, %v194
    %v200 = vld [vmem:[#allocation0] sm:$0xff]
    %201 = vrot.lane.b32.xlu0 %v200, 124
    %v202 = vpop.permute.xlu0 %201
    %vm203 = vcmask 15360
    %s204 = scalar_lea.vmem [#allocation2], 2
    %205 = vst.msk [vmem:[%s204] ss:$8 sm:$0xf] %vm203, %v202
    %s206 = scalar_lea.vmem [#allocation2], 2
    %207 = vst.msk [vmem:[%s206] ss:$8 sm:$0xf0] %vm203, %v202
    %s208 = scalar_lea.vmem [#allocation0], 8
    %v209 = vld [vmem:[%s208] sm:$0xff]
    %210 = vrot.lane.b32.xlu0 %v209, 124
    %v211 = vpop.permute.xlu0 %210
    %vm212 = vcmask 15360
    %s213 = scalar_lea.vmem [#allocation2], 66
    %214 = vst.msk [vmem:[%s213] ss:$8 sm:$0xf] %vm212, %v211
    %s215 = scalar_lea.vmem [#allocation2], 66
    %216 = vst.msk [vmem:[%s215] ss:$8 sm:$0xf0] %vm212, %v211
    %s217 = scalar_lea.vmem [#allocation0], 16
    %v218 = vld [vmem:[%s217] sm:$0xff]
    %219 = vrot.lane.b32.xlu0 %v218, 124
    %v220 = vpop.permute.xlu0 %219
    %vm221 = vcmask 15360
    %s222 = scalar_lea.vmem [#allocation2], 130
    %223 = vst.msk [vmem:[%s222] ss:$8 sm:$0xf] %vm221, %v220
    %s224 = scalar_lea.vmem [#allocation2], 130
    %225 = vst.msk [vmem:[%s224] ss:$8 sm:$0xf0] %vm221, %v220
    %s226 = scalar_lea.vmem [#allocation0], 24
    %v227 = vld [vmem:[%s226] sm:$0xff]
    %228 = vrot.lane.b32.xlu0 %v227, 124
    %v229 = vpop.permute.xlu0 %228
    %vm230 = vcmask 15360
    %s231 = scalar_lea.vmem [#allocation2], 194
    %232 = vst.msk [vmem:[%s231] ss:$8 sm:$0xf] %vm230, %v229
    %s233 = scalar_lea.vmem [#allocation2], 194
    %234 = vst.msk [vmem:[%s233] ss:$8 sm:$0xf0] %vm230, %v229
    %s235 = scalar_lea.vmem [#allocation0], 32
    %v236 = vld [vmem:[%s235] sm:$0xff]
    %237 = vrot.lane.b32.xlu0 %v236, 124
    %v238 = vpop.permute.xlu0 %237
    %vm239 = vcmask 15360
    %s240 = scalar_lea.vmem [#allocation2], 258
    %241 = vst.msk [vmem:[%s240] ss:$8 sm:$0xf] %vm239, %v238
    %s242 = scalar_lea.vmem [#allocation2], 258
    %243 = vst.msk [vmem:[%s242] ss:$8 sm:$0xf0] %vm239, %v238
    %s244 = scalar_lea.vmem [#allocation0], 40
    %v245 = vld [vmem:[%s244] sm:$0xff]
    %246 = vrot.lane.b32.xlu0 %v245, 124
    %v247 = vpop.permute.xlu0 %246
    %vm248 = vcmask 15360
    %s249 = scalar_lea.vmem [#allocation2], 322
    %250 = vst.msk [vmem:[%s249] ss:$8 sm:$0xf] %vm248, %v247
    %s251 = scalar_lea.vmem [#allocation2], 322
    %252 = vst.msk [vmem:[%s251] ss:$8 sm:$0xf0] %vm248, %v247
    %s253 = scalar_lea.vmem [#allocation0], 48
    %v254 = vld [vmem:[%s253] sm:$0xff]
    %255 = vrot.lane.b32.xlu0 %v254, 124
    %v256 = vpop.permute.xlu0 %255
    %vm257 = vcmask 15360
    %s258 = scalar_lea.vmem [#allocation2], 386
    %259 = vst.msk [vmem:[%s258] ss:$8 sm:$0xf] %vm257, %v256
    %s260 = scalar_lea.vmem [#allocation2], 386
    %261 = vst.msk [vmem:[%s260] ss:$8 sm:$0xf0] %vm257, %v256
    %s262 = scalar_lea.vmem [#allocation0], 56
    %v263 = vld [vmem:[%s262] sm:$0xff]
    %264 = vrot.lane.b32.xlu0 %v263, 124
    %v265 = vpop.permute.xlu0 %264
    %vm266 = vcmask 15360
    %s267 = scalar_lea.vmem [#allocation2], 450
    %268 = vst.msk [vmem:[%s267] ss:$8 sm:$0xf] %vm266, %v265
    %s269 = scalar_lea.vmem [#allocation2], 450
    %270 = vst.msk [vmem:[%s269] ss:$8 sm:$0xf0] %vm266, %v265
    %s271 = scalar_lea.vmem [#allocation0], 64
    %v272 = vld [vmem:[%s271] sm:$0xff]
    %273 = vrot.lane.b32.xlu0 %v272, 124
    %v274 = vpop.permute.xlu0 %273
    %vm275 = vcmask 15360
    %s276 = scalar_lea.vmem [#allocation2], 514
    %277 = vst.msk [vmem:[%s276] ss:$8 sm:$0xf] %vm275, %v274
    %s278 = scalar_lea.vmem [#allocation2], 514
    %279 = vst.msk [vmem:[%s278] ss:$8 sm:$0xf0] %vm275, %v274
    %s280 = scalar_lea.vmem [#allocation0], 72
    %v281 = vld [vmem:[%s280] sm:$0xff]
    %282 = vrot.lane.b32.xlu0 %v281, 124
    %v283 = vpop.permute.xlu0 %282
    %vm284 = vcmask 15360
    %s285 = scalar_lea.vmem [#allocation2], 578
    %286 = vst.msk [vmem:[%s285] ss:$8 sm:$0xf] %vm284, %v283
    %s287 = scalar_lea.vmem [#allocation2], 578
    %288 = vst.msk [vmem:[%s287] ss:$8 sm:$0xf0] %vm284, %v283
    %s289 = scalar_lea.vmem [#allocation0], 80
    %v290 = vld [vmem:[%s289] sm:$0xff]
    %291 = vrot.lane.b32.xlu0 %v290, 124
    %v292 = vpop.permute.xlu0 %291
    %vm293 = vcmask 15360
    %s294 = scalar_lea.vmem [#allocation2], 642
    %295 = vst.msk [vmem:[%s294] ss:$8 sm:$0xf] %vm293, %v292
    %s296 = scalar_lea.vmem [#allocation2], 642
    %297 = vst.msk [vmem:[%s296] ss:$8 sm:$0xf0] %vm293, %v292
    %s298 = scalar_lea.vmem [#allocation0], 88
    %v299 = vld [vmem:[%s298] sm:$0xff]
    %300 = vrot.lane.b32.xlu0 %v299, 124
    %v301 = vpop.permute.xlu0 %300
    %vm302 = vcmask 15360
    %s303 = scalar_lea.vmem [#allocation2], 706
    %304 = vst.msk [vmem:[%s303] ss:$8 sm:$0xf] %vm302, %v301
    %s305 = scalar_lea.vmem [#allocation2], 706
    %306 = vst.msk [vmem:[%s305] ss:$8 sm:$0xf0] %vm302, %v301
    %v307 = vld [vmem:[#allocation0] sm:$0xff]
    %308 = vrot.lane.b32.xlu0 %v307, 122
    %v309 = vpop.permute.xlu0 %308
    %vm310 = vcmask 15360
    %s311 = scalar_lea.vmem [#allocation2], 3
    %312 = vst.msk [vmem:[%s311] ss:$8 sm:$0xf] %vm310, %v309
    %s313 = scalar_lea.vmem [#allocation2], 3
    %314 = vst.msk [vmem:[%s313] ss:$8 sm:$0xf0] %vm310, %v309
    %s315 = scalar_lea.vmem [#allocation0], 8
    %v316 = vld [vmem:[%s315] sm:$0xff]
    %317 = vrot.lane.b32.xlu0 %v316, 122
    %v318 = vpop.permute.xlu0 %317
    %vm319 = vcmask 15360
    %s320 = scalar_lea.vmem [#allocation2], 67
    %321 = vst.msk [vmem:[%s320] ss:$8 sm:$0xf] %vm319, %v318
    %s322 = scalar_lea.vmem [#allocation2], 67
    %323 = vst.msk [vmem:[%s322] ss:$8 sm:$0xf0] %vm319, %v318
    %s324 = scalar_lea.vmem [#allocation0], 16
    %v325 = vld [vmem:[%s324] sm:$0xff]
    %326 = vrot.lane.b32.xlu0 %v325, 122
    %v327 = vpop.permute.xlu0 %326
    %vm328 = vcmask 15360
    %s329 = scalar_lea.vmem [#allocation2], 131
    %330 = vst.msk [vmem:[%s329] ss:$8 sm:$0xf] %vm328, %v327
    %s331 = scalar_lea.vmem [#allocation2], 131
    %332 = vst.msk [vmem:[%s331] ss:$8 sm:$0xf0] %vm328, %v327
    %s333 = scalar_lea.vmem [#allocation0], 24
    %v334 = vld [vmem:[%s333] sm:$0xff]
    %335 = vrot.lane.b32.xlu0 %v334, 122
    %v336 = vpop.permute.xlu0 %335
    %vm337 = vcmask 15360
    %s338 = scalar_lea.vmem [#allocation2], 195
    %339 = vst.msk [vmem:[%s338] ss:$8 sm:$0xf] %vm337, %v336
    %s340 = scalar_lea.vmem [#allocation2], 195
    %341 = vst.msk [vmem:[%s340] ss:$8 sm:$0xf0] %vm337, %v336
    %s342 = scalar_lea.vmem [#allocation0], 32
    %v343 = vld [vmem:[%s342] sm:$0xff]
    %344 = vrot.lane.b32.xlu0 %v343, 122
    %v345 = vpop.permute.xlu0 %344
    %vm346 = vcmask 15360
    %s347 = scalar_lea.vmem [#allocation2], 259
    %348 = vst.msk [vmem:[%s347] ss:$8 sm:$0xf] %vm346, %v345
    %s349 = scalar_lea.vmem [#allocation2], 259
    %350 = vst.msk [vmem:[%s349] ss:$8 sm:$0xf0] %vm346, %v345
    %s351 = scalar_lea.vmem [#allocation0], 40
    %v352 = vld [vmem:[%s351] sm:$0xff]
    %353 = vrot.lane.b32.xlu0 %v352, 122
    %v354 = vpop.permute.xlu0 %353
    %vm355 = vcmask 15360
    %s356 = scalar_lea.vmem [#allocation2], 323
    %357 = vst.msk [vmem:[%s356] ss:$8 sm:$0xf] %vm355, %v354
    %s358 = scalar_lea.vmem [#allocation2], 323
    %359 = vst.msk [vmem:[%s358] ss:$8 sm:$0xf0] %vm355, %v354
    %s360 = scalar_lea.vmem [#allocation0], 48
    %v361 = vld [vmem:[%s360] sm:$0xff]
    %362 = vrot.lane.b32.xlu0 %v361, 122
    %v363 = vpop.permute.xlu0 %362
    %vm364 = vcmask 15360
    %s365 = scalar_lea.vmem [#allocation2], 387
    %366 = vst.msk [vmem:[%s365] ss:$8 sm:$0xf] %vm364, %v363
    %s367 = scalar_lea.vmem [#allocation2], 387
    %368 = vst.msk [vmem:[%s367] ss:$8 sm:$0xf0] %vm364, %v363
    %s369 = scalar_lea.vmem [#allocation0], 56
    %v370 = vld [vmem:[%s369] sm:$0xff]
    %371 = vrot.lane.b32.xlu0 %v370, 122
    %v372 = vpop.permute.xlu0 %371
    %vm373 = vcmask 15360
    %s374 = scalar_lea.vmem [#allocation2], 451
    %375 = vst.msk [vmem:[%s374] ss:$8 sm:$0xf] %vm373, %v372
    %s376 = scalar_lea.vmem [#allocation2], 451
    %377 = vst.msk [vmem:[%s376] ss:$8 sm:$0xf0] %vm373, %v372
    %s378 = scalar_lea.vmem [#allocation0], 64
    %v379 = vld [vmem:[%s378] sm:$0xff]
    %380 = vrot.lane.b32.xlu0 %v379, 122
    %v381 = vpop.permute.xlu0 %380
    %vm382 = vcmask 15360
    %s383 = scalar_lea.vmem [#allocation2], 515
    %384 = vst.msk [vmem:[%s383] ss:$8 sm:$0xf] %vm382, %v381
    %s385 = scalar_lea.vmem [#allocation2], 515
    %386 = vst.msk [vmem:[%s385] ss:$8 sm:$0xf0] %vm382, %v381
    %s387 = scalar_lea.vmem [#allocation0], 72
    %v388 = vld [vmem:[%s387] sm:$0xff]
    %389 = vrot.lane.b32.xlu0 %v388, 122
    %v390 = vpop.permute.xlu0 %389
    %vm391 = vcmask 15360
    %s392 = scalar_lea.vmem [#allocation2], 579
    %393 = vst.msk [vmem:[%s392] ss:$8 sm:$0xf] %vm391, %v390
    %s394 = scalar_lea.vmem [#allocation2], 579
    %395 = vst.msk [vmem:[%s394] ss:$8 sm:$0xf0] %vm391, %v390
    %s396 = scalar_lea.vmem [#allocation0], 80
    %v397 = vld [vmem:[%s396] sm:$0xff]
    %398 = vrot.lane.b32.xlu0 %v397, 122
    %v399 = vpop.permute.xlu0 %398
    %vm400 = vcmask 15360
    %s401 = scalar_lea.vmem [#allocation2], 643
    %402 = vst.msk [vmem:[%s401] ss:$8 sm:$0xf] %vm400, %v399
    %s403 = scalar_lea.vmem [#allocation2], 643
    %404 = vst.msk [vmem:[%s403] ss:$8 sm:$0xf0] %vm400, %v399
    %s405 = scalar_lea.vmem [#allocation0], 88
    %v406 = vld [vmem:[%s405] sm:$0xff]
    %407 = vrot.lane.b32.xlu0 %v406, 122
    %v408 = vpop.permute.xlu0 %407
    %vm409 = vcmask 15360
    %s410 = scalar_lea.vmem [#allocation2], 707
    %411 = vst.msk [vmem:[%s410] ss:$8 sm:$0xf] %vm409, %v408
    %s412 = scalar_lea.vmem [#allocation2], 707
    %413 = vst.msk [vmem:[%s412] ss:$8 sm:$0xf0] %vm409, %v408
    %v414 = vld [vmem:[#allocation0] sm:$0xff]
    %415 = vrot.lane.b32.xlu0 %v414, 120
    %v416 = vpop.permute.xlu0 %415
    %vm417 = vcmask 15360
    %s418 = scalar_lea.vmem [#allocation2], 4
    %419 = vst.msk [vmem:[%s418] ss:$8 sm:$0xf] %vm417, %v416
    %s420 = scalar_lea.vmem [#allocation2], 4
    %421 = vst.msk [vmem:[%s420] ss:$8 sm:$0xf0] %vm417, %v416
    %s422 = scalar_lea.vmem [#allocation0], 8
    %v423 = vld [vmem:[%s422] sm:$0xff]
    %424 = vrot.lane.b32.xlu0 %v423, 120
    %v425 = vpop.permute.xlu0 %424
    %vm426 = vcmask 15360
    %s427 = scalar_lea.vmem [#allocation2], 68
    %428 = vst.msk [vmem:[%s427] ss:$8 sm:$0xf] %vm426, %v425
    %s429 = scalar_lea.vmem [#allocation2], 68
    %430 = vst.msk [vmem:[%s429] ss:$8 sm:$0xf0] %vm426, %v425
    %s431 = scalar_lea.vmem [#allocation0], 16
    %v432 = vld [vmem:[%s431] sm:$0xff]
    %433 = vrot.lane.b32.xlu0 %v432, 120
    %v434 = vpop.permute.xlu0 %433
    %vm435 = vcmask 15360
    %s436 = scalar_lea.vmem [#allocation2], 132
    %437 = vst.msk [vmem:[%s436] ss:$8 sm:$0xf] %vm435, %v434
    %s438 = scalar_lea.vmem [#allocation2], 132
    %439 = vst.msk [vmem:[%s438] ss:$8 sm:$0xf0] %vm435, %v434
    %s440 = scalar_lea.vmem [#allocation0], 24
    %v441 = vld [vmem:[%s440] sm:$0xff]
    %442 = vrot.lane.b32.xlu0 %v441, 120
    %v443 = vpop.permute.xlu0 %442
    %vm444 = vcmask 15360
    %s445 = scalar_lea.vmem [#allocation2], 196
    %446 = vst.msk [vmem:[%s445] ss:$8 sm:$0xf] %vm444, %v443
    %s447 = scalar_lea.vmem [#allocation2], 196
    %448 = vst.msk [vmem:[%s447] ss:$8 sm:$0xf0] %vm444, %v443
    %s449 = scalar_lea.vmem [#allocation0], 32
    %v450 = vld [vmem:[%s449] sm:$0xff]
    %451 = vrot.lane.b32.xlu0 %v450, 120
    %v452 = vpop.permute.xlu0 %451
    %vm453 = vcmask 15360
    %s454 = scalar_lea.vmem [#allocation2], 260
    %455 = vst.msk [vmem:[%s454] ss:$8 sm:$0xf] %vm453, %v452
    %s456 = scalar_lea.vmem [#allocation2], 260
    %457 = vst.msk [vmem:[%s456] ss:$8 sm:$0xf0] %vm453, %v452
    %s458 = scalar_lea.vmem [#allocation0], 40
    %v459 = vld [vmem:[%s458] sm:$0xff]
    %460 = vrot.lane.b32.xlu0 %v459, 120
    %v461 = vpop.permute.xlu0 %460
    %vm462 = vcmask 15360
    %s463 = scalar_lea.vmem [#allocation2], 324
    %464 = vst.msk [vmem:[%s463] ss:$8 sm:$0xf] %vm462, %v461
    %s465 = scalar_lea.vmem [#allocation2], 324
    %466 = vst.msk [vmem:[%s465] ss:$8 sm:$0xf0] %vm462, %v461
    %s467 = scalar_lea.vmem [#allocation0], 48
    %v468 = vld [vmem:[%s467] sm:$0xff]
    %469 = vrot.lane.b32.xlu0 %v468, 120
    %v470 = vpop.permute.xlu0 %469
    %vm471 = vcmask 15360
    %s472 = scalar_lea.vmem [#allocation2], 388
    %473 = vst.msk [vmem:[%s472] ss:$8 sm:$0xf] %vm471, %v470
    %s474 = scalar_lea.vmem [#allocation2], 388
    %475 = vst.msk [vmem:[%s474] ss:$8 sm:$0xf0] %vm471, %v470
    %s476 = scalar_lea.vmem [#allocation0], 56
    %v477 = vld [vmem:[%s476] sm:$0xff]
    %478 = vrot.lane.b32.xlu0 %v477, 120
    %v479 = vpop.permute.xlu0 %478
    %vm480 = vcmask 15360
    %s481 = scalar_lea.vmem [#allocation2], 452
    %482 = vst.msk [vmem:[%s481] ss:$8 sm:$0xf] %vm480, %v479
    %s483 = scalar_lea.vmem [#allocation2], 452
    %484 = vst.msk [vmem:[%s483] ss:$8 sm:$0xf0] %vm480, %v479
    %s485 = scalar_lea.vmem [#allocation0], 64
    %v486 = vld [vmem:[%s485] sm:$0xff]
    %487 = vrot.lane.b32.xlu0 %v486, 120
    %v488 = vpop.permute.xlu0 %487
    %vm489 = vcmask 15360
    %s490 = scalar_lea.vmem [#allocation2], 516
    %491 = vst.msk [vmem:[%s490] ss:$8 sm:$0xf] %vm489, %v488
    %s492 = scalar_lea.vmem [#allocation2], 516
    %493 = vst.msk [vmem:[%s492] ss:$8 sm:$0xf0] %vm489, %v488
    %s494 = scalar_lea.vmem [#allocation0], 72
    %v495 = vld [vmem:[%s494] sm:$0xff]
    %496 = vrot.lane.b32.xlu0 %v495, 120
    %v497 = vpop.permute.xlu0 %496
    %vm498 = vcmask 15360
    %s499 = scalar_lea.vmem [#allocation2], 580
    %500 = vst.msk [vmem:[%s499] ss:$8 sm:$0xf] %vm498, %v497
    %s501 = scalar_lea.vmem [#allocation2], 580
    %502 = vst.msk [vmem:[%s501] ss:$8 sm:$0xf0] %vm498, %v497
    %s503 = scalar_lea.vmem [#allocation0], 80
    %v504 = vld [vmem:[%s503] sm:$0xff]
    %505 = vrot.lane.b32.xlu0 %v504, 120
    %v506 = vpop.permute.xlu0 %505
    %vm507 = vcmask 15360
    %s508 = scalar_lea.vmem [#allocation2], 644
    %509 = vst.msk [vmem:[%s508] ss:$8 sm:$0xf] %vm507, %v506
    %s510 = scalar_lea.vmem [#allocation2], 644
    %511 = vst.msk [vmem:[%s510] ss:$8 sm:$0xf0] %vm507, %v506
    %s512 = scalar_lea.vmem [#allocation0], 88
    %v513 = vld [vmem:[%s512] sm:$0xff]
    %514 = vrot.lane.b32.xlu0 %v513, 120
    %v515 = vpop.permute.xlu0 %514
    %vm516 = vcmask 15360
    %s517 = scalar_lea.vmem [#allocation2], 708
    %518 = vst.msk [vmem:[%s517] ss:$8 sm:$0xf] %vm516, %v515
    %s519 = scalar_lea.vmem [#allocation2], 708
    %520 = vst.msk [vmem:[%s519] ss:$8 sm:$0xf0] %vm516, %v515
    %v521 = vld [vmem:[#allocation0] sm:$0xff]
    %522 = vrot.lane.b32.xlu0 %v521, 118
    %v523 = vpop.permute.xlu0 %522
    %vm524 = vcmask 15360
    %s525 = scalar_lea.vmem [#allocation2], 5
    %526 = vst.msk [vmem:[%s525] ss:$8 sm:$0xf] %vm524, %v523
    %s527 = scalar_lea.vmem [#allocation2], 5
    %528 = vst.msk [vmem:[%s527] ss:$8 sm:$0xf0] %vm524, %v523
    %s529 = scalar_lea.vmem [#allocation0], 8
    %v530 = vld [vmem:[%s529] sm:$0xff]
    %531 = vrot.lane.b32.xlu0 %v530, 118
    %v532 = vpop.permute.xlu0 %531
    %vm533 = vcmask 15360
    %s534 = scalar_lea.vmem [#allocation2], 69
    %535 = vst.msk [vmem:[%s534] ss:$8 sm:$0xf] %vm533, %v532
    %s536 = scalar_lea.vmem [#allocation2], 69
    %537 = vst.msk [vmem:[%s536] ss:$8 sm:$0xf0] %vm533, %v532
    %s538 = scalar_lea.vmem [#allocation0], 16
    %v539 = vld [vmem:[%s538] sm:$0xff]
    %540 = vrot.lane.b32.xlu0 %v539, 118
    %v541 = vpop.permute.xlu0 %540
    %vm542 = vcmask 15360
    %s543 = scalar_lea.vmem [#allocation2], 133
    %544 = vst.msk [vmem:[%s543] ss:$8 sm:$0xf] %vm542, %v541
    %s545 = scalar_lea.vmem [#allocation2], 133
    %546 = vst.msk [vmem:[%s545] ss:$8 sm:$0xf0] %vm542, %v541
    %s547 = scalar_lea.vmem [#allocation0], 24
    %v548 = vld [vmem:[%s547] sm:$0xff]
    %549 = vrot.lane.b32.xlu0 %v548, 118
    %v550 = vpop.permute.xlu0 %549
    %vm551 = vcmask 15360
    %s552 = scalar_lea.vmem [#allocation2], 197
    %553 = vst.msk [vmem:[%s552] ss:$8 sm:$0xf] %vm551, %v550
    %s554 = scalar_lea.vmem [#allocation2], 197
    %555 = vst.msk [vmem:[%s554] ss:$8 sm:$0xf0] %vm551, %v550
    %s556 = scalar_lea.vmem [#allocation0], 32
    %v557 = vld [vmem:[%s556] sm:$0xff]
    %558 = vrot.lane.b32.xlu0 %v557, 118
    %v559 = vpop.permute.xlu0 %558
    %vm560 = vcmask 15360
    %s561 = scalar_lea.vmem [#allocation2], 261
    %562 = vst.msk [vmem:[%s561] ss:$8 sm:$0xf] %vm560, %v559
    %s563 = scalar_lea.vmem [#allocation2], 261
    %564 = vst.msk [vmem:[%s563] ss:$8 sm:$0xf0] %vm560, %v559
    %s565 = scalar_lea.vmem [#allocation0], 40
    %v566 = vld [vmem:[%s565] sm:$0xff]
    %567 = vrot.lane.b32.xlu0 %v566, 118
    %v568 = vpop.permute.xlu0 %567
    %vm569 = vcmask 15360
    %s570 = scalar_lea.vmem [#allocation2], 325
    %571 = vst.msk [vmem:[%s570] ss:$8 sm:$0xf] %vm569, %v568
    %s572 = scalar_lea.vmem [#allocation2], 325
    %573 = vst.msk [vmem:[%s572] ss:$8 sm:$0xf0] %vm569, %v568
    %s574 = scalar_lea.vmem [#allocation0], 48
    %v575 = vld [vmem:[%s574] sm:$0xff]
    %576 = vrot.lane.b32.xlu0 %v575, 118
    %v577 = vpop.permute.xlu0 %576
    %vm578 = vcmask 15360
    %s579 = scalar_lea.vmem [#allocation2], 389
    %580 = vst.msk [vmem:[%s579] ss:$8 sm:$0xf] %vm578, %v577
    %s581 = scalar_lea.vmem [#allocation2], 389
    %582 = vst.msk [vmem:[%s581] ss:$8 sm:$0xf0] %vm578, %v577
    %s583 = scalar_lea.vmem [#allocation0], 56
    %v584 = vld [vmem:[%s583] sm:$0xff]
    %585 = vrot.lane.b32.xlu0 %v584, 118
    %v586 = vpop.permute.xlu0 %585
    %vm587 = vcmask 15360
    %s588 = scalar_lea.vmem [#allocation2], 453
    %589 = vst.msk [vmem:[%s588] ss:$8 sm:$0xf] %vm587, %v586
    %s590 = scalar_lea.vmem [#allocation2], 453
    %591 = vst.msk [vmem:[%s590] ss:$8 sm:$0xf0] %vm587, %v586
    %s592 = scalar_lea.vmem [#allocation0], 64
    %v593 = vld [vmem:[%s592] sm:$0xff]
    %594 = vrot.lane.b32.xlu0 %v593, 118
    %v595 = vpop.permute.xlu0 %594
    %vm596 = vcmask 15360
    %s597 = scalar_lea.vmem [#allocation2], 517
    %598 = vst.msk [vmem:[%s597] ss:$8 sm:$0xf] %vm596, %v595
    %s599 = scalar_lea.vmem [#allocation2], 517
    %600 = vst.msk [vmem:[%s599] ss:$8 sm:$0xf0] %vm596, %v595
    %s601 = scalar_lea.vmem [#allocation0], 72
    %v602 = vld [vmem:[%s601] sm:$0xff]
    %603 = vrot.lane.b32.xlu0 %v602, 118
    %v604 = vpop.permute.xlu0 %603
    %vm605 = vcmask 15360
    %s606 = scalar_lea.vmem [#allocation2], 581
    %607 = vst.msk [vmem:[%s606] ss:$8 sm:$0xf] %vm605, %v604
    %s608 = scalar_lea.vmem [#allocation2], 581
    %609 = vst.msk [vmem:[%s608] ss:$8 sm:$0xf0] %vm605, %v604
    %s610 = scalar_lea.vmem [#allocation0], 80
    %v611 = vld [vmem:[%s610] sm:$0xff]
    %612 = vrot.lane.b32.xlu0 %v611, 118
    %v613 = vpop.permute.xlu0 %612
    %vm614 = vcmask 15360
    %s615 = scalar_lea.vmem [#allocation2], 645
    %616 = vst.msk [vmem:[%s615] ss:$8 sm:$0xf] %vm614, %v613
    %s617 = scalar_lea.vmem [#allocation2], 645
    %618 = vst.msk [vmem:[%s617] ss:$8 sm:$0xf0] %vm614, %v613
    %s619 = scalar_lea.vmem [#allocation0], 88
    %v620 = vld [vmem:[%s619] sm:$0xff]
    %621 = vrot.lane.b32.xlu0 %v620, 118
    %v622 = vpop.permute.xlu0 %621
    %vm623 = vcmask 15360
    %s624 = scalar_lea.vmem [#allocation2], 709
    %625 = vst.msk [vmem:[%s624] ss:$8 sm:$0xf] %vm623, %v622
    %s626 = scalar_lea.vmem [#allocation2], 709
    %627 = vst.msk [vmem:[%s626] ss:$8 sm:$0xf0] %vm623, %v622
    %v628 = vld [vmem:[#allocation0] sm:$0xff]
    %629 = vrot.lane.b32.xlu0 %v628, 116
    %v630 = vpop.permute.xlu0 %629
    %vm631 = vcmask 15360
    %s632 = scalar_lea.vmem [#allocation2], 6
    %633 = vst.msk [vmem:[%s632] ss:$8 sm:$0xf] %vm631, %v630
    %s634 = scalar_lea.vmem [#allocation2], 6
    %635 = vst.msk [vmem:[%s634] ss:$8 sm:$0xf0] %vm631, %v630
    %s636 = scalar_lea.vmem [#allocation0], 8
    %v637 = vld [vmem:[%s636] sm:$0xff]
    %638 = vrot.lane.b32.xlu0 %v637, 116
    %v639 = vpop.permute.xlu0 %638
    %vm640 = vcmask 15360
    %s641 = scalar_lea.vmem [#allocation2], 70
    %642 = vst.msk [vmem:[%s641] ss:$8 sm:$0xf] %vm640, %v639
    %s643 = scalar_lea.vmem [#allocation2], 70
    %644 = vst.msk [vmem:[%s643] ss:$8 sm:$0xf0] %vm640, %v639
    %s645 = scalar_lea.vmem [#allocation0], 16
    %v646 = vld [vmem:[%s645] sm:$0xff]
    %647 = vrot.lane.b32.xlu0 %v646, 116
    %v648 = vpop.permute.xlu0 %647
    %vm649 = vcmask 15360
    %s650 = scalar_lea.vmem [#allocation2], 134
    %651 = vst.msk [vmem:[%s650] ss:$8 sm:$0xf] %vm649, %v648
    %s652 = scalar_lea.vmem [#allocation2], 134
    %653 = vst.msk [vmem:[%s652] ss:$8 sm:$0xf0] %vm649, %v648
    %s654 = scalar_lea.vmem [#allocation0], 24
    %v655 = vld [vmem:[%s654] sm:$0xff]
    %656 = vrot.lane.b32.xlu0 %v655, 116
    %v657 = vpop.permute.xlu0 %656
    %vm658 = vcmask 15360
    %s659 = scalar_lea.vmem [#allocation2], 198
    %660 = vst.msk [vmem:[%s659] ss:$8 sm:$0xf] %vm658, %v657
    %s661 = scalar_lea.vmem [#allocation2], 198
    %662 = vst.msk [vmem:[%s661] ss:$8 sm:$0xf0] %vm658, %v657
    %s663 = scalar_lea.vmem [#allocation0], 32
    %v664 = vld [vmem:[%s663] sm:$0xff]
    %665 = vrot.lane.b32.xlu0 %v664, 116
    %v666 = vpop.permute.xlu0 %665
    %vm667 = vcmask 15360
    %s668 = scalar_lea.vmem [#allocation2], 262
    %669 = vst.msk [vmem:[%s668] ss:$8 sm:$0xf] %vm667, %v666
    %s670 = scalar_lea.vmem [#allocation2], 262
    %671 = vst.msk [vmem:[%s670] ss:$8 sm:$0xf0] %vm667, %v666
    %s672 = scalar_lea.vmem [#allocation0], 40
    %v673 = vld [vmem:[%s672] sm:$0xff]
    %674 = vrot.lane.b32.xlu0 %v673, 116
    %v675 = vpop.permute.xlu0 %674
    %vm676 = vcmask 15360
    %s677 = scalar_lea.vmem [#allocation2], 326
    %678 = vst.msk [vmem:[%s677] ss:$8 sm:$0xf] %vm676, %v675
    %s679 = scalar_lea.vmem [#allocation2], 326
    %680 = vst.msk [vmem:[%s679] ss:$8 sm:$0xf0] %vm676, %v675
    %s681 = scalar_lea.vmem [#allocation0], 48
    %v682 = vld [vmem:[%s681] sm:$0xff]
    %683 = vrot.lane.b32.xlu0 %v682, 116
    %v684 = vpop.permute.xlu0 %683
    %vm685 = vcmask 15360
    %s686 = scalar_lea.vmem [#allocation2], 390
    %687 = vst.msk [vmem:[%s686] ss:$8 sm:$0xf] %vm685, %v684
    %s688 = scalar_lea.vmem [#allocation2], 390
    %689 = vst.msk [vmem:[%s688] ss:$8 sm:$0xf0] %vm685, %v684
    %s690 = scalar_lea.vmem [#allocation0], 56
    %v691 = vld [vmem:[%s690] sm:$0xff]
    %692 = vrot.lane.b32.xlu0 %v691, 116
    %v693 = vpop.permute.xlu0 %692
    %vm694 = vcmask 15360
    %s695 = scalar_lea.vmem [#allocation2], 454
    %696 = vst.msk [vmem:[%s695] ss:$8 sm:$0xf] %vm694, %v693
    %s697 = scalar_lea.vmem [#allocation2], 454
    %698 = vst.msk [vmem:[%s697] ss:$8 sm:$0xf0] %vm694, %v693
    %s699 = scalar_lea.vmem [#allocation0], 64
    %v700 = vld [vmem:[%s699] sm:$0xff]
    %701 = vrot.lane.b32.xlu0 %v700, 116
    %v702 = vpop.permute.xlu0 %701
    %vm703 = vcmask 15360
    %s704 = scalar_lea.vmem [#allocation2], 518
    %705 = vst.msk [vmem:[%s704] ss:$8 sm:$0xf] %vm703, %v702
    %s706 = scalar_lea.vmem [#allocation2], 518
    %707 = vst.msk [vmem:[%s706] ss:$8 sm:$0xf0] %vm703, %v702
    %s708 = scalar_lea.vmem [#allocation0], 72
    %v709 = vld [vmem:[%s708] sm:$0xff]
    %710 = vrot.lane.b32.xlu0 %v709, 116
    %v711 = vpop.permute.xlu0 %710
    %vm712 = vcmask 15360
    %s713 = scalar_lea.vmem [#allocation2], 582
    %714 = vst.msk [vmem:[%s713] ss:$8 sm:$0xf] %vm712, %v711
    %s715 = scalar_lea.vmem [#allocation2], 582
    %716 = vst.msk [vmem:[%s715] ss:$8 sm:$0xf0] %vm712, %v711
    %s717 = scalar_lea.vmem [#allocation0], 80
    %v718 = vld [vmem:[%s717] sm:$0xff]
    %719 = vrot.lane.b32.xlu0 %v718, 116
    %v720 = vpop.permute.xlu0 %719
    %vm721 = vcmask 15360
    %s722 = scalar_lea.vmem [#allocation2], 646
    %723 = vst.msk [vmem:[%s722] ss:$8 sm:$0xf] %vm721, %v720
    %s724 = scalar_lea.vmem [#allocation2], 646
    %725 = vst.msk [vmem:[%s724] ss:$8 sm:$0xf0] %vm721, %v720
    %s726 = scalar_lea.vmem [#allocation0], 88
    %v727 = vld [vmem:[%s726] sm:$0xff]
    %728 = vrot.lane.b32.xlu0 %v727, 116
    %v729 = vpop.permute.xlu0 %728
    %vm730 = vcmask 15360
    %s731 = scalar_lea.vmem [#allocation2], 710
    %732 = vst.msk [vmem:[%s731] ss:$8 sm:$0xf] %vm730, %v729
    %s733 = scalar_lea.vmem [#allocation2], 710
    %734 = vst.msk [vmem:[%s733] ss:$8 sm:$0xf0] %vm730, %v729
    %v735 = vld [vmem:[#allocation0] sm:$0xff]
    %736 = vrot.lane.b32.xlu0 %v735, 114
    %v737 = vpop.permute.xlu0 %736
    %vm738 = vcmask 15360
    %s739 = scalar_lea.vmem [#allocation2], 7
    %740 = vst.msk [vmem:[%s739] ss:$8 sm:$0xf] %vm738, %v737
    %s741 = scalar_lea.vmem [#allocation2], 7
    %742 = vst.msk [vmem:[%s741] ss:$8 sm:$0xf0] %vm738, %v737
    %s743 = scalar_lea.vmem [#allocation0], 8
    %v744 = vld [vmem:[%s743] sm:$0xff]
    %745 = vrot.lane.b32.xlu0 %v744, 114
    %v746 = vpop.permute.xlu0 %745
    %vm747 = vcmask 15360
    %s748 = scalar_lea.vmem [#allocation2], 71
    %749 = vst.msk [vmem:[%s748] ss:$8 sm:$0xf] %vm747, %v746
    %s750 = scalar_lea.vmem [#allocation2], 71
    %751 = vst.msk [vmem:[%s750] ss:$8 sm:$0xf0] %vm747, %v746
    %s752 = scalar_lea.vmem [#allocation0], 16
    %v753 = vld [vmem:[%s752] sm:$0xff]
    %754 = vrot.lane.b32.xlu0 %v753, 114
    %v755 = vpop.permute.xlu0 %754
    %vm756 = vcmask 15360
    %s757 = scalar_lea.vmem [#allocation2], 135
    %758 = vst.msk [vmem:[%s757] ss:$8 sm:$0xf] %vm756, %v755
    %s759 = scalar_lea.vmem [#allocation2], 135
    %760 = vst.msk [vmem:[%s759] ss:$8 sm:$0xf0] %vm756, %v755
    %s761 = scalar_lea.vmem [#allocation0], 24
    %v762 = vld [vmem:[%s761] sm:$0xff]
    %763 = vrot.lane.b32.xlu0 %v762, 114
    %v764 = vpop.permute.xlu0 %763
    %vm765 = vcmask 15360
    %s766 = scalar_lea.vmem [#allocation2], 199
    %767 = vst.msk [vmem:[%s766] ss:$8 sm:$0xf] %vm765, %v764
    %s768 = scalar_lea.vmem [#allocation2], 199
    %769 = vst.msk [vmem:[%s768] ss:$8 sm:$0xf0] %vm765, %v764
    %s770 = scalar_lea.vmem [#allocation0], 32
    %v771 = vld [vmem:[%s770] sm:$0xff]
    %772 = vrot.lane.b32.xlu0 %v771, 114
    %v773 = vpop.permute.xlu0 %772
    %vm774 = vcmask 15360
    %s775 = scalar_lea.vmem [#allocation2], 263
    %776 = vst.msk [vmem:[%s775] ss:$8 sm:$0xf] %vm774, %v773
    %s777 = scalar_lea.vmem [#allocation2], 263
    %778 = vst.msk [vmem:[%s777] ss:$8 sm:$0xf0] %vm774, %v773
    %s779 = scalar_lea.vmem [#allocation0], 40
    %v780 = vld [vmem:[%s779] sm:$0xff]
    %781 = vrot.lane.b32.xlu0 %v780, 114
    %v782 = vpop.permute.xlu0 %781
    %vm783 = vcmask 15360
    %s784 = scalar_lea.vmem [#allocation2], 327
    %785 = vst.msk [vmem:[%s784] ss:$8 sm:$0xf] %vm783, %v782
    %s786 = scalar_lea.vmem [#allocation2], 327
    %787 = vst.msk [vmem:[%s786] ss:$8 sm:$0xf0] %vm783, %v782
    %s788 = scalar_lea.vmem [#allocation0], 48
    %v789 = vld [vmem:[%s788] sm:$0xff]
    %790 = vrot.lane.b32.xlu0 %v789, 114
    %v791 = vpop.permute.xlu0 %790
    %vm792 = vcmask 15360
    %s793 = scalar_lea.vmem [#allocation2], 391
    %794 = vst.msk [vmem:[%s793] ss:$8 sm:$0xf] %vm792, %v791
    %s795 = scalar_lea.vmem [#allocation2], 391
    %796 = vst.msk [vmem:[%s795] ss:$8 sm:$0xf0] %vm792, %v791
    %s797 = scalar_lea.vmem [#allocation0], 56
    %v798 = vld [vmem:[%s797] sm:$0xff]
    %799 = vrot.lane.b32.xlu0 %v798, 114
    %v800 = vpop.permute.xlu0 %799
    %vm801 = vcmask 15360
    %s802 = scalar_lea.vmem [#allocation2], 455
    %803 = vst.msk [vmem:[%s802] ss:$8 sm:$0xf] %vm801, %v800
    %s804 = scalar_lea.vmem [#allocation2], 455
    %805 = vst.msk [vmem:[%s804] ss:$8 sm:$0xf0] %vm801, %v800
    %s806 = scalar_lea.vmem [#allocation0], 64
    %v807 = vld [vmem:[%s806] sm:$0xff]
    %808 = vrot.lane.b32.xlu0 %v807, 114
    %v809 = vpop.permute.xlu0 %808
    %vm810 = vcmask 15360
    %s811 = scalar_lea.vmem [#allocation2], 519
    %812 = vst.msk [vmem:[%s811] ss:$8 sm:$0xf] %vm810, %v809
    %s813 = scalar_lea.vmem [#allocation2], 519
    %814 = vst.msk [vmem:[%s813] ss:$8 sm:$0xf0] %vm810, %v809
    %s815 = scalar_lea.vmem [#allocation0], 72
    %v816 = vld [vmem:[%s815] sm:$0xff]
    %817 = vrot.lane.b32.xlu0 %v816, 114
    %v818 = vpop.permute.xlu0 %817
    %vm819 = vcmask 15360
    %s820 = scalar_lea.vmem [#allocation2], 583
    %821 = vst.msk [vmem:[%s820] ss:$8 sm:$0xf] %vm819, %v818
    %s822 = scalar_lea.vmem [#allocation2], 583
    %823 = vst.msk [vmem:[%s822] ss:$8 sm:$0xf0] %vm819, %v818
    %s824 = scalar_lea.vmem [#allocation0], 80
    %v825 = vld [vmem:[%s824] sm:$0xff]
    %826 = vrot.lane.b32.xlu0 %v825, 114
    %v827 = vpop.permute.xlu0 %826
    %vm828 = vcmask 15360
    %s829 = scalar_lea.vmem [#allocation2], 647
    %830 = vst.msk [vmem:[%s829] ss:$8 sm:$0xf] %vm828, %v827
    %s831 = scalar_lea.vmem [#allocation2], 647
    %832 = vst.msk [vmem:[%s831] ss:$8 sm:$0xf0] %vm828, %v827
    %s833 = scalar_lea.vmem [#allocation0], 88
    %v834 = vld [vmem:[%s833] sm:$0xff]
    %835 = vrot.lane.b32.xlu0 %v834, 114
    %v836 = vpop.permute.xlu0 %835
    %vm837 = vcmask 15360
    %s838 = scalar_lea.vmem [#allocation2], 711
    %839 = vst.msk [vmem:[%s838] ss:$8 sm:$0xf] %vm837, %v836
    %s840 = scalar_lea.vmem [#allocation2], 711
    %841 = vst.msk [vmem:[%s840] ss:$8 sm:$0xf0] %vm837, %v836
    %s843 = smul.u32 4, 2
    %s844 = sshllo.u32 0, %s843
    %s845 = sshrl.u32 %s843, 1
    %v846 = vld [vmem:[#allocation2] sm:%s844]
    %v847 = vpack.c.bf16 0.0, %v846
    %s848 = sshllo.u32 0, %s845
    %849 = vst [vmem:[%s1] sm:%s848] %v847
    %s850 = scalar_lea.vmem [#allocation2], 8
    %v851 = vld [vmem:[%s850] sm:%s844]
    %v852 = vpack.c.bf16 0.0, %v851
    %s853 = sshllo.u32 0, %s845
    %s854 = scalar_lea.vmem %s1, 4
    %855 = vst [vmem:[%s854] sm:%s853] %v852
    %s856 = scalar_lea.vmem [#allocation2], 16
    %v857 = vld [vmem:[%s856] sm:%s844]
    %v858 = vpack.c.bf16 0.0, %v857
    %s859 = sshllo.u32 0, %s845
    %s860 = smul.addr 4, 2
    %s861 = scalar_lea.vmem %s1, %s860
    %862 = vst [vmem:[%s861] sm:%s859] %v858
    %s863 = scalar_lea.vmem [#allocation2], 24
    %v864 = vld [vmem:[%s863] sm:%s844]
    %v865 = vpack.c.bf16 0.0, %v864
    %s866 = sshllo.u32 0, %s845
    %s867 = smul.addr 4, 3
    %s868 = scalar_lea.vmem %s1, %s867
    %869 = vst [vmem:[%s868] sm:%s866] %v865
    %s870 = scalar_lea.vmem [#allocation2], 32
    %v871 = vld [vmem:[%s870] sm:%s844]
    %v872 = vpack.c.bf16 0.0, %v871
    %s873 = sshllo.u32 0, %s845
    %s874 = smul.addr 4, 4
    %s875 = scalar_lea.vmem %s1, %s874
    %876 = vst [vmem:[%s875] sm:%s873] %v872
    %s877 = scalar_lea.vmem [#allocation2], 40
    %v878 = vld [vmem:[%s877] sm:%s844]
    %v879 = vpack.c.bf16 0.0, %v878
    %s880 = sshllo.u32 0, %s845
    %s881 = smul.addr 4, 5
    %s882 = scalar_lea.vmem %s1, %s881
    %883 = vst [vmem:[%s882] sm:%s880] %v879
    %s884 = scalar_lea.vmem [#allocation2], 48
    %v885 = vld [vmem:[%s884] sm:%s844]
    %v886 = vpack.c.bf16 0.0, %v885
    %s887 = sshllo.u32 0, %s845
    %s888 = smul.addr 4, 6
    %s889 = scalar_lea.vmem %s1, %s888
    %890 = vst [vmem:[%s889] sm:%s887] %v886
    %s891 = scalar_lea.vmem [#allocation2], 56
    %v892 = vld [vmem:[%s891] sm:%s844]
    %v893 = vpack.c.bf16 0.0, %v892
    %s894 = sshllo.u32 0, %s845
    %s895 = smul.addr 4, 7
    %s896 = scalar_lea.vmem %s1, %s895
    %897 = vst [vmem:[%s896] sm:%s894] %v893
    %s898 = scalar_lea.vmem [#allocation2], 64
    %v899 = vld [vmem:[%s898] sm:%s844]
    %v900 = vpack.c.bf16 0.0, %v899
    %s901 = sshllo.u32 0, %s845
    %s902 = smul.addr 4, 8
    %s903 = scalar_lea.vmem %s1, %s902
    %904 = vst [vmem:[%s903] sm:%s901] %v900
    %s905 = scalar_lea.vmem [#allocation2], 72
    %v906 = vld [vmem:[%s905] sm:%s844]
    %v907 = vpack.c.bf16 0.0, %v906
    %s908 = sshllo.u32 0, %s845
    %s909 = smul.addr 4, 9
    %s910 = scalar_lea.vmem %s1, %s909
    %911 = vst [vmem:[%s910] sm:%s908] %v907
    %s912 = scalar_lea.vmem [#allocation2], 80
    %v913 = vld [vmem:[%s912] sm:%s844]
    %v914 = vpack.c.bf16 0.0, %v913
    %s915 = sshllo.u32 0, %s845
    %s916 = smul.addr 4, 10
    %s917 = scalar_lea.vmem %s1, %s916
    %918 = vst [vmem:[%s917] sm:%s915] %v914
    %s919 = scalar_lea.vmem [#allocation2], 88
    %v920 = vld [vmem:[%s919] sm:%s844]
    %v921 = vpack.c.bf16 0.0, %v920
    %s922 = sshllo.u32 0, %s845
    %s923 = smul.addr 4, 11
    %s924 = scalar_lea.vmem %s1, %s923
    %925 = vst [vmem:[%s924] sm:%s922] %v921
    %s926 = scalar_lea.vmem [#allocation2], 96
    %v927 = vld [vmem:[%s926] sm:%s844]
    %v928 = vpack.c.bf16 0.0, %v927
    %s929 = sshllo.u32 0, %s845
    %s930 = smul.addr 4, 12
    %s931 = scalar_lea.vmem %s1, %s930
    %932 = vst [vmem:[%s931] sm:%s929] %v928
    %s933 = scalar_lea.vmem [#allocation2], 104
    %v934 = vld [vmem:[%s933] sm:%s844]
    %v935 = vpack.c.bf16 0.0, %v934
    %s936 = sshllo.u32 0, %s845
    %s937 = smul.addr 4, 13
    %s938 = scalar_lea.vmem %s1, %s937
    %939 = vst [vmem:[%s938] sm:%s936] %v935
    %s940 = scalar_lea.vmem [#allocation2], 112
    %v941 = vld [vmem:[%s940] sm:%s844]
    %v942 = vpack.c.bf16 0.0, %v941
    %s943 = sshllo.u32 0, %s845
    %s944 = smul.addr 4, 14
    %s945 = scalar_lea.vmem %s1, %s944
    %946 = vst [vmem:[%s945] sm:%s943] %v942
    %s947 = scalar_lea.vmem [#allocation2], 120
    %v948 = vld [vmem:[%s947] sm:%s844]
    %v949 = vpack.c.bf16 0.0, %v948
    %s950 = sshllo.u32 0, %s845
    %s951 = smul.addr 4, 15
    %s952 = scalar_lea.vmem %s1, %s951
    %953 = vst [vmem:[%s952] sm:%s950] %v949
    %s954 = scalar_lea.vmem [#allocation2], 128
    %v955 = vld [vmem:[%s954] sm:%s844]
    %v956 = vpack.c.bf16 0.0, %v955
    %s957 = sshllo.u32 0, %s845
    %s958 = smul.addr 4, 16
    %s959 = scalar_lea.vmem %s1, %s958
    %960 = vst [vmem:[%s959] sm:%s957] %v956
    %s961 = scalar_lea.vmem [#allocation2], 136
    %v962 = vld [vmem:[%s961] sm:%s844]
    %v963 = vpack.c.bf16 0.0, %v962
    %s964 = sshllo.u32 0, %s845
    %s965 = smul.addr 4, 17
    %s966 = scalar_lea.vmem %s1, %s965
    %967 = vst [vmem:[%s966] sm:%s964] %v963
    %s968 = scalar_lea.vmem [#allocation2], 144
    %v969 = vld [vmem:[%s968] sm:%s844]
    %v970 = vpack.c.bf16 0.0, %v969
    %s971 = sshllo.u32 0, %s845
    %s972 = smul.addr 4, 18
    %s973 = scalar_lea.vmem %s1, %s972
    %974 = vst [vmem:[%s973] sm:%s971] %v970
    %s975 = scalar_lea.vmem [#allocation2], 152
    %v976 = vld [vmem:[%s975] sm:%s844]
    %v977 = vpack.c.bf16 0.0, %v976
    %s978 = sshllo.u32 0, %s845
    %s979 = smul.addr 4, 19
    %s980 = scalar_lea.vmem %s1, %s979
    %981 = vst [vmem:[%s980] sm:%s978] %v977
    %s982 = scalar_lea.vmem [#allocation2], 160
    %v983 = vld [vmem:[%s982] sm:%s844]
    %v984 = vpack.c.bf16 0.0, %v983
    %s985 = sshllo.u32 0, %s845
    %s986 = smul.addr 4, 20
    %s987 = scalar_lea.vmem %s1, %s986
    %988 = vst [vmem:[%s987] sm:%s985] %v984
    %s989 = scalar_lea.vmem [#allocation2], 168
    %v990 = vld [vmem:[%s989] sm:%s844]
    %v991 = vpack.c.bf16 0.0, %v990
    %s992 = sshllo.u32 0, %s845
    %s993 = smul.addr 4, 21
    %s994 = scalar_lea.vmem %s1, %s993
    %995 = vst [vmem:[%s994] sm:%s992] %v991
    %s996 = scalar_lea.vmem [#allocation2], 176
    %v997 = vld [vmem:[%s996] sm:%s844]
    %v998 = vpack.c.bf16 0.0, %v997
    %s999 = sshllo.u32 0, %s845
    %s1000 = smul.addr 4, 22
    %s1001 = scalar_lea.vmem %s1, %s1000
    %1002 = vst [vmem:[%s1001] sm:%s999] %v998
    %s1003 = scalar_lea.vmem [#allocation2], 184
    %v1004 = vld [vmem:[%s1003] sm:%s844]
    %v1005 = vpack.c.bf16 0.0, %v1004
    %s1006 = sshllo.u32 0, %s845
    %s1007 = smul.addr 4, 23
    %s1008 = scalar_lea.vmem %s1, %s1007
    %1009 = vst [vmem:[%s1008] sm:%s1006] %v1005
    %s1010 = scalar_lea.vmem [#allocation2], 192
    %v1011 = vld [vmem:[%s1010] sm:%s844]
    %v1012 = vpack.c.bf16 0.0, %v1011
    %s1013 = sshllo.u32 0, %s845
    %s1014 = smul.addr 4, 24
    %s1015 = scalar_lea.vmem %s1, %s1014
    %1016 = vst [vmem:[%s1015] sm:%s1013] %v1012
    %s1017 = scalar_lea.vmem [#allocation2], 200
    %v1018 = vld [vmem:[%s1017] sm:%s844]
    %v1019 = vpack.c.bf16 0.0, %v1018
    %s1020 = sshllo.u32 0, %s845
    %s1021 = smul.addr 4, 25
    %s1022 = scalar_lea.vmem %s1, %s1021
    %1023 = vst [vmem:[%s1022] sm:%s1020] %v1019
    %s1024 = scalar_lea.vmem [#allocation2], 208
    %v1025 = vld [vmem:[%s1024] sm:%s844]
    %v1026 = vpack.c.bf16 0.0, %v1025
    %s1027 = sshllo.u32 0, %s845
    %s1028 = smul.addr 4, 26
    %s1029 = scalar_lea.vmem %s1, %s1028
    %1030 = vst [vmem:[%s1029] sm:%s1027] %v1026
    %s1031 = scalar_lea.vmem [#allocation2], 216
    %v1032 = vld [vmem:[%s1031] sm:%s844]
    %v1033 = vpack.c.bf16 0.0, %v1032
    %s1034 = sshllo.u32 0, %s845
    %s1035 = smul.addr 4, 27
    %s1036 = scalar_lea.vmem %s1, %s1035
    %1037 = vst [vmem:[%s1036] sm:%s1034] %v1033
    %s1038 = scalar_lea.vmem [#allocation2], 224
    %v1039 = vld [vmem:[%s1038] sm:%s844]
    %v1040 = vpack.c.bf16 0.0, %v1039
    %s1041 = sshllo.u32 0, %s845
    %s1042 = smul.addr 4, 28
    %s1043 = scalar_lea.vmem %s1, %s1042
    %1044 = vst [vmem:[%s1043] sm:%s1041] %v1040
    %s1045 = scalar_lea.vmem [#allocation2], 232
    %v1046 = vld [vmem:[%s1045] sm:%s844]
    %v1047 = vpack.c.bf16 0.0, %v1046
    %s1048 = sshllo.u32 0, %s845
    %s1049 = smul.addr 4, 29
    %s1050 = scalar_lea.vmem %s1, %s1049
    %1051 = vst [vmem:[%s1050] sm:%s1048] %v1047
    %s1052 = scalar_lea.vmem [#allocation2], 240
    %v1053 = vld [vmem:[%s1052] sm:%s844]
    %v1054 = vpack.c.bf16 0.0, %v1053
    %s1055 = sshllo.u32 0, %s845
    %s1056 = smul.addr 4, 30
    %s1057 = scalar_lea.vmem %s1, %s1056
    %1058 = vst [vmem:[%s1057] sm:%s1055] %v1054
    %s1059 = scalar_lea.vmem [#allocation2], 248
    %v1060 = vld [vmem:[%s1059] sm:%s844]
    %v1061 = vpack.c.bf16 0.0, %v1060
    %s1062 = sshllo.u32 0, %s845
    %s1063 = smul.addr 4, 31
    %s1064 = scalar_lea.vmem %s1, %s1063
    %1065 = vst [vmem:[%s1064] sm:%s1062] %v1061
    %s1066 = scalar_lea.vmem [#allocation2], 256
    %v1067 = vld [vmem:[%s1066] sm:%s844]
    %v1068 = vpack.c.bf16 0.0, %v1067
    %s1069 = sshllo.u32 0, %s845
    %s1070 = smul.addr 4, 32
    %s1071 = scalar_lea.vmem %s1, %s1070
    %1072 = vst [vmem:[%s1071] sm:%s1069] %v1068
    %s1073 = scalar_lea.vmem [#allocation2], 264
    %v1074 = vld [vmem:[%s1073] sm:%s844]
    %v1075 = vpack.c.bf16 0.0, %v1074
    %s1076 = sshllo.u32 0, %s845
    %s1077 = smul.addr 4, 33
    %s1078 = scalar_lea.vmem %s1, %s1077
    %1079 = vst [vmem:[%s1078] sm:%s1076] %v1075
    %s1080 = scalar_lea.vmem [#allocation2], 272
    %v1081 = vld [vmem:[%s1080] sm:%s844]
    %v1082 = vpack.c.bf16 0.0, %v1081
    %s1083 = sshllo.u32 0, %s845
    %s1084 = smul.addr 4, 34
    %s1085 = scalar_lea.vmem %s1, %s1084
    %1086 = vst [vmem:[%s1085] sm:%s1083] %v1082
    %s1087 = scalar_lea.vmem [#allocation2], 280
    %v1088 = vld [vmem:[%s1087] sm:%s844]
    %v1089 = vpack.c.bf16 0.0, %v1088
    %s1090 = sshllo.u32 0, %s845
    %s1091 = smul.addr 4, 35
    %s1092 = scalar_lea.vmem %s1, %s1091
    %1093 = vst [vmem:[%s1092] sm:%s1090] %v1089
    %s1094 = scalar_lea.vmem [#allocation2], 288
    %v1095 = vld [vmem:[%s1094] sm:%s844]
    %v1096 = vpack.c.bf16 0.0, %v1095
    %s1097 = sshllo.u32 0, %s845
    %s1098 = smul.addr 4, 36
    %s1099 = scalar_lea.vmem %s1, %s1098
    %1100 = vst [vmem:[%s1099] sm:%s1097] %v1096
    %s1101 = scalar_lea.vmem [#allocation2], 296
    %v1102 = vld [vmem:[%s1101] sm:%s844]
    %v1103 = vpack.c.bf16 0.0, %v1102
    %s1104 = sshllo.u32 0, %s845
    %s1105 = smul.addr 4, 37
    %s1106 = scalar_lea.vmem %s1, %s1105
    %1107 = vst [vmem:[%s1106] sm:%s1104] %v1103
    %s1108 = scalar_lea.vmem [#allocation2], 304
    %v1109 = vld [vmem:[%s1108] sm:%s844]
    %v1110 = vpack.c.bf16 0.0, %v1109
    %s1111 = sshllo.u32 0, %s845
    %s1112 = smul.addr 4, 38
    %s1113 = scalar_lea.vmem %s1, %s1112
    %1114 = vst [vmem:[%s1113] sm:%s1111] %v1110
    %s1115 = scalar_lea.vmem [#allocation2], 312
    %v1116 = vld [vmem:[%s1115] sm:%s844]
    %v1117 = vpack.c.bf16 0.0, %v1116
    %s1118 = sshllo.u32 0, %s845
    %s1119 = smul.addr 4, 39
    %s1120 = scalar_lea.vmem %s1, %s1119
    %1121 = vst [vmem:[%s1120] sm:%s1118] %v1117
    %s1122 = scalar_lea.vmem [#allocation2], 320
    %v1123 = vld [vmem:[%s1122] sm:%s844]
    %v1124 = vpack.c.bf16 0.0, %v1123
    %s1125 = sshllo.u32 0, %s845
    %s1126 = smul.addr 4, 40
    %s1127 = scalar_lea.vmem %s1, %s1126
    %1128 = vst [vmem:[%s1127] sm:%s1125] %v1124
    %s1129 = scalar_lea.vmem [#allocation2], 328
    %v1130 = vld [vmem:[%s1129] sm:%s844]
    %v1131 = vpack.c.bf16 0.0, %v1130
    %s1132 = sshllo.u32 0, %s845
    %s1133 = smul.addr 4, 41
    %s1134 = scalar_lea.vmem %s1, %s1133
    %1135 = vst [vmem:[%s1134] sm:%s1132] %v1131
    %s1136 = scalar_lea.vmem [#allocation2], 336
    %v1137 = vld [vmem:[%s1136] sm:%s844]
    %v1138 = vpack.c.bf16 0.0, %v1137
    %s1139 = sshllo.u32 0, %s845
    %s1140 = smul.addr 4, 42
    %s1141 = scalar_lea.vmem %s1, %s1140
    %1142 = vst [vmem:[%s1141] sm:%s1139] %v1138
    %s1143 = scalar_lea.vmem [#allocation2], 344
    %v1144 = vld [vmem:[%s1143] sm:%s844]
    %v1145 = vpack.c.bf16 0.0, %v1144
    %s1146 = sshllo.u32 0, %s845
    %s1147 = smul.addr 4, 43
    %s1148 = scalar_lea.vmem %s1, %s1147
    %1149 = vst [vmem:[%s1148] sm:%s1146] %v1145
    %s1150 = scalar_lea.vmem [#allocation2], 352
    %v1151 = vld [vmem:[%s1150] sm:%s844]
    %v1152 = vpack.c.bf16 0.0, %v1151
    %s1153 = sshllo.u32 0, %s845
    %s1154 = smul.addr 4, 44
    %s1155 = scalar_lea.vmem %s1, %s1154
    %1156 = vst [vmem:[%s1155] sm:%s1153] %v1152
    %s1157 = scalar_lea.vmem [#allocation2], 360
    %v1158 = vld [vmem:[%s1157] sm:%s844]
    %v1159 = vpack.c.bf16 0.0, %v1158
    %s1160 = sshllo.u32 0, %s845
    %s1161 = smul.addr 4, 45
    %s1162 = scalar_lea.vmem %s1, %s1161
    %1163 = vst [vmem:[%s1162] sm:%s1160] %v1159
    %s1164 = scalar_lea.vmem [#allocation2], 368
    %v1165 = vld [vmem:[%s1164] sm:%s844]
    %v1166 = vpack.c.bf16 0.0, %v1165
    %s1167 = sshllo.u32 0, %s845
    %s1168 = smul.addr 4, 46
    %s1169 = scalar_lea.vmem %s1, %s1168
    %1170 = vst [vmem:[%s1169] sm:%s1167] %v1166
    %s1171 = scalar_lea.vmem [#allocation2], 376
    %v1172 = vld [vmem:[%s1171] sm:%s844]
    %v1173 = vpack.c.bf16 0.0, %v1172
    %s1174 = sshllo.u32 0, %s845
    %s1175 = smul.addr 4, 47
    %s1176 = scalar_lea.vmem %s1, %s1175
    %1177 = vst [vmem:[%s1176] sm:%s1174] %v1173
    %s1178 = scalar_lea.vmem [#allocation2], 384
    %v1179 = vld [vmem:[%s1178] sm:%s844]
    %v1180 = vpack.c.bf16 0.0, %v1179
    %s1181 = sshllo.u32 0, %s845
    %s1182 = smul.addr 4, 48
    %s1183 = scalar_lea.vmem %s1, %s1182
    %1184 = vst [vmem:[%s1183] sm:%s1181] %v1180
    %s1185 = scalar_lea.vmem [#allocation2], 392
    %v1186 = vld [vmem:[%s1185] sm:%s844]
    %v1187 = vpack.c.bf16 0.0, %v1186
    %s1188 = sshllo.u32 0, %s845
    %s1189 = smul.addr 4, 49
    %s1190 = scalar_lea.vmem %s1, %s1189
    %1191 = vst [vmem:[%s1190] sm:%s1188] %v1187
    %s1192 = scalar_lea.vmem [#allocation2], 400
    %v1193 = vld [vmem:[%s1192] sm:%s844]
    %v1194 = vpack.c.bf16 0.0, %v1193
    %s1195 = sshllo.u32 0, %s845
    %s1196 = smul.addr 4, 50
    %s1197 = scalar_lea.vmem %s1, %s1196
    %1198 = vst [vmem:[%s1197] sm:%s1195] %v1194
    %s1199 = scalar_lea.vmem [#allocation2], 408
    %v1200 = vld [vmem:[%s1199] sm:%s844]
    %v1201 = vpack.c.bf16 0.0, %v1200
    %s1202 = sshllo.u32 0, %s845
    %s1203 = smul.addr 4, 51
    %s1204 = scalar_lea.vmem %s1, %s1203
    %1205 = vst [vmem:[%s1204] sm:%s1202] %v1201
    %s1206 = scalar_lea.vmem [#allocation2], 416
    %v1207 = vld [vmem:[%s1206] sm:%s844]
    %v1208 = vpack.c.bf16 0.0, %v1207
    %s1209 = sshllo.u32 0, %s845
    %s1210 = smul.addr 4, 52
    %s1211 = scalar_lea.vmem %s1, %s1210
    %1212 = vst [vmem:[%s1211] sm:%s1209] %v1208
    %s1213 = scalar_lea.vmem [#allocation2], 424
    %v1214 = vld [vmem:[%s1213] sm:%s844]
    %v1215 = vpack.c.bf16 0.0, %v1214
    %s1216 = sshllo.u32 0, %s845
    %s1217 = smul.addr 4, 53
    %s1218 = scalar_lea.vmem %s1, %s1217
    %1219 = vst [vmem:[%s1218] sm:%s1216] %v1215
    %s1220 = scalar_lea.vmem [#allocation2], 432
    %v1221 = vld [vmem:[%s1220] sm:%s844]
    %v1222 = vpack.c.bf16 0.0, %v1221
    %s1223 = sshllo.u32 0, %s845
    %s1224 = smul.addr 4, 54
    %s1225 = scalar_lea.vmem %s1, %s1224
    %1226 = vst [vmem:[%s1225] sm:%s1223] %v1222
    %s1227 = scalar_lea.vmem [#allocation2], 440
    %v1228 = vld [vmem:[%s1227] sm:%s844]
    %v1229 = vpack.c.bf16 0.0, %v1228
    %s1230 = sshllo.u32 0, %s845
    %s1231 = smul.addr 4, 55
    %s1232 = scalar_lea.vmem %s1, %s1231
    %1233 = vst [vmem:[%s1232] sm:%s1230] %v1229
    %s1234 = scalar_lea.vmem [#allocation2], 448
    %v1235 = vld [vmem:[%s1234] sm:%s844]
    %v1236 = vpack.c.bf16 0.0, %v1235
    %s1237 = sshllo.u32 0, %s845
    %s1238 = smul.addr 4, 56
    %s1239 = scalar_lea.vmem %s1, %s1238
    %1240 = vst [vmem:[%s1239] sm:%s1237] %v1236
    %s1241 = scalar_lea.vmem [#allocation2], 456
    %v1242 = vld [vmem:[%s1241] sm:%s844]
    %v1243 = vpack.c.bf16 0.0, %v1242
    %s1244 = sshllo.u32 0, %s845
    %s1245 = smul.addr 4, 57
    %s1246 = scalar_lea.vmem %s1, %s1245
    %1247 = vst [vmem:[%s1246] sm:%s1244] %v1243
    %s1248 = scalar_lea.vmem [#allocation2], 464
    %v1249 = vld [vmem:[%s1248] sm:%s844]
    %v1250 = vpack.c.bf16 0.0, %v1249
    %s1251 = sshllo.u32 0, %s845
    %s1252 = smul.addr 4, 58
    %s1253 = scalar_lea.vmem %s1, %s1252
    %1254 = vst [vmem:[%s1253] sm:%s1251] %v1250
    %s1255 = scalar_lea.vmem [#allocation2], 472
    %v1256 = vld [vmem:[%s1255] sm:%s844]
    %v1257 = vpack.c.bf16 0.0, %v1256
    %s1258 = sshllo.u32 0, %s845
    %s1259 = smul.addr 4, 59
    %s1260 = scalar_lea.vmem %s1, %s1259
    %1261 = vst [vmem:[%s1260] sm:%s1258] %v1257
    %s1262 = scalar_lea.vmem [#allocation2], 480
    %v1263 = vld [vmem:[%s1262] sm:%s844]
    %v1264 = vpack.c.bf16 0.0, %v1263
    %s1265 = sshllo.u32 0, %s845
    %s1266 = smul.addr 4, 60
    %s1267 = scalar_lea.vmem %s1, %s1266
    %1268 = vst [vmem:[%s1267] sm:%s1265] %v1264
    %s1269 = scalar_lea.vmem [#allocation2], 488
    %v1270 = vld [vmem:[%s1269] sm:%s844]
    %v1271 = vpack.c.bf16 0.0, %v1270
    %s1272 = sshllo.u32 0, %s845
    %s1273 = smul.addr 4, 61
    %s1274 = scalar_lea.vmem %s1, %s1273
    %1275 = vst [vmem:[%s1274] sm:%s1272] %v1271
    %s1276 = scalar_lea.vmem [#allocation2], 496
    %v1277 = vld [vmem:[%s1276] sm:%s844]
    %v1278 = vpack.c.bf16 0.0, %v1277
    %s1279 = sshllo.u32 0, %s845
    %s1280 = smul.addr 4, 62
    %s1281 = scalar_lea.vmem %s1, %s1280
    %1282 = vst [vmem:[%s1281] sm:%s1279] %v1278
    %s1283 = scalar_lea.vmem [#allocation2], 504
    %v1284 = vld [vmem:[%s1283] sm:%s844]
    %v1285 = vpack.c.bf16 0.0, %v1284
    %s1286 = sshllo.u32 0, %s845
    %s1287 = smul.addr 4, 63
    %s1288 = scalar_lea.vmem %s1, %s1287
    %1289 = vst [vmem:[%s1288] sm:%s1286] %v1285
    %s1290 = scalar_lea.vmem [#allocation2], 512
    %v1291 = vld [vmem:[%s1290] sm:%s844]
    %v1292 = vpack.c.bf16 0.0, %v1291
    %s1293 = sshllo.u32 0, %s845
    %s1294 = smul.addr 4, 64
    %s1295 = scalar_lea.vmem %s1, %s1294
    %1296 = vst [vmem:[%s1295] sm:%s1293] %v1292
    %s1297 = scalar_lea.vmem [#allocation2], 520
    %v1298 = vld [vmem:[%s1297] sm:%s844]
    %v1299 = vpack.c.bf16 0.0, %v1298
    %s1300 = sshllo.u32 0, %s845
    %s1301 = smul.addr 4, 65
    %s1302 = scalar_lea.vmem %s1, %s1301
    %1303 = vst [vmem:[%s1302] sm:%s1300] %v1299
    %s1304 = scalar_lea.vmem [#allocation2], 528
    %v1305 = vld [vmem:[%s1304] sm:%s844]
    %v1306 = vpack.c.bf16 0.0, %v1305
    %s1307 = sshllo.u32 0, %s845
    %s1308 = smul.addr 4, 66
    %s1309 = scalar_lea.vmem %s1, %s1308
    %1310 = vst [vmem:[%s1309] sm:%s1307] %v1306
    %s1311 = scalar_lea.vmem [#allocation2], 536
    %v1312 = vld [vmem:[%s1311] sm:%s844]
    %v1313 = vpack.c.bf16 0.0, %v1312
    %s1314 = sshllo.u32 0, %s845
    %s1315 = smul.addr 4, 67
    %s1316 = scalar_lea.vmem %s1, %s1315
    %1317 = vst [vmem:[%s1316] sm:%s1314] %v1313
    %s1318 = scalar_lea.vmem [#allocation2], 544
    %v1319 = vld [vmem:[%s1318] sm:%s844]
    %v1320 = vpack.c.bf16 0.0, %v1319
    %s1321 = sshllo.u32 0, %s845
    %s1322 = smul.addr 4, 68
    %s1323 = scalar_lea.vmem %s1, %s1322
    %1324 = vst [vmem:[%s1323] sm:%s1321] %v1320
    %s1325 = scalar_lea.vmem [#allocation2], 552
    %v1326 = vld [vmem:[%s1325] sm:%s844]
    %v1327 = vpack.c.bf16 0.0, %v1326
    %s1328 = sshllo.u32 0, %s845
    %s1329 = smul.addr 4, 69
    %s1330 = scalar_lea.vmem %s1, %s1329
    %1331 = vst [vmem:[%s1330] sm:%s1328] %v1327
    %s1332 = scalar_lea.vmem [#allocation2], 560
    %v1333 = vld [vmem:[%s1332] sm:%s844]
    %v1334 = vpack.c.bf16 0.0, %v1333
    %s1335 = sshllo.u32 0, %s845
    %s1336 = smul.addr 4, 70
    %s1337 = scalar_lea.vmem %s1, %s1336
    %1338 = vst [vmem:[%s1337] sm:%s1335] %v1334
    %s1339 = scalar_lea.vmem [#allocation2], 568
    %v1340 = vld [vmem:[%s1339] sm:%s844]
    %v1341 = vpack.c.bf16 0.0, %v1340
    %s1342 = sshllo.u32 0, %s845
    %s1343 = smul.addr 4, 71
    %s1344 = scalar_lea.vmem %s1, %s1343
    %1345 = vst [vmem:[%s1344] sm:%s1342] %v1341
    %s1346 = scalar_lea.vmem [#allocation2], 576
    %v1347 = vld [vmem:[%s1346] sm:%s844]
    %v1348 = vpack.c.bf16 0.0, %v1347
    %s1349 = sshllo.u32 0, %s845
    %s1350 = smul.addr 4, 72
    %s1351 = scalar_lea.vmem %s1, %s1350
    %1352 = vst [vmem:[%s1351] sm:%s1349] %v1348
    %s1353 = scalar_lea.vmem [#allocation2], 584
    %v1354 = vld [vmem:[%s1353] sm:%s844]
    %v1355 = vpack.c.bf16 0.0, %v1354
    %s1356 = sshllo.u32 0, %s845
    %s1357 = smul.addr 4, 73
    %s1358 = scalar_lea.vmem %s1, %s1357
    %1359 = vst [vmem:[%s1358] sm:%s1356] %v1355
    %s1360 = scalar_lea.vmem [#allocation2], 592
    %v1361 = vld [vmem:[%s1360] sm:%s844]
    %v1362 = vpack.c.bf16 0.0, %v1361
    %s1363 = sshllo.u32 0, %s845
    %s1364 = smul.addr 4, 74
    %s1365 = scalar_lea.vmem %s1, %s1364
    %1366 = vst [vmem:[%s1365] sm:%s1363] %v1362
    %s1367 = scalar_lea.vmem [#allocation2], 600
    %v1368 = vld [vmem:[%s1367] sm:%s844]
    %v1369 = vpack.c.bf16 0.0, %v1368
    %s1370 = sshllo.u32 0, %s845
    %s1371 = smul.addr 4, 75
    %s1372 = scalar_lea.vmem %s1, %s1371
    %1373 = vst [vmem:[%s1372] sm:%s1370] %v1369
    %s1374 = scalar_lea.vmem [#allocation2], 608
    %v1375 = vld [vmem:[%s1374] sm:%s844]
    %v1376 = vpack.c.bf16 0.0, %v1375
    %s1377 = sshllo.u32 0, %s845
    %s1378 = smul.addr 4, 76
    %s1379 = scalar_lea.vmem %s1, %s1378
    %1380 = vst [vmem:[%s1379] sm:%s1377] %v1376
    %s1381 = scalar_lea.vmem [#allocation2], 616
    %v1382 = vld [vmem:[%s1381] sm:%s844]
    %v1383 = vpack.c.bf16 0.0, %v1382
    %s1384 = sshllo.u32 0, %s845
    %s1385 = smul.addr 4, 77
    %s1386 = scalar_lea.vmem %s1, %s1385
    %1387 = vst [vmem:[%s1386] sm:%s1384] %v1383
    %s1388 = scalar_lea.vmem [#allocation2], 624
    %v1389 = vld [vmem:[%s1388] sm:%s844]
    %v1390 = vpack.c.bf16 0.0, %v1389
    %s1391 = sshllo.u32 0, %s845
    %s1392 = smul.addr 4, 78
    %s1393 = scalar_lea.vmem %s1, %s1392
    %1394 = vst [vmem:[%s1393] sm:%s1391] %v1390
    %s1395 = scalar_lea.vmem [#allocation2], 632
    %v1396 = vld [vmem:[%s1395] sm:%s844]
    %v1397 = vpack.c.bf16 0.0, %v1396
    %s1398 = sshllo.u32 0, %s845
    %s1399 = smul.addr 4, 79
    %s1400 = scalar_lea.vmem %s1, %s1399
    %1401 = vst [vmem:[%s1400] sm:%s1398] %v1397
    %s1402 = scalar_lea.vmem [#allocation2], 640
    %v1403 = vld [vmem:[%s1402] sm:%s844]
    %v1404 = vpack.c.bf16 0.0, %v1403
    %s1405 = sshllo.u32 0, %s845
    %s1406 = smul.addr 4, 80
    %s1407 = scalar_lea.vmem %s1, %s1406
    %1408 = vst [vmem:[%s1407] sm:%s1405] %v1404
    %s1409 = scalar_lea.vmem [#allocation2], 648
    %v1410 = vld [vmem:[%s1409] sm:%s844]
    %v1411 = vpack.c.bf16 0.0, %v1410
    %s1412 = sshllo.u32 0, %s845
    %s1413 = smul.addr 4, 81
    %s1414 = scalar_lea.vmem %s1, %s1413
    %1415 = vst [vmem:[%s1414] sm:%s1412] %v1411
    %s1416 = scalar_lea.vmem [#allocation2], 656
    %v1417 = vld [vmem:[%s1416] sm:%s844]
    %v1418 = vpack.c.bf16 0.0, %v1417
    %s1419 = sshllo.u32 0, %s845
    %s1420 = smul.addr 4, 82
    %s1421 = scalar_lea.vmem %s1, %s1420
    %1422 = vst [vmem:[%s1421] sm:%s1419] %v1418
    %s1423 = scalar_lea.vmem [#allocation2], 664
    %v1424 = vld [vmem:[%s1423] sm:%s844]
    %v1425 = vpack.c.bf16 0.0, %v1424
    %s1426 = sshllo.u32 0, %s845
    %s1427 = smul.addr 4, 83
    %s1428 = scalar_lea.vmem %s1, %s1427
    %1429 = vst [vmem:[%s1428] sm:%s1426] %v1425
    %s1430 = scalar_lea.vmem [#allocation2], 672
    %v1431 = vld [vmem:[%s1430] sm:%s844]
    %v1432 = vpack.c.bf16 0.0, %v1431
    %s1433 = sshllo.u32 0, %s845
    %s1434 = smul.addr 4, 84
    %s1435 = scalar_lea.vmem %s1, %s1434
    %1436 = vst [vmem:[%s1435] sm:%s1433] %v1432
    %s1437 = scalar_lea.vmem [#allocation2], 680
    %v1438 = vld [vmem:[%s1437] sm:%s844]
    %v1439 = vpack.c.bf16 0.0, %v1438
    %s1440 = sshllo.u32 0, %s845
    %s1441 = smul.addr 4, 85
    %s1442 = scalar_lea.vmem %s1, %s1441
    %1443 = vst [vmem:[%s1442] sm:%s1440] %v1439
    %s1444 = scalar_lea.vmem [#allocation2], 688
    %v1445 = vld [vmem:[%s1444] sm:%s844]
    %v1446 = vpack.c.bf16 0.0, %v1445
    %s1447 = sshllo.u32 0, %s845
    %s1448 = smul.addr 4, 86
    %s1449 = scalar_lea.vmem %s1, %s1448
    %1450 = vst [vmem:[%s1449] sm:%s1447] %v1446
    %s1451 = scalar_lea.vmem [#allocation2], 696
    %v1452 = vld [vmem:[%s1451] sm:%s844]
    %v1453 = vpack.c.bf16 0.0, %v1452
    %s1454 = sshllo.u32 0, %s845
    %s1455 = smul.addr 4, 87
    %s1456 = scalar_lea.vmem %s1, %s1455
    %1457 = vst [vmem:[%s1456] sm:%s1454] %v1453
    %s1458 = scalar_lea.vmem [#allocation2], 704
    %v1459 = vld [vmem:[%s1458] sm:%s844]
    %v1460 = vpack.c.bf16 0.0, %v1459
    %s1461 = sshllo.u32 0, %s845
    %s1462 = smul.addr 4, 88
    %s1463 = scalar_lea.vmem %s1, %s1462
    %1464 = vst [vmem:[%s1463] sm:%s1461] %v1460
    %s1465 = scalar_lea.vmem [#allocation2], 712
    %v1466 = vld [vmem:[%s1465] sm:%s844]
    %v1467 = vpack.c.bf16 0.0, %v1466
    %s1468 = sshllo.u32 0, %s845
    %s1469 = smul.addr 4, 89
    %s1470 = scalar_lea.vmem %s1, %s1469
    %1471 = vst [vmem:[%s1470] sm:%s1468] %v1467
    %s1472 = scalar_lea.vmem [#allocation2], 720
    %v1473 = vld [vmem:[%s1472] sm:%s844]
    %v1474 = vpack.c.bf16 0.0, %v1473
    %s1475 = sshllo.u32 0, %s845
    %s1476 = smul.addr 4, 90
    %s1477 = scalar_lea.vmem %s1, %s1476
    %1478 = vst [vmem:[%s1477] sm:%s1475] %v1474
    %s1479 = scalar_lea.vmem [#allocation2], 728
    %v1480 = vld [vmem:[%s1479] sm:%s844]
    %v1481 = vpack.c.bf16 0.0, %v1480
    %s1482 = sshllo.u32 0, %s845
    %s1483 = smul.addr 4, 91
    %s1484 = scalar_lea.vmem %s1, %s1483
    %1485 = vst [vmem:[%s1484] sm:%s1482] %v1481
    %s1486 = scalar_lea.vmem [#allocation2], 736
    %v1487 = vld [vmem:[%s1486] sm:%s844]
    %v1488 = vpack.c.bf16 0.0, %v1487
    %s1489 = sshllo.u32 0, %s845
    %s1490 = smul.addr 4, 92
    %s1491 = scalar_lea.vmem %s1, %s1490
    %1492 = vst [vmem:[%s1491] sm:%s1489] %v1488
    %s1493 = scalar_lea.vmem [#allocation2], 744
    %v1494 = vld [vmem:[%s1493] sm:%s844]
    %v1495 = vpack.c.bf16 0.0, %v1494
    %s1496 = sshllo.u32 0, %s845
    %s1497 = smul.addr 4, 93
    %s1498 = scalar_lea.vmem %s1, %s1497
    %1499 = vst [vmem:[%s1498] sm:%s1496] %v1495
    %s1500 = scalar_lea.vmem [#allocation2], 752
    %v1501 = vld [vmem:[%s1500] sm:%s844]
    %v1502 = vpack.c.bf16 0.0, %v1501
    %s1503 = sshllo.u32 0, %s845
    %s1504 = smul.addr 4, 94
    %s1505 = scalar_lea.vmem %s1, %s1504
    %1506 = vst [vmem:[%s1505] sm:%s1503] %v1502
    %s1507 = scalar_lea.vmem [#allocation2], 760
    %v1508 = vld [vmem:[%s1507] sm:%s844]
    %v1509 = vpack.c.bf16 0.0, %v1508
    %s1510 = sshllo.u32 0, %s845
    %s1511 = smul.addr 4, 95
    %s1512 = scalar_lea.vmem %s1, %s1511
    %1513 = vst [vmem:[%s1512] sm:%s1510] %v1509
    %1514 = vsyncpa [#allocation1], 1

// kernel: squeeze.11
$region0: #{squeeze.11}
  %s0 = inlined_call_operand.vmem [shape: f32[2,1,4,4], index: 0, kind: input, shape index: {}]
  %s1 = inlined_call_operand.vmem [shape: f32[2,16], index: 1, kind: output, shape index: {}]
  $region1: #{squeeze.11} parent=0
    #allocation0 [shape = 'u8[4096]{0}', space=vmem, size = 0x1000, scoped, tag = 'scoped mem for output reshape']
    #allocation1 [shape = 'u8[8192]{0}', space=vmem, size = 0x2000, scoped, tag = 'scoped mem for input reshape']
    %s3 = sshllo.u32 0, 4
    %s4 = scalar_lea.vmem %s0, 4
    %v5 = vld [vmem:[%s4] sm:%s3]
    %s6 = scalar_lea.vmem [#allocation1], 8
    %7 = vst [vmem:[%s6] sm:%s3] %v5
    %v8 = vld [vmem:[%s0] sm:%s3]
    %9 = vst [vmem:[#allocation1] sm:%s3] %v8
    %s10 = smov 3
    %v11 = vld [vmem:[#allocation1] ss:$8 sm:%s10]
    %vm12 = vcmask 31744
    %13 = vst.msk [vmem:[#allocation0] sm:$0x3] %vm12, %v11
    %s14 = scalar_lea.vmem [#allocation1], 3
    %s15 = smov 3
    %v16 = vld [vmem:[%s14] ss:$8 sm:%s15]
    %17 = vrot.lane.b32.xlu0 %v16, 12
    %v18 = vpop.permute.xlu0 %17
    %vm19 = vcmask 130144
    %20 = vst.msk [vmem:[#allocation0] sm:$0x3] %vm19, %v18
    %s21 = scalar_lea.vmem [#allocation1], 2
    %s22 = smov 3
    %v23 = vld [vmem:[%s21] ss:$8 sm:%s22]
    %24 = vrot.lane.b32.xlu0 %v23, 8
    %v25 = vpop.permute.xlu0 %24
    %vm26 = vcmask 97344
    %27 = vst.msk [vmem:[#allocation0] sm:$0x3] %vm26, %v25
    %s28 = scalar_lea.vmem [#allocation1], 1
    %s29 = smov 3
    %v30 = vld [vmem:[%s28] ss:$8 sm:%s29]
    %31 = vrot.lane.b32.xlu0 %v30, 4
    %v32 = vpop.permute.xlu0 %31
    %vm33 = vcmask 64544
    %34 = vst.msk [vmem:[#allocation0] sm:$0x3] %vm33, %v32
    %s36 = sshllo.u32 0, 2
    %v38 = vld [vmem:[#allocation0] sm:%s36]
    %s39 = sshllo.u32 0, 2
    %40 = vst [vmem:[%s1] sm:%s39] %v38

// kernel: gaussian_hamer_predictor_forward.2
$region0: #{gaussian_hamer_predictor_forward.2}
  #allocation0 [shape = 'u32[]', space=smem, size = 0x4, offset = 0x4, fixed_abs, tag = 'smem constant byte address 0x4 - core index']
  #allocation1 [shape = 'u32[144,128]{1,0:T(1,128)}', space=vmem, size = 0x12000, scoped, tag = 'internal scratch']
  %s0 = inlined_call_operand.vmem [shape: f32[10,32], index: 0, kind: input, shape index: {}]
  %s1 = inlined_call_operand.vmem [shape: f32[2,64,32], index: 1, kind: input, shape index: {}]
  %s2 = inlined_call_operand.vmem [shape: f32[32,128], index: 2, kind: input, shape index: {}]
  %s3 = inlined_call_operand.vmem [shape: bf16[32,32], index: 3, kind: input, shape index: {}]
  %s4 = inlined_call_operand.vmem [shape: bf16[32,32], index: 4, kind: input, shape index: {}]
  %s5 = inlined_call_operand.vmem [shape: bf16[32,32], index: 5, kind: input, shape index: {}]
  %s6 = inlined_call_operand.vmem [shape: bf16[32,32], index: 6, kind: input, shape index: {}]
  %s7 = inlined_call_operand.vmem [shape: f32[32,3], index: 7, kind: input, shape index: {}]
  %s8 = inlined_call_operand.vmem [shape: f32[1,3], index: 8, kind: input, shape index: {}]
  %s9 = inlined_call_operand.vmem [shape: f32[2,10,32], index: 9, kind: output, shape index: {0}]
  %s10 = inlined_call_operand.vmem [shape: f32[2,3], index: 10, kind: output, shape index: {1}]
  %11 = xla_tuple %s9, %s10
  %s12 = sld [smem:[#allocation0]]
  $region54: #{gaussian_hamer_predictor_forward.2} parent=0
    _
  %s14 = ssub.s32 1, %s12
  %s15 = scalar_select 0, %s14, %s12
  // Predicated region
  $region2: #{gaussian_hamer_predictor_forward.2} parent=0 // pred_check
    _
  $region3: #{gaussian_hamer_predictor_forward.2} parent=0 // pred_check_branch
    %17 = sbr.rel (0) target = $region5
  $region4: #{gaussian_hamer_predictor_forward.2} parent=0 // pred_region
    _
  $region5: #{gaussian_hamer_predictor_forward.2} parent=0 // pred_fallthru
    _
  // Predicated region
  $region6: #{gaussian_hamer_predictor_forward.2} parent=0 // pred_check
    _
  $region7: #{gaussian_hamer_predictor_forward.2} parent=0 // pred_check_branch
    %19 = sbr.rel (0) target = $region9
  $region8: #{gaussian_hamer_predictor_forward.2} parent=0 // pred_region
    _
  $region9: #{gaussian_hamer_predictor_forward.2} parent=0 // pred_fallthru
    _
  // Predicated region
  $region10: #{gaussian_hamer_predictor_forward.2} parent=0 // pred_check
    _
  $region11: #{gaussian_hamer_predictor_forward.2} parent=0 // pred_check_branch
    %21 = sbr.rel (0) target = $region13
  $region12: #{gaussian_hamer_predictor_forward.2} parent=0 // pred_region
    _
  $region13: #{gaussian_hamer_predictor_forward.2} parent=0 // pred_fallthru
    _
  // Predicated region
  $region14: #{gaussian_hamer_predictor_forward.2} parent=0 // pred_check
    _
  $region15: #{gaussian_hamer_predictor_forward.2} parent=0 // pred_check_branch
    %23 = sbr.rel (0) target = $region17
  $region16: #{gaussian_hamer_predictor_forward.2} parent=0 // pred_region
    _
  $region17: #{gaussian_hamer_predictor_forward.2} parent=0 // pred_fallthru
    _
  // Predicated region
  $region18: #{gaussian_hamer_predictor_forward.2} parent=0 // pred_check
    _
  $region19: #{gaussian_hamer_predictor_forward.2} parent=0 // pred_check_branch
    %25 = sbr.rel (0) target = $region21
  $region20: #{gaussian_hamer_predictor_forward.2} parent=0 // pred_region
    _
  $region21: #{gaussian_hamer_predictor_forward.2} parent=0 // pred_fallthru
    _
  // Predicated region
  $region22: #{gaussian_hamer_predictor_forward.2} parent=0 // pred_check
    _
  $region23: #{gaussian_hamer_predictor_forward.2} parent=0 // pred_check_branch
    %27 = sbr.rel (0) target = $region25
  $region24: #{gaussian_hamer_predictor_forward.2} parent=0 // pred_region
    _
  $region25: #{gaussian_hamer_predictor_forward.2} parent=0 // pred_fallthru
    _
  // Predicated region
  $region26: #{gaussian_hamer_predictor_forward.2} parent=0 // pred_check
    _
  $region27: #{gaussian_hamer_predictor_forward.2} parent=0 // pred_check_branch
    %29 = sbr.rel (0) target = $region29
  $region28: #{gaussian_hamer_predictor_forward.2} parent=0 // pred_region
    _
  $region29: #{gaussian_hamer_predictor_forward.2} parent=0 // pred_fallthru
    _
  // Predicated region
  $region30: #{gaussian_hamer_predictor_forward.2} parent=0 // pred_check
    _
  $region31: #{gaussian_hamer_predictor_forward.2} parent=0 // pred_check_branch
    %31 = sbr.rel (0) target = $region33
  $region32: #{gaussian_hamer_predictor_forward.2} parent=0 // pred_region
    _
  $region33: #{gaussian_hamer_predictor_forward.2} parent=0 // pred_fallthru
    _
  // Predicated region
  $region34: #{gaussian_hamer_predictor_forward.2} parent=0 // pred_check
    _
  $region35: #{gaussian_hamer_predictor_forward.2} parent=0 // pred_check_branch
    %33 = sbr.rel (0) target = $region37
  $region36: #{gaussian_hamer_predictor_forward.2} parent=0 // pred_region
    _
  $region37: #{gaussian_hamer_predictor_forward.2} parent=0 // pred_fallthru
    _
  %v35 = vld [vmem:[%s0] sm:$0xff]
  %v36 = vld [vmem:[%s0 + $0x8] sm:$0x3]
  %v37 = vld [vmem:[%s1] sm:$0xff]
  %v38 = vld [vmem:[%s1 + $0x8] sm:$0xff]
  %v39 = vld [vmem:[%s1 + $0x10] sm:$0xff]
  %v40 = vld [vmem:[%s1 + $0x18] sm:$0xff]
  %v41 = vld [vmem:[%s1 + $0x20] sm:$0xff]
  %v42 = vld [vmem:[%s1 + $0x28] sm:$0xff]
  %v43 = vld [vmem:[%s1 + $0x30] sm:$0xff]
  %v44 = vld [vmem:[%s1 + $0x38] sm:$0xff]
  %v45 = vld [vmem:[%s1 + $0x40] sm:$0xff]
  %v46 = vld [vmem:[%s1 + $0x48] sm:$0xff]
  %v47 = vld [vmem:[%s1 + $0x50] sm:$0xff]
  %v48 = vld [vmem:[%s1 + $0x58] sm:$0xff]
  %v49 = vld [vmem:[%s1 + $0x60] sm:$0xff]
  %v50 = vld [vmem:[%s1 + $0x68] sm:$0xff]
  %v51 = vld [vmem:[%s1 + $0x70] sm:$0xff]
  %v52 = vld [vmem:[%s1 + $0x78] sm:$0xff]
  %v53 = vpack.c.bf16 %v36, %v35
  %v54 = vld [vmem:[%s3] sm:$0xf]
  %v55 = vld [vmem:[%s3 + $0x4] sm:$0xf]
  %v56 = vld [vmem:[%s3 + $0x8] sm:$0xf]
  %v57 = vld [vmem:[%s3 + $0xc] sm:$0xf]
  %v62 = vunpack.c.l.b16 %v54
  %v63 = vunpack.c.l.b16 %v55
  %v64 = vunpack.c.l.b16 %v56
  %v65 = vunpack.c.l.b16 %v57
  %v66 = vpack.c.b16 %v63, %v62
  %v67 = vpack.c.b16 %v65, %v64
  %vm70 = vcmask 261120
  %v72 = vsel %vm70, %v53, 0
  %74 = vmatprep.subr.bf16.mxu0 0
  %75 = vmatpush1.bf16.msra.mxu0 %v66
  %76 = vmatprep.subr.bf16.mxu0 0
  %77 = vmatpush1.bf16.msra.mxu0 %v67
  %78 = vmatprep.subr.bf16.mxu0 0
  %79 = vmatpush1.bf16.msra.mxu0 0
  %80 = vmatprep.subr.bf16.mxu0 0
  %81 = vmatpush1.bf16.msra.mxu0 0
  %82 = vmatprep.subr.bf16.mxu0 0
  %83 = vmatpush1.bf16.msra.mxu0 0
  %84 = vmatprep.subr.bf16.mxu0 0
  %85 = vmatpush1.bf16.msra.mxu0 0
  %86 = vmatprep.subr.bf16.mxu0 0
  %87 = vmatpush1.bf16.msra.mxu0 0
  %88 = vmatprep.subr.bf16.mxu0 0
  %89 = vmatpush1.bf16.msra.mxu0 0
  %90 = vmatprep.subr.bf16.mxu0 0
  %91 = vmatpush1.bf16.msra.mxu0 0
  %92 = vmatprep.subr.bf16.mxu0 0
  %93 = vmatpush1.bf16.msra.mxu0 0
  %94 = vmatprep.subr.bf16.mxu0 0
  %95 = vmatpush1.bf16.msra.mxu0 0
  %96 = vmatprep.subr.bf16.mxu0 0
  %97 = vmatpush1.bf16.msra.mxu0 0
  %98 = vmatprep.subr.bf16.mxu0 0
  %99 = vmatpush1.bf16.msra.mxu0 0
  %100 = vmatprep.subr.bf16.mxu0 0
  %101 = vmatpush1.bf16.msra.mxu0 0
  %102 = vmatprep.subr.bf16.mxu0 0
  %103 = vmatpush1.bf16.msra.mxu0 0
  %104 = vmatprep.subr.bf16.mxu0 0
  %105 = vmatpush1.bf16.msra.mxu0 0
  %106 = vmatprep.mubr.bf16.mxu0 0
  %107 = vmatmul.mubr.bf16.gmra.mrb[0].mxu0 %v72
  %v108 = vpop.f32.mrb[0].mxu0
  %v109 = vadd.f32 0.0, %v108
  %v110 = vpop.f32.mrb[0].mxu0
  %v111 = vpop.f32.mrb[0].mxu0
  %v112 = vadd.f32 0.0, %v111
  %v113 = vpop.f32.mrb[0].mxu0
  %114 = vdwg.mxu0
  %v115 = vld [vmem:[%s4] sm:$0xf]
  %v116 = vld [vmem:[%s4 + $0x4] sm:$0xf]
  %v117 = vld [vmem:[%s4 + $0x8] sm:$0xf]
  %v118 = vld [vmem:[%s4 + $0xc] sm:$0xf]
  %v119 = vld [vmem:[%s2] sm:$0xff]
  %v120 = vld [vmem:[%s2 + $0x8] sm:$0xff]
  %v121 = vld [vmem:[%s2 + $0x10] sm:$0xff]
  %v122 = vld [vmem:[%s2 + $0x18] sm:$0xff]
  %v123 = vpack.c.bf16 %v120, %v119
  %v124 = vpack.c.bf16 %v122, %v121
  %v129 = vunpack.c.l.b16 %v115
  %v130 = vunpack.c.l.b16 %v116
  %v131 = vunpack.c.l.b16 %v117
  %v132 = vunpack.c.l.b16 %v118
  %v133 = vpack.c.b16 %v130, %v129
  %v134 = vpack.c.b16 %v132, %v131
  %v136 = vsel %vm70, %v133, 0
  %v139 = vsel %vm70, %v134, 0
  %141 = vmatprep.subr.bf16.mxu0 0
  %142 = vmatpush1.bf16.msra.mxu0 %v123
  %143 = vmatprep.subr.bf16.mxu0 0
  %144 = vmatpush1.bf16.msra.mxu0 %v124
  %145 = vmatprep.subr.bf16.mxu0 0
  %146 = vmatpush1.bf16.msra.mxu0 0
  %147 = vmatprep.subr.bf16.mxu0 0
  %148 = vmatpush1.bf16.msra.mxu0 0
  %149 = vmatprep.subr.bf16.mxu0 0
  %150 = vmatpush1.bf16.msra.mxu0 0
  %151 = vmatprep.subr.bf16.mxu0 0
  %152 = vmatpush1.bf16.msra.mxu0 0
  %153 = vmatprep.subr.bf16.mxu0 0
  %154 = vmatpush1.bf16.msra.mxu0 0
  %155 = vmatprep.subr.bf16.mxu0 0
  %156 = vmatpush1.bf16.msra.mxu0 0
  %157 = vmatprep.subr.bf16.mxu0 0
  %158 = vmatpush1.bf16.msra.mxu0 0
  %159 = vmatprep.subr.bf16.mxu0 0
  %160 = vmatpush1.bf16.msra.mxu0 0
  %161 = vmatprep.subr.bf16.mxu0 0
  %162 = vmatpush1.bf16.msra.mxu0 0
  %163 = vmatprep.subr.bf16.mxu0 0
  %164 = vmatpush1.bf16.msra.mxu0 0
  %165 = vmatprep.subr.bf16.mxu0 0
  %166 = vmatpush1.bf16.msra.mxu0 0
  %167 = vmatprep.subr.bf16.mxu0 0
  %168 = vmatpush1.bf16.msra.mxu0 0
  %169 = vmatprep.subr.bf16.mxu0 0
  %170 = vmatpush1.bf16.msra.mxu0 0
  %171 = vmatprep.subr.bf16.mxu0 0
  %172 = vmatpush1.bf16.msra.mxu0 0
  %173 = vmatprep.mubr.bf16.mxu0 0
  %174 = vmatmul.mubr.bf16.gmra.mrb[0].mxu0 %v136
  %v175 = vpop.f32.mrb[0].mxu0
  %v176 = vadd.f32 0.0, %v175
  %v177 = vpop.f32.mrb[0].mxu0
  %v178 = vpop.f32.mrb[0].mxu0
  %v179 = vadd.f32 0.0, %v178
  %v180 = vpop.f32.mrb[0].mxu0
  %181 = vmatprep.mubr.bf16.mxu0 0
  %182 = vmatmul.mubr.bf16.gmra.mrb[0].mxu0 %v139
  %v183 = vpop.f32.mrb[0].mxu0
  %v184 = vadd.f32 0.0, %v183
  %v185 = vpop.f32.mrb[0].mxu0
  %v186 = vpop.f32.mrb[0].mxu0
  %v187 = vadd.f32 0.0, %v186
  %v188 = vpop.f32.mrb[0].mxu0
  %189 = vdwg.mxu0
  %v190 = vpack.c.bf16 %v38, %v37
  %v191 = vpack.c.bf16 %v40, %v39
  %v192 = vpack.c.bf16 %v42, %v41
  %v193 = vpack.c.bf16 %v44, %v43
  %v194 = vpack.c.bf16 %v46, %v45
  %v195 = vpack.c.bf16 %v48, %v47
  %v196 = vpack.c.bf16 %v50, %v49
  %v197 = vpack.c.bf16 %v52, %v51
  %v198 = vld [vmem:[%s5] sm:$0xf]
  %v199 = vld [vmem:[%s5 + $0x4] sm:$0xf]
  %v200 = vld [vmem:[%s5 + $0x8] sm:$0xf]
  %v201 = vld [vmem:[%s5 + $0xc] sm:$0xf]
  %v206 = vunpack.c.l.b16 %v198
  %v207 = vunpack.c.l.b16 %v199
  %v208 = vunpack.c.l.b16 %v200
  %v209 = vunpack.c.l.b16 %v201
  %v210 = vpack.c.b16 %v207, %v206
  %v211 = vpack.c.b16 %v209, %v208
  %v215 = vsel %vm70, %v190, 0
  %v218 = vsel %vm70, %v191, 0
  %v221 = vsel %vm70, %v192, 0
  %v224 = vsel %vm70, %v193, 0
  %v227 = vsel %vm70, %v194, 0
  %v230 = vsel %vm70, %v195, 0
  %v233 = vsel %vm70, %v196, 0
  %v236 = vsel %vm70, %v197, 0
  %238 = vmatprep.subr.bf16.mxu0 0
  %239 = vmatpush1.bf16.msra.mxu0 %v210
  %240 = vmatprep.subr.bf16.mxu0 0
  %241 = vmatpush1.bf16.msra.mxu0 %v211
  %242 = vmatprep.subr.bf16.mxu0 0
  %243 = vmatpush1.bf16.msra.mxu0 0
  %244 = vmatprep.subr.bf16.mxu0 0
  %245 = vmatpush1.bf16.msra.mxu0 0
  %246 = vmatprep.subr.bf16.mxu0 0
  %247 = vmatpush1.bf16.msra.mxu0 0
  %248 = vmatprep.subr.bf16.mxu0 0
  %249 = vmatpush1.bf16.msra.mxu0 0
  %250 = vmatprep.subr.bf16.mxu0 0
  %251 = vmatpush1.bf16.msra.mxu0 0
  %252 = vmatprep.subr.bf16.mxu0 0
  %253 = vmatpush1.bf16.msra.mxu0 0
  %254 = vmatprep.subr.bf16.mxu0 0
  %255 = vmatpush1.bf16.msra.mxu0 0
  %256 = vmatprep.subr.bf16.mxu0 0
  %257 = vmatpush1.bf16.msra.mxu0 0
  %258 = vmatprep.subr.bf16.mxu0 0
  %259 = vmatpush1.bf16.msra.mxu0 0
  %260 = vmatprep.subr.bf16.mxu0 0
  %261 = vmatpush1.bf16.msra.mxu0 0
  %262 = vmatprep.subr.bf16.mxu0 0
  %263 = vmatpush1.bf16.msra.mxu0 0
  %264 = vmatprep.subr.bf16.mxu0 0
  %265 = vmatpush1.bf16.msra.mxu0 0
  %266 = vmatprep.subr.bf16.mxu0 0
  %267 = vmatpush1.bf16.msra.mxu0 0
  %268 = vmatprep.subr.bf16.mxu0 0
  %269 = vmatpush1.bf16.msra.mxu0 0
  %270 = vmatprep.mubr.bf16.mxu0 0
  %271 = vmatmul.mubr.bf16.gmra.mrb[0].mxu0 %v215
  %v272 = vpop.f32.mrb[0].mxu0
  %v273 = vadd.f32 0.0, %v272
  %v274 = vpop.f32.mrb[0].mxu0
  %v275 = vpop.f32.mrb[0].mxu0
  %v276 = vadd.f32 0.0, %v275
  %v277 = vpop.f32.mrb[0].mxu0
  %278 = vmatprep.mubr.bf16.mxu0 0
  %279 = vmatmul.mubr.bf16.gmra.mrb[0].mxu0 %v218
  %v280 = vpop.f32.mrb[0].mxu0
  %v281 = vadd.f32 0.0, %v280
  %v282 = vpop.f32.mrb[0].mxu0
  %v283 = vpop.f32.mrb[0].mxu0
  %v284 = vadd.f32 0.0, %v283
  %v285 = vpop.f32.mrb[0].mxu0
  %286 = vmatprep.mubr.bf16.mxu0 0
  %287 = vmatmul.mubr.bf16.gmra.mrb[0].mxu0 %v221
  %v288 = vpop.f32.mrb[0].mxu0
  %v289 = vadd.f32 0.0, %v288
  %v290 = vpop.f32.mrb[0].mxu0
  %v291 = vpop.f32.mrb[0].mxu0
  %v292 = vadd.f32 0.0, %v291
  %v293 = vpop.f32.mrb[0].mxu0
  %294 = vmatprep.mubr.bf16.mxu0 0
  %295 = vmatmul.mubr.bf16.gmra.mrb[0].mxu0 %v224
  %v296 = vpop.f32.mrb[0].mxu0
  %v297 = vadd.f32 0.0, %v296
  %v298 = vpop.f32.mrb[0].mxu0
  %v299 = vpop.f32.mrb[0].mxu0
  %v300 = vadd.f32 0.0, %v299
  %v301 = vpop.f32.mrb[0].mxu0
  %302 = vmatprep.mubr.bf16.mxu0 0
  %303 = vmatmul.mubr.bf16.gmra.mrb[0].mxu0 %v227
  %v304 = vpop.f32.mrb[0].mxu0
  %v305 = vadd.f32 0.0, %v304
  %v306 = vpop.f32.mrb[0].mxu0
  %v307 = vpop.f32.mrb[0].mxu0
  %v308 = vadd.f32 0.0, %v307
  %v309 = vpop.f32.mrb[0].mxu0
  %310 = vmatprep.mubr.bf16.mxu0 0
  %311 = vmatmul.mubr.bf16.gmra.mrb[0].mxu0 %v230
  %v312 = vpop.f32.mrb[0].mxu0
  %v313 = vadd.f32 0.0, %v312
  %v314 = vpop.f32.mrb[0].mxu0
  %v315 = vpop.f32.mrb[0].mxu0
  %v316 = vadd.f32 0.0, %v315
  %v317 = vpop.f32.mrb[0].mxu0
  %318 = vmatprep.mubr.bf16.mxu0 0
  %319 = vmatmul.mubr.bf16.gmra.mrb[0].mxu0 %v233
  %v320 = vpop.f32.mrb[0].mxu0
  %v321 = vadd.f32 0.0, %v320
  %v322 = vpop.f32.mrb[0].mxu0
  %v323 = vpop.f32.mrb[0].mxu0
  %v324 = vadd.f32 0.0, %v323
  %v325 = vpop.f32.mrb[0].mxu0
  %326 = vmatprep.mubr.bf16.mxu0 0
  %327 = vmatmul.mubr.bf16.gmra.mrb[0].mxu0 %v236
  %v328 = vpop.f32.mrb[0].mxu0
  %v329 = vadd.f32 0.0, %v328
  %v330 = vpop.f32.mrb[0].mxu0
  %v331 = vpop.f32.mrb[0].mxu0
  %v332 = vadd.f32 0.0, %v331
  %v333 = vpop.f32.mrb[0].mxu0
  %334 = vdwg.mxu0
  %v335 = vpack.c.bf16 %v112, %v109
  %v336 = vpack.c.bf16 %v179, %v176
  %v337 = vpack.c.bf16 %v187, %v184
  %v338 = vpack.c.bf16 %v276, %v273
  %v339 = vpack.c.bf16 %v284, %v281
  %v340 = vpack.c.bf16 %v292, %v289
  %v341 = vpack.c.bf16 %v300, %v297
  %v342 = vpack.c.bf16 %v308, %v305
  %v343 = vpack.c.bf16 %v316, %v313
  %v344 = vpack.c.bf16 %v324, %v321
  %v345 = vpack.c.bf16 %v332, %v329
  %v347 = vsel %vm70, %v335, 0
  %349 = vmatprep.subr.bf16.mxu0 0
  %350 = vmatpush1.bf16.msra.mxu0 %v336
  %351 = vmatprep.subr.bf16.mxu0 0
  %352 = vmatpush1.bf16.msra.mxu0 %v337
  %353 = vmatprep.subr.bf16.mxu0 0
  %354 = vmatpush1.bf16.msra.mxu0 0
  %355 = vmatprep.subr.bf16.mxu0 0
  %356 = vmatpush1.bf16.msra.mxu0 0
  %357 = vmatprep.subr.bf16.mxu0 0
  %358 = vmatpush1.bf16.msra.mxu0 0
  %359 = vmatprep.subr.bf16.mxu0 0
  %360 = vmatpush1.bf16.msra.mxu0 0
  %361 = vmatprep.subr.bf16.mxu0 0
  %362 = vmatpush1.bf16.msra.mxu0 0
  %363 = vmatprep.subr.bf16.mxu0 0
  %364 = vmatpush1.bf16.msra.mxu0 0
  %365 = vmatprep.subr.bf16.mxu0 0
  %366 = vmatpush1.bf16.msra.mxu0 0
  %367 = vmatprep.subr.bf16.mxu0 0
  %368 = vmatpush1.bf16.msra.mxu0 0
  %369 = vmatprep.subr.bf16.mxu0 0
  %370 = vmatpush1.bf16.msra.mxu0 0
  %371 = vmatprep.subr.bf16.mxu0 0
  %372 = vmatpush1.bf16.msra.mxu0 0
  %373 = vmatprep.subr.bf16.mxu0 0
  %374 = vmatpush1.bf16.msra.mxu0 0
  %375 = vmatprep.subr.bf16.mxu0 0
  %376 = vmatpush1.bf16.msra.mxu0 0
  %377 = vmatprep.subr.bf16.mxu0 0
  %378 = vmatpush1.bf16.msra.mxu0 0
  %379 = vmatprep.subr.bf16.mxu0 0
  %380 = vmatpush1.bf16.msra.mxu0 0
  %381 = vmatprep.mubr.bf16.mxu0 0
  %382 = vmatmul.mubr.bf16.gmra.mrb[0].mxu0 %v347
  %v383 = vpop.f32.mrb[0].mxu0
  %v384 = vadd.f32 0.0, %v383
  %v385 = vpop.f32.mrb[0].mxu0
  %v386 = vpop.f32.mrb[0].mxu0
  %v387 = vadd.f32 0.0, %v386
  %v388 = vpop.f32.mrb[0].mxu0
  %389 = vdwg.mxu0
  %v390 = vmul.f32 %v384, 0.17677669
  %v391 = vmul.f32 %v387, 0.17677669
  %vm392 = vcmask 523264
  %v393 = vsel %vm392, %v390, -inf
  %394 = vmax.xlane.f32.xlu0 %v393
  %v395 = vpop.xlane.xlu0 %394
  %vm396 = vcmask 517120
  %v397 = vsel %vm396, %v391, -inf
  %398 = vmax.xlane.f32.xlu0 %v397
  %v399 = vpop.xlane.xlu0 %398
  %v400 = vsub.f32 %v390, %v395
  %v401 = vsub.f32 %v391, %v399
  %v402 = vmul.f32 %v400, 1.442695
  %v403 = vpow.pop %v402
  %v404 = vmul.f32 %v401, 1.442695
  %v405 = vpow.pop %v404
  %v406 = vsel %vm392, %v403, 0.0
  %407 = vadd.xlane.f32.xlu0 %v406
  %v408 = vpop.xlane.xlu0 %407
  %v409 = vsel %vm396, %v405, 0.0
  %410 = vadd.xlane.f32.xlu0 %v409
  %v411 = vpop.xlane.xlu0 %410
  %v412 = vrcp.pop %v408
  %v413 = vrcp.pop %v411
  %v414 = vmul.f32 %v403, %v412
  %v415 = vmul.f32 %v405, %v413
  %v416 = vpack.c.bf16 %v415, %v414
  %v418 = vsel %vm392, %v416, 0
  %420 = vmatprep.subr.bf16.mxu0 0
  %421 = vmatpush1.bf16.msra.mxu0 %v338
  %422 = vmatprep.subr.bf16.mxu0 0
  %423 = vmatpush1.bf16.msra.mxu0 %v339
  %424 = vmatprep.subr.bf16.mxu0 0
  %425 = vmatpush1.bf16.msra.mxu0 %v340
  %426 = vmatprep.subr.bf16.mxu0 0
  %427 = vmatpush1.bf16.msra.mxu0 %v341
  %428 = vmatprep.subr.bf16.mxu0 0
  %429 = vmatpush1.bf16.msra.mxu0 0
  %430 = vmatprep.subr.bf16.mxu0 0
  %431 = vmatpush1.bf16.msra.mxu0 0
  %432 = vmatprep.subr.bf16.mxu0 0
  %433 = vmatpush1.bf16.msra.mxu0 0
  %434 = vmatprep.subr.bf16.mxu0 0
  %435 = vmatpush1.bf16.msra.mxu0 0
  %436 = vmatprep.subr.bf16.mxu0 0
  %437 = vmatpush1.bf16.msra.mxu0 0
  %438 = vmatprep.subr.bf16.mxu0 0
  %439 = vmatpush1.bf16.msra.mxu0 0
  %440 = vmatprep.subr.bf16.mxu0 0
  %441 = vmatpush1.bf16.msra.mxu0 0
  %442 = vmatprep.subr.bf16.mxu0 0
  %443 = vmatpush1.bf16.msra.mxu0 0
  %444 = vmatprep.subr.bf16.mxu0 0
  %445 = vmatpush1.bf16.msra.mxu0 0
  %446 = vmatprep.subr.bf16.mxu0 0
  %447 = vmatpush1.bf16.msra.mxu0 0
  %448 = vmatprep.subr.bf16.mxu0 0
  %449 = vmatpush1.bf16.msra.mxu0 0
  %450 = vmatprep.subr.bf16.mxu0 0
  %451 = vmatpush1.bf16.msra.mxu0 0
  %452 = vmatprep.mubr.bf16.mxu0 0
  %453 = vmatmul.mubr.bf16.gmra.mrb[0].mxu0 %v418
  %v454 = vpop.f32.mrb[0].mxu0
  %v455 = vadd.f32 0.0, %v454
  %v456 = vpop.f32.mrb[0].mxu0
  %v457 = vpop.f32.mrb[0].mxu0
  %v458 = vadd.f32 0.0, %v457
  %v459 = vpop.f32.mrb[0].mxu0
  %460 = vdwg.mxu0
  %v461 = vsel %vm70, %v37, 0.0
  %v462 = vsel %vm70, %v38, 0.0
  %v463 = vadd.f32 %v461, %v462
  %v464 = vsel %vm70, %v39, 0.0
  %v465 = vadd.f32 %v463, %v464
  %v466 = vsel %vm70, %v40, 0.0
  %v467 = vadd.f32 %v465, %v466
  %v468 = vsel %vm70, %v41, 0.0
  %v469 = vadd.f32 %v467, %v468
  %v470 = vsel %vm70, %v42, 0.0
  %v471 = vadd.f32 %v469, %v470
  %v472 = vsel %vm70, %v43, 0.0
  %v473 = vadd.f32 %v471, %v472
  %v474 = vsel %vm70, %v44, 0.0
  %v475 = vadd.f32 %v473, %v474
  %v476 = vrot.slane %v475, 4
  %v477 = vadd.f32 %v475, %v476
  %v478 = vrot.slane %v477, 2
  %v479 = vadd.f32 %v477, %v478
  %v480 = vrot.slane %v479, 1
  %v481 = vadd.f32 %v479, %v480
  %v482 = vrcp.pop 64.0
  %v483 = vmul.f32 %v481, %v482
  %486 = vrot.lane.b32.xlu0 %v336, 64
  %v487 = vpop.permute.xlu0 %486
  %488 = vrot.lane.b32.xlu0 %v337, 64
  %v489 = vpop.permute.xlu0 %488
  %492 = vmatprep.subr.bf16.mxu0 0
  %493 = vmatpush1.bf16.msra.mxu0 %v487
  %494 = vmatprep.subr.bf16.mxu0 0
  %495 = vmatpush1.bf16.msra.mxu0 %v489
  %496 = vmatprep.subr.bf16.mxu0 0
  %497 = vmatpush1.bf16.msra.mxu0 0
  %498 = vmatprep.subr.bf16.mxu0 0
  %499 = vmatpush1.bf16.msra.mxu0 0
  %500 = vmatprep.subr.bf16.mxu0 0
  %501 = vmatpush1.bf16.msra.mxu0 0
  %502 = vmatprep.subr.bf16.mxu0 0
  %503 = vmatpush1.bf16.msra.mxu0 0
  %504 = vmatprep.subr.bf16.mxu0 0
  %505 = vmatpush1.bf16.msra.mxu0 0
  %506 = vmatprep.subr.bf16.mxu0 0
  %507 = vmatpush1.bf16.msra.mxu0 0
  %508 = vmatprep.subr.bf16.mxu0 0
  %509 = vmatpush1.bf16.msra.mxu0 0
  %510 = vmatprep.subr.bf16.mxu0 0
  %511 = vmatpush1.bf16.msra.mxu0 0
  %512 = vmatprep.subr.bf16.mxu0 0
  %513 = vmatpush1.bf16.msra.mxu0 0
  %514 = vmatprep.subr.bf16.mxu0 0
  %515 = vmatpush1.bf16.msra.mxu0 0
  %516 = vmatprep.subr.bf16.mxu0 0
  %517 = vmatpush1.bf16.msra.mxu0 0
  %518 = vmatprep.subr.bf16.mxu0 0
  %519 = vmatpush1.bf16.msra.mxu0 0
  %520 = vmatprep.subr.bf16.mxu0 0
  %521 = vmatpush1.bf16.msra.mxu0 0
  %522 = vmatprep.subr.bf16.mxu0 0
  %523 = vmatpush1.bf16.msra.mxu0 0
  %524 = vmatprep.mubr.bf16.mxu0 0
  %525 = vmatmul.mubr.bf16.gmra.mrb[0].mxu0 %v347
  %v526 = vpop.f32.mrb[0].mxu0
  %v527 = vadd.f32 0.0, %v526
  %v528 = vpop.f32.mrb[0].mxu0
  %v529 = vpop.f32.mrb[0].mxu0
  %v530 = vadd.f32 0.0, %v529
  %v531 = vpop.f32.mrb[0].mxu0
  %532 = vdwg.mxu0
  %v533 = vmul.f32 %v527, 0.17677669
  %v534 = vmul.f32 %v530, 0.17677669
  %v535 = vsel %vm392, %v533, -inf
  %536 = vmax.xlane.f32.xlu0 %v535
  %v537 = vpop.xlane.xlu0 %536
  %v538 = vsel %vm396, %v534, -inf
  %539 = vmax.xlane.f32.xlu0 %v538
  %v540 = vpop.xlane.xlu0 %539
  %v541 = vsub.f32 %v533, %v537
  %v542 = vsub.f32 %v534, %v540
  %v543 = vmul.f32 %v541, 1.442695
  %v544 = vpow.pop %v543
  %v545 = vmul.f32 %v542, 1.442695
  %v546 = vpow.pop %v545
  %v547 = vsel %vm392, %v544, 0.0
  %548 = vadd.xlane.f32.xlu0 %v547
  %v549 = vpop.xlane.xlu0 %548
  %v550 = vsel %vm396, %v546, 0.0
  %551 = vadd.xlane.f32.xlu0 %v550
  %v552 = vpop.xlane.xlu0 %551
  %v553 = vrcp.pop %v549
  %v554 = vrcp.pop %v552
  %v555 = vmul.f32 %v544, %v553
  %v556 = vmul.f32 %v546, %v554
  %v557 = vpack.c.bf16 %v556, %v555
  %v559 = vsel %vm392, %v557, 0
  %561 = vmatprep.subr.bf16.mxu0 0
  %562 = vmatpush1.bf16.msra.mxu0 %v342
  %563 = vmatprep.subr.bf16.mxu0 0
  %564 = vmatpush1.bf16.msra.mxu0 %v343
  %565 = vmatprep.subr.bf16.mxu0 0
  %566 = vmatpush1.bf16.msra.mxu0 %v344
  %567 = vmatprep.subr.bf16.mxu0 0
  %568 = vmatpush1.bf16.msra.mxu0 %v345
  %569 = vmatprep.subr.bf16.mxu0 0
  %570 = vmatpush1.bf16.msra.mxu0 0
  %571 = vmatprep.subr.bf16.mxu0 0
  %572 = vmatpush1.bf16.msra.mxu0 0
  %573 = vmatprep.subr.bf16.mxu0 0
  %574 = vmatpush1.bf16.msra.mxu0 0
  %575 = vmatprep.subr.bf16.mxu0 0
  %576 = vmatpush1.bf16.msra.mxu0 0
  %577 = vmatprep.subr.bf16.mxu0 0
  %578 = vmatpush1.bf16.msra.mxu0 0
  %579 = vmatprep.subr.bf16.mxu0 0
  %580 = vmatpush1.bf16.msra.mxu0 0
  %581 = vmatprep.subr.bf16.mxu0 0
  %582 = vmatpush1.bf16.msra.mxu0 0
  %583 = vmatprep.subr.bf16.mxu0 0
  %584 = vmatpush1.bf16.msra.mxu0 0
  %585 = vmatprep.subr.bf16.mxu0 0
  %586 = vmatpush1.bf16.msra.mxu0 0
  %587 = vmatprep.subr.bf16.mxu0 0
  %588 = vmatpush1.bf16.msra.mxu0 0
  %589 = vmatprep.subr.bf16.mxu0 0
  %590 = vmatpush1.bf16.msra.mxu0 0
  %591 = vmatprep.subr.bf16.mxu0 0
  %592 = vmatpush1.bf16.msra.mxu0 0
  %593 = vmatprep.mubr.bf16.mxu0 0
  %594 = vmatmul.mubr.bf16.gmra.mrb[0].mxu0 %v559
  %v595 = vpop.f32.mrb[0].mxu0
  %v596 = vadd.f32 0.0, %v595
  %v597 = vpop.f32.mrb[0].mxu0
  %v598 = vpop.f32.mrb[0].mxu0
  %v599 = vadd.f32 0.0, %v598
  %v600 = vpop.f32.mrb[0].mxu0
  %601 = vdwg.mxu0
  %v602 = vsel %vm70, %v45, 0.0
  %v603 = vsel %vm70, %v46, 0.0
  %v604 = vadd.f32 %v602, %v603
  %v605 = vsel %vm70, %v47, 0.0
  %v606 = vadd.f32 %v604, %v605
  %v607 = vsel %vm70, %v48, 0.0
  %v608 = vadd.f32 %v606, %v607
  %v609 = vsel %vm70, %v49, 0.0
  %v610 = vadd.f32 %v608, %v609
  %v611 = vsel %vm70, %v50, 0.0
  %v612 = vadd.f32 %v610, %v611
  %v613 = vsel %vm70, %v51, 0.0
  %v614 = vadd.f32 %v612, %v613
  %v615 = vsel %vm70, %v52, 0.0
  %v616 = vadd.f32 %v614, %v615
  %v617 = vrot.slane %v616, 4
  %v618 = vadd.f32 %v616, %v617
  %v619 = vrot.slane %v618, 2
  %v620 = vadd.f32 %v618, %v619
  %v621 = vrot.slane %v620, 1
  %v622 = vadd.f32 %v620, %v621
  %v623 = vmul.f32 %v622, %v482
  %vm626 = vcmask 1041408
  %v627 = vrot.slane %v596, 6
  %v628 = vrot.slane %v599, 6
  %v629 = vsel %vm626, %v627, %v628
  %v632 = vsel %vm626, %v458, %v627
  %v633 = vpack.c.bf16 %v632, %v455
  %v634 = vpack.c.bf16 %v629, %v629
  %v635 = vld [vmem:[%s6] sm:$0xf]
  %v636 = vld [vmem:[%s6 + $0x4] sm:$0xf]
  %v637 = vld [vmem:[%s6 + $0x8] sm:$0xf]
  %v638 = vld [vmem:[%s6 + $0xc] sm:$0xf]
  %v643 = vunpack.c.l.b16 %v635
  %v644 = vunpack.c.l.b16 %v636
  %v645 = vunpack.c.l.b16 %v637
  %v646 = vunpack.c.l.b16 %v638
  %v647 = vpack.c.b16 %v644, %v643
  %v648 = vpack.c.b16 %v646, %v645
  %v652 = vsel %vm70, %v633, 0
  %v655 = vsel %vm70, %v634, 0
  %657 = vmatprep.subr.bf16.mxu0 0
  %658 = vmatpush1.bf16.msra.mxu0 %v647
  %659 = vmatprep.subr.bf16.mxu0 0
  %660 = vmatpush1.bf16.msra.mxu0 %v648
  %661 = vmatprep.subr.bf16.mxu0 0
  %662 = vmatpush1.bf16.msra.mxu0 0
  %663 = vmatprep.subr.bf16.mxu0 0
  %664 = vmatpush1.bf16.msra.mxu0 0
  %665 = vmatprep.subr.bf16.mxu0 0
  %666 = vmatpush1.bf16.msra.mxu0 0
  %667 = vmatprep.subr.bf16.mxu0 0
  %668 = vmatpush1.bf16.msra.mxu0 0
  %669 = vmatprep.subr.bf16.mxu0 0
  %670 = vmatpush1.bf16.msra.mxu0 0
  %671 = vmatprep.subr.bf16.mxu0 0
  %672 = vmatpush1.bf16.msra.mxu0 0
  %673 = vmatprep.subr.bf16.mxu0 0
  %674 = vmatpush1.bf16.msra.mxu0 0
  %675 = vmatprep.subr.bf16.mxu0 0
  %676 = vmatpush1.bf16.msra.mxu0 0
  %677 = vmatprep.subr.bf16.mxu0 0
  %678 = vmatpush1.bf16.msra.mxu0 0
  %679 = vmatprep.subr.bf16.mxu0 0
  %680 = vmatpush1.bf16.msra.mxu0 0
  %681 = vmatprep.subr.bf16.mxu0 0
  %682 = vmatpush1.bf16.msra.mxu0 0
  %683 = vmatprep.subr.bf16.mxu0 0
  %684 = vmatpush1.bf16.msra.mxu0 0
  %685 = vmatprep.subr.bf16.mxu0 0
  %686 = vmatpush1.bf16.msra.mxu0 0
  %687 = vmatprep.subr.bf16.mxu0 0
  %688 = vmatpush1.bf16.msra.mxu0 0
  %689 = vmatprep.mubr.bf16.mxu0 0
  %690 = vmatmul.mubr.bf16.gmra.mrb[0].mxu0 %v652
  %v691 = vpop.f32.mrb[0].mxu0
  %v692 = vadd.f32 0.0, %v691
  %v693 = vpop.f32.mrb[0].mxu0
  %v694 = vpop.f32.mrb[0].mxu0
  %v695 = vadd.f32 0.0, %v694
  %v696 = vpop.f32.mrb[0].mxu0
  %697 = vmatprep.mubr.bf16.mxu0 0
  %698 = vmatmul.mubr.bf16.gmra.mrb[0].mxu0 %v655
  %v699 = vpop.f32.mrb[0].mxu0
  %v700 = vadd.f32 0.0, %v699
  %v701 = vpop.f32.mrb[0].mxu0
  %v702 = vpop.f32.mrb[0].mxu0
  %v703 = vpop.f32.mrb[0].mxu0
  %704 = vdwg.mxu0
  %v705 = vadd.f32 %v692, %v35
  %v706 = vadd.f32 %v695, %v36
  %707 = vst.msk [vmem:[%s9] sm:$0xff] %vm70, %v705
  %vm708 = vcmask 254976
  %709 = vst.msk [vmem:[%s9 + $0x8] sm:$0x3] %vm708, %v706
  %v712 = vrot.slane %v35, 6
  %v713 = vrot.slane %v36, 6
  %v714 = vsel %vm626, %v712, %v713
  %v717 = vadd.f32 %v695, %v712
  %v718 = vadd.f32 %v700, %v714
  %s719 = scalar_lea.vmem %s9, 16
  %vm720 = vcmask 261122
  %721 = vst.msk [vmem:[%s719 - $0x2] sm:$0xfc] %vm720, %v717
  %vm722 = vcmask 257024
  %723 = vst.msk [vmem:[%s719 + $0x6] sm:$0xf] %vm722, %v718
  %vm724 = vcmask 1040384
  %v725 = vsel %vm724, %v483, %v623
  %v726 = vld [vmem:[%s7] sm:$0xff]
  %v727 = vld [vmem:[%s7 + $0x8] sm:$0xff]
  %v728 = vld [vmem:[%s7 + $0x10] sm:$0xff]
  %v729 = vld [vmem:[%s7 + $0x18] sm:$0xff]
  %v730 = vld [vmem:[%s8] sm:$0x1]
  %v732 = vlaneseq
  %v733 = vshrl.u32 %v732, 7
  %v734 = vsub.s32 0, %v733
  %v735 = vrot.slane %v730, %v734
  %v738 = vsel %vm70, %v725, 0
  %740 = vmatprep.subr.mxu0 0.0
  %741 = vmatpush1.msra.mxu0 %v726
  %742 = vmatprep.subr.mxu0 0.0
  %743 = vmatpush1.msra.mxu0 %v727
  %744 = vmatprep.subr.mxu0 0.0
  %745 = vmatpush1.msra.mxu0 %v728
  %746 = vmatprep.subr.mxu0 0.0
  %747 = vmatpush1.msra.mxu0 %v729
  %748 = vmatprep.subr.mxu0 0.0
  %749 = vmatpush1.msra.mxu0 0.0
  %750 = vmatprep.subr.mxu0 0.0
  %751 = vmatpush1.msra.mxu0 0.0
  %752 = vmatprep.subr.mxu0 0.0
  %753 = vmatpush1.msra.mxu0 0.0
  %754 = vmatprep.subr.mxu0 0.0
  %755 = vmatpush1.msra.mxu0 0.0
  %756 = vmatprep.subr.mxu0 0.0
  %757 = vmatpush1.msra.mxu0 0.0
  %758 = vmatprep.subr.mxu0 0.0
  %759 = vmatpush1.msra.mxu0 0.0
  %760 = vmatprep.subr.mxu0 0.0
  %761 = vmatpush1.msra.mxu0 0.0
  %762 = vmatprep.subr.mxu0 0.0
  %763 = vmatpush1.msra.mxu0 0.0
  %764 = vmatprep.subr.mxu0 0.0
  %765 = vmatpush1.msra.mxu0 0.0
  %766 = vmatprep.subr.mxu0 0.0
  %767 = vmatpush1.msra.mxu0 0.0
  %768 = vmatprep.subr.mxu0 0.0
  %769 = vmatpush1.msra.mxu0 0.0
  %770 = vmatprep.subr.mxu0 0.0
  %771 = vmatpush1.msra.mxu0 0.0
  %772 = vmatprep.subr.mxu0 0.0
  %773 = vmatpush1.msra.mxu0 0.0
  %774 = vmatprep.subr.mxu0 0.0
  %775 = vmatpush1.msra.mxu0 0.0
  %776 = vmatprep.subr.mxu0 0.0
  %777 = vmatpush1.msra.mxu0 0.0
  %778 = vmatprep.subr.mxu0 0.0
  %779 = vmatpush1.msra.mxu0 0.0
  %780 = vmatprep.subr.mxu0 0.0
  %781 = vmatpush1.msra.mxu0 0.0
  %782 = vmatprep.subr.mxu0 0.0
  %783 = vmatpush1.msra.mxu0 0.0
  %784 = vmatprep.subr.mxu0 0.0
  %785 = vmatpush1.msra.mxu0 0.0
  %786 = vmatprep.subr.mxu0 0.0
  %787 = vmatpush1.msra.mxu0 0.0
  %788 = vmatprep.subr.mxu0 0.0
  %789 = vmatpush1.msra.mxu0 0.0
  %790 = vmatprep.subr.mxu0 0.0
  %791 = vmatpush1.msra.mxu0 0.0
  %792 = vmatprep.subr.mxu0 0.0
  %793 = vmatpush1.msra.mxu0 0.0
  %794 = vmatprep.subr.mxu0 0.0
  %795 = vmatpush1.msra.mxu0 0.0
  %796 = vmatprep.subr.mxu0 0.0
  %797 = vmatpush1.msra.mxu0 0.0
  %798 = vmatprep.subr.mxu0 0.0
  %799 = vmatpush1.msra.mxu0 0.0
  %800 = vmatprep.subr.mxu0 0.0
  %801 = vmatpush1.msra.mxu0 0.0
  %802 = vmatprep.subr.mxu0 0.0
  %803 = vmatpush1.msra.mxu0 0.0
  %804 = vmatprep.mubr.f32.mxu0 0.0
  %805 = vmatmul.mubr.f32.gmra.mrb[0].mxu0 %v738
  %v806 = vpop.f32.mrb[0].mxu0
  %v807 = vadd.f32 %v735, %v806
  %v808 = vpop.f32.mrb[0].mxu0
  %809 = vdwg.mxu0
  %vm810 = vcmask 17408
  %811 = vst.msk [vmem:[%s10] sm:$0x3] %vm810, %v807
  // Predicated region
  $region38: #{gaussian_hamer_predictor_forward.2} parent=0 // pred_check
    _
  $region39: #{gaussian_hamer_predictor_forward.2} parent=0 // pred_check_branch
    %813 = sbr.rel (0) target = $region41
  $region40: #{gaussian_hamer_predictor_forward.2} parent=0 // pred_region
    _
  $region41: #{gaussian_hamer_predictor_forward.2} parent=0 // pred_fallthru
    _
  // Predicated region
  $region42: #{gaussian_hamer_predictor_forward.2} parent=0 // pred_check
    _
  $region43: #{gaussian_hamer_predictor_forward.2} parent=0 // pred_check_branch
    %815 = sbr.rel (0) target = $region45
  $region44: #{gaussian_hamer_predictor_forward.2} parent=0 // pred_region
    _
  $region45: #{gaussian_hamer_predictor_forward.2} parent=0 // pred_fallthru
    _
  // Predicated region
  $region46: #{gaussian_hamer_predictor_forward.2} parent=0 // pred_check
    _
  $region47: #{gaussian_hamer_predictor_forward.2} parent=0 // pred_check_branch
    %817 = sbr.rel (0) target = $region49
  $region48: #{gaussian_hamer_predictor_forward.2} parent=0 // pred_region
    _
  $region49: #{gaussian_hamer_predictor_forward.2} parent=0 // pred_fallthru
    _
  // Predicated region
  $region50: #{gaussian_hamer_predictor_forward.2} parent=0 // pred_check
    _
  $region51: #{gaussian_hamer_predictor_forward.2} parent=0 // pred_check_branch
    %819 = sbr.rel (0) target = $region53
  $region52: #{gaussian_hamer_predictor_forward.2} parent=0 // pred_region
    _
  $region53: #{gaussian_hamer_predictor_forward.2} parent=0 // pred_fallthru
    _

// kernel: gaussian_hamer_predictor_forward.3
$region0: #{gaussian_hamer_predictor_forward.3}
  #allocation0 [shape = 'u32[]', space=smem, size = 0x4, offset = 0x4, fixed_abs, tag = 'smem constant byte address 0x4 - core index']
  #allocation1 [shape = 'u32[144,128]{1,0:T(1,128)}', space=vmem, size = 0x12000, scoped, tag = 'internal scratch']
  %s0 = inlined_call_operand.vmem [shape: f32[2,25], index: 0, kind: input, shape index: {}]
  %s1 = inlined_call_operand.vmem [shape: bf16[20,32], index: 1, kind: input, shape index: {}]
  %s2 = inlined_call_operand.vmem [shape: bf16[32,7168], index: 2, kind: input, shape index: {}]
  %s3 = inlined_call_operand.vmem [shape: f32[1,7168], index: 3, kind: input, shape index: {}]
  %s4 = inlined_call_operand.vmem [shape: f32[2,2,1536], index: 4, kind: input, shape index: {}]
  %s5 = inlined_call_operand.vmem [shape: f32[2,3,128], index: 5, kind: input, shape index: {}]
  %s6 = inlined_call_operand.vmem [shape: f32[2,2,1536], index: 6, kind: output, shape index: {0}]
  %s7 = inlined_call_operand.vmem [shape: f32[2,2,2048], index: 7, kind: output, shape index: {1}]
  %s8 = inlined_call_operand.vmem [shape: f32[2,2,512], index: 8, kind: output, shape index: {2}]
  %s9 = inlined_call_operand.vmem [shape: f32[2,2,1536], index: 9, kind: output, shape index: {3}]
  %s10 = inlined_call_operand.vmem [shape: f32[2,2,1536], index: 10, kind: output, shape index: {4}]
  %s11 = inlined_call_operand.vmem [shape: f32[2,2,1536], index: 11, kind: output, shape index: {5}]
  %s12 = inlined_call_operand.vmem [shape: f32[2,2,1536], index: 12, kind: output, shape index: {6}]
  %s13 = inlined_call_operand.vmem [shape: f32[2,3,128], index: 13, kind: output, shape index: {7}]
  %14 = xla_tuple %s6, %s7, %s8, %s9, %s10, %s11, %s12, %s13
  %s15 = sld [smem:[#allocation0]]
  $region94: #{gaussian_hamer_predictor_forward.3} parent=0
    _
  %s17 = ssub.s32 1, %s15
  %s18 = scalar_select 0, %s17, %s15
  $region1: #{gaussian_hamer_predictor_forward.3} parent=0
    #allocation2 [shape = 'u8[1024]{0}', space=smem, size = 0x400, scoped, tag = 'input window, operand 0, single buffered']
    #allocation3 [shape = 's32[1]{0}', space=sflag, size = 0x4, scoped, tag = 'scoped memory for gaussian_hamer_predictor_forward.3']
    %19 = vsyncpa [#allocation3], 0
    // Predicated region
    $region2: #{gaussian_hamer_predictor_forward.3} parent=1 // pred_check
      _
    $region3: #{gaussian_hamer_predictor_forward.3} parent=1 // pred_check_branch
      %21 = sbr.rel (0) target = $region5
    $region4: #{gaussian_hamer_predictor_forward.3} parent=1 // pred_region
      %s23 = ssub.s32 32, 32
      %24 = vsyncadd [#allocation3], %s23
      %s26 = sshll.u32 %s0, 4
      %s27 = int_to_ptr.vmem [resolvable:$true] %s26
      %29 = dma.vmem_to_smem %s27, 32, [#allocation2], [#allocation3]
    $region5: #{gaussian_hamer_predictor_forward.3} parent=1 // pred_fallthru
      _
    // Predicated region
    $region6: #{gaussian_hamer_predictor_forward.3} parent=1 // pred_check
      _
    $region7: #{gaussian_hamer_predictor_forward.3} parent=1 // pred_check_branch
      %31 = sbr.rel (0) target = $region9
    $region8: #{gaussian_hamer_predictor_forward.3} parent=1 // pred_region
      _
    $region9: #{gaussian_hamer_predictor_forward.3} parent=1 // pred_fallthru
      _
    // Predicated region
    $region10: #{gaussian_hamer_predictor_forward.3} parent=1 // pred_check
      _
    $region11: #{gaussian_hamer_predictor_forward.3} parent=1 // pred_check_branch
      %33 = sbr.rel (0) target = $region13
    $region12: #{gaussian_hamer_predictor_forward.3} parent=1 // pred_region
      _
    $region13: #{gaussian_hamer_predictor_forward.3} parent=1 // pred_fallthru
      _
    // Predicated region
    $region14: #{gaussian_hamer_predictor_forward.3} parent=1 // pred_check
      _
    $region15: #{gaussian_hamer_predictor_forward.3} parent=1 // pred_check_branch
      %35 = sbr.rel (0) target = $region17
    $region16: #{gaussian_hamer_predictor_forward.3} parent=1 // pred_region
      _
    $region17: #{gaussian_hamer_predictor_forward.3} parent=1 // pred_fallthru
      _
    // Predicated region
    $region18: #{gaussian_hamer_predictor_forward.3} parent=1 // pred_check
      _
    $region19: #{gaussian_hamer_predictor_forward.3} parent=1 // pred_check_branch
      %37 = sbr.rel (0) target = $region21
    $region20: #{gaussian_hamer_predictor_forward.3} parent=1 // pred_region
      _
    $region21: #{gaussian_hamer_predictor_forward.3} parent=1 // pred_fallthru
      _
    // Predicated region
    $region22: #{gaussian_hamer_predictor_forward.3} parent=1 // pred_check
      _
    $region23: #{gaussian_hamer_predictor_forward.3} parent=1 // pred_check_branch
      %39 = sbr.rel (0) target = $region25
    $region24: #{gaussian_hamer_predictor_forward.3} parent=1 // pred_region
      _
    $region25: #{gaussian_hamer_predictor_forward.3} parent=1 // pred_fallthru
      _
    // Predicated region
    $region26: #{gaussian_hamer_predictor_forward.3} parent=1 // pred_check
      _
    $region27: #{gaussian_hamer_predictor_forward.3} parent=1 // pred_check_branch
      %41 = sbr.rel (0) target = $region29
    $region28: #{gaussian_hamer_predictor_forward.3} parent=1 // pred_region
      %42 = dma.done [#allocation3], 32
    $region29: #{gaussian_hamer_predictor_forward.3} parent=1 // pred_fallthru
      _
    %43 = sfence
    %v45 = vld [vmem:[%s1] sm:$0xf]
    %v46 = vld [vmem:[%s1 + $0x4] sm:$0xf]
    %v47 = vld [vmem:[%s1 + $0x8] sm:$0x3]
    %v48 = vld [vmem:[%s2] sm:$0xff]
    %v49 = vld [vmem:[%s2 + $0x8] sm:$0xff]
    %v50 = vld [vmem:[%s2 + $0x10] sm:$0xff]
    %v51 = vld [vmem:[%s2 + $0x18] sm:$0xff]
    %v52 = vld [vmem:[%s2 + $0x20] sm:$0xff]
    %v53 = vld [vmem:[%s2 + $0x28] sm:$0xff]
    %v54 = vld [vmem:[%s2 + $0x30] sm:$0xff]
    %v55 = vld [vmem:[%s2 + $0x38] sm:$0xff]
    %v56 = vld [vmem:[%s2 + $0x40] sm:$0xff]
    %v57 = vld [vmem:[%s2 + $0x48] sm:$0xff]
    %v58 = vld [vmem:[%s2 + $0x50] sm:$0xff]
    %v59 = vld [vmem:[%s2 + $0x58] sm:$0xff]
    %v60 = vld [vmem:[%s2 + $0x60] sm:$0xff]
    %v61 = vld [vmem:[%s2 + $0x68] sm:$0xff]
    %v62 = vld [vmem:[%s2 + $0x70] sm:$0xff]
    %v63 = vld [vmem:[%s2 + $0x78] sm:$0xff]
    %v64 = vld [vmem:[%s2 + $0x80] sm:$0xff]
    %v65 = vld [vmem:[%s2 + $0x88] sm:$0xff]
    %v66 = vld [vmem:[%s2 + $0x90] sm:$0xff]
    %v67 = vld [vmem:[%s2 + $0x98] sm:$0xff]
    %v68 = vld [vmem:[%s2 + $0xa0] sm:$0xff]
    %v69 = vld [vmem:[%s2 + $0xa8] sm:$0xff]
    %v70 = vld [vmem:[%s2 + $0xb0] sm:$0xff]
    %v71 = vld [vmem:[%s2 + $0xb8] sm:$0xff]
    %v72 = vld [vmem:[%s2 + $0xc0] sm:$0xff]
    %v73 = vld [vmem:[%s2 + $0xc8] sm:$0xff]
    %v74 = vld [vmem:[%s2 + $0xd0] sm:$0xff]
    %v75 = vld [vmem:[%s2 + $0xd8] sm:$0xff]
    %v76 = vld [vmem:[%s2 + $0xe0] sm:$0xff]
    %v77 = vld [vmem:[%s2 + $0xe8] sm:$0xff]
    %v78 = vld [vmem:[%s2 + $0xf0] sm:$0xff]
    %v79 = vld [vmem:[%s2 + $0xf8] sm:$0xff]
    %v80 = vld [vmem:[%s2 + $0x100] sm:$0xff]
    %v81 = vld [vmem:[%s2 + $0x108] sm:$0xff]
    %v82 = vld [vmem:[%s2 + $0x110] sm:$0xff]
    %v83 = vld [vmem:[%s2 + $0x118] sm:$0xff]
    %v84 = vld [vmem:[%s2 + $0x120] sm:$0xff]
    %v85 = vld [vmem:[%s2 + $0x128] sm:$0xff]
    %v86 = vld [vmem:[%s2 + $0x130] sm:$0xff]
    %v87 = vld [vmem:[%s2 + $0x138] sm:$0xff]
    %v88 = vld [vmem:[%s2 + $0x140] sm:$0xff]
    %v89 = vld [vmem:[%s2 + $0x148] sm:$0xff]
    %v90 = vld [vmem:[%s2 + $0x150] sm:$0xff]
    %v91 = vld [vmem:[%s2 + $0x158] sm:$0xff]
    %v92 = vld [vmem:[%s2 + $0x160] sm:$0xff]
    %v93 = vld [vmem:[%s2 + $0x168] sm:$0xff]
    %v94 = vld [vmem:[%s2 + $0x170] sm:$0xff]
    %v95 = vld [vmem:[%s2 + $0x178] sm:$0xff]
    %v96 = vld [vmem:[%s2 + $0x180] sm:$0xff]
    %v97 = vld [vmem:[%s2 + $0x188] sm:$0xff]
    %v98 = vld [vmem:[%s2 + $0x190] sm:$0xff]
    %v99 = vld [vmem:[%s2 + $0x198] sm:$0xff]
    %v100 = vld [vmem:[%s2 + $0x1a0] sm:$0xff]
    %v101 = vld [vmem:[%s2 + $0x1a8] sm:$0xff]
    %v102 = vld [vmem:[%s2 + $0x1b0] sm:$0xff]
    %v103 = vld [vmem:[%s2 + $0x1b8] sm:$0xff]
    %v104 = vld [vmem:[%s2 + $0x1c0] sm:$0xff]
    %v105 = vld [vmem:[%s2 + $0x1c8] sm:$0xff]
    %v106 = vld [vmem:[%s2 + $0x1d0] sm:$0xff]
    %v107 = vld [vmem:[%s2 + $0x1d8] sm:$0xff]
    %v108 = vld [vmem:[%s2 + $0x1e0] sm:$0xff]
    %v109 = vld [vmem:[%s2 + $0x1e8] sm:$0xff]
    %v110 = vld [vmem:[%s2 + $0x1f0] sm:$0xff]
    %v111 = vld [vmem:[%s2 + $0x1f8] sm:$0xff]
    %v112 = vld [vmem:[%s2 + $0x200] sm:$0xff]
    %v113 = vld [vmem:[%s2 + $0x208] sm:$0xff]
    %v114 = vld [vmem:[%s2 + $0x210] sm:$0xff]
    %v115 = vld [vmem:[%s2 + $0x218] sm:$0xff]
    %v116 = vld [vmem:[%s2 + $0x220] sm:$0xff]
    %v117 = vld [vmem:[%s2 + $0x228] sm:$0xff]
    %v118 = vld [vmem:[%s2 + $0x230] sm:$0xff]
    %v119 = vld [vmem:[%s2 + $0x238] sm:$0xff]
    %v120 = vld [vmem:[%s2 + $0x240] sm:$0xff]
    %v121 = vld [vmem:[%s2 + $0x248] sm:$0xff]
    %v122 = vld [vmem:[%s2 + $0x250] sm:$0xff]
    %v123 = vld [vmem:[%s2 + $0x258] sm:$0xff]
    %v124 = vld [vmem:[%s2 + $0x260] sm:$0xff]
    %v125 = vld [vmem:[%s2 + $0x268] sm:$0xff]
    %v126 = vld [vmem:[%s2 + $0x270] sm:$0xff]
    %v127 = vld [vmem:[%s2 + $0x278] sm:$0xff]
    %v128 = vld [vmem:[%s2 + $0x280] sm:$0xff]
    %v129 = vld [vmem:[%s2 + $0x288] sm:$0xff]
    %v130 = vld [vmem:[%s2 + $0x290] sm:$0xff]
    %v131 = vld [vmem:[%s2 + $0x298] sm:$0xff]
    %v132 = vld [vmem:[%s2 + $0x2a0] sm:$0xff]
    %v133 = vld [vmem:[%s2 + $0x2a8] sm:$0xff]
    %v134 = vld [vmem:[%s2 + $0x2b0] sm:$0xff]
    %v135 = vld [vmem:[%s2 + $0x2b8] sm:$0xff]
    %v136 = vld [vmem:[%s2 + $0x2c0] sm:$0xff]
    %v137 = vld [vmem:[%s2 + $0x2c8] sm:$0xff]
    %v138 = vld [vmem:[%s2 + $0x2d0] sm:$0xff]
    %v139 = vld [vmem:[%s2 + $0x2d8] sm:$0xff]
    %v140 = vld [vmem:[%s2 + $0x2e0] sm:$0xff]
    %v141 = vld [vmem:[%s2 + $0x2e8] sm:$0xff]
    %v142 = vld [vmem:[%s2 + $0x2f0] sm:$0xff]
    %v143 = vld [vmem:[%s2 + $0x2f8] sm:$0xff]
    %v144 = vld [vmem:[%s2 + $0x300] sm:$0xff]
    %v145 = vld [vmem:[%s2 + $0x308] sm:$0xff]
    %v146 = vld [vmem:[%s2 + $0x310] sm:$0xff]
    %v147 = vld [vmem:[%s2 + $0x318] sm:$0xff]
    %v148 = vld [vmem:[%s2 + $0x320] sm:$0xff]
    %v149 = vld [vmem:[%s2 + $0x328] sm:$0xff]
    %v150 = vld [vmem:[%s2 + $0x330] sm:$0xff]
    %v151 = vld [vmem:[%s2 + $0x338] sm:$0xff]
    %v152 = vld [vmem:[%s2 + $0x340] sm:$0xff]
    %v153 = vld [vmem:[%s2 + $0x348] sm:$0xff]
    %v154 = vld [vmem:[%s2 + $0x350] sm:$0xff]
    %v155 = vld [vmem:[%s2 + $0x358] sm:$0xff]
    %v156 = vld [vmem:[%s2 + $0x360] sm:$0xff]
    %v157 = vld [vmem:[%s2 + $0x368] sm:$0xff]
    %v158 = vld [vmem:[%s2 + $0x370] sm:$0xff]
    %v159 = vld [vmem:[%s2 + $0x378] sm:$0xff]
    %v160 = vld [vmem:[%s3] sm:$0xff]
    %v161 = vld [vmem:[%s3 + $0x8] sm:$0xff]
    %v162 = vld [vmem:[%s3 + $0x10] sm:$0xff]
    %v163 = vld [vmem:[%s3 + $0x18] sm:$0xff]
    %v164 = vld [vmem:[%s3 + $0x20] sm:$0xff]
    %v165 = vld [vmem:[%s3 + $0x28] sm:$0xff]
    %v166 = vld [vmem:[%s3 + $0x30] sm:$0xff]
    %v174 = vlaneseq
    %v175 = vshrl.u32 %v174, 7
    %v176 = vsub.s32 0, %v175
    %v177 = vrot.slane %v160, %v176
    %v178 = vlaneseq
    %v179 = vshrl.u32 %v178, 7
    %v180 = vsub.s32 1, %v179
    %v181 = vrot.slane %v160, %v180
    %v182 = vlaneseq
    %v183 = vshrl.u32 %v182, 7
    %v184 = vsub.s32 2, %v183
    %v185 = vrot.slane %v160, %v184
    %v186 = vlaneseq
    %v187 = vshrl.u32 %v186, 7
    %v188 = vsub.s32 3, %v187
    %v189 = vrot.slane %v160, %v188
    %v190 = vlaneseq
    %v191 = vshrl.u32 %v190, 7
    %v192 = vsub.s32 4, %v191
    %v193 = vrot.slane %v160, %v192
    %v194 = vlaneseq
    %v195 = vshrl.u32 %v194, 7
    %v196 = vsub.s32 5, %v195
    %v197 = vrot.slane %v160, %v196
    %v198 = vlaneseq
    %v199 = vshrl.u32 %v198, 7
    %v200 = vsub.s32 6, %v199
    %v201 = vrot.slane %v160, %v200
    %v202 = vlaneseq
    %v203 = vshrl.u32 %v202, 7
    %v204 = vsub.s32 7, %v203
    %v205 = vrot.slane %v160, %v204
    %v206 = vlaneseq
    %v207 = vshrl.u32 %v206, 7
    %v208 = vsub.s32 0, %v207
    %v209 = vrot.slane %v161, %v208
    %v210 = vlaneseq
    %v211 = vshrl.u32 %v210, 7
    %v212 = vsub.s32 1, %v211
    %v213 = vrot.slane %v161, %v212
    %v214 = vlaneseq
    %v215 = vshrl.u32 %v214, 7
    %v216 = vsub.s32 2, %v215
    %v217 = vrot.slane %v161, %v216
    %v218 = vlaneseq
    %v219 = vshrl.u32 %v218, 7
    %v220 = vsub.s32 3, %v219
    %v221 = vrot.slane %v161, %v220
    %v222 = vlaneseq
    %v223 = vshrl.u32 %v222, 7
    %v224 = vsub.s32 4, %v223
    %v225 = vrot.slane %v161, %v224
    %v226 = vlaneseq
    %v227 = vshrl.u32 %v226, 7
    %v228 = vsub.s32 5, %v227
    %v229 = vrot.slane %v161, %v228
    %v230 = vlaneseq
    %v231 = vshrl.u32 %v230, 7
    %v232 = vsub.s32 6, %v231
    %v233 = vrot.slane %v161, %v232
    %v234 = vlaneseq
    %v235 = vshrl.u32 %v234, 7
    %v236 = vsub.s32 7, %v235
    %v237 = vrot.slane %v161, %v236
    %v238 = vlaneseq
    %v239 = vshrl.u32 %v238, 7
    %v240 = vsub.s32 0, %v239
    %v241 = vrot.slane %v162, %v240
    %v242 = vlaneseq
    %v243 = vshrl.u32 %v242, 7
    %v244 = vsub.s32 1, %v243
    %v245 = vrot.slane %v162, %v244
    %v246 = vlaneseq
    %v247 = vshrl.u32 %v246, 7
    %v248 = vsub.s32 2, %v247
    %v249 = vrot.slane %v162, %v248
    %v250 = vlaneseq
    %v251 = vshrl.u32 %v250, 7
    %v252 = vsub.s32 3, %v251
    %v253 = vrot.slane %v162, %v252
    %v254 = vlaneseq
    %v255 = vshrl.u32 %v254, 7
    %v256 = vsub.s32 4, %v255
    %v257 = vrot.slane %v162, %v256
    %v258 = vlaneseq
    %v259 = vshrl.u32 %v258, 7
    %v260 = vsub.s32 5, %v259
    %v261 = vrot.slane %v162, %v260
    %v262 = vlaneseq
    %v263 = vshrl.u32 %v262, 7
    %v264 = vsub.s32 6, %v263
    %v265 = vrot.slane %v162, %v264
    %v266 = vlaneseq
    %v267 = vshrl.u32 %v266, 7
    %v268 = vsub.s32 7, %v267
    %v269 = vrot.slane %v162, %v268
    %v270 = vlaneseq
    %v271 = vshrl.u32 %v270, 7
    %v272 = vsub.s32 0, %v271
    %v273 = vrot.slane %v163, %v272
    %v274 = vlaneseq
    %v275 = vshrl.u32 %v274, 7
    %v276 = vsub.s32 1, %v275
    %v277 = vrot.slane %v163, %v276
    %v278 = vlaneseq
    %v279 = vshrl.u32 %v278, 7
    %v280 = vsub.s32 2, %v279
    %v281 = vrot.slane %v163, %v280
    %v282 = vlaneseq
    %v283 = vshrl.u32 %v282, 7
    %v284 = vsub.s32 3, %v283
    %v285 = vrot.slane %v163, %v284
    %v286 = vlaneseq
    %v287 = vshrl.u32 %v286, 7
    %v288 = vsub.s32 4, %v287
    %v289 = vrot.slane %v163, %v288
    %v290 = vlaneseq
    %v291 = vshrl.u32 %v290, 7
    %v292 = vsub.s32 5, %v291
    %v293 = vrot.slane %v163, %v292
    %v294 = vlaneseq
    %v295 = vshrl.u32 %v294, 7
    %v296 = vsub.s32 6, %v295
    %v297 = vrot.slane %v163, %v296
    %v298 = vlaneseq
    %v299 = vshrl.u32 %v298, 7
    %v300 = vsub.s32 7, %v299
    %v301 = vrot.slane %v163, %v300
    %v302 = vlaneseq
    %v303 = vshrl.u32 %v302, 7
    %v304 = vsub.s32 0, %v303
    %v305 = vrot.slane %v164, %v304
    %v306 = vlaneseq
    %v307 = vshrl.u32 %v306, 7
    %v308 = vsub.s32 1, %v307
    %v309 = vrot.slane %v164, %v308
    %v310 = vlaneseq
    %v311 = vshrl.u32 %v310, 7
    %v312 = vsub.s32 2, %v311
    %v313 = vrot.slane %v164, %v312
    %v314 = vlaneseq
    %v315 = vshrl.u32 %v314, 7
    %v316 = vsub.s32 3, %v315
    %v317 = vrot.slane %v164, %v316
    %v318 = vlaneseq
    %v319 = vshrl.u32 %v318, 7
    %v320 = vsub.s32 4, %v319
    %v321 = vrot.slane %v164, %v320
    %v322 = vlaneseq
    %v323 = vshrl.u32 %v322, 7
    %v324 = vsub.s32 5, %v323
    %v325 = vrot.slane %v164, %v324
    %v326 = vlaneseq
    %v327 = vshrl.u32 %v326, 7
    %v328 = vsub.s32 6, %v327
    %v329 = vrot.slane %v164, %v328
    %v330 = vlaneseq
    %v331 = vshrl.u32 %v330, 7
    %v332 = vsub.s32 7, %v331
    %v333 = vrot.slane %v164, %v332
    %v334 = vlaneseq
    %v335 = vshrl.u32 %v334, 7
    %v336 = vsub.s32 0, %v335
    %v337 = vrot.slane %v165, %v336
    %v338 = vlaneseq
    %v339 = vshrl.u32 %v338, 7
    %v340 = vsub.s32 1, %v339
    %v341 = vrot.slane %v165, %v340
    %v342 = vlaneseq
    %v343 = vshrl.u32 %v342, 7
    %v344 = vsub.s32 2, %v343
    %v345 = vrot.slane %v165, %v344
    %v346 = vlaneseq
    %v347 = vshrl.u32 %v346, 7
    %v348 = vsub.s32 3, %v347
    %v349 = vrot.slane %v165, %v348
    %v350 = vlaneseq
    %v351 = vshrl.u32 %v350, 7
    %v352 = vsub.s32 4, %v351
    %v353 = vrot.slane %v165, %v352
    %v354 = vlaneseq
    %v355 = vshrl.u32 %v354, 7
    %v356 = vsub.s32 5, %v355
    %v357 = vrot.slane %v165, %v356
    %v358 = vlaneseq
    %v359 = vshrl.u32 %v358, 7
    %v360 = vsub.s32 6, %v359
    %v361 = vrot.slane %v165, %v360
    %v362 = vlaneseq
    %v363 = vshrl.u32 %v362, 7
    %v364 = vsub.s32 7, %v363
    %v365 = vrot.slane %v165, %v364
    %v366 = vlaneseq
    %v367 = vshrl.u32 %v366, 7
    %v368 = vsub.s32 0, %v367
    %v369 = vrot.slane %v166, %v368
    %v370 = vlaneseq
    %v371 = vshrl.u32 %v370, 7
    %v372 = vsub.s32 1, %v371
    %v373 = vrot.slane %v166, %v372
    %v374 = vlaneseq
    %v375 = vshrl.u32 %v374, 7
    %v376 = vsub.s32 2, %v375
    %v377 = vrot.slane %v166, %v376
    %v378 = vlaneseq
    %v379 = vshrl.u32 %v378, 7
    %v380 = vsub.s32 3, %v379
    %v381 = vrot.slane %v166, %v380
    %v382 = vlaneseq
    %v383 = vshrl.u32 %v382, 7
    %v384 = vsub.s32 4, %v383
    %v385 = vrot.slane %v166, %v384
    %v386 = vlaneseq
    %v387 = vshrl.u32 %v386, 7
    %v388 = vsub.s32 5, %v387
    %v389 = vrot.slane %v166, %v388
    %v390 = vlaneseq
    %v391 = vshrl.u32 %v390, 7
    %v392 = vsub.s32 6, %v391
    %v393 = vrot.slane %v166, %v392
    %v394 = vlaneseq
    %v395 = vshrl.u32 %v394, 7
    %v396 = vsub.s32 7, %v395
    %v397 = vrot.slane %v166, %v396
    %v457 = vunpack.c.l.b16 %v45
    %v458 = vunpack.c.l.b16 %v46
    %v459 = vunpack.c.l.b16 %v47
    %v460 = vpack.c.b16 %v458, %v457
    %v461 = vpack.c.b16 %v459, %v459
    %v574 = vunpack.c.l.b16 %v48
    %v575 = vunpack.c.h.b16 %v48
    %v576 = vunpack.c.l.b16 %v49
    %v577 = vunpack.c.h.b16 %v49
    %v578 = vunpack.c.l.b16 %v50
    %v579 = vunpack.c.h.b16 %v50
    %v580 = vunpack.c.l.b16 %v51
    %v581 = vunpack.c.h.b16 %v51
    %v582 = vunpack.c.l.b16 %v52
    %v583 = vunpack.c.h.b16 %v52
    %v584 = vunpack.c.l.b16 %v53
    %v585 = vunpack.c.h.b16 %v53
    %v586 = vunpack.c.l.b16 %v54
    %v587 = vunpack.c.h.b16 %v54
    %v588 = vunpack.c.l.b16 %v55
    %v589 = vunpack.c.h.b16 %v55
    %v590 = vunpack.c.l.b16 %v56
    %v591 = vunpack.c.h.b16 %v56
    %v592 = vunpack.c.l.b16 %v57
    %v593 = vunpack.c.h.b16 %v57
    %v594 = vunpack.c.l.b16 %v58
    %v595 = vunpack.c.h.b16 %v58
    %v596 = vunpack.c.l.b16 %v59
    %v597 = vunpack.c.h.b16 %v59
    %v598 = vunpack.c.l.b16 %v60
    %v599 = vunpack.c.h.b16 %v60
    %v600 = vunpack.c.l.b16 %v61
    %v601 = vunpack.c.h.b16 %v61
    %v602 = vunpack.c.l.b16 %v62
    %v603 = vunpack.c.h.b16 %v62
    %v604 = vunpack.c.l.b16 %v63
    %v605 = vunpack.c.h.b16 %v63
    %v606 = vunpack.c.l.b16 %v64
    %v607 = vunpack.c.h.b16 %v64
    %v608 = vunpack.c.l.b16 %v65
    %v609 = vunpack.c.h.b16 %v65
    %v610 = vunpack.c.l.b16 %v66
    %v611 = vunpack.c.h.b16 %v66
    %v612 = vunpack.c.l.b16 %v67
    %v613 = vunpack.c.h.b16 %v67
    %v614 = vunpack.c.l.b16 %v68
    %v615 = vunpack.c.h.b16 %v68
    %v616 = vunpack.c.l.b16 %v69
    %v617 = vunpack.c.h.b16 %v69
    %v618 = vunpack.c.l.b16 %v70
    %v619 = vunpack.c.h.b16 %v70
    %v620 = vunpack.c.l.b16 %v71
    %v621 = vunpack.c.h.b16 %v71
    %v622 = vunpack.c.l.b16 %v72
    %v623 = vunpack.c.h.b16 %v72
    %v624 = vunpack.c.l.b16 %v73
    %v625 = vunpack.c.h.b16 %v73
    %v626 = vunpack.c.l.b16 %v74
    %v627 = vunpack.c.h.b16 %v74
    %v628 = vunpack.c.l.b16 %v75
    %v629 = vunpack.c.h.b16 %v75
    %v630 = vunpack.c.l.b16 %v76
    %v631 = vunpack.c.h.b16 %v76
    %v632 = vunpack.c.l.b16 %v77
    %v633 = vunpack.c.h.b16 %v77
    %v634 = vunpack.c.l.b16 %v78
    %v635 = vunpack.c.h.b16 %v78
    %v636 = vunpack.c.l.b16 %v79
    %v637 = vunpack.c.h.b16 %v79
    %v638 = vunpack.c.l.b16 %v80
    %v639 = vunpack.c.h.b16 %v80
    %v640 = vunpack.c.l.b16 %v81
    %v641 = vunpack.c.h.b16 %v81
    %v642 = vunpack.c.l.b16 %v82
    %v643 = vunpack.c.h.b16 %v82
    %v644 = vunpack.c.l.b16 %v83
    %v645 = vunpack.c.h.b16 %v83
    %v646 = vunpack.c.l.b16 %v84
    %v647 = vunpack.c.h.b16 %v84
    %v648 = vunpack.c.l.b16 %v85
    %v649 = vunpack.c.h.b16 %v85
    %v650 = vunpack.c.l.b16 %v86
    %v651 = vunpack.c.h.b16 %v86
    %v652 = vunpack.c.l.b16 %v87
    %v653 = vunpack.c.h.b16 %v87
    %v654 = vunpack.c.l.b16 %v88
    %v655 = vunpack.c.h.b16 %v88
    %v656 = vunpack.c.l.b16 %v89
    %v657 = vunpack.c.h.b16 %v89
    %v658 = vunpack.c.l.b16 %v90
    %v659 = vunpack.c.h.b16 %v90
    %v660 = vunpack.c.l.b16 %v91
    %v661 = vunpack.c.h.b16 %v91
    %v662 = vunpack.c.l.b16 %v92
    %v663 = vunpack.c.h.b16 %v92
    %v664 = vunpack.c.l.b16 %v93
    %v665 = vunpack.c.h.b16 %v93
    %v666 = vunpack.c.l.b16 %v94
    %v667 = vunpack.c.h.b16 %v94
    %v668 = vunpack.c.l.b16 %v95
    %v669 = vunpack.c.h.b16 %v95
    %v670 = vunpack.c.l.b16 %v96
    %v671 = vunpack.c.h.b16 %v96
    %v672 = vunpack.c.l.b16 %v97
    %v673 = vunpack.c.h.b16 %v97
    %v674 = vunpack.c.l.b16 %v98
    %v675 = vunpack.c.h.b16 %v98
    %v676 = vunpack.c.l.b16 %v99
    %v677 = vunpack.c.h.b16 %v99
    %v678 = vunpack.c.l.b16 %v100
    %v679 = vunpack.c.h.b16 %v100
    %v680 = vunpack.c.l.b16 %v101
    %v681 = vunpack.c.h.b16 %v101
    %v682 = vunpack.c.l.b16 %v102
    %v683 = vunpack.c.h.b16 %v102
    %v684 = vunpack.c.l.b16 %v103
    %v685 = vunpack.c.h.b16 %v103
    %v686 = vunpack.c.l.b16 %v104
    %v687 = vunpack.c.h.b16 %v104
    %v688 = vunpack.c.l.b16 %v105
    %v689 = vunpack.c.h.b16 %v105
    %v690 = vunpack.c.l.b16 %v106
    %v691 = vunpack.c.h.b16 %v106
    %v692 = vunpack.c.l.b16 %v107
    %v693 = vunpack.c.h.b16 %v107
    %v694 = vunpack.c.l.b16 %v108
    %v695 = vunpack.c.h.b16 %v108
    %v696 = vunpack.c.l.b16 %v109
    %v697 = vunpack.c.h.b16 %v109
    %v698 = vunpack.c.l.b16 %v110
    %v699 = vunpack.c.h.b16 %v110
    %v700 = vunpack.c.l.b16 %v111
    %v701 = vunpack.c.h.b16 %v111
    %v702 = vunpack.c.l.b16 %v112
    %v703 = vunpack.c.h.b16 %v112
    %v704 = vunpack.c.l.b16 %v113
    %v705 = vunpack.c.h.b16 %v113
    %v706 = vunpack.c.l.b16 %v114
    %v707 = vunpack.c.h.b16 %v114
    %v708 = vunpack.c.l.b16 %v115
    %v709 = vunpack.c.h.b16 %v115
    %v710 = vunpack.c.l.b16 %v116
    %v711 = vunpack.c.h.b16 %v116
    %v712 = vunpack.c.l.b16 %v117
    %v713 = vunpack.c.h.b16 %v117
    %v714 = vunpack.c.l.b16 %v118
    %v715 = vunpack.c.h.b16 %v118
    %v716 = vunpack.c.l.b16 %v119
    %v717 = vunpack.c.h.b16 %v119
    %v718 = vunpack.c.l.b16 %v120
    %v719 = vunpack.c.h.b16 %v120
    %v720 = vunpack.c.l.b16 %v121
    %v721 = vunpack.c.h.b16 %v121
    %v722 = vunpack.c.l.b16 %v122
    %v723 = vunpack.c.h.b16 %v122
    %v724 = vunpack.c.l.b16 %v123
    %v725 = vunpack.c.h.b16 %v123
    %v726 = vunpack.c.l.b16 %v124
    %v727 = vunpack.c.h.b16 %v124
    %v728 = vunpack.c.l.b16 %v125
    %v729 = vunpack.c.h.b16 %v125
    %v730 = vunpack.c.l.b16 %v126
    %v731 = vunpack.c.h.b16 %v126
    %v732 = vunpack.c.l.b16 %v127
    %v733 = vunpack.c.h.b16 %v127
    %v734 = vunpack.c.l.b16 %v128
    %v735 = vunpack.c.h.b16 %v128
    %v736 = vunpack.c.l.b16 %v129
    %v737 = vunpack.c.h.b16 %v129
    %v738 = vunpack.c.l.b16 %v130
    %v739 = vunpack.c.h.b16 %v130
    %v740 = vunpack.c.l.b16 %v131
    %v741 = vunpack.c.h.b16 %v131
    %v742 = vunpack.c.l.b16 %v132
    %v743 = vunpack.c.h.b16 %v132
    %v744 = vunpack.c.l.b16 %v133
    %v745 = vunpack.c.h.b16 %v133
    %v746 = vunpack.c.l.b16 %v134
    %v747 = vunpack.c.h.b16 %v134
    %v748 = vunpack.c.l.b16 %v135
    %v749 = vunpack.c.h.b16 %v135
    %v750 = vunpack.c.l.b16 %v136
    %v751 = vunpack.c.h.b16 %v136
    %v752 = vunpack.c.l.b16 %v137
    %v753 = vunpack.c.h.b16 %v137
    %v754 = vunpack.c.l.b16 %v138
    %v755 = vunpack.c.h.b16 %v138
    %v756 = vunpack.c.l.b16 %v139
    %v757 = vunpack.c.h.b16 %v139
    %v758 = vunpack.c.l.b16 %v140
    %v759 = vunpack.c.h.b16 %v140
    %v760 = vunpack.c.l.b16 %v141
    %v761 = vunpack.c.h.b16 %v141
    %v762 = vunpack.c.l.b16 %v142
    %v763 = vunpack.c.h.b16 %v142
    %v764 = vunpack.c.l.b16 %v143
    %v765 = vunpack.c.h.b16 %v143
    %v766 = vunpack.c.l.b16 %v144
    %v767 = vunpack.c.h.b16 %v144
    %v768 = vunpack.c.l.b16 %v145
    %v769 = vunpack.c.h.b16 %v145
    %v770 = vunpack.c.l.b16 %v146
    %v771 = vunpack.c.h.b16 %v146
    %v772 = vunpack.c.l.b16 %v147
    %v773 = vunpack.c.h.b16 %v147
    %v774 = vunpack.c.l.b16 %v148
    %v775 = vunpack.c.h.b16 %v148
    %v776 = vunpack.c.l.b16 %v149
    %v777 = vunpack.c.h.b16 %v149
    %v778 = vunpack.c.l.b16 %v150
    %v779 = vunpack.c.h.b16 %v150
    %v780 = vunpack.c.l.b16 %v151
    %v781 = vunpack.c.h.b16 %v151
    %v782 = vunpack.c.l.b16 %v152
    %v783 = vunpack.c.h.b16 %v152
    %v784 = vunpack.c.l.b16 %v153
    %v785 = vunpack.c.h.b16 %v153
    %v786 = vunpack.c.l.b16 %v154
    %v787 = vunpack.c.h.b16 %v154
    %v788 = vunpack.c.l.b16 %v155
    %v789 = vunpack.c.h.b16 %v155
    %v790 = vunpack.c.l.b16 %v156
    %v791 = vunpack.c.h.b16 %v156
    %v792 = vunpack.c.l.b16 %v157
    %v793 = vunpack.c.h.b16 %v157
    %v794 = vunpack.c.l.b16 %v158
    %v795 = vunpack.c.h.b16 %v158
    %v796 = vunpack.c.l.b16 %v159
    %v797 = vunpack.c.h.b16 %v159
    %v798 = vpack.c.b16 %v630, %v574
    %v799 = vpack.c.b16 %v631, %v575
    %v800 = vpack.c.b16 %v632, %v576
    %v801 = vpack.c.b16 %v633, %v577
    %v802 = vpack.c.b16 %v634, %v578
    %v803 = vpack.c.b16 %v635, %v579
    %v804 = vpack.c.b16 %v636, %v580
    %v805 = vpack.c.b16 %v637, %v581
    %v806 = vpack.c.b16 %v638, %v582
    %v807 = vpack.c.b16 %v639, %v583
    %v808 = vpack.c.b16 %v640, %v584
    %v809 = vpack.c.b16 %v641, %v585
    %v810 = vpack.c.b16 %v642, %v586
    %v811 = vpack.c.b16 %v643, %v587
    %v812 = vpack.c.b16 %v644, %v588
    %v813 = vpack.c.b16 %v645, %v589
    %v814 = vpack.c.b16 %v646, %v590
    %v815 = vpack.c.b16 %v647, %v591
    %v816 = vpack.c.b16 %v648, %v592
    %v817 = vpack.c.b16 %v649, %v593
    %v818 = vpack.c.b16 %v650, %v594
    %v819 = vpack.c.b16 %v651, %v595
    %v820 = vpack.c.b16 %v652, %v596
    %v821 = vpack.c.b16 %v653, %v597
    %v822 = vpack.c.b16 %v654, %v598
    %v823 = vpack.c.b16 %v655, %v599
    %v824 = vpack.c.b16 %v656, %v600
    %v825 = vpack.c.b16 %v657, %v601
    %v826 = vpack.c.b16 %v658, %v602
    %v827 = vpack.c.b16 %v659, %v603
    %v828 = vpack.c.b16 %v660, %v604
    %v829 = vpack.c.b16 %v661, %v605
    %v830 = vpack.c.b16 %v662, %v606
    %v831 = vpack.c.b16 %v663, %v607
    %v832 = vpack.c.b16 %v664, %v608
    %v833 = vpack.c.b16 %v665, %v609
    %v834 = vpack.c.b16 %v666, %v610
    %v835 = vpack.c.b16 %v667, %v611
    %v836 = vpack.c.b16 %v668, %v612
    %v837 = vpack.c.b16 %v669, %v613
    %v838 = vpack.c.b16 %v670, %v614
    %v839 = vpack.c.b16 %v671, %v615
    %v840 = vpack.c.b16 %v672, %v616
    %v841 = vpack.c.b16 %v673, %v617
    %v842 = vpack.c.b16 %v674, %v618
    %v843 = vpack.c.b16 %v675, %v619
    %v844 = vpack.c.b16 %v676, %v620
    %v845 = vpack.c.b16 %v677, %v621
    %v846 = vpack.c.b16 %v678, %v622
    %v847 = vpack.c.b16 %v679, %v623
    %v848 = vpack.c.b16 %v680, %v624
    %v849 = vpack.c.b16 %v681, %v625
    %v850 = vpack.c.b16 %v682, %v626
    %v851 = vpack.c.b16 %v683, %v627
    %v852 = vpack.c.b16 %v684, %v628
    %v853 = vpack.c.b16 %v685, %v629
    %v854 = vpack.c.b16 %v742, %v686
    %v855 = vpack.c.b16 %v743, %v687
    %v856 = vpack.c.b16 %v744, %v688
    %v857 = vpack.c.b16 %v745, %v689
    %v858 = vpack.c.b16 %v746, %v690
    %v859 = vpack.c.b16 %v747, %v691
    %v860 = vpack.c.b16 %v748, %v692
    %v861 = vpack.c.b16 %v749, %v693
    %v862 = vpack.c.b16 %v750, %v694
    %v863 = vpack.c.b16 %v751, %v695
    %v864 = vpack.c.b16 %v752, %v696
    %v865 = vpack.c.b16 %v753, %v697
    %v866 = vpack.c.b16 %v754, %v698
    %v867 = vpack.c.b16 %v755, %v699
    %v868 = vpack.c.b16 %v756, %v700
    %v869 = vpack.c.b16 %v757, %v701
    %v870 = vpack.c.b16 %v758, %v702
    %v871 = vpack.c.b16 %v759, %v703
    %v872 = vpack.c.b16 %v760, %v704
    %v873 = vpack.c.b16 %v761, %v705
    %v874 = vpack.c.b16 %v762, %v706
    %v875 = vpack.c.b16 %v763, %v707
    %v876 = vpack.c.b16 %v764, %v708
    %v877 = vpack.c.b16 %v765, %v709
    %v878 = vpack.c.b16 %v766, %v710
    %v879 = vpack.c.b16 %v767, %v711
    %v880 = vpack.c.b16 %v768, %v712
    %v881 = vpack.c.b16 %v769, %v713
    %v882 = vpack.c.b16 %v770, %v714
    %v883 = vpack.c.b16 %v771, %v715
    %v884 = vpack.c.b16 %v772, %v716
    %v885 = vpack.c.b16 %v773, %v717
    %v886 = vpack.c.b16 %v774, %v718
    %v887 = vpack.c.b16 %v775, %v719
    %v888 = vpack.c.b16 %v776, %v720
    %v889 = vpack.c.b16 %v777, %v721
    %v890 = vpack.c.b16 %v778, %v722
    %v891 = vpack.c.b16 %v779, %v723
    %v892 = vpack.c.b16 %v780, %v724
    %v893 = vpack.c.b16 %v781, %v725
    %v894 = vpack.c.b16 %v782, %v726
    %v895 = vpack.c.b16 %v783, %v727
    %v896 = vpack.c.b16 %v784, %v728
    %v897 = vpack.c.b16 %v785, %v729
    %v898 = vpack.c.b16 %v786, %v730
    %v899 = vpack.c.b16 %v787, %v731
    %v900 = vpack.c.b16 %v788, %v732
    %v901 = vpack.c.b16 %v789, %v733
    %v902 = vpack.c.b16 %v790, %v734
    %v903 = vpack.c.b16 %v791, %v735
    %v904 = vpack.c.b16 %v792, %v736
    %v905 = vpack.c.b16 %v793, %v737
    %v906 = vpack.c.b16 %v794, %v738
    %v907 = vpack.c.b16 %v795, %v739
    %v908 = vpack.c.b16 %v796, %v740
    %v909 = vpack.c.b16 %v797, %v741
    %vm1022 = vcmask 261120
    %v1024 = vsel %vm1022, %v460, 0
    %v1027 = vsel %vm1022, %v461, 0
    %1029 = vmatprep.subr.bf16.mxu0 %v799
    %1030 = vmatpush1.bf16.msra.mxu0 %v798
    %1031 = vmatprep.subr.bf16.mxu0 %v855
    %1032 = vmatpush1.bf16.msra.mxu0 %v854
    %1033 = vmatprep.subr.bf16.mxu0 0
    %1034 = vmatpush1.bf16.msra.mxu0 0
    %1035 = vmatprep.subr.bf16.mxu0 0
    %1036 = vmatpush1.bf16.msra.mxu0 0
    %1037 = vmatprep.subr.bf16.mxu0 0
    %1038 = vmatpush1.bf16.msra.mxu0 0
    %1039 = vmatprep.subr.bf16.mxu0 0
    %1040 = vmatpush1.bf16.msra.mxu0 0
    %1041 = vmatprep.subr.bf16.mxu0 0
    %1042 = vmatpush1.bf16.msra.mxu0 0
    %1043 = vmatprep.subr.bf16.mxu0 0
    %1044 = vmatpush1.bf16.msra.mxu0 0
    %1045 = vmatprep.subr.bf16.mxu0 0
    %1046 = vmatpush1.bf16.msra.mxu0 0
    %1047 = vmatprep.subr.bf16.mxu0 0
    %1048 = vmatpush1.bf16.msra.mxu0 0
    %1049 = vmatprep.subr.bf16.mxu0 0
    %1050 = vmatpush1.bf16.msra.mxu0 0
    %1051 = vmatprep.subr.bf16.mxu0 0
    %1052 = vmatpush1.bf16.msra.mxu0 0
    %1053 = vmatprep.subr.bf16.mxu0 0
    %1054 = vmatpush1.bf16.msra.mxu0 0
    %1055 = vmatprep.subr.bf16.mxu0 0
    %1056 = vmatpush1.bf16.msra.mxu0 0
    %1057 = vmatprep.subr.bf16.mxu0 0
    %1058 = vmatpush1.bf16.msra.mxu0 0
    %1059 = vmatprep.subr.bf16.mxu0 0
    %1060 = vmatpush1.bf16.msra.mxu0 0
    %1061 = vmatprep.mubr.bf16.mxu0 0
    %1062 = vmatmul.mubr.bf16.gmra.mrb[0].mxu0 %v1024
    %v1063 = vpop.f32.mrb[0].mxu0
    %v1064 = vadd.f32 %v177, %v1063
    %v1065 = vpop.f32.mrb[0].mxu0
    %v1066 = vadd.f32 %v181, %v1065
    %v1067 = vpop.f32.mrb[0].mxu0
    %v1068 = vadd.f32 %v177, %v1067
    %v1069 = vpop.f32.mrb[0].mxu0
    %v1070 = vadd.f32 %v181, %v1069
    %1071 = vmatprep.mubr.bf16.mxu0 0
    %1072 = vmatmul.mubr.bf16.gmra.mrb[0].mxu0 %v1027
    %v1073 = vpop.f32.mrb[0].mxu0
    %v1074 = vpop.f32.mrb[0].mxu0
    %v1075 = vpop.f32.mrb[0].mxu0
    %v1076 = vpop.f32.mrb[0].mxu0
    %1077 = vdwg.mxu0
    %1078 = vmatprep.subr.bf16.mxu0 %v801
    %1079 = vmatpush1.bf16.msra.mxu0 %v800
    %1080 = vmatprep.subr.bf16.mxu0 %v857
    %1081 = vmatpush1.bf16.msra.mxu0 %v856
    %1082 = vmatprep.subr.bf16.mxu0 0
    %1083 = vmatpush1.bf16.msra.mxu0 0
    %1084 = vmatprep.subr.bf16.mxu0 0
    %1085 = vmatpush1.bf16.msra.mxu0 0
    %1086 = vmatprep.subr.bf16.mxu0 0
    %1087 = vmatpush1.bf16.msra.mxu0 0
    %1088 = vmatprep.subr.bf16.mxu0 0
    %1089 = vmatpush1.bf16.msra.mxu0 0
    %1090 = vmatprep.subr.bf16.mxu0 0
    %1091 = vmatpush1.bf16.msra.mxu0 0
    %1092 = vmatprep.subr.bf16.mxu0 0
    %1093 = vmatpush1.bf16.msra.mxu0 0
    %1094 = vmatprep.subr.bf16.mxu0 0
    %1095 = vmatpush1.bf16.msra.mxu0 0
    %1096 = vmatprep.subr.bf16.mxu0 0
    %1097 = vmatpush1.bf16.msra.mxu0 0
    %1098 = vmatprep.subr.bf16.mxu0 0
    %1099 = vmatpush1.bf16.msra.mxu0 0
    %1100 = vmatprep.subr.bf16.mxu0 0
    %1101 = vmatpush1.bf16.msra.mxu0 0
    %1102 = vmatprep.subr.bf16.mxu0 0
    %1103 = vmatpush1.bf16.msra.mxu0 0
    %1104 = vmatprep.subr.bf16.mxu0 0
    %1105 = vmatpush1.bf16.msra.mxu0 0
    %1106 = vmatprep.subr.bf16.mxu0 0
    %1107 = vmatpush1.bf16.msra.mxu0 0
    %1108 = vmatprep.subr.bf16.mxu0 0
    %1109 = vmatpush1.bf16.msra.mxu0 0
    %1110 = vmatprep.mubr.bf16.mxu0 0
    %1111 = vmatmul.mubr.bf16.gmra.mrb[0].mxu0 %v1024
    %v1112 = vpop.f32.mrb[0].mxu0
    %v1113 = vadd.f32 %v185, %v1112
    %v1114 = vpop.f32.mrb[0].mxu0
    %v1115 = vadd.f32 %v189, %v1114
    %v1116 = vpop.f32.mrb[0].mxu0
    %v1117 = vadd.f32 %v185, %v1116
    %v1118 = vpop.f32.mrb[0].mxu0
    %v1119 = vadd.f32 %v189, %v1118
    %1120 = vmatprep.mubr.bf16.mxu0 0
    %1121 = vmatmul.mubr.bf16.gmra.mrb[0].mxu0 %v1027
    %v1122 = vpop.f32.mrb[0].mxu0
    %v1123 = vpop.f32.mrb[0].mxu0
    %v1124 = vpop.f32.mrb[0].mxu0
    %v1125 = vpop.f32.mrb[0].mxu0
    %1126 = vdwg.mxu0
    %1127 = vmatprep.subr.bf16.mxu0 %v803
    %1128 = vmatpush1.bf16.msra.mxu0 %v802
    %1129 = vmatprep.subr.bf16.mxu0 %v859
    %1130 = vmatpush1.bf16.msra.mxu0 %v858
    %1131 = vmatprep.subr.bf16.mxu0 0
    %1132 = vmatpush1.bf16.msra.mxu0 0
    %1133 = vmatprep.subr.bf16.mxu0 0
    %1134 = vmatpush1.bf16.msra.mxu0 0
    %1135 = vmatprep.subr.bf16.mxu0 0
    %1136 = vmatpush1.bf16.msra.mxu0 0
    %1137 = vmatprep.subr.bf16.mxu0 0
    %1138 = vmatpush1.bf16.msra.mxu0 0
    %1139 = vmatprep.subr.bf16.mxu0 0
    %1140 = vmatpush1.bf16.msra.mxu0 0
    %1141 = vmatprep.subr.bf16.mxu0 0
    %1142 = vmatpush1.bf16.msra.mxu0 0
    %1143 = vmatprep.subr.bf16.mxu0 0
    %1144 = vmatpush1.bf16.msra.mxu0 0
    %1145 = vmatprep.subr.bf16.mxu0 0
    %1146 = vmatpush1.bf16.msra.mxu0 0
    %1147 = vmatprep.subr.bf16.mxu0 0
    %1148 = vmatpush1.bf16.msra.mxu0 0
    %1149 = vmatprep.subr.bf16.mxu0 0
    %1150 = vmatpush1.bf16.msra.mxu0 0
    %1151 = vmatprep.subr.bf16.mxu0 0
    %1152 = vmatpush1.bf16.msra.mxu0 0
    %1153 = vmatprep.subr.bf16.mxu0 0
    %1154 = vmatpush1.bf16.msra.mxu0 0
    %1155 = vmatprep.subr.bf16.mxu0 0
    %1156 = vmatpush1.bf16.msra.mxu0 0
    %1157 = vmatprep.subr.bf16.mxu0 0
    %1158 = vmatpush1.bf16.msra.mxu0 0
    %1159 = vmatprep.mubr.bf16.mxu0 0
    %1160 = vmatmul.mubr.bf16.gmra.mrb[0].mxu0 %v1024
    %v1161 = vpop.f32.mrb[0].mxu0
    %v1162 = vadd.f32 %v193, %v1161
    %v1163 = vpop.f32.mrb[0].mxu0
    %v1164 = vadd.f32 %v197, %v1163
    %v1165 = vpop.f32.mrb[0].mxu0
    %v1166 = vadd.f32 %v193, %v1165
    %v1167 = vpop.f32.mrb[0].mxu0
    %v1168 = vadd.f32 %v197, %v1167
    %1169 = vmatprep.mubr.bf16.mxu0 0
    %1170 = vmatmul.mubr.bf16.gmra.mrb[0].mxu0 %v1027
    %v1171 = vpop.f32.mrb[0].mxu0
    %v1172 = vpop.f32.mrb[0].mxu0
    %v1173 = vpop.f32.mrb[0].mxu0
    %v1174 = vpop.f32.mrb[0].mxu0
    %1175 = vdwg.mxu0
    %1176 = vmatprep.subr.bf16.mxu0 %v805
    %1177 = vmatpush1.bf16.msra.mxu0 %v804
    %1178 = vmatprep.subr.bf16.mxu0 %v861
    %1179 = vmatpush1.bf16.msra.mxu0 %v860
    %1180 = vmatprep.subr.bf16.mxu0 0
    %1181 = vmatpush1.bf16.msra.mxu0 0
    %1182 = vmatprep.subr.bf16.mxu0 0
    %1183 = vmatpush1.bf16.msra.mxu0 0
    %1184 = vmatprep.subr.bf16.mxu0 0
    %1185 = vmatpush1.bf16.msra.mxu0 0
    %1186 = vmatprep.subr.bf16.mxu0 0
    %1187 = vmatpush1.bf16.msra.mxu0 0
    %1188 = vmatprep.subr.bf16.mxu0 0
    %1189 = vmatpush1.bf16.msra.mxu0 0
    %1190 = vmatprep.subr.bf16.mxu0 0
    %1191 = vmatpush1.bf16.msra.mxu0 0
    %1192 = vmatprep.subr.bf16.mxu0 0
    %1193 = vmatpush1.bf16.msra.mxu0 0
    %1194 = vmatprep.subr.bf16.mxu0 0
    %1195 = vmatpush1.bf16.msra.mxu0 0
    %1196 = vmatprep.subr.bf16.mxu0 0
    %1197 = vmatpush1.bf16.msra.mxu0 0
    %1198 = vmatprep.subr.bf16.mxu0 0
    %1199 = vmatpush1.bf16.msra.mxu0 0
    %1200 = vmatprep.subr.bf16.mxu0 0
    %1201 = vmatpush1.bf16.msra.mxu0 0
    %1202 = vmatprep.subr.bf16.mxu0 0
    %1203 = vmatpush1.bf16.msra.mxu0 0
    %1204 = vmatprep.subr.bf16.mxu0 0
    %1205 = vmatpush1.bf16.msra.mxu0 0
    %1206 = vmatprep.subr.bf16.mxu0 0
    %1207 = vmatpush1.bf16.msra.mxu0 0
    %1208 = vmatprep.mubr.bf16.mxu0 0
    %1209 = vmatmul.mubr.bf16.gmra.mrb[0].mxu0 %v1024
    %v1210 = vpop.f32.mrb[0].mxu0
    %v1211 = vadd.f32 %v201, %v1210
    %v1212 = vpop.f32.mrb[0].mxu0
    %v1213 = vadd.f32 %v205, %v1212
    %v1214 = vpop.f32.mrb[0].mxu0
    %v1215 = vadd.f32 %v201, %v1214
    %v1216 = vpop.f32.mrb[0].mxu0
    %v1217 = vadd.f32 %v205, %v1216
    %1218 = vmatprep.mubr.bf16.mxu0 0
    %1219 = vmatmul.mubr.bf16.gmra.mrb[0].mxu0 %v1027
    %v1220 = vpop.f32.mrb[0].mxu0
    %v1221 = vpop.f32.mrb[0].mxu0
    %v1222 = vpop.f32.mrb[0].mxu0
    %v1223 = vpop.f32.mrb[0].mxu0
    %1224 = vdwg.mxu0
    %1225 = vmatprep.subr.bf16.mxu0 %v807
    %1226 = vmatpush1.bf16.msra.mxu0 %v806
    %1227 = vmatprep.subr.bf16.mxu0 %v863
    %1228 = vmatpush1.bf16.msra.mxu0 %v862
    %1229 = vmatprep.subr.bf16.mxu0 0
    %1230 = vmatpush1.bf16.msra.mxu0 0
    %1231 = vmatprep.subr.bf16.mxu0 0
    %1232 = vmatpush1.bf16.msra.mxu0 0
    %1233 = vmatprep.subr.bf16.mxu0 0
    %1234 = vmatpush1.bf16.msra.mxu0 0
    %1235 = vmatprep.subr.bf16.mxu0 0
    %1236 = vmatpush1.bf16.msra.mxu0 0
    %1237 = vmatprep.subr.bf16.mxu0 0
    %1238 = vmatpush1.bf16.msra.mxu0 0
    %1239 = vmatprep.subr.bf16.mxu0 0
    %1240 = vmatpush1.bf16.msra.mxu0 0
    %1241 = vmatprep.subr.bf16.mxu0 0
    %1242 = vmatpush1.bf16.msra.mxu0 0
    %1243 = vmatprep.subr.bf16.mxu0 0
    %1244 = vmatpush1.bf16.msra.mxu0 0
    %1245 = vmatprep.subr.bf16.mxu0 0
    %1246 = vmatpush1.bf16.msra.mxu0 0
    %1247 = vmatprep.subr.bf16.mxu0 0
    %1248 = vmatpush1.bf16.msra.mxu0 0
    %1249 = vmatprep.subr.bf16.mxu0 0
    %1250 = vmatpush1.bf16.msra.mxu0 0
    %1251 = vmatprep.subr.bf16.mxu0 0
    %1252 = vmatpush1.bf16.msra.mxu0 0
    %1253 = vmatprep.subr.bf16.mxu0 0
    %1254 = vmatpush1.bf16.msra.mxu0 0
    %1255 = vmatprep.subr.bf16.mxu0 0
    %1256 = vmatpush1.bf16.msra.mxu0 0
    %1257 = vmatprep.mubr.bf16.mxu0 0
    %1258 = vmatmul.mubr.bf16.gmra.mrb[0].mxu0 %v1024
    %v1259 = vpop.f32.mrb[0].mxu0
    %v1260 = vadd.f32 %v209, %v1259
    %v1261 = vpop.f32.mrb[0].mxu0
    %v1262 = vadd.f32 %v213, %v1261
    %v1263 = vpop.f32.mrb[0].mxu0
    %v1264 = vadd.f32 %v209, %v1263
    %v1265 = vpop.f32.mrb[0].mxu0
    %v1266 = vadd.f32 %v213, %v1265
    %1267 = vmatprep.mubr.bf16.mxu0 0
    %1268 = vmatmul.mubr.bf16.gmra.mrb[0].mxu0 %v1027
    %v1269 = vpop.f32.mrb[0].mxu0
    %v1270 = vpop.f32.mrb[0].mxu0
    %v1271 = vpop.f32.mrb[0].mxu0
    %v1272 = vpop.f32.mrb[0].mxu0
    %1273 = vdwg.mxu0
    %1274 = vmatprep.subr.bf16.mxu0 %v809
    %1275 = vmatpush1.bf16.msra.mxu0 %v808
    %1276 = vmatprep.subr.bf16.mxu0 %v865
    %1277 = vmatpush1.bf16.msra.mxu0 %v864
    %1278 = vmatprep.subr.bf16.mxu0 0
    %1279 = vmatpush1.bf16.msra.mxu0 0
    %1280 = vmatprep.subr.bf16.mxu0 0
    %1281 = vmatpush1.bf16.msra.mxu0 0
    %1282 = vmatprep.subr.bf16.mxu0 0
    %1283 = vmatpush1.bf16.msra.mxu0 0
    %1284 = vmatprep.subr.bf16.mxu0 0
    %1285 = vmatpush1.bf16.msra.mxu0 0
    %1286 = vmatprep.subr.bf16.mxu0 0
    %1287 = vmatpush1.bf16.msra.mxu0 0
    %1288 = vmatprep.subr.bf16.mxu0 0
    %1289 = vmatpush1.bf16.msra.mxu0 0
    %1290 = vmatprep.subr.bf16.mxu0 0
    %1291 = vmatpush1.bf16.msra.mxu0 0
    %1292 = vmatprep.subr.bf16.mxu0 0
    %1293 = vmatpush1.bf16.msra.mxu0 0
    %1294 = vmatprep.subr.bf16.mxu0 0
    %1295 = vmatpush1.bf16.msra.mxu0 0
    %1296 = vmatprep.subr.bf16.mxu0 0
    %1297 = vmatpush1.bf16.msra.mxu0 0
    %1298 = vmatprep.subr.bf16.mxu0 0
    %1299 = vmatpush1.bf16.msra.mxu0 0
    %1300 = vmatprep.subr.bf16.mxu0 0
    %1301 = vmatpush1.bf16.msra.mxu0 0
    %1302 = vmatprep.subr.bf16.mxu0 0
    %1303 = vmatpush1.bf16.msra.mxu0 0
    %1304 = vmatprep.subr.bf16.mxu0 0
    %1305 = vmatpush1.bf16.msra.mxu0 0
    %1306 = vmatprep.mubr.bf16.mxu0 0
    %1307 = vmatmul.mubr.bf16.gmra.mrb[0].mxu0 %v1024
    %v1308 = vpop.f32.mrb[0].mxu0
    %v1309 = vadd.f32 %v217, %v1308
    %v1310 = vpop.f32.mrb[0].mxu0
    %v1311 = vadd.f32 %v221, %v1310
    %v1312 = vpop.f32.mrb[0].mxu0
    %v1313 = vadd.f32 %v217, %v1312
    %v1314 = vpop.f32.mrb[0].mxu0
    %v1315 = vadd.f32 %v221, %v1314
    %1316 = vmatprep.mubr.bf16.mxu0 0
    %1317 = vmatmul.mubr.bf16.gmra.mrb[0].mxu0 %v1027
    %v1318 = vpop.f32.mrb[0].mxu0
    %v1319 = vpop.f32.mrb[0].mxu0
    %v1320 = vpop.f32.mrb[0].mxu0
    %v1321 = vpop.f32.mrb[0].mxu0
    %1322 = vdwg.mxu0
    %1323 = vmatprep.subr.bf16.mxu0 %v811
    %1324 = vmatpush1.bf16.msra.mxu0 %v810
    %1325 = vmatprep.subr.bf16.mxu0 %v867
    %1326 = vmatpush1.bf16.msra.mxu0 %v866
    %1327 = vmatprep.subr.bf16.mxu0 0
    %1328 = vmatpush1.bf16.msra.mxu0 0
    %1329 = vmatprep.subr.bf16.mxu0 0
    %1330 = vmatpush1.bf16.msra.mxu0 0
    %1331 = vmatprep.subr.bf16.mxu0 0
    %1332 = vmatpush1.bf16.msra.mxu0 0
    %1333 = vmatprep.subr.bf16.mxu0 0
    %1334 = vmatpush1.bf16.msra.mxu0 0
    %1335 = vmatprep.subr.bf16.mxu0 0
    %1336 = vmatpush1.bf16.msra.mxu0 0
    %1337 = vmatprep.subr.bf16.mxu0 0
    %1338 = vmatpush1.bf16.msra.mxu0 0
    %1339 = vmatprep.subr.bf16.mxu0 0
    %1340 = vmatpush1.bf16.msra.mxu0 0
    %1341 = vmatprep.subr.bf16.mxu0 0
    %1342 = vmatpush1.bf16.msra.mxu0 0
    %1343 = vmatprep.subr.bf16.mxu0 0
    %1344 = vmatpush1.bf16.msra.mxu0 0
    %1345 = vmatprep.subr.bf16.mxu0 0
    %1346 = vmatpush1.bf16.msra.mxu0 0
    %1347 = vmatprep.subr.bf16.mxu0 0
    %1348 = vmatpush1.bf16.msra.mxu0 0
    %1349 = vmatprep.subr.bf16.mxu0 0
    %1350 = vmatpush1.bf16.msra.mxu0 0
    %1351 = vmatprep.subr.bf16.mxu0 0
    %1352 = vmatpush1.bf16.msra.mxu0 0
    %1353 = vmatprep.subr.bf16.mxu0 0
    %1354 = vmatpush1.bf16.msra.mxu0 0
    %1355 = vmatprep.mubr.bf16.mxu0 0
    %1356 = vmatmul.mubr.bf16.gmra.mrb[0].mxu0 %v1024
    %v1357 = vpop.f32.mrb[0].mxu0
    %v1358 = vadd.f32 %v225, %v1357
    %v1359 = vpop.f32.mrb[0].mxu0
    %v1360 = vadd.f32 %v229, %v1359
    %v1361 = vpop.f32.mrb[0].mxu0
    %v1362 = vadd.f32 %v225, %v1361
    %v1363 = vpop.f32.mrb[0].mxu0
    %v1364 = vadd.f32 %v229, %v1363
    %1365 = vmatprep.mubr.bf16.mxu0 0
    %1366 = vmatmul.mubr.bf16.gmra.mrb[0].mxu0 %v1027
    %v1367 = vpop.f32.mrb[0].mxu0
    %v1368 = vpop.f32.mrb[0].mxu0
    %v1369 = vpop.f32.mrb[0].mxu0
    %v1370 = vpop.f32.mrb[0].mxu0
    %1371 = vdwg.mxu0
    %1372 = vmatprep.subr.bf16.mxu0 %v813
    %1373 = vmatpush1.bf16.msra.mxu0 %v812
    %1374 = vmatprep.subr.bf16.mxu0 %v869
    %1375 = vmatpush1.bf16.msra.mxu0 %v868
    %1376 = vmatprep.subr.bf16.mxu0 0
    %1377 = vmatpush1.bf16.msra.mxu0 0
    %1378 = vmatprep.subr.bf16.mxu0 0
    %1379 = vmatpush1.bf16.msra.mxu0 0
    %1380 = vmatprep.subr.bf16.mxu0 0
    %1381 = vmatpush1.bf16.msra.mxu0 0
    %1382 = vmatprep.subr.bf16.mxu0 0
    %1383 = vmatpush1.bf16.msra.mxu0 0
    %1384 = vmatprep.subr.bf16.mxu0 0
    %1385 = vmatpush1.bf16.msra.mxu0 0
    %1386 = vmatprep.subr.bf16.mxu0 0
    %1387 = vmatpush1.bf16.msra.mxu0 0
    %1388 = vmatprep.subr.bf16.mxu0 0
    %1389 = vmatpush1.bf16.msra.mxu0 0
    %1390 = vmatprep.subr.bf16.mxu0 0
    %1391 = vmatpush1.bf16.msra.mxu0 0
    %1392 = vmatprep.subr.bf16.mxu0 0
    %1393 = vmatpush1.bf16.msra.mxu0 0
    %1394 = vmatprep.subr.bf16.mxu0 0
    %1395 = vmatpush1.bf16.msra.mxu0 0
    %1396 = vmatprep.subr.bf16.mxu0 0
    %1397 = vmatpush1.bf16.msra.mxu0 0
    %1398 = vmatprep.subr.bf16.mxu0 0
    %1399 = vmatpush1.bf16.msra.mxu0 0
    %1400 = vmatprep.subr.bf16.mxu0 0
    %1401 = vmatpush1.bf16.msra.mxu0 0
    %1402 = vmatprep.subr.bf16.mxu0 0
    %1403 = vmatpush1.bf16.msra.mxu0 0
    %1404 = vmatprep.mubr.bf16.mxu0 0
    %1405 = vmatmul.mubr.bf16.gmra.mrb[0].mxu0 %v1024
    %v1406 = vpop.f32.mrb[0].mxu0
    %v1407 = vadd.f32 %v233, %v1406
    %v1408 = vpop.f32.mrb[0].mxu0
    %v1409 = vadd.f32 %v237, %v1408
    %v1410 = vpop.f32.mrb[0].mxu0
    %v1411 = vadd.f32 %v233, %v1410
    %v1412 = vpop.f32.mrb[0].mxu0
    %v1413 = vadd.f32 %v237, %v1412
    %1414 = vmatprep.mubr.bf16.mxu0 0
    %1415 = vmatmul.mubr.bf16.gmra.mrb[0].mxu0 %v1027
    %v1416 = vpop.f32.mrb[0].mxu0
    %v1417 = vpop.f32.mrb[0].mxu0
    %v1418 = vpop.f32.mrb[0].mxu0
    %v1419 = vpop.f32.mrb[0].mxu0
    %1420 = vdwg.mxu0
    %1421 = vmatprep.subr.bf16.mxu0 %v815
    %1422 = vmatpush1.bf16.msra.mxu0 %v814
    %1423 = vmatprep.subr.bf16.mxu0 %v871
    %1424 = vmatpush1.bf16.msra.mxu0 %v870
    %1425 = vmatprep.subr.bf16.mxu0 0
    %1426 = vmatpush1.bf16.msra.mxu0 0
    %1427 = vmatprep.subr.bf16.mxu0 0
    %1428 = vmatpush1.bf16.msra.mxu0 0
    %1429 = vmatprep.subr.bf16.mxu0 0
    %1430 = vmatpush1.bf16.msra.mxu0 0
    %1431 = vmatprep.subr.bf16.mxu0 0
    %1432 = vmatpush1.bf16.msra.mxu0 0
    %1433 = vmatprep.subr.bf16.mxu0 0
    %1434 = vmatpush1.bf16.msra.mxu0 0
    %1435 = vmatprep.subr.bf16.mxu0 0
    %1436 = vmatpush1.bf16.msra.mxu0 0
    %1437 = vmatprep.subr.bf16.mxu0 0
    %1438 = vmatpush1.bf16.msra.mxu0 0
    %1439 = vmatprep.subr.bf16.mxu0 0
    %1440 = vmatpush1.bf16.msra.mxu0 0
    %1441 = vmatprep.subr.bf16.mxu0 0
    %1442 = vmatpush1.bf16.msra.mxu0 0
    %1443 = vmatprep.subr.bf16.mxu0 0
    %1444 = vmatpush1.bf16.msra.mxu0 0
    %1445 = vmatprep.subr.bf16.mxu0 0
    %1446 = vmatpush1.bf16.msra.mxu0 0
    %1447 = vmatprep.subr.bf16.mxu0 0
    %1448 = vmatpush1.bf16.msra.mxu0 0
    %1449 = vmatprep.subr.bf16.mxu0 0
    %1450 = vmatpush1.bf16.msra.mxu0 0
    %1451 = vmatprep.subr.bf16.mxu0 0
    %1452 = vmatpush1.bf16.msra.mxu0 0
    %1453 = vmatprep.mubr.bf16.mxu0 0
    %1454 = vmatmul.mubr.bf16.gmra.mrb[0].mxu0 %v1024
    %v1455 = vpop.f32.mrb[0].mxu0
    %v1456 = vadd.f32 %v241, %v1455
    %v1457 = vpop.f32.mrb[0].mxu0
    %v1458 = vadd.f32 %v245, %v1457
    %v1459 = vpop.f32.mrb[0].mxu0
    %v1460 = vadd.f32 %v241, %v1459
    %v1461 = vpop.f32.mrb[0].mxu0
    %v1462 = vadd.f32 %v245, %v1461
    %1463 = vmatprep.mubr.bf16.mxu0 0
    %1464 = vmatmul.mubr.bf16.gmra.mrb[0].mxu0 %v1027
    %v1465 = vpop.f32.mrb[0].mxu0
    %v1466 = vpop.f32.mrb[0].mxu0
    %v1467 = vpop.f32.mrb[0].mxu0
    %v1468 = vpop.f32.mrb[0].mxu0
    %1469 = vdwg.mxu0
    %1470 = vmatprep.subr.bf16.mxu0 %v817
    %1471 = vmatpush1.bf16.msra.mxu0 %v816
    %1472 = vmatprep.subr.bf16.mxu0 %v873
    %1473 = vmatpush1.bf16.msra.mxu0 %v872
    %1474 = vmatprep.subr.bf16.mxu0 0
    %1475 = vmatpush1.bf16.msra.mxu0 0
    %1476 = vmatprep.subr.bf16.mxu0 0
    %1477 = vmatpush1.bf16.msra.mxu0 0
    %1478 = vmatprep.subr.bf16.mxu0 0
    %1479 = vmatpush1.bf16.msra.mxu0 0
    %1480 = vmatprep.subr.bf16.mxu0 0
    %1481 = vmatpush1.bf16.msra.mxu0 0
    %1482 = vmatprep.subr.bf16.mxu0 0
    %1483 = vmatpush1.bf16.msra.mxu0 0
    %1484 = vmatprep.subr.bf16.mxu0 0
    %1485 = vmatpush1.bf16.msra.mxu0 0
    %1486 = vmatprep.subr.bf16.mxu0 0
    %1487 = vmatpush1.bf16.msra.mxu0 0
    %1488 = vmatprep.subr.bf16.mxu0 0
    %1489 = vmatpush1.bf16.msra.mxu0 0
    %1490 = vmatprep.subr.bf16.mxu0 0
    %1491 = vmatpush1.bf16.msra.mxu0 0
    %1492 = vmatprep.subr.bf16.mxu0 0
    %1493 = vmatpush1.bf16.msra.mxu0 0
    %1494 = vmatprep.subr.bf16.mxu0 0
    %1495 = vmatpush1.bf16.msra.mxu0 0
    %1496 = vmatprep.subr.bf16.mxu0 0
    %1497 = vmatpush1.bf16.msra.mxu0 0
    %1498 = vmatprep.subr.bf16.mxu0 0
    %1499 = vmatpush1.bf16.msra.mxu0 0
    %1500 = vmatprep.subr.bf16.mxu0 0
    %1501 = vmatpush1.bf16.msra.mxu0 0
    %1502 = vmatprep.mubr.bf16.mxu0 0
    %1503 = vmatmul.mubr.bf16.gmra.mrb[0].mxu0 %v1024
    %v1504 = vpop.f32.mrb[0].mxu0
    %v1505 = vadd.f32 %v249, %v1504
    %v1506 = vpop.f32.mrb[0].mxu0
    %v1507 = vadd.f32 %v253, %v1506
    %v1508 = vpop.f32.mrb[0].mxu0
    %v1509 = vadd.f32 %v249, %v1508
    %v1510 = vpop.f32.mrb[0].mxu0
    %v1511 = vadd.f32 %v253, %v1510
    %1512 = vmatprep.mubr.bf16.mxu0 0
    %1513 = vmatmul.mubr.bf16.gmra.mrb[0].mxu0 %v1027
    %v1514 = vpop.f32.mrb[0].mxu0
    %v1515 = vpop.f32.mrb[0].mxu0
    %v1516 = vpop.f32.mrb[0].mxu0
    %v1517 = vpop.f32.mrb[0].mxu0
    %1518 = vdwg.mxu0
    %1519 = vmatprep.subr.bf16.mxu0 %v819
    %1520 = vmatpush1.bf16.msra.mxu0 %v818
    %1521 = vmatprep.subr.bf16.mxu0 %v875
    %1522 = vmatpush1.bf16.msra.mxu0 %v874
    %1523 = vmatprep.subr.bf16.mxu0 0
    %1524 = vmatpush1.bf16.msra.mxu0 0
    %1525 = vmatprep.subr.bf16.mxu0 0
    %1526 = vmatpush1.bf16.msra.mxu0 0
    %1527 = vmatprep.subr.bf16.mxu0 0
    %1528 = vmatpush1.bf16.msra.mxu0 0
    %1529 = vmatprep.subr.bf16.mxu0 0
    %1530 = vmatpush1.bf16.msra.mxu0 0
    %1531 = vmatprep.subr.bf16.mxu0 0
    %1532 = vmatpush1.bf16.msra.mxu0 0
    %1533 = vmatprep.subr.bf16.mxu0 0
    %1534 = vmatpush1.bf16.msra.mxu0 0
    %1535 = vmatprep.subr.bf16.mxu0 0
    %1536 = vmatpush1.bf16.msra.mxu0 0
    %1537 = vmatprep.subr.bf16.mxu0 0
    %1538 = vmatpush1.bf16.msra.mxu0 0
    %1539 = vmatprep.subr.bf16.mxu0 0
    %1540 = vmatpush1.bf16.msra.mxu0 0
    %1541 = vmatprep.subr.bf16.mxu0 0
    %1542 = vmatpush1.bf16.msra.mxu0 0
    %1543 = vmatprep.subr.bf16.mxu0 0
    %1544 = vmatpush1.bf16.msra.mxu0 0
    %1545 = vmatprep.subr.bf16.mxu0 0
    %1546 = vmatpush1.bf16.msra.mxu0 0
    %1547 = vmatprep.subr.bf16.mxu0 0
    %1548 = vmatpush1.bf16.msra.mxu0 0
    %1549 = vmatprep.subr.bf16.mxu0 0
    %1550 = vmatpush1.bf16.msra.mxu0 0
    %1551 = vmatprep.mubr.bf16.mxu0 0
    %1552 = vmatmul.mubr.bf16.gmra.mrb[0].mxu0 %v1024
    %v1553 = vpop.f32.mrb[0].mxu0
    %v1554 = vadd.f32 %v257, %v1553
    %v1555 = vpop.f32.mrb[0].mxu0
    %v1556 = vadd.f32 %v261, %v1555
    %v1557 = vpop.f32.mrb[0].mxu0
    %v1558 = vadd.f32 %v257, %v1557
    %v1559 = vpop.f32.mrb[0].mxu0
    %v1560 = vadd.f32 %v261, %v1559
    %1561 = vmatprep.mubr.bf16.mxu0 0
    %1562 = vmatmul.mubr.bf16.gmra.mrb[0].mxu0 %v1027
    %v1563 = vpop.f32.mrb[0].mxu0
    %v1564 = vpop.f32.mrb[0].mxu0
    %v1565 = vpop.f32.mrb[0].mxu0
    %v1566 = vpop.f32.mrb[0].mxu0
    %1567 = vdwg.mxu0
    %1568 = vmatprep.subr.bf16.mxu0 %v821
    %1569 = vmatpush1.bf16.msra.mxu0 %v820
    %1570 = vmatprep.subr.bf16.mxu0 %v877
    %1571 = vmatpush1.bf16.msra.mxu0 %v876
    %1572 = vmatprep.subr.bf16.mxu0 0
    %1573 = vmatpush1.bf16.msra.mxu0 0
    %1574 = vmatprep.subr.bf16.mxu0 0
    %1575 = vmatpush1.bf16.msra.mxu0 0
    %1576 = vmatprep.subr.bf16.mxu0 0
    %1577 = vmatpush1.bf16.msra.mxu0 0
    %1578 = vmatprep.subr.bf16.mxu0 0
    %1579 = vmatpush1.bf16.msra.mxu0 0
    %1580 = vmatprep.subr.bf16.mxu0 0
    %1581 = vmatpush1.bf16.msra.mxu0 0
    %1582 = vmatprep.subr.bf16.mxu0 0
    %1583 = vmatpush1.bf16.msra.mxu0 0
    %1584 = vmatprep.subr.bf16.mxu0 0
    %1585 = vmatpush1.bf16.msra.mxu0 0
    %1586 = vmatprep.subr.bf16.mxu0 0
    %1587 = vmatpush1.bf16.msra.mxu0 0
    %1588 = vmatprep.subr.bf16.mxu0 0
    %1589 = vmatpush1.bf16.msra.mxu0 0
    %1590 = vmatprep.subr.bf16.mxu0 0
    %1591 = vmatpush1.bf16.msra.mxu0 0
    %1592 = vmatprep.subr.bf16.mxu0 0
    %1593 = vmatpush1.bf16.msra.mxu0 0
    %1594 = vmatprep.subr.bf16.mxu0 0
    %1595 = vmatpush1.bf16.msra.mxu0 0
    %1596 = vmatprep.subr.bf16.mxu0 0
    %1597 = vmatpush1.bf16.msra.mxu0 0
    %1598 = vmatprep.subr.bf16.mxu0 0
    %1599 = vmatpush1.bf16.msra.mxu0 0
    %1600 = vmatprep.mubr.bf16.mxu0 0
    %1601 = vmatmul.mubr.bf16.gmra.mrb[0].mxu0 %v1024
    %v1602 = vpop.f32.mrb[0].mxu0
    %v1603 = vadd.f32 %v265, %v1602
    %v1604 = vpop.f32.mrb[0].mxu0
    %v1605 = vadd.f32 %v269, %v1604
    %v1606 = vpop.f32.mrb[0].mxu0
    %v1607 = vadd.f32 %v265, %v1606
    %v1608 = vpop.f32.mrb[0].mxu0
    %v1609 = vadd.f32 %v269, %v1608
    %1610 = vmatprep.mubr.bf16.mxu0 0
    %1611 = vmatmul.mubr.bf16.gmra.mrb[0].mxu0 %v1027
    %v1612 = vpop.f32.mrb[0].mxu0
    %v1613 = vpop.f32.mrb[0].mxu0
    %v1614 = vpop.f32.mrb[0].mxu0
    %v1615 = vpop.f32.mrb[0].mxu0
    %1616 = vdwg.mxu0
    %1617 = vmatprep.subr.bf16.mxu0 %v823
    %1618 = vmatpush1.bf16.msra.mxu0 %v822
    %1619 = vmatprep.subr.bf16.mxu0 %v879
    %1620 = vmatpush1.bf16.msra.mxu0 %v878
    %1621 = vmatprep.subr.bf16.mxu0 0
    %1622 = vmatpush1.bf16.msra.mxu0 0
    %1623 = vmatprep.subr.bf16.mxu0 0
    %1624 = vmatpush1.bf16.msra.mxu0 0
    %1625 = vmatprep.subr.bf16.mxu0 0
    %1626 = vmatpush1.bf16.msra.mxu0 0
    %1627 = vmatprep.subr.bf16.mxu0 0
    %1628 = vmatpush1.bf16.msra.mxu0 0
    %1629 = vmatprep.subr.bf16.mxu0 0
    %1630 = vmatpush1.bf16.msra.mxu0 0
    %1631 = vmatprep.subr.bf16.mxu0 0
    %1632 = vmatpush1.bf16.msra.mxu0 0
    %1633 = vmatprep.subr.bf16.mxu0 0
    %1634 = vmatpush1.bf16.msra.mxu0 0
    %1635 = vmatprep.subr.bf16.mxu0 0
    %1636 = vmatpush1.bf16.msra.mxu0 0
    %1637 = vmatprep.subr.bf16.mxu0 0
    %1638 = vmatpush1.bf16.msra.mxu0 0
    %1639 = vmatprep.subr.bf16.mxu0 0
    %1640 = vmatpush1.bf16.msra.mxu0 0
    %1641 = vmatprep.subr.bf16.mxu0 0
    %1642 = vmatpush1.bf16.msra.mxu0 0
    %1643 = vmatprep.subr.bf16.mxu0 0
    %1644 = vmatpush1.bf16.msra.mxu0 0
    %1645 = vmatprep.subr.bf16.mxu0 0
    %1646 = vmatpush1.bf16.msra.mxu0 0
    %1647 = vmatprep.subr.bf16.mxu0 0
    %1648 = vmatpush1.bf16.msra.mxu0 0
    %1649 = vmatprep.mubr.bf16.mxu0 0
    %1650 = vmatmul.mubr.bf16.gmra.mrb[0].mxu0 %v1024
    %v1651 = vpop.f32.mrb[0].mxu0
    %v1652 = vadd.f32 %v273, %v1651
    %v1653 = vpop.f32.mrb[0].mxu0
    %v1654 = vadd.f32 %v277, %v1653
    %v1655 = vpop.f32.mrb[0].mxu0
    %v1656 = vadd.f32 %v273, %v1655
    %v1657 = vpop.f32.mrb[0].mxu0
    %v1658 = vadd.f32 %v277, %v1657
    %1659 = vmatprep.mubr.bf16.mxu0 0
    %1660 = vmatmul.mubr.bf16.gmra.mrb[0].mxu0 %v1027
    %v1661 = vpop.f32.mrb[0].mxu0
    %v1662 = vpop.f32.mrb[0].mxu0
    %v1663 = vpop.f32.mrb[0].mxu0
    %v1664 = vpop.f32.mrb[0].mxu0
    %1665 = vdwg.mxu0
    %1666 = vmatprep.subr.bf16.mxu0 %v825
    %1667 = vmatpush1.bf16.msra.mxu0 %v824
    %1668 = vmatprep.subr.bf16.mxu0 %v881
    %1669 = vmatpush1.bf16.msra.mxu0 %v880
    %1670 = vmatprep.subr.bf16.mxu0 0
    %1671 = vmatpush1.bf16.msra.mxu0 0
    %1672 = vmatprep.subr.bf16.mxu0 0
    %1673 = vmatpush1.bf16.msra.mxu0 0
    %1674 = vmatprep.subr.bf16.mxu0 0
    %1675 = vmatpush1.bf16.msra.mxu0 0
    %1676 = vmatprep.subr.bf16.mxu0 0
    %1677 = vmatpush1.bf16.msra.mxu0 0
    %1678 = vmatprep.subr.bf16.mxu0 0
    %1679 = vmatpush1.bf16.msra.mxu0 0
    %1680 = vmatprep.subr.bf16.mxu0 0
    %1681 = vmatpush1.bf16.msra.mxu0 0
    %1682 = vmatprep.subr.bf16.mxu0 0
    %1683 = vmatpush1.bf16.msra.mxu0 0
    %1684 = vmatprep.subr.bf16.mxu0 0
    %1685 = vmatpush1.bf16.msra.mxu0 0
    %1686 = vmatprep.subr.bf16.mxu0 0
    %1687 = vmatpush1.bf16.msra.mxu0 0
    %1688 = vmatprep.subr.bf16.mxu0 0
    %1689 = vmatpush1.bf16.msra.mxu0 0
    %1690 = vmatprep.subr.bf16.mxu0 0
    %1691 = vmatpush1.bf16.msra.mxu0 0
    %1692 = vmatprep.subr.bf16.mxu0 0
    %1693 = vmatpush1.bf16.msra.mxu0 0
    %1694 = vmatprep.subr.bf16.mxu0 0
    %1695 = vmatpush1.bf16.msra.mxu0 0
    %1696 = vmatprep.subr.bf16.mxu0 0
    %1697 = vmatpush1.bf16.msra.mxu0 0
    %1698 = vmatprep.mubr.bf16.mxu0 0
    %1699 = vmatmul.mubr.bf16.gmra.mrb[0].mxu0 %v1024
    %v1700 = vpop.f32.mrb[0].mxu0
    %v1701 = vadd.f32 %v281, %v1700
    %v1702 = vpop.f32.mrb[0].mxu0
    %v1703 = vadd.f32 %v285, %v1702
    %v1704 = vpop.f32.mrb[0].mxu0
    %v1705 = vadd.f32 %v281, %v1704
    %v1706 = vpop.f32.mrb[0].mxu0
    %v1707 = vadd.f32 %v285, %v1706
    %1708 = vmatprep.mubr.bf16.mxu0 0
    %1709 = vmatmul.mubr.bf16.gmra.mrb[0].mxu0 %v1027
    %v1710 = vpop.f32.mrb[0].mxu0
    %v1711 = vpop.f32.mrb[0].mxu0
    %v1712 = vpop.f32.mrb[0].mxu0
    %v1713 = vpop.f32.mrb[0].mxu0
    %1714 = vdwg.mxu0
    %1715 = vmatprep.subr.bf16.mxu0 %v827
    %1716 = vmatpush1.bf16.msra.mxu0 %v826
    %1717 = vmatprep.subr.bf16.mxu0 %v883
    %1718 = vmatpush1.bf16.msra.mxu0 %v882
    %1719 = vmatprep.subr.bf16.mxu0 0
    %1720 = vmatpush1.bf16.msra.mxu0 0
    %1721 = vmatprep.subr.bf16.mxu0 0
    %1722 = vmatpush1.bf16.msra.mxu0 0
    %1723 = vmatprep.subr.bf16.mxu0 0
    %1724 = vmatpush1.bf16.msra.mxu0 0
    %1725 = vmatprep.subr.bf16.mxu0 0
    %1726 = vmatpush1.bf16.msra.mxu0 0
    %1727 = vmatprep.subr.bf16.mxu0 0
    %1728 = vmatpush1.bf16.msra.mxu0 0
    %1729 = vmatprep.subr.bf16.mxu0 0
    %1730 = vmatpush1.bf16.msra.mxu0 0
    %1731 = vmatprep.subr.bf16.mxu0 0
    %1732 = vmatpush1.bf16.msra.mxu0 0
    %1733 = vmatprep.subr.bf16.mxu0 0
    %1734 = vmatpush1.bf16.msra.mxu0 0
    %1735 = vmatprep.subr.bf16.mxu0 0
    %1736 = vmatpush1.bf16.msra.mxu0 0
    %1737 = vmatprep.subr.bf16.mxu0 0
    %1738 = vmatpush1.bf16.msra.mxu0 0
    %1739 = vmatprep.subr.bf16.mxu0 0
    %1740 = vmatpush1.bf16.msra.mxu0 0
    %1741 = vmatprep.subr.bf16.mxu0 0
    %1742 = vmatpush1.bf16.msra.mxu0 0
    %1743 = vmatprep.subr.bf16.mxu0 0
    %1744 = vmatpush1.bf16.msra.mxu0 0
    %1745 = vmatprep.subr.bf16.mxu0 0
    %1746 = vmatpush1.bf16.msra.mxu0 0
    %1747 = vmatprep.mubr.bf16.mxu0 0
    %1748 = vmatmul.mubr.bf16.gmra.mrb[0].mxu0 %v1024
    %v1749 = vpop.f32.mrb[0].mxu0
    %v1750 = vadd.f32 %v289, %v1749
    %v1751 = vpop.f32.mrb[0].mxu0
    %v1752 = vadd.f32 %v293, %v1751
    %v1753 = vpop.f32.mrb[0].mxu0
    %v1754 = vadd.f32 %v289, %v1753
    %v1755 = vpop.f32.mrb[0].mxu0
    %v1756 = vadd.f32 %v293, %v1755
    %1757 = vmatprep.mubr.bf16.mxu0 0
    %1758 = vmatmul.mubr.bf16.gmra.mrb[0].mxu0 %v1027
    %v1759 = vpop.f32.mrb[0].mxu0
    %v1760 = vpop.f32.mrb[0].mxu0
    %v1761 = vpop.f32.mrb[0].mxu0
    %v1762 = vpop.f32.mrb[0].mxu0
    %1763 = vdwg.mxu0
    %1764 = vmatprep.subr.bf16.mxu0 %v829
    %1765 = vmatpush1.bf16.msra.mxu0 %v828
    %1766 = vmatprep.subr.bf16.mxu0 %v885
    %1767 = vmatpush1.bf16.msra.mxu0 %v884
    %1768 = vmatprep.subr.bf16.mxu0 0
    %1769 = vmatpush1.bf16.msra.mxu0 0
    %1770 = vmatprep.subr.bf16.mxu0 0
    %1771 = vmatpush1.bf16.msra.mxu0 0
    %1772 = vmatprep.subr.bf16.mxu0 0
    %1773 = vmatpush1.bf16.msra.mxu0 0
    %1774 = vmatprep.subr.bf16.mxu0 0
    %1775 = vmatpush1.bf16.msra.mxu0 0
    %1776 = vmatprep.subr.bf16.mxu0 0
    %1777 = vmatpush1.bf16.msra.mxu0 0
    %1778 = vmatprep.subr.bf16.mxu0 0
    %1779 = vmatpush1.bf16.msra.mxu0 0
    %1780 = vmatprep.subr.bf16.mxu0 0
    %1781 = vmatpush1.bf16.msra.mxu0 0
    %1782 = vmatprep.subr.bf16.mxu0 0
    %1783 = vmatpush1.bf16.msra.mxu0 0
    %1784 = vmatprep.subr.bf16.mxu0 0
    %1785 = vmatpush1.bf16.msra.mxu0 0
    %1786 = vmatprep.subr.bf16.mxu0 0
    %1787 = vmatpush1.bf16.msra.mxu0 0
    %1788 = vmatprep.subr.bf16.mxu0 0
    %1789 = vmatpush1.bf16.msra.mxu0 0
    %1790 = vmatprep.subr.bf16.mxu0 0
    %1791 = vmatpush1.bf16.msra.mxu0 0
    %1792 = vmatprep.subr.bf16.mxu0 0
    %1793 = vmatpush1.bf16.msra.mxu0 0
    %1794 = vmatprep.subr.bf16.mxu0 0
    %1795 = vmatpush1.bf16.msra.mxu0 0
    %1796 = vmatprep.mubr.bf16.mxu0 0
    %1797 = vmatmul.mubr.bf16.gmra.mrb[0].mxu0 %v1024
    %v1798 = vpop.f32.mrb[0].mxu0
    %v1799 = vadd.f32 %v297, %v1798
    %v1800 = vpop.f32.mrb[0].mxu0
    %v1801 = vadd.f32 %v301, %v1800
    %v1802 = vpop.f32.mrb[0].mxu0
    %v1803 = vadd.f32 %v297, %v1802
    %v1804 = vpop.f32.mrb[0].mxu0
    %v1805 = vadd.f32 %v301, %v1804
    %1806 = vmatprep.mubr.bf16.mxu0 0
    %1807 = vmatmul.mubr.bf16.gmra.mrb[0].mxu0 %v1027
    %v1808 = vpop.f32.mrb[0].mxu0
    %v1809 = vpop.f32.mrb[0].mxu0
    %v1810 = vpop.f32.mrb[0].mxu0
    %v1811 = vpop.f32.mrb[0].mxu0
    %1812 = vdwg.mxu0
    %1813 = vmatprep.subr.bf16.mxu0 %v831
    %1814 = vmatpush1.bf16.msra.mxu0 %v830
    %1815 = vmatprep.subr.bf16.mxu0 %v887
    %1816 = vmatpush1.bf16.msra.mxu0 %v886
    %1817 = vmatprep.subr.bf16.mxu0 0
    %1818 = vmatpush1.bf16.msra.mxu0 0
    %1819 = vmatprep.subr.bf16.mxu0 0
    %1820 = vmatpush1.bf16.msra.mxu0 0
    %1821 = vmatprep.subr.bf16.mxu0 0
    %1822 = vmatpush1.bf16.msra.mxu0 0
    %1823 = vmatprep.subr.bf16.mxu0 0
    %1824 = vmatpush1.bf16.msra.mxu0 0
    %1825 = vmatprep.subr.bf16.mxu0 0
    %1826 = vmatpush1.bf16.msra.mxu0 0
    %1827 = vmatprep.subr.bf16.mxu0 0
    %1828 = vmatpush1.bf16.msra.mxu0 0
    %1829 = vmatprep.subr.bf16.mxu0 0
    %1830 = vmatpush1.bf16.msra.mxu0 0
    %1831 = vmatprep.subr.bf16.mxu0 0
    %1832 = vmatpush1.bf16.msra.mxu0 0
    %1833 = vmatprep.subr.bf16.mxu0 0
    %1834 = vmatpush1.bf16.msra.mxu0 0
    %1835 = vmatprep.subr.bf16.mxu0 0
    %1836 = vmatpush1.bf16.msra.mxu0 0
    %1837 = vmatprep.subr.bf16.mxu0 0
    %1838 = vmatpush1.bf16.msra.mxu0 0
    %1839 = vmatprep.subr.bf16.mxu0 0
    %1840 = vmatpush1.bf16.msra.mxu0 0
    %1841 = vmatprep.subr.bf16.mxu0 0
    %1842 = vmatpush1.bf16.msra.mxu0 0
    %1843 = vmatprep.subr.bf16.mxu0 0
    %1844 = vmatpush1.bf16.msra.mxu0 0
    %1845 = vmatprep.mubr.bf16.mxu0 0
    %1846 = vmatmul.mubr.bf16.gmra.mrb[0].mxu0 %v1024
    %v1847 = vpop.f32.mrb[0].mxu0
    %v1848 = vadd.f32 %v305, %v1847
    %v1849 = vpop.f32.mrb[0].mxu0
    %v1850 = vadd.f32 %v309, %v1849
    %v1851 = vpop.f32.mrb[0].mxu0
    %v1852 = vpop.f32.mrb[0].mxu0
    %1853 = vmatprep.mubr.bf16.mxu0 0
    %1854 = vmatmul.mubr.bf16.gmra.mrb[0].mxu0 %v1027
    %v1855 = vpop.f32.mrb[0].mxu0
    %v1856 = vadd.f32 %v305, %v1855
    %v1857 = vpop.f32.mrb[0].mxu0
    %v1858 = vadd.f32 %v309, %v1857
    %v1859 = vpop.f32.mrb[0].mxu0
    %v1860 = vpop.f32.mrb[0].mxu0
    %1861 = vdwg.mxu0
    %1862 = vmatprep.subr.bf16.mxu0 %v833
    %1863 = vmatpush1.bf16.msra.mxu0 %v832
    %1864 = vmatprep.subr.bf16.mxu0 %v889
    %1865 = vmatpush1.bf16.msra.mxu0 %v888
    %1866 = vmatprep.subr.bf16.mxu0 0
    %1867 = vmatpush1.bf16.msra.mxu0 0
    %1868 = vmatprep.subr.bf16.mxu0 0
    %1869 = vmatpush1.bf16.msra.mxu0 0
    %1870 = vmatprep.subr.bf16.mxu0 0
    %1871 = vmatpush1.bf16.msra.mxu0 0
    %1872 = vmatprep.subr.bf16.mxu0 0
    %1873 = vmatpush1.bf16.msra.mxu0 0
    %1874 = vmatprep.subr.bf16.mxu0 0
    %1875 = vmatpush1.bf16.msra.mxu0 0
    %1876 = vmatprep.subr.bf16.mxu0 0
    %1877 = vmatpush1.bf16.msra.mxu0 0
    %1878 = vmatprep.subr.bf16.mxu0 0
    %1879 = vmatpush1.bf16.msra.mxu0 0
    %1880 = vmatprep.subr.bf16.mxu0 0
    %1881 = vmatpush1.bf16.msra.mxu0 0
    %1882 = vmatprep.subr.bf16.mxu0 0
    %1883 = vmatpush1.bf16.msra.mxu0 0
    %1884 = vmatprep.subr.bf16.mxu0 0
    %1885 = vmatpush1.bf16.msra.mxu0 0
    %1886 = vmatprep.subr.bf16.mxu0 0
    %1887 = vmatpush1.bf16.msra.mxu0 0
    %1888 = vmatprep.subr.bf16.mxu0 0
    %1889 = vmatpush1.bf16.msra.mxu0 0
    %1890 = vmatprep.subr.bf16.mxu0 0
    %1891 = vmatpush1.bf16.msra.mxu0 0
    %1892 = vmatprep.subr.bf16.mxu0 0
    %1893 = vmatpush1.bf16.msra.mxu0 0
    %1894 = vmatprep.mubr.bf16.mxu0 0
    %1895 = vmatmul.mubr.bf16.gmra.mrb[0].mxu0 %v1024
    %v1896 = vpop.f32.mrb[0].mxu0
    %v1897 = vadd.f32 %v313, %v1896
    %v1898 = vpop.f32.mrb[0].mxu0
    %v1899 = vadd.f32 %v317, %v1898
    %v1900 = vpop.f32.mrb[0].mxu0
    %v1901 = vpop.f32.mrb[0].mxu0
    %1902 = vmatprep.mubr.bf16.mxu0 0
    %1903 = vmatmul.mubr.bf16.gmra.mrb[0].mxu0 %v1027
    %v1904 = vpop.f32.mrb[0].mxu0
    %v1905 = vadd.f32 %v313, %v1904
    %v1906 = vpop.f32.mrb[0].mxu0
    %v1907 = vadd.f32 %v317, %v1906
    %v1908 = vpop.f32.mrb[0].mxu0
    %v1909 = vpop.f32.mrb[0].mxu0
    %1910 = vdwg.mxu0
    %1911 = vmatprep.subr.bf16.mxu0 %v835
    %1912 = vmatpush1.bf16.msra.mxu0 %v834
    %1913 = vmatprep.subr.bf16.mxu0 %v891
    %1914 = vmatpush1.bf16.msra.mxu0 %v890
    %1915 = vmatprep.subr.bf16.mxu0 0
    %1916 = vmatpush1.bf16.msra.mxu0 0
    %1917 = vmatprep.subr.bf16.mxu0 0
    %1918 = vmatpush1.bf16.msra.mxu0 0
    %1919 = vmatprep.subr.bf16.mxu0 0
    %1920 = vmatpush1.bf16.msra.mxu0 0
    %1921 = vmatprep.subr.bf16.mxu0 0
    %1922 = vmatpush1.bf16.msra.mxu0 0
    %1923 = vmatprep.subr.bf16.mxu0 0
    %1924 = vmatpush1.bf16.msra.mxu0 0
    %1925 = vmatprep.subr.bf16.mxu0 0
    %1926 = vmatpush1.bf16.msra.mxu0 0
    %1927 = vmatprep.subr.bf16.mxu0 0
    %1928 = vmatpush1.bf16.msra.mxu0 0
    %1929 = vmatprep.subr.bf16.mxu0 0
    %1930 = vmatpush1.bf16.msra.mxu0 0
    %1931 = vmatprep.subr.bf16.mxu0 0
    %1932 = vmatpush1.bf16.msra.mxu0 0
    %1933 = vmatprep.subr.bf16.mxu0 0
    %1934 = vmatpush1.bf16.msra.mxu0 0
    %1935 = vmatprep.subr.bf16.mxu0 0
    %1936 = vmatpush1.bf16.msra.mxu0 0
    %1937 = vmatprep.subr.bf16.mxu0 0
    %1938 = vmatpush1.bf16.msra.mxu0 0
    %1939 = vmatprep.subr.bf16.mxu0 0
    %1940 = vmatpush1.bf16.msra.mxu0 0
    %1941 = vmatprep.subr.bf16.mxu0 0
    %1942 = vmatpush1.bf16.msra.mxu0 0
    %1943 = vmatprep.mubr.bf16.mxu0 0
    %1944 = vmatmul.mubr.bf16.gmra.mrb[0].mxu0 %v1024
    %v1945 = vpop.f32.mrb[0].mxu0
    %v1946 = vadd.f32 %v321, %v1945
    %v1947 = vpop.f32.mrb[0].mxu0
    %v1948 = vadd.f32 %v325, %v1947
    %v1949 = vpop.f32.mrb[0].mxu0
    %v1950 = vpop.f32.mrb[0].mxu0
    %1951 = vmatprep.mubr.bf16.mxu0 0
    %1952 = vmatmul.mubr.bf16.gmra.mrb[0].mxu0 %v1027
    %v1953 = vpop.f32.mrb[0].mxu0
    %v1954 = vadd.f32 %v321, %v1953
    %v1955 = vpop.f32.mrb[0].mxu0
    %v1956 = vadd.f32 %v325, %v1955
    %v1957 = vpop.f32.mrb[0].mxu0
    %v1958 = vpop.f32.mrb[0].mxu0
    %1959 = vdwg.mxu0
    %1960 = vmatprep.subr.bf16.mxu0 %v837
    %1961 = vmatpush1.bf16.msra.mxu0 %v836
    %1962 = vmatprep.subr.bf16.mxu0 %v893
    %1963 = vmatpush1.bf16.msra.mxu0 %v892
    %1964 = vmatprep.subr.bf16.mxu0 0
    %1965 = vmatpush1.bf16.msra.mxu0 0
    %1966 = vmatprep.subr.bf16.mxu0 0
    %1967 = vmatpush1.bf16.msra.mxu0 0
    %1968 = vmatprep.subr.bf16.mxu0 0
    %1969 = vmatpush1.bf16.msra.mxu0 0
    %1970 = vmatprep.subr.bf16.mxu0 0
    %1971 = vmatpush1.bf16.msra.mxu0 0
    %1972 = vmatprep.subr.bf16.mxu0 0
    %1973 = vmatpush1.bf16.msra.mxu0 0
    %1974 = vmatprep.subr.bf16.mxu0 0
    %1975 = vmatpush1.bf16.msra.mxu0 0
    %1976 = vmatprep.subr.bf16.mxu0 0
    %1977 = vmatpush1.bf16.msra.mxu0 0
    %1978 = vmatprep.subr.bf16.mxu0 0
    %1979 = vmatpush1.bf16.msra.mxu0 0
    %1980 = vmatprep.subr.bf16.mxu0 0
    %1981 = vmatpush1.bf16.msra.mxu0 0
    %1982 = vmatprep.subr.bf16.mxu0 0
    %1983 = vmatpush1.bf16.msra.mxu0 0
    %1984 = vmatprep.subr.bf16.mxu0 0
    %1985 = vmatpush1.bf16.msra.mxu0 0
    %1986 = vmatprep.subr.bf16.mxu0 0
    %1987 = vmatpush1.bf16.msra.mxu0 0
    %1988 = vmatprep.subr.bf16.mxu0 0
    %1989 = vmatpush1.bf16.msra.mxu0 0
    %1990 = vmatprep.subr.bf16.mxu0 0
    %1991 = vmatpush1.bf16.msra.mxu0 0
    %1992 = vmatprep.mubr.bf16.mxu0 0
    %1993 = vmatmul.mubr.bf16.gmra.mrb[0].mxu0 %v1024
    %v1994 = vpop.f32.mrb[0].mxu0
    %v1995 = vadd.f32 %v329, %v1994
    %v1996 = vpop.f32.mrb[0].mxu0
    %v1997 = vadd.f32 %v333, %v1996
    %v1998 = vpop.f32.mrb[0].mxu0
    %v1999 = vpop.f32.mrb[0].mxu0
    %2000 = vmatprep.mubr.bf16.mxu0 0
    %2001 = vmatmul.mubr.bf16.gmra.mrb[0].mxu0 %v1027
    %v2002 = vpop.f32.mrb[0].mxu0
    %v2003 = vadd.f32 %v329, %v2002
    %v2004 = vpop.f32.mrb[0].mxu0
    %v2005 = vadd.f32 %v333, %v2004
    %v2006 = vpop.f32.mrb[0].mxu0
    %v2007 = vpop.f32.mrb[0].mxu0
    %2008 = vdwg.mxu0
    %2009 = vmatprep.subr.bf16.mxu0 %v839
    %2010 = vmatpush1.bf16.msra.mxu0 %v838
    %2011 = vmatprep.subr.bf16.mxu0 %v895
    %2012 = vmatpush1.bf16.msra.mxu0 %v894
    %2013 = vmatprep.subr.bf16.mxu0 0
    %2014 = vmatpush1.bf16.msra.mxu0 0
    %2015 = vmatprep.subr.bf16.mxu0 0
    %2016 = vmatpush1.bf16.msra.mxu0 0
    %2017 = vmatprep.subr.bf16.mxu0 0
    %2018 = vmatpush1.bf16.msra.mxu0 0
    %2019 = vmatprep.subr.bf16.mxu0 0
    %2020 = vmatpush1.bf16.msra.mxu0 0
    %2021 = vmatprep.subr.bf16.mxu0 0
    %2022 = vmatpush1.bf16.msra.mxu0 0
    %2023 = vmatprep.subr.bf16.mxu0 0
    %2024 = vmatpush1.bf16.msra.mxu0 0
    %2025 = vmatprep.subr.bf16.mxu0 0
    %2026 = vmatpush1.bf16.msra.mxu0 0
    %2027 = vmatprep.subr.bf16.mxu0 0
    %2028 = vmatpush1.bf16.msra.mxu0 0
    %2029 = vmatprep.subr.bf16.mxu0 0
    %2030 = vmatpush1.bf16.msra.mxu0 0
    %2031 = vmatprep.subr.bf16.mxu0 0
    %2032 = vmatpush1.bf16.msra.mxu0 0
    %2033 = vmatprep.subr.bf16.mxu0 0
    %2034 = vmatpush1.bf16.msra.mxu0 0
    %2035 = vmatprep.subr.bf16.mxu0 0
    %2036 = vmatpush1.bf16.msra.mxu0 0
    %2037 = vmatprep.subr.bf16.mxu0 0
    %2038 = vmatpush1.bf16.msra.mxu0 0
    %2039 = vmatprep.subr.bf16.mxu0 0
    %2040 = vmatpush1.bf16.msra.mxu0 0
    %2041 = vmatprep.mubr.bf16.mxu0 0
    %2042 = vmatmul.mubr.bf16.gmra.mrb[0].mxu0 %v1024
    %v2043 = vpop.f32.mrb[0].mxu0
    %v2044 = vadd.f32 %v337, %v2043
    %v2045 = vpop.f32.mrb[0].mxu0
    %v2046 = vadd.f32 %v341, %v2045
    %v2047 = vpop.f32.mrb[0].mxu0
    %v2048 = vpop.f32.mrb[0].mxu0
    %2049 = vmatprep.mubr.bf16.mxu0 0
    %2050 = vmatmul.mubr.bf16.gmra.mrb[0].mxu0 %v1027
    %v2051 = vpop.f32.mrb[0].mxu0
    %v2052 = vadd.f32 %v337, %v2051
    %v2053 = vpop.f32.mrb[0].mxu0
    %v2054 = vadd.f32 %v341, %v2053
    %v2055 = vpop.f32.mrb[0].mxu0
    %v2056 = vpop.f32.mrb[0].mxu0
    %2057 = vdwg.mxu0
    %2058 = vmatprep.subr.bf16.mxu0 %v841
    %2059 = vmatpush1.bf16.msra.mxu0 %v840
    %2060 = vmatprep.subr.bf16.mxu0 %v897
    %2061 = vmatpush1.bf16.msra.mxu0 %v896
    %2062 = vmatprep.subr.bf16.mxu0 0
    %2063 = vmatpush1.bf16.msra.mxu0 0
    %2064 = vmatprep.subr.bf16.mxu0 0
    %2065 = vmatpush1.bf16.msra.mxu0 0
    %2066 = vmatprep.subr.bf16.mxu0 0
    %2067 = vmatpush1.bf16.msra.mxu0 0
    %2068 = vmatprep.subr.bf16.mxu0 0
    %2069 = vmatpush1.bf16.msra.mxu0 0
    %2070 = vmatprep.subr.bf16.mxu0 0
    %2071 = vmatpush1.bf16.msra.mxu0 0
    %2072 = vmatprep.subr.bf16.mxu0 0
    %2073 = vmatpush1.bf16.msra.mxu0 0
    %2074 = vmatprep.subr.bf16.mxu0 0
    %2075 = vmatpush1.bf16.msra.mxu0 0
    %2076 = vmatprep.subr.bf16.mxu0 0
    %2077 = vmatpush1.bf16.msra.mxu0 0
    %2078 = vmatprep.subr.bf16.mxu0 0
    %2079 = vmatpush1.bf16.msra.mxu0 0
    %2080 = vmatprep.subr.bf16.mxu0 0
    %2081 = vmatpush1.bf16.msra.mxu0 0
    %2082 = vmatprep.subr.bf16.mxu0 0
    %2083 = vmatpush1.bf16.msra.mxu0 0
    %2084 = vmatprep.subr.bf16.mxu0 0
    %2085 = vmatpush1.bf16.msra.mxu0 0
    %2086 = vmatprep.subr.bf16.mxu0 0
    %2087 = vmatpush1.bf16.msra.mxu0 0
    %2088 = vmatprep.subr.bf16.mxu0 0
    %2089 = vmatpush1.bf16.msra.mxu0 0
    %2090 = vmatprep.mubr.bf16.mxu0 0
    %2091 = vmatmul.mubr.bf16.gmra.mrb[0].mxu0 %v1024
    %v2092 = vpop.f32.mrb[0].mxu0
    %v2093 = vadd.f32 %v345, %v2092
    %v2094 = vpop.f32.mrb[0].mxu0
    %v2095 = vadd.f32 %v349, %v2094
    %v2096 = vpop.f32.mrb[0].mxu0
    %v2097 = vpop.f32.mrb[0].mxu0
    %2098 = vmatprep.mubr.bf16.mxu0 0
    %2099 = vmatmul.mubr.bf16.gmra.mrb[0].mxu0 %v1027
    %v2100 = vpop.f32.mrb[0].mxu0
    %v2101 = vadd.f32 %v345, %v2100
    %v2102 = vpop.f32.mrb[0].mxu0
    %v2103 = vadd.f32 %v349, %v2102
    %v2104 = vpop.f32.mrb[0].mxu0
    %v2105 = vpop.f32.mrb[0].mxu0
    %2106 = vdwg.mxu0
    %2107 = vmatprep.subr.bf16.mxu0 %v843
    %2108 = vmatpush1.bf16.msra.mxu0 %v842
    %2109 = vmatprep.subr.bf16.mxu0 %v899
    %2110 = vmatpush1.bf16.msra.mxu0 %v898
    %2111 = vmatprep.subr.bf16.mxu0 0
    %2112 = vmatpush1.bf16.msra.mxu0 0
    %2113 = vmatprep.subr.bf16.mxu0 0
    %2114 = vmatpush1.bf16.msra.mxu0 0
    %2115 = vmatprep.subr.bf16.mxu0 0
    %2116 = vmatpush1.bf16.msra.mxu0 0
    %2117 = vmatprep.subr.bf16.mxu0 0
    %2118 = vmatpush1.bf16.msra.mxu0 0
    %2119 = vmatprep.subr.bf16.mxu0 0
    %2120 = vmatpush1.bf16.msra.mxu0 0
    %2121 = vmatprep.subr.bf16.mxu0 0
    %2122 = vmatpush1.bf16.msra.mxu0 0
    %2123 = vmatprep.subr.bf16.mxu0 0
    %2124 = vmatpush1.bf16.msra.mxu0 0
    %2125 = vmatprep.subr.bf16.mxu0 0
    %2126 = vmatpush1.bf16.msra.mxu0 0
    %2127 = vmatprep.subr.bf16.mxu0 0
    %2128 = vmatpush1.bf16.msra.mxu0 0
    %2129 = vmatprep.subr.bf16.mxu0 0
    %2130 = vmatpush1.bf16.msra.mxu0 0
    %2131 = vmatprep.subr.bf16.mxu0 0
    %2132 = vmatpush1.bf16.msra.mxu0 0
    %2133 = vmatprep.subr.bf16.mxu0 0
    %2134 = vmatpush1.bf16.msra.mxu0 0
    %2135 = vmatprep.subr.bf16.mxu0 0
    %2136 = vmatpush1.bf16.msra.mxu0 0
    %2137 = vmatprep.subr.bf16.mxu0 0
    %2138 = vmatpush1.bf16.msra.mxu0 0
    %2139 = vmatprep.mubr.bf16.mxu0 0
    %2140 = vmatmul.mubr.bf16.gmra.mrb[0].mxu0 %v1024
    %v2141 = vpop.f32.mrb[0].mxu0
    %v2142 = vpop.f32.mrb[0].mxu0
    %v2143 = vpop.f32.mrb[0].mxu0
    %v2144 = vadd.f32 %v353, %v2143
    %v2145 = vpop.f32.mrb[0].mxu0
    %v2146 = vadd.f32 %v357, %v2145
    %2147 = vmatprep.mubr.bf16.mxu0 0
    %2148 = vmatmul.mubr.bf16.gmra.mrb[0].mxu0 %v1027
    %v2149 = vpop.f32.mrb[0].mxu0
    %v2150 = vadd.f32 %v353, %v2149
    %v2151 = vpop.f32.mrb[0].mxu0
    %v2152 = vadd.f32 %v357, %v2151
    %v2153 = vpop.f32.mrb[0].mxu0
    %v2154 = vpop.f32.mrb[0].mxu0
    %2155 = vdwg.mxu0
    %2156 = vmatprep.subr.bf16.mxu0 %v845
    %2157 = vmatpush1.bf16.msra.mxu0 %v844
    %2158 = vmatprep.subr.bf16.mxu0 %v901
    %2159 = vmatpush1.bf16.msra.mxu0 %v900
    %2160 = vmatprep.subr.bf16.mxu0 0
    %2161 = vmatpush1.bf16.msra.mxu0 0
    %2162 = vmatprep.subr.bf16.mxu0 0
    %2163 = vmatpush1.bf16.msra.mxu0 0
    %2164 = vmatprep.subr.bf16.mxu0 0
    %2165 = vmatpush1.bf16.msra.mxu0 0
    %2166 = vmatprep.subr.bf16.mxu0 0
    %2167 = vmatpush1.bf16.msra.mxu0 0
    %2168 = vmatprep.subr.bf16.mxu0 0
    %2169 = vmatpush1.bf16.msra.mxu0 0
    %2170 = vmatprep.subr.bf16.mxu0 0
    %2171 = vmatpush1.bf16.msra.mxu0 0
    %2172 = vmatprep.subr.bf16.mxu0 0
    %2173 = vmatpush1.bf16.msra.mxu0 0
    %2174 = vmatprep.subr.bf16.mxu0 0
    %2175 = vmatpush1.bf16.msra.mxu0 0
    %2176 = vmatprep.subr.bf16.mxu0 0
    %2177 = vmatpush1.bf16.msra.mxu0 0
    %2178 = vmatprep.subr.bf16.mxu0 0
    %2179 = vmatpush1.bf16.msra.mxu0 0
    %2180 = vmatprep.subr.bf16.mxu0 0
    %2181 = vmatpush1.bf16.msra.mxu0 0
    %2182 = vmatprep.subr.bf16.mxu0 0
    %2183 = vmatpush1.bf16.msra.mxu0 0
    %2184 = vmatprep.subr.bf16.mxu0 0
    %2185 = vmatpush1.bf16.msra.mxu0 0
    %2186 = vmatprep.subr.bf16.mxu0 0
    %2187 = vmatpush1.bf16.msra.mxu0 0
    %2188 = vmatprep.mubr.bf16.mxu0 0
    %2189 = vmatmul.mubr.bf16.gmra.mrb[0].mxu0 %v1024
    %v2190 = vpop.f32.mrb[0].mxu0
    %v2191 = vpop.f32.mrb[0].mxu0
    %v2192 = vpop.f32.mrb[0].mxu0
    %v2193 = vadd.f32 %v361, %v2192
    %v2194 = vpop.f32.mrb[0].mxu0
    %v2195 = vadd.f32 %v365, %v2194
    %2196 = vmatprep.mubr.bf16.mxu0 0
    %2197 = vmatmul.mubr.bf16.gmra.mrb[0].mxu0 %v1027
    %v2198 = vpop.f32.mrb[0].mxu0
    %v2199 = vadd.f32 %v361, %v2198
    %v2200 = vpop.f32.mrb[0].mxu0
    %v2201 = vadd.f32 %v365, %v2200
    %v2202 = vpop.f32.mrb[0].mxu0
    %v2203 = vpop.f32.mrb[0].mxu0
    %2204 = vdwg.mxu0
    %2205 = vmatprep.subr.bf16.mxu0 %v847
    %2206 = vmatpush1.bf16.msra.mxu0 %v846
    %2207 = vmatprep.subr.bf16.mxu0 %v903
    %2208 = vmatpush1.bf16.msra.mxu0 %v902
    %2209 = vmatprep.subr.bf16.mxu0 0
    %2210 = vmatpush1.bf16.msra.mxu0 0
    %2211 = vmatprep.subr.bf16.mxu0 0
    %2212 = vmatpush1.bf16.msra.mxu0 0
    %2213 = vmatprep.subr.bf16.mxu0 0
    %2214 = vmatpush1.bf16.msra.mxu0 0
    %2215 = vmatprep.subr.bf16.mxu0 0
    %2216 = vmatpush1.bf16.msra.mxu0 0
    %2217 = vmatprep.subr.bf16.mxu0 0
    %2218 = vmatpush1.bf16.msra.mxu0 0
    %2219 = vmatprep.subr.bf16.mxu0 0
    %2220 = vmatpush1.bf16.msra.mxu0 0
    %2221 = vmatprep.subr.bf16.mxu0 0
    %2222 = vmatpush1.bf16.msra.mxu0 0
    %2223 = vmatprep.subr.bf16.mxu0 0
    %2224 = vmatpush1.bf16.msra.mxu0 0
    %2225 = vmatprep.subr.bf16.mxu0 0
    %2226 = vmatpush1.bf16.msra.mxu0 0
    %2227 = vmatprep.subr.bf16.mxu0 0
    %2228 = vmatpush1.bf16.msra.mxu0 0
    %2229 = vmatprep.subr.bf16.mxu0 0
    %2230 = vmatpush1.bf16.msra.mxu0 0
    %2231 = vmatprep.subr.bf16.mxu0 0
    %2232 = vmatpush1.bf16.msra.mxu0 0
    %2233 = vmatprep.subr.bf16.mxu0 0
    %2234 = vmatpush1.bf16.msra.mxu0 0
    %2235 = vmatprep.subr.bf16.mxu0 0
    %2236 = vmatpush1.bf16.msra.mxu0 0
    %2237 = vmatprep.mubr.bf16.mxu0 0
    %2238 = vmatmul.mubr.bf16.gmra.mrb[0].mxu0 %v1024
    %v2239 = vpop.f32.mrb[0].mxu0
    %v2240 = vpop.f32.mrb[0].mxu0
    %v2241 = vpop.f32.mrb[0].mxu0
    %v2242 = vadd.f32 %v369, %v2241
    %v2243 = vpop.f32.mrb[0].mxu0
    %v2244 = vadd.f32 %v373, %v2243
    %2245 = vmatprep.mubr.bf16.mxu0 0
    %2246 = vmatmul.mubr.bf16.gmra.mrb[0].mxu0 %v1027
    %v2247 = vpop.f32.mrb[0].mxu0
    %v2248 = vadd.f32 %v369, %v2247
    %v2249 = vpop.f32.mrb[0].mxu0
    %v2250 = vadd.f32 %v373, %v2249
    %v2251 = vpop.f32.mrb[0].mxu0
    %v2252 = vpop.f32.mrb[0].mxu0
    %2253 = vdwg.mxu0
    %2254 = vmatprep.subr.bf16.mxu0 %v849
    %2255 = vmatpush1.bf16.msra.mxu0 %v848
    %2256 = vmatprep.subr.bf16.mxu0 %v905
    %2257 = vmatpush1.bf16.msra.mxu0 %v904
    %2258 = vmatprep.subr.bf16.mxu0 0
    %2259 = vmatpush1.bf16.msra.mxu0 0
    %2260 = vmatprep.subr.bf16.mxu0 0
    %2261 = vmatpush1.bf16.msra.mxu0 0
    %2262 = vmatprep.subr.bf16.mxu0 0
    %2263 = vmatpush1.bf16.msra.mxu0 0
    %2264 = vmatprep.subr.bf16.mxu0 0
    %2265 = vmatpush1.bf16.msra.mxu0 0
    %2266 = vmatprep.subr.bf16.mxu0 0
    %2267 = vmatpush1.bf16.msra.mxu0 0
    %2268 = vmatprep.subr.bf16.mxu0 0
    %2269 = vmatpush1.bf16.msra.mxu0 0
    %2270 = vmatprep.subr.bf16.mxu0 0
    %2271 = vmatpush1.bf16.msra.mxu0 0
    %2272 = vmatprep.subr.bf16.mxu0 0
    %2273 = vmatpush1.bf16.msra.mxu0 0
    %2274 = vmatprep.subr.bf16.mxu0 0
    %2275 = vmatpush1.bf16.msra.mxu0 0
    %2276 = vmatprep.subr.bf16.mxu0 0
    %2277 = vmatpush1.bf16.msra.mxu0 0
    %2278 = vmatprep.subr.bf16.mxu0 0
    %2279 = vmatpush1.bf16.msra.mxu0 0
    %2280 = vmatprep.subr.bf16.mxu0 0
    %2281 = vmatpush1.bf16.msra.mxu0 0
    %2282 = vmatprep.subr.bf16.mxu0 0
    %2283 = vmatpush1.bf16.msra.mxu0 0
    %2284 = vmatprep.subr.bf16.mxu0 0
    %2285 = vmatpush1.bf16.msra.mxu0 0
    %2286 = vmatprep.mubr.bf16.mxu0 0
    %2287 = vmatmul.mubr.bf16.gmra.mrb[0].mxu0 %v1024
    %v2288 = vpop.f32.mrb[0].mxu0
    %v2289 = vpop.f32.mrb[0].mxu0
    %v2290 = vpop.f32.mrb[0].mxu0
    %v2291 = vadd.f32 %v377, %v2290
    %v2292 = vpop.f32.mrb[0].mxu0
    %v2293 = vadd.f32 %v381, %v2292
    %2294 = vmatprep.mubr.bf16.mxu0 0
    %2295 = vmatmul.mubr.bf16.gmra.mrb[0].mxu0 %v1027
    %v2296 = vpop.f32.mrb[0].mxu0
    %v2297 = vadd.f32 %v377, %v2296
    %v2298 = vpop.f32.mrb[0].mxu0
    %v2299 = vadd.f32 %v381, %v2298
    %v2300 = vpop.f32.mrb[0].mxu0
    %v2301 = vpop.f32.mrb[0].mxu0
    %2302 = vdwg.mxu0
    %2303 = vmatprep.subr.bf16.mxu0 %v851
    %2304 = vmatpush1.bf16.msra.mxu0 %v850
    %2305 = vmatprep.subr.bf16.mxu0 %v907
    %2306 = vmatpush1.bf16.msra.mxu0 %v906
    %2307 = vmatprep.subr.bf16.mxu0 0
    %2308 = vmatpush1.bf16.msra.mxu0 0
    %2309 = vmatprep.subr.bf16.mxu0 0
    %2310 = vmatpush1.bf16.msra.mxu0 0
    %2311 = vmatprep.subr.bf16.mxu0 0
    %2312 = vmatpush1.bf16.msra.mxu0 0
    %2313 = vmatprep.subr.bf16.mxu0 0
    %2314 = vmatpush1.bf16.msra.mxu0 0
    %2315 = vmatprep.subr.bf16.mxu0 0
    %2316 = vmatpush1.bf16.msra.mxu0 0
    %2317 = vmatprep.subr.bf16.mxu0 0
    %2318 = vmatpush1.bf16.msra.mxu0 0
    %2319 = vmatprep.subr.bf16.mxu0 0
    %2320 = vmatpush1.bf16.msra.mxu0 0
    %2321 = vmatprep.subr.bf16.mxu0 0
    %2322 = vmatpush1.bf16.msra.mxu0 0
    %2323 = vmatprep.subr.bf16.mxu0 0
    %2324 = vmatpush1.bf16.msra.mxu0 0
    %2325 = vmatprep.subr.bf16.mxu0 0
    %2326 = vmatpush1.bf16.msra.mxu0 0
    %2327 = vmatprep.subr.bf16.mxu0 0
    %2328 = vmatpush1.bf16.msra.mxu0 0
    %2329 = vmatprep.subr.bf16.mxu0 0
    %2330 = vmatpush1.bf16.msra.mxu0 0
    %2331 = vmatprep.subr.bf16.mxu0 0
    %2332 = vmatpush1.bf16.msra.mxu0 0
    %2333 = vmatprep.subr.bf16.mxu0 0
    %2334 = vmatpush1.bf16.msra.mxu0 0
    %2335 = vmatprep.mubr.bf16.mxu0 0
    %2336 = vmatmul.mubr.bf16.gmra.mrb[0].mxu0 %v1024
    %v2337 = vpop.f32.mrb[0].mxu0
    %v2338 = vpop.f32.mrb[0].mxu0
    %v2339 = vpop.f32.mrb[0].mxu0
    %v2340 = vadd.f32 %v385, %v2339
    %v2341 = vpop.f32.mrb[0].mxu0
    %v2342 = vadd.f32 %v389, %v2341
    %2343 = vmatprep.mubr.bf16.mxu0 0
    %2344 = vmatmul.mubr.bf16.gmra.mrb[0].mxu0 %v1027
    %v2345 = vpop.f32.mrb[0].mxu0
    %v2346 = vadd.f32 %v385, %v2345
    %v2347 = vpop.f32.mrb[0].mxu0
    %v2348 = vadd.f32 %v389, %v2347
    %v2349 = vpop.f32.mrb[0].mxu0
    %v2350 = vpop.f32.mrb[0].mxu0
    %2351 = vdwg.mxu0
    %2352 = vmatprep.subr.bf16.mxu0 %v853
    %2353 = vmatpush1.bf16.msra.mxu0 %v852
    %2354 = vmatprep.subr.bf16.mxu0 %v909
    %2355 = vmatpush1.bf16.msra.mxu0 %v908
    %2356 = vmatprep.subr.bf16.mxu0 0
    %2357 = vmatpush1.bf16.msra.mxu0 0
    %2358 = vmatprep.subr.bf16.mxu0 0
    %2359 = vmatpush1.bf16.msra.mxu0 0
    %2360 = vmatprep.subr.bf16.mxu0 0
    %2361 = vmatpush1.bf16.msra.mxu0 0
    %2362 = vmatprep.subr.bf16.mxu0 0
    %2363 = vmatpush1.bf16.msra.mxu0 0
    %2364 = vmatprep.subr.bf16.mxu0 0
    %2365 = vmatpush1.bf16.msra.mxu0 0
    %2366 = vmatprep.subr.bf16.mxu0 0
    %2367 = vmatpush1.bf16.msra.mxu0 0
    %2368 = vmatprep.subr.bf16.mxu0 0
    %2369 = vmatpush1.bf16.msra.mxu0 0
    %2370 = vmatprep.subr.bf16.mxu0 0
    %2371 = vmatpush1.bf16.msra.mxu0 0
    %2372 = vmatprep.subr.bf16.mxu0 0
    %2373 = vmatpush1.bf16.msra.mxu0 0
    %2374 = vmatprep.subr.bf16.mxu0 0
    %2375 = vmatpush1.bf16.msra.mxu0 0
    %2376 = vmatprep.subr.bf16.mxu0 0
    %2377 = vmatpush1.bf16.msra.mxu0 0
    %2378 = vmatprep.subr.bf16.mxu0 0
    %2379 = vmatpush1.bf16.msra.mxu0 0
    %2380 = vmatprep.subr.bf16.mxu0 0
    %2381 = vmatpush1.bf16.msra.mxu0 0
    %2382 = vmatprep.subr.bf16.mxu0 0
    %2383 = vmatpush1.bf16.msra.mxu0 0
    %2384 = vmatprep.mubr.bf16.mxu0 0
    %2385 = vmatmul.mubr.bf16.gmra.mrb[0].mxu0 %v1024
    %v2386 = vpop.f32.mrb[0].mxu0
    %v2387 = vpop.f32.mrb[0].mxu0
    %v2388 = vpop.f32.mrb[0].mxu0
    %v2389 = vadd.f32 %v393, %v2388
    %v2390 = vpop.f32.mrb[0].mxu0
    %v2391 = vadd.f32 %v397, %v2390
    %2392 = vmatprep.mubr.bf16.mxu0 0
    %2393 = vmatmul.mubr.bf16.gmra.mrb[0].mxu0 %v1027
    %v2394 = vpop.f32.mrb[0].mxu0
    %v2395 = vadd.f32 %v393, %v2394
    %v2396 = vpop.f32.mrb[0].mxu0
    %v2397 = vadd.f32 %v397, %v2396
    %v2398 = vpop.f32.mrb[0].mxu0
    %v2399 = vpop.f32.mrb[0].mxu0
    %2400 = vdwg.mxu0
    %s2401 = sld [smem:[#allocation2]]
    %s2402 = sld [smem:[#allocation2 + $0x1]]
    %s2403 = sld [smem:[#allocation2 + $0x2]]
    %s2404 = sld [smem:[#allocation2 + $0x3]]
    %s2405 = sld [smem:[#allocation2 + $0x4]]
    %s2406 = sld [smem:[#allocation2 + $0x5]]
    %s2407 = sld [smem:[#allocation2 + $0x6]]
    %s2408 = sld [smem:[#allocation2 + $0x7]]
    %s2409 = sld [smem:[#allocation2 + $0x8]]
    %v2422 = vcombine.low %v1064, %v1066
    %v2423 = vcombine.low %v1113, %v1115
    %v2425 = vunpack.c.l.s4 1983009808
    %v2426 = vunpack.c.0.s8 %v2425
    %v2427 = vlaneseq
    %v2428 = vshrl.u32 %v2427, 7
    %v2429 = vsub.s32 %v2426, %v2428
    %v2430 = vrot.slane %v2422, %v2429
    %v2432 = vunpack.c.l.s4 1983009808
    %v2433 = vunpack.c.0.s8 %v2432
    %v2434 = vlaneseq
    %v2435 = vshrl.u32 %v2434, 7
    %v2436 = vsub.s32 %v2433, %v2435
    %v2437 = vrot.slane %v2423, %v2436
    %v2438 = vcombine.low %v2430, %v2437
    %v2439 = vcombine.low %v1162, %v1164
    %v2440 = vcombine.low %v1211, %v1213
    %v2442 = vunpack.c.l.s4 1983009808
    %v2443 = vunpack.c.0.s8 %v2442
    %v2444 = vlaneseq
    %v2445 = vshrl.u32 %v2444, 7
    %v2446 = vsub.s32 %v2443, %v2445
    %v2447 = vrot.slane %v2439, %v2446
    %v2449 = vunpack.c.l.s4 1983009808
    %v2450 = vunpack.c.0.s8 %v2449
    %v2451 = vlaneseq
    %v2452 = vshrl.u32 %v2451, 7
    %v2453 = vsub.s32 %v2450, %v2452
    %v2454 = vrot.slane %v2440, %v2453
    %v2455 = vcombine.low %v2447, %v2454
    %v2456 = vcombine.low %v1260, %v1262
    %v2457 = vcombine.low %v1309, %v1311
    %v2459 = vunpack.c.l.s4 1983009808
    %v2460 = vunpack.c.0.s8 %v2459
    %v2461 = vlaneseq
    %v2462 = vshrl.u32 %v2461, 7
    %v2463 = vsub.s32 %v2460, %v2462
    %v2464 = vrot.slane %v2456, %v2463
    %v2466 = vunpack.c.l.s4 1983009808
    %v2467 = vunpack.c.0.s8 %v2466
    %v2468 = vlaneseq
    %v2469 = vshrl.u32 %v2468, 7
    %v2470 = vsub.s32 %v2467, %v2469
    %v2471 = vrot.slane %v2457, %v2470
    %v2472 = vcombine.low %v2464, %v2471
    %2476 = vst [vmem:[%s6] sm:$0xff] %v2438
    %2477 = vst [vmem:[%s6 + $0x8] sm:$0xff] %v2455
    %2478 = vst [vmem:[%s6 + $0x10] sm:$0xff] %v2472
    %v2479 = vxor.u32 %v1750, 2147483648
    %v2480 = vxor.u32 %v1752, 2147483648
    %v2481 = vxor.u32 %v1799, 2147483648
    %v2482 = vxor.u32 %v1801, 2147483648
    %v2483 = vmul.f32 %v2479, 1.442695
    %v2484 = vpow.pop %v2483
    %v2485 = vmul.f32 %v2480, 1.442695
    %v2486 = vpow.pop %v2485
    %v2487 = vmul.f32 %v2481, 1.442695
    %v2488 = vpow.pop %v2487
    %v2489 = vmul.f32 %v2482, 1.442695
    %v2490 = vpow.pop %v2489
    %v2491 = vadd.f32 %v2484, 1.0
    %v2492 = vadd.f32 %v2486, 1.0
    %v2493 = vadd.f32 %v2488, 1.0
    %v2494 = vadd.f32 %v2490, 1.0
    %v2495 = vrcp.pop %v2491
    %v2496 = vmul.f32 1.0, %v2495
    %v2497 = vrcp.pop %v2492
    %v2498 = vmul.f32 1.0, %v2497
    %v2499 = vrcp.pop %v2493
    %v2500 = vmul.f32 1.0, %v2499
    %v2501 = vrcp.pop %v2494
    %v2502 = vmul.f32 1.0, %v2501
    %v2507 = vcombine.high %v2496, %v2498
    %v2508 = vcombine.high %v2500, %v2502
    %v2510 = vunpack.c.l.s4 1983009808
    %v2511 = vunpack.c.0.s8 %v2510
    %v2512 = vlaneseq
    %v2513 = vshrl.u32 %v2512, 7
    %v2514 = vsub.s32 %v2511, %v2513
    %v2515 = vrot.slane %v2507, %v2514
    %v2517 = vunpack.c.l.s4 1983009808
    %v2518 = vunpack.c.0.s8 %v2517
    %v2519 = vlaneseq
    %v2520 = vshrl.u32 %v2519, 7
    %v2521 = vsub.s32 %v2518, %v2520
    %v2522 = vrot.slane %v2508, %v2521
    %v2523 = vcombine.low %v2515, %v2522
    %2525 = vst [vmem:[%s8] sm:$0xff] %v2523
    %v2526 = vmul.f32 %v1848, 1.442695
    %v2527 = vpow.pop %v2526
    %v2528 = vmul.f32 %v1850, 1.442695
    %v2529 = vpow.pop %v2528
    %v2530 = vmul.f32 %v1897, 1.442695
    %v2531 = vpow.pop %v2530
    %v2532 = vmul.f32 %v1899, 1.442695
    %v2533 = vpow.pop %v2532
    %v2534 = vmul.f32 %v1946, 1.442695
    %v2535 = vpow.pop %v2534
    %v2536 = vmul.f32 %v1948, 1.442695
    %v2537 = vpow.pop %v2536
    %v2538 = vmul.f32 %v1995, 1.442695
    %v2539 = vpow.pop %v2538
    %v2540 = vmul.f32 %v1997, 1.442695
    %v2541 = vpow.pop %v2540
    %v2542 = vmul.f32 %v2044, 1.442695
    %v2543 = vpow.pop %v2542
    %v2544 = vmul.f32 %v2046, 1.442695
    %v2545 = vpow.pop %v2544
    %v2546 = vmul.f32 %v2093, 1.442695
    %v2547 = vpow.pop %v2546
    %v2548 = vmul.f32 %v2095, 1.442695
    %v2549 = vpow.pop %v2548
    %v2562 = vcombine.high %v2527, %v2529
    %v2563 = vcombine.high %v2531, %v2533
    %v2565 = vunpack.c.l.s4 1983009808
    %v2566 = vunpack.c.0.s8 %v2565
    %v2567 = vlaneseq
    %v2568 = vshrl.u32 %v2567, 7
    %v2569 = vsub.s32 %v2566, %v2568
    %v2570 = vrot.slane %v2562, %v2569
    %v2572 = vunpack.c.l.s4 1983009808
    %v2573 = vunpack.c.0.s8 %v2572
    %v2574 = vlaneseq
    %v2575 = vshrl.u32 %v2574, 7
    %v2576 = vsub.s32 %v2573, %v2575
    %v2577 = vrot.slane %v2563, %v2576
    %v2578 = vcombine.high %v2570, %v2577
    %v2579 = vcombine.high %v2535, %v2537
    %v2580 = vcombine.high %v2539, %v2541
    %v2582 = vunpack.c.l.s4 1983009808
    %v2583 = vunpack.c.0.s8 %v2582
    %v2584 = vlaneseq
    %v2585 = vshrl.u32 %v2584, 7
    %v2586 = vsub.s32 %v2583, %v2585
    %v2587 = vrot.slane %v2579, %v2586
    %v2589 = vunpack.c.l.s4 1983009808
    %v2590 = vunpack.c.0.s8 %v2589
    %v2591 = vlaneseq
    %v2592 = vshrl.u32 %v2591, 7
    %v2593 = vsub.s32 %v2590, %v2592
    %v2594 = vrot.slane %v2580, %v2593
    %v2595 = vcombine.high %v2587, %v2594
    %v2596 = vcombine.high %v2543, %v2545
    %v2597 = vcombine.high %v2547, %v2549
    %v2599 = vunpack.c.l.s4 1983009808
    %v2600 = vunpack.c.0.s8 %v2599
    %v2601 = vlaneseq
    %v2602 = vshrl.u32 %v2601, 7
    %v2603 = vsub.s32 %v2600, %v2602
    %v2604 = vrot.slane %v2596, %v2603
    %v2606 = vunpack.c.l.s4 1983009808
    %v2607 = vunpack.c.0.s8 %v2606
    %v2608 = vlaneseq
    %v2609 = vshrl.u32 %v2608, 7
    %v2610 = vsub.s32 %v2607, %v2609
    %v2611 = vrot.slane %v2597, %v2610
    %v2612 = vcombine.high %v2604, %v2611
    %2616 = vst [vmem:[%s9] sm:$0xff] %v2578
    %2617 = vst [vmem:[%s9 + $0x8] sm:$0xff] %v2595
    %2618 = vst [vmem:[%s9 + $0x10] sm:$0xff] %v2612
    %v2631 = vcombine.low %v2144, %v2146
    %v2632 = vcombine.low %v2193, %v2195
    %v2634 = vunpack.c.l.s4 1983009808
    %v2635 = vunpack.c.0.s8 %v2634
    %v2636 = vlaneseq
    %v2637 = vshrl.u32 %v2636, 7
    %v2638 = vsub.s32 %v2635, %v2637
    %v2639 = vrot.slane %v2631, %v2638
    %v2641 = vunpack.c.l.s4 1983009808
    %v2642 = vunpack.c.0.s8 %v2641
    %v2643 = vlaneseq
    %v2644 = vshrl.u32 %v2643, 7
    %v2645 = vsub.s32 %v2642, %v2644
    %v2646 = vrot.slane %v2632, %v2645
    %v2647 = vcombine.low %v2639, %v2646
    %v2648 = vcombine.low %v2242, %v2244
    %v2649 = vcombine.low %v2291, %v2293
    %v2651 = vunpack.c.l.s4 1983009808
    %v2652 = vunpack.c.0.s8 %v2651
    %v2653 = vlaneseq
    %v2654 = vshrl.u32 %v2653, 7
    %v2655 = vsub.s32 %v2652, %v2654
    %v2656 = vrot.slane %v2648, %v2655
    %v2658 = vunpack.c.l.s4 1983009808
    %v2659 = vunpack.c.0.s8 %v2658
    %v2660 = vlaneseq
    %v2661 = vshrl.u32 %v2660, 7
    %v2662 = vsub.s32 %v2659, %v2661
    %v2663 = vrot.slane %v2649, %v2662
    %v2664 = vcombine.low %v2656, %v2663
    %v2665 = vcombine.low %v2340, %v2342
    %v2666 = vcombine.low %v2389, %v2391
    %v2668 = vunpack.c.l.s4 1983009808
    %v2669 = vunpack.c.0.s8 %v2668
    %v2670 = vlaneseq
    %v2671 = vshrl.u32 %v2670, 7
    %v2672 = vsub.s32 %v2669, %v2671
    %v2673 = vrot.slane %v2665, %v2672
    %v2675 = vunpack.c.l.s4 1983009808
    %v2676 = vunpack.c.0.s8 %v2675
    %v2677 = vlaneseq
    %v2678 = vshrl.u32 %v2677, 7
    %v2679 = vsub.s32 %v2676, %v2678
    %v2680 = vrot.slane %v2666, %v2679
    %v2681 = vcombine.low %v2673, %v2680
    %2685 = vst [vmem:[%s10] sm:$0xff] %v2647
    %2686 = vst [vmem:[%s10 + $0x8] sm:$0xff] %v2664
    %2687 = vst [vmem:[%s10 + $0x10] sm:$0xff] %v2681
    %v2688 = vmul.f32 %v1358, %v1358
    %v2689 = vmul.f32 %v1360, %v1360
    %v2690 = vmul.f32 %v1407, %v1407
    %v2691 = vmul.f32 %v1409, %v1409
    %v2696 = vrot.slane %v2688, 2
    %v2697 = vrot.slane %v2689, 2
    %v2698 = vrot.slane %v2690, 2
    %v2699 = vrot.slane %v2691, 2
    %vm2704 = vcmask 1041408
    %v2705 = vsel %vm2704, %v2696, 0.0
    %v2706 = vsel %vm2704, %v2697, 0.0
    %v2707 = vadd.f32 %v2705, %v2706
    %v2708 = vsel %vm2704, %v2698, 0.0
    %v2709 = vadd.f32 %v2707, %v2708
    %v2710 = vsel %vm2704, %v2699, 0.0
    %v2711 = vadd.f32 %v2709, %v2710
    %2712 = vadd.xlane.f32.xlu0 %v2711
    %v2713 = vpop.xlane.xlu0 %2712
    %v2714 = vrot.slane %v2713, 4
    %v2715 = vadd.f32 %v2713, %v2714
    %v2716 = vrot.slane %v2715, 2
    %v2717 = vadd.f32 %v2715, %v2716
    %v2718 = vrot.slane %v2717, 1
    %v2719 = vadd.f32 %v2717, %v2718
    %s2720 = vtos %v2719
    %v2721 = vstv %s2720
    %v2722 = vrsqrt.pop %v2721
    %v2723 = vmul.f32 %v2721, %v2722
    %vm2724 = vcmp.eq.f32.partialorder %v2721, inf
    %v2725 = vsel %vm2724, %v2721, %v2723
    %vm2726 = vcmp.eq.f32.partialorder %v2721, 0.0
    %v2727 = vand.u32 %v2721, 2147483648
    %v2728 = vsel %vm2726, %v2727, %v2725
    %s2729 = vtos %v2728
    %s2730 = smax.f32 %s2729, 1e-12
    %v2731 = vstv %s2730
    %v2732 = vrcp.pop %v2731
    %s2733 = vtos %v2732
    %v2734 = vstv %s2733
    %v2735 = vmul.f32 %v1358, %v2734
    %v2736 = vmul.f32 %v1360, %v2734
    %v2737 = vmul.f32 %v1407, %v2734
    %v2738 = vmul.f32 %v1409, %v2734
    %v2739 = vmul.f32 %v1456, %v1456
    %v2740 = vmul.f32 %v1458, %v1458
    %v2741 = vmul.f32 %v1505, %v1505
    %v2742 = vmul.f32 %v1507, %v1507
    %v2747 = vrot.slane %v2739, 2
    %v2748 = vrot.slane %v2740, 2
    %v2749 = vrot.slane %v2741, 2
    %v2750 = vrot.slane %v2742, 2
    %v2755 = vsel %vm2704, %v2747, 0.0
    %v2756 = vsel %vm2704, %v2748, 0.0
    %v2757 = vadd.f32 %v2755, %v2756
    %v2758 = vsel %vm2704, %v2749, 0.0
    %v2759 = vadd.f32 %v2757, %v2758
    %v2760 = vsel %vm2704, %v2750, 0.0
    %v2761 = vadd.f32 %v2759, %v2760
    %2762 = vadd.xlane.f32.xlu0 %v2761
    %v2763 = vpop.xlane.xlu0 %2762
    %v2764 = vrot.slane %v2763, 4
    %v2765 = vadd.f32 %v2763, %v2764
    %v2766 = vrot.slane %v2765, 2
    %v2767 = vadd.f32 %v2765, %v2766
    %v2768 = vrot.slane %v2767, 1
    %v2769 = vadd.f32 %v2767, %v2768
    %s2770 = vtos %v2769
    %v2771 = vstv %s2770
    %v2772 = vrsqrt.pop %v2771
    %v2773 = vmul.f32 %v2771, %v2772
    %vm2774 = vcmp.eq.f32.partialorder %v2771, inf
    %v2775 = vsel %vm2774, %v2771, %v2773
    %vm2776 = vcmp.eq.f32.partialorder %v2771, 0.0
    %v2777 = vand.u32 %v2771, 2147483648
    %v2778 = vsel %vm2776, %v2777, %v2775
    %s2779 = vtos %v2778
    %s2780 = smax.f32 %s2779, 1e-12
    %v2781 = vstv %s2780
    %v2782 = vrcp.pop %v2781
    %s2783 = vtos %v2782
    %v2784 = vstv %s2783
    %v2785 = vmul.f32 %v1456, %v2784
    %v2786 = vmul.f32 %v1458, %v2784
    %v2787 = vmul.f32 %v1505, %v2784
    %v2788 = vmul.f32 %v1507, %v2784
    %v2789 = vmul.f32 %v1554, %v1554
    %v2790 = vmul.f32 %v1556, %v1556
    %v2791 = vmul.f32 %v1603, %v1603
    %v2792 = vmul.f32 %v1605, %v1605
    %v2797 = vrot.slane %v2789, 2
    %v2798 = vrot.slane %v2790, 2
    %v2799 = vrot.slane %v2791, 2
    %v2800 = vrot.slane %v2792, 2
    %v2805 = vsel %vm2704, %v2797, 0.0
    %v2806 = vsel %vm2704, %v2798, 0.0
    %v2807 = vadd.f32 %v2805, %v2806
    %v2808 = vsel %vm2704, %v2799, 0.0
    %v2809 = vadd.f32 %v2807, %v2808
    %v2810 = vsel %vm2704, %v2800, 0.0
    %v2811 = vadd.f32 %v2809, %v2810
    %2812 = vadd.xlane.f32.xlu0 %v2811
    %v2813 = vpop.xlane.xlu0 %2812
    %v2814 = vrot.slane %v2813, 4
    %v2815 = vadd.f32 %v2813, %v2814
    %v2816 = vrot.slane %v2815, 2
    %v2817 = vadd.f32 %v2815, %v2816
    %v2818 = vrot.slane %v2817, 1
    %v2819 = vadd.f32 %v2817, %v2818
    %s2820 = vtos %v2819
    %v2821 = vstv %s2820
    %v2822 = vrsqrt.pop %v2821
    %v2823 = vmul.f32 %v2821, %v2822
    %vm2824 = vcmp.eq.f32.partialorder %v2821, inf
    %v2825 = vsel %vm2824, %v2821, %v2823
    %vm2826 = vcmp.eq.f32.partialorder %v2821, 0.0
    %v2827 = vand.u32 %v2821, 2147483648
    %v2828 = vsel %vm2826, %v2827, %v2825
    %s2829 = vtos %v2828
    %s2830 = smax.f32 %s2829, 1e-12
    %v2831 = vstv %s2830
    %v2832 = vrcp.pop %v2831
    %s2833 = vtos %v2832
    %v2834 = vstv %s2833
    %v2835 = vmul.f32 %v1554, %v2834
    %v2836 = vmul.f32 %v1556, %v2834
    %v2837 = vmul.f32 %v1603, %v2834
    %v2838 = vmul.f32 %v1605, %v2834
    %v2839 = vmul.f32 %v1652, %v1652
    %v2840 = vmul.f32 %v1654, %v1654
    %v2841 = vmul.f32 %v1701, %v1701
    %v2842 = vmul.f32 %v1703, %v1703
    %v2847 = vrot.slane %v2839, 2
    %v2848 = vrot.slane %v2840, 2
    %v2849 = vrot.slane %v2841, 2
    %v2850 = vrot.slane %v2842, 2
    %v2855 = vsel %vm2704, %v2847, 0.0
    %v2856 = vsel %vm2704, %v2848, 0.0
    %v2857 = vadd.f32 %v2855, %v2856
    %v2858 = vsel %vm2704, %v2849, 0.0
    %v2859 = vadd.f32 %v2857, %v2858
    %v2860 = vsel %vm2704, %v2850, 0.0
    %v2861 = vadd.f32 %v2859, %v2860
    %2862 = vadd.xlane.f32.xlu0 %v2861
    %v2863 = vpop.xlane.xlu0 %2862
    %v2864 = vrot.slane %v2863, 4
    %v2865 = vadd.f32 %v2863, %v2864
    %v2866 = vrot.slane %v2865, 2
    %v2867 = vadd.f32 %v2865, %v2866
    %v2868 = vrot.slane %v2867, 1
    %v2869 = vadd.f32 %v2867, %v2868
    %s2870 = vtos %v2869
    %v2871 = vstv %s2870
    %v2872 = vrsqrt.pop %v2871
    %v2873 = vmul.f32 %v2871, %v2872
    %vm2874 = vcmp.eq.f32.partialorder %v2871, inf
    %v2875 = vsel %vm2874, %v2871, %v2873
    %vm2876 = vcmp.eq.f32.partialorder %v2871, 0.0
    %v2877 = vand.u32 %v2871, 2147483648
    %v2878 = vsel %vm2876, %v2877, %v2875
    %s2879 = vtos %v2878
    %s2880 = smax.f32 %s2879, 1e-12
    %v2881 = vstv %s2880
    %v2882 = vrcp.pop %v2881
    %s2883 = vtos %v2882
    %v2884 = vstv %s2883
    %v2885 = vmul.f32 %v1652, %v2884
    %v2886 = vmul.f32 %v1654, %v2884
    %v2887 = vmul.f32 %v1701, %v2884
    %v2888 = vmul.f32 %v1703, %v2884
    %v2889 = vstv %s2406
    %v2890 = vmul.f32 %v2889, %v2735
    %v2891 = vmul.f32 %v2889, %v2736
    %v2892 = vmul.f32 %v2889, %v2737
    %v2893 = vmul.f32 %v2889, %v2738
    %v2894 = vstv %s2407
    %v2895 = vmul.f32 %v2894, %v2785
    %v2896 = vmul.f32 %v2894, %v2786
    %v2897 = vmul.f32 %v2894, %v2787
    %v2898 = vmul.f32 %v2894, %v2788
    %v2899 = vsub.f32 %v2890, %v2895
    %v2900 = vsub.f32 %v2891, %v2896
    %v2901 = vsub.f32 %v2892, %v2897
    %v2902 = vsub.f32 %v2893, %v2898
    %v2903 = vstv %s2408
    %v2904 = vmul.f32 %v2903, %v2835
    %v2905 = vmul.f32 %v2903, %v2836
    %v2906 = vmul.f32 %v2903, %v2837
    %v2907 = vmul.f32 %v2903, %v2838
    %v2908 = vsub.f32 %v2899, %v2904
    %v2909 = vsub.f32 %v2900, %v2905
    %v2910 = vsub.f32 %v2901, %v2906
    %v2911 = vsub.f32 %v2902, %v2907
    %v2912 = vstv %s2409
    %v2913 = vmul.f32 %v2912, %v2885
    %v2914 = vmul.f32 %v2912, %v2886
    %v2915 = vmul.f32 %v2912, %v2887
    %v2916 = vmul.f32 %v2912, %v2888
    %v2917 = vsub.f32 %v2908, %v2913
    %v2918 = vsub.f32 %v2909, %v2914
    %v2919 = vsub.f32 %v2910, %v2915
    %v2920 = vsub.f32 %v2911, %v2916
    %v2925 = vcombine.low %v2917, %v2918
    %v2926 = vcombine.low %v2919, %v2920
    %v2928 = vunpack.c.l.s4 1983009808
    %v2929 = vunpack.c.0.s8 %v2928
    %v2930 = vlaneseq
    %v2931 = vshrl.u32 %v2930, 7
    %v2932 = vsub.s32 %v2929, %v2931
    %v2933 = vrot.slane %v2925, %v2932
    %v2935 = vunpack.c.l.s4 1983009808
    %v2936 = vunpack.c.0.s8 %v2935
    %v2937 = vlaneseq
    %v2938 = vshrl.u32 %v2937, 7
    %v2939 = vsub.s32 %v2936, %v2938
    %v2940 = vrot.slane %v2926, %v2939
    %v2941 = vcombine.high %v2933, %v2940
    %2943 = vst [vmem:[%s7] sm:$0xff] %v2941
    %v2944 = vmul.f32 %v2889, %v2785
    %v2945 = vmul.f32 %v2889, %v2786
    %v2946 = vmul.f32 %v2889, %v2787
    %v2947 = vmul.f32 %v2889, %v2788
    %v2948 = vmul.f32 %v2894, %v2735
    %v2949 = vmul.f32 %v2894, %v2736
    %v2950 = vmul.f32 %v2894, %v2737
    %v2951 = vmul.f32 %v2894, %v2738
    %v2952 = vadd.f32 %v2944, %v2948
    %v2953 = vadd.f32 %v2945, %v2949
    %v2954 = vadd.f32 %v2946, %v2950
    %v2955 = vadd.f32 %v2947, %v2951
    %v2956 = vmul.f32 %v2903, %v2885
    %v2957 = vmul.f32 %v2903, %v2886
    %v2958 = vmul.f32 %v2903, %v2887
    %v2959 = vmul.f32 %v2903, %v2888
    %v2960 = vadd.f32 %v2952, %v2956
    %v2961 = vadd.f32 %v2953, %v2957
    %v2962 = vadd.f32 %v2954, %v2958
    %v2963 = vadd.f32 %v2955, %v2959
    %v2964 = vmul.f32 %v2912, %v2835
    %v2965 = vmul.f32 %v2912, %v2836
    %v2966 = vmul.f32 %v2912, %v2837
    %v2967 = vmul.f32 %v2912, %v2838
    %v2968 = vsub.f32 %v2960, %v2964
    %v2969 = vsub.f32 %v2961, %v2965
    %v2970 = vsub.f32 %v2962, %v2966
    %v2971 = vsub.f32 %v2963, %v2967
    %v2976 = vcombine.low %v2968, %v2969
    %v2977 = vcombine.low %v2970, %v2971
    %v2979 = vunpack.c.l.s4 1983009808
    %v2980 = vunpack.c.0.s8 %v2979
    %v2981 = vlaneseq
    %v2982 = vshrl.u32 %v2981, 7
    %v2983 = vsub.s32 %v2980, %v2982
    %v2984 = vrot.slane %v2976, %v2983
    %v2986 = vunpack.c.l.s4 1983009808
    %v2987 = vunpack.c.0.s8 %v2986
    %v2988 = vlaneseq
    %v2989 = vshrl.u32 %v2988, 7
    %v2990 = vsub.s32 %v2987, %v2989
    %v2991 = vrot.slane %v2977, %v2990
    %v2992 = vcombine.high %v2984, %v2991
    %2994 = vst [vmem:[%s7 + $0x8] sm:$0xff] %v2992
    %v2995 = vmul.f32 %v2889, %v2835
    %v2996 = vmul.f32 %v2889, %v2836
    %v2997 = vmul.f32 %v2889, %v2837
    %v2998 = vmul.f32 %v2889, %v2838
    %v2999 = vmul.f32 %v2894, %v2885
    %v3000 = vmul.f32 %v2894, %v2886
    %v3001 = vmul.f32 %v2894, %v2887
    %v3002 = vmul.f32 %v2894, %v2888
    %v3003 = vsub.f32 %v2995, %v2999
    %v3004 = vsub.f32 %v2996, %v3000
    %v3005 = vsub.f32 %v2997, %v3001
    %v3006 = vsub.f32 %v2998, %v3002
    %v3007 = vmul.f32 %v2903, %v2735
    %v3008 = vmul.f32 %v2903, %v2736
    %v3009 = vmul.f32 %v2903, %v2737
    %v3010 = vmul.f32 %v2903, %v2738
    %v3011 = vadd.f32 %v3003, %v3007
    %v3012 = vadd.f32 %v3004, %v3008
    %v3013 = vadd.f32 %v3005, %v3009
    %v3014 = vadd.f32 %v3006, %v3010
    %v3015 = vmul.f32 %v2912, %v2785
    %v3016 = vmul.f32 %v2912, %v2786
    %v3017 = vmul.f32 %v2912, %v2787
    %v3018 = vmul.f32 %v2912, %v2788
    %v3019 = vadd.f32 %v3011, %v3015
    %v3020 = vadd.f32 %v3012, %v3016
    %v3021 = vadd.f32 %v3013, %v3017
    %v3022 = vadd.f32 %v3014, %v3018
    %v3027 = vcombine.low %v3019, %v3020
    %v3028 = vcombine.low %v3021, %v3022
    %v3030 = vunpack.c.l.s4 1983009808
    %v3031 = vunpack.c.0.s8 %v3030
    %v3032 = vlaneseq
    %v3033 = vshrl.u32 %v3032, 7
    %v3034 = vsub.s32 %v3031, %v3033
    %v3035 = vrot.slane %v3027, %v3034
    %v3037 = vunpack.c.l.s4 1983009808
    %v3038 = vunpack.c.0.s8 %v3037
    %v3039 = vlaneseq
    %v3040 = vshrl.u32 %v3039, 7
    %v3041 = vsub.s32 %v3038, %v3040
    %v3042 = vrot.slane %v3028, %v3041
    %v3043 = vcombine.high %v3035, %v3042
    %3045 = vst [vmem:[%s7 + $0x10] sm:$0xff] %v3043
    %v3046 = vmul.f32 %v2889, %v2885
    %v3047 = vmul.f32 %v2889, %v2886
    %v3048 = vmul.f32 %v2889, %v2887
    %v3049 = vmul.f32 %v2889, %v2888
    %v3050 = vmul.f32 %v2894, %v2835
    %v3051 = vmul.f32 %v2894, %v2836
    %v3052 = vmul.f32 %v2894, %v2837
    %v3053 = vmul.f32 %v2894, %v2838
    %v3054 = vadd.f32 %v3046, %v3050
    %v3055 = vadd.f32 %v3047, %v3051
    %v3056 = vadd.f32 %v3048, %v3052
    %v3057 = vadd.f32 %v3049, %v3053
    %v3058 = vmul.f32 %v2903, %v2785
    %v3059 = vmul.f32 %v2903, %v2786
    %v3060 = vmul.f32 %v2903, %v2787
    %v3061 = vmul.f32 %v2903, %v2788
    %v3062 = vsub.f32 %v3054, %v3058
    %v3063 = vsub.f32 %v3055, %v3059
    %v3064 = vsub.f32 %v3056, %v3060
    %v3065 = vsub.f32 %v3057, %v3061
    %v3066 = vmul.f32 %v2912, %v2735
    %v3067 = vmul.f32 %v2912, %v2736
    %v3068 = vmul.f32 %v2912, %v2737
    %v3069 = vmul.f32 %v2912, %v2738
    %v3070 = vadd.f32 %v3062, %v3066
    %v3071 = vadd.f32 %v3063, %v3067
    %v3072 = vadd.f32 %v3064, %v3068
    %v3073 = vadd.f32 %v3065, %v3069
    %v3078 = vcombine.low %v3070, %v3071
    %v3079 = vcombine.low %v3072, %v3073
    %v3081 = vunpack.c.l.s4 1983009808
    %v3082 = vunpack.c.0.s8 %v3081
    %v3083 = vlaneseq
    %v3084 = vshrl.u32 %v3083, 7
    %v3085 = vsub.s32 %v3082, %v3084
    %v3086 = vrot.slane %v3078, %v3085
    %v3088 = vunpack.c.l.s4 1983009808
    %v3089 = vunpack.c.0.s8 %v3088
    %v3090 = vlaneseq
    %v3091 = vshrl.u32 %v3090, 7
    %v3092 = vsub.s32 %v3089, %v3091
    %v3093 = vrot.slane %v3079, %v3092
    %v3094 = vcombine.high %v3086, %v3093
    %3096 = vst [vmem:[%s7 + $0x18] sm:$0xff] %v3094
    %v3097 = vld [vmem:[%s4] sm:$0xff]
    %v3098 = vld [vmem:[%s4 + $0x8] sm:$0xff]
    %v3099 = vld [vmem:[%s4 + $0x10] sm:$0xff]
    %v3100 = vstv %s2401
    %v3101 = vadd.f32 %v3097, %v3100
    %v3102 = vstv %s2402
    %v3103 = vadd.f32 %v3098, %v3102
    %v3104 = vstv %s2403
    %v3105 = vadd.f32 %v3099, %v3104
    %v3106 = vstv %s2404
    %v3107 = vmul.f32 %v3105, %v3106
    %v3108 = vsub.f32 %v3101, %v3107
    %v3109 = vstv %s2405
    %v3110 = vmul.f32 %v3105, %v3109
    %v3111 = vsub.f32 %v3103, %v3110
    %s3112 = sld [smem:[#allocation2 + $0x9]]
    %v3113 = vstv %s3112
    %v3114 = vmul.f32 %v3108, %v3113
    %s3115 = sld [smem:[#allocation2 + $0xd]]
    %v3116 = vstv %s3115
    %v3117 = vmul.f32 %v3111, %v3116
    %v3118 = vadd.f32 %v3114, %v3117
    %s3119 = sld [smem:[#allocation2 + $0x11]]
    %v3120 = vstv %s3119
    %v3121 = vmul.f32 %v3105, %v3120
    %v3122 = vadd.f32 %v3118, %v3121
    %s3123 = sld [smem:[#allocation2 + $0x15]]
    %v3124 = vstv %s3123
    %v3125 = vadd.f32 %v3122, %v3124
    %s3126 = sld [smem:[#allocation2 + $0xa]]
    %v3127 = vstv %s3126
    %v3128 = vmul.f32 %v3108, %v3127
    %s3129 = sld [smem:[#allocation2 + $0xe]]
    %v3130 = vstv %s3129
    %v3131 = vmul.f32 %v3111, %v3130
    %v3132 = vadd.f32 %v3128, %v3131
    %s3133 = sld [smem:[#allocation2 + $0x12]]
    %v3134 = vstv %s3133
    %v3135 = vmul.f32 %v3105, %v3134
    %v3136 = vadd.f32 %v3132, %v3135
    %s3137 = sld [smem:[#allocation2 + $0x16]]
    %v3138 = vstv %s3137
    %v3139 = vadd.f32 %v3136, %v3138
    %s3140 = sld [smem:[#allocation2 + $0xb]]
    %v3141 = vstv %s3140
    %v3142 = vmul.f32 %v3108, %v3141
    %s3143 = sld [smem:[#allocation2 + $0xf]]
    %v3144 = vstv %s3143
    %v3145 = vmul.f32 %v3111, %v3144
    %v3146 = vadd.f32 %v3142, %v3145
    %s3147 = sld [smem:[#allocation2 + $0x13]]
    %v3148 = vstv %s3147
    %v3149 = vmul.f32 %v3105, %v3148
    %v3150 = vadd.f32 %v3146, %v3149
    %s3151 = sld [smem:[#allocation2 + $0x17]]
    %v3152 = vstv %s3151
    %v3153 = vadd.f32 %v3150, %v3152
    %3154 = vst [vmem:[%s12] sm:$0xff] %v3125
    %3155 = vst [vmem:[%s12 + $0x8] sm:$0xff] %v3139
    %3156 = vst [vmem:[%s12 + $0x10] sm:$0xff] %v3153
    %v3157 = vadd.f32 %v3125, %v2647
    %3158 = vst [vmem:[%s11] sm:$0xff] %v3157
    %v3159 = vadd.f32 %v3139, %v2664
    %3160 = vst [vmem:[%s11 + $0x8] sm:$0xff] %v3159
    %v3161 = vadd.f32 %v3153, %v2681
    %3162 = vst [vmem:[%s11 + $0x10] sm:$0xff] %v3161
    %v3163 = vld [vmem:[%s5] sm:$0x7]
    %v3164 = vadd.f32 %v3163, %v3100
    %v3165 = vadd.f32 %v3163, %v3102
    %v3166 = vadd.f32 %v3163, %v3104
    %v3167 = vmul.f32 %v3166, %v3106
    %v3169 = vrot.slane %v3167, 2
    %v3171 = vsub.f32 %v3164, %v3169
    %v3172 = vmul.f32 %v3166, %v3109
    %v3174 = vrot.slane %v3172, 1
    %v3176 = vsub.f32 %v3165, %v3174
    %s3177 = sld [smem:[#allocation2 + $0x9]]
    %v3178 = vstv %s3177
    %v3179 = vmul.f32 %v3171, %v3178
    %s3180 = sld [smem:[#allocation2 + $0xd]]
    %v3181 = vstv %s3180
    %v3182 = vmul.f32 %v3176, %v3181
    %v3184 = vrot.slane %v3182, 1
    %v3186 = vadd.f32 %v3179, %v3184
    %s3187 = sld [smem:[#allocation2 + $0x11]]
    %v3188 = vstv %s3187
    %v3189 = vmul.f32 %v3166, %v3188
    %v3191 = vrot.slane %v3189, 2
    %v3193 = vadd.f32 %v3186, %v3191
    %s3194 = sld [smem:[#allocation2 + $0x15]]
    %v3195 = vstv %s3194
    %v3196 = vadd.f32 %v3193, %v3195
    %s3197 = sld [smem:[#allocation2 + $0xa]]
    %v3198 = vstv %s3197
    %v3199 = vmul.f32 %v3171, %v3198
    %s3200 = sld [smem:[#allocation2 + $0xe]]
    %v3201 = vstv %s3200
    %v3202 = vmul.f32 %v3176, %v3201
    %v3204 = vrot.slane %v3202, 1
    %v3206 = vadd.f32 %v3199, %v3204
    %s3207 = sld [smem:[#allocation2 + $0x12]]
    %v3208 = vstv %s3207
    %v3209 = vmul.f32 %v3166, %v3208
    %v3211 = vrot.slane %v3209, 2
    %v3213 = vadd.f32 %v3206, %v3211
    %s3214 = sld [smem:[#allocation2 + $0x16]]
    %v3215 = vstv %s3214
    %v3216 = vadd.f32 %v3213, %v3215
    %s3217 = sld [smem:[#allocation2 + $0xb]]
    %v3218 = vstv %s3217
    %v3219 = vmul.f32 %v3171, %v3218
    %s3220 = sld [smem:[#allocation2 + $0xf]]
    %v3221 = vstv %s3220
    %v3222 = vmul.f32 %v3176, %v3221
    %v3224 = vrot.slane %v3222, 1
    %v3226 = vadd.f32 %v3219, %v3224
    %s3227 = sld [smem:[#allocation2 + $0x13]]
    %v3228 = vstv %s3227
    %v3229 = vmul.f32 %v3166, %v3228
    %v3231 = vrot.slane %v3229, 2
    %v3233 = vadd.f32 %v3226, %v3231
    %s3234 = sld [smem:[#allocation2 + $0x17]]
    %v3235 = vstv %s3234
    %v3236 = vadd.f32 %v3233, %v3235
    %3237 = vst [vmem:[%s13] sm:$0x1] %v3196
    %3238 = vst [vmem:[%s13 + $0x1] sm:$0x1] %v3216
    %3239 = vst [vmem:[%s13 + $0x2] sm:$0x1] %v3236
    %s3240 = sld [smem:[#allocation2 + $0x80]]
    %s3241 = sld [smem:[#allocation2 + $0x81]]
    %s3242 = sld [smem:[#allocation2 + $0x82]]
    %s3243 = sld [smem:[#allocation2 + $0x83]]
    %s3244 = sld [smem:[#allocation2 + $0x84]]
    %s3245 = sld [smem:[#allocation2 + $0x85]]
    %s3246 = sld [smem:[#allocation2 + $0x86]]
    %s3247 = sld [smem:[#allocation2 + $0x87]]
    %s3248 = sld [smem:[#allocation2 + $0x88]]
    %v3261 = vcombine.low %v1068, %v1070
    %v3262 = vcombine.low %v1117, %v1119
    %v3264 = vunpack.c.l.s4 1983009808
    %v3265 = vunpack.c.0.s8 %v3264
    %v3266 = vlaneseq
    %v3267 = vshrl.u32 %v3266, 7
    %v3268 = vsub.s32 %v3265, %v3267
    %v3269 = vrot.slane %v3261, %v3268
    %v3271 = vunpack.c.l.s4 1983009808
    %v3272 = vunpack.c.0.s8 %v3271
    %v3273 = vlaneseq
    %v3274 = vshrl.u32 %v3273, 7
    %v3275 = vsub.s32 %v3272, %v3274
    %v3276 = vrot.slane %v3262, %v3275
    %v3277 = vcombine.high %v3269, %v3276
    %v3278 = vcombine.low %v1166, %v1168
    %v3279 = vcombine.low %v1215, %v1217
    %v3281 = vunpack.c.l.s4 1983009808
    %v3282 = vunpack.c.0.s8 %v3281
    %v3283 = vlaneseq
    %v3284 = vshrl.u32 %v3283, 7
    %v3285 = vsub.s32 %v3282, %v3284
    %v3286 = vrot.slane %v3278, %v3285
    %v3288 = vunpack.c.l.s4 1983009808
    %v3289 = vunpack.c.0.s8 %v3288
    %v3290 = vlaneseq
    %v3291 = vshrl.u32 %v3290, 7
    %v3292 = vsub.s32 %v3289, %v3291
    %v3293 = vrot.slane %v3279, %v3292
    %v3294 = vcombine.high %v3286, %v3293
    %v3295 = vcombine.low %v1264, %v1266
    %v3296 = vcombine.low %v1313, %v1315
    %v3298 = vunpack.c.l.s4 1983009808
    %v3299 = vunpack.c.0.s8 %v3298
    %v3300 = vlaneseq
    %v3301 = vshrl.u32 %v3300, 7
    %v3302 = vsub.s32 %v3299, %v3301
    %v3303 = vrot.slane %v3295, %v3302
    %v3305 = vunpack.c.l.s4 1983009808
    %v3306 = vunpack.c.0.s8 %v3305
    %v3307 = vlaneseq
    %v3308 = vshrl.u32 %v3307, 7
    %v3309 = vsub.s32 %v3306, %v3308
    %v3310 = vrot.slane %v3296, %v3309
    %v3311 = vcombine.high %v3303, %v3310
    %s3315 = scalar_lea.vmem %s6, 24
    %3316 = vst [vmem:[%s3315] sm:$0xff] %v3277
    %3317 = vst [vmem:[%s3315 + $0x8] sm:$0xff] %v3294
    %3318 = vst [vmem:[%s3315 + $0x10] sm:$0xff] %v3311
    %v3319 = vxor.u32 %v1754, 2147483648
    %v3320 = vxor.u32 %v1756, 2147483648
    %v3321 = vxor.u32 %v1803, 2147483648
    %v3322 = vxor.u32 %v1805, 2147483648
    %v3323 = vmul.f32 %v3319, 1.442695
    %v3324 = vpow.pop %v3323
    %v3325 = vmul.f32 %v3320, 1.442695
    %v3326 = vpow.pop %v3325
    %v3327 = vmul.f32 %v3321, 1.442695
    %v3328 = vpow.pop %v3327
    %v3329 = vmul.f32 %v3322, 1.442695
    %v3330 = vpow.pop %v3329
    %v3331 = vadd.f32 %v3324, 1.0
    %v3332 = vadd.f32 %v3326, 1.0
    %v3333 = vadd.f32 %v3328, 1.0
    %v3334 = vadd.f32 %v3330, 1.0
    %v3335 = vrcp.pop %v3331
    %v3336 = vmul.f32 1.0, %v3335
    %v3337 = vrcp.pop %v3332
    %v3338 = vmul.f32 1.0, %v3337
    %v3339 = vrcp.pop %v3333
    %v3340 = vmul.f32 1.0, %v3339
    %v3341 = vrcp.pop %v3334
    %v3342 = vmul.f32 1.0, %v3341
    %v3347 = vcombine.high %v3336, %v3338
    %v3348 = vcombine.high %v3340, %v3342
    %v3350 = vunpack.c.l.s4 1983009808
    %v3351 = vunpack.c.0.s8 %v3350
    %v3352 = vlaneseq
    %v3353 = vshrl.u32 %v3352, 7
    %v3354 = vsub.s32 %v3351, %v3353
    %v3355 = vrot.slane %v3347, %v3354
    %v3357 = vunpack.c.l.s4 1983009808
    %v3358 = vunpack.c.0.s8 %v3357
    %v3359 = vlaneseq
    %v3360 = vshrl.u32 %v3359, 7
    %v3361 = vsub.s32 %v3358, %v3360
    %v3362 = vrot.slane %v3348, %v3361
    %v3363 = vcombine.high %v3355, %v3362
    %s3365 = scalar_lea.vmem %s8, 8
    %3366 = vst [vmem:[%s3365] sm:$0xff] %v3363
    %v3367 = vmul.f32 %v1856, 1.442695
    %v3368 = vpow.pop %v3367
    %v3369 = vmul.f32 %v1858, 1.442695
    %v3370 = vpow.pop %v3369
    %v3371 = vmul.f32 %v1905, 1.442695
    %v3372 = vpow.pop %v3371
    %v3373 = vmul.f32 %v1907, 1.442695
    %v3374 = vpow.pop %v3373
    %v3375 = vmul.f32 %v1954, 1.442695
    %v3376 = vpow.pop %v3375
    %v3377 = vmul.f32 %v1956, 1.442695
    %v3378 = vpow.pop %v3377
    %v3379 = vmul.f32 %v2003, 1.442695
    %v3380 = vpow.pop %v3379
    %v3381 = vmul.f32 %v2005, 1.442695
    %v3382 = vpow.pop %v3381
    %v3383 = vmul.f32 %v2052, 1.442695
    %v3384 = vpow.pop %v3383
    %v3385 = vmul.f32 %v2054, 1.442695
    %v3386 = vpow.pop %v3385
    %v3387 = vmul.f32 %v2101, 1.442695
    %v3388 = vpow.pop %v3387
    %v3389 = vmul.f32 %v2103, 1.442695
    %v3390 = vpow.pop %v3389
    %v3403 = vcombine.low %v3368, %v3370
    %v3404 = vcombine.low %v3372, %v3374
    %v3406 = vunpack.c.l.s4 1983009808
    %v3407 = vunpack.c.0.s8 %v3406
    %v3408 = vlaneseq
    %v3409 = vshrl.u32 %v3408, 7
    %v3410 = vsub.s32 %v3407, %v3409
    %v3411 = vrot.slane %v3403, %v3410
    %v3413 = vunpack.c.l.s4 1983009808
    %v3414 = vunpack.c.0.s8 %v3413
    %v3415 = vlaneseq
    %v3416 = vshrl.u32 %v3415, 7
    %v3417 = vsub.s32 %v3414, %v3416
    %v3418 = vrot.slane %v3404, %v3417
    %v3419 = vcombine.low %v3411, %v3418
    %v3420 = vcombine.low %v3376, %v3378
    %v3421 = vcombine.low %v3380, %v3382
    %v3423 = vunpack.c.l.s4 1983009808
    %v3424 = vunpack.c.0.s8 %v3423
    %v3425 = vlaneseq
    %v3426 = vshrl.u32 %v3425, 7
    %v3427 = vsub.s32 %v3424, %v3426
    %v3428 = vrot.slane %v3420, %v3427
    %v3430 = vunpack.c.l.s4 1983009808
    %v3431 = vunpack.c.0.s8 %v3430
    %v3432 = vlaneseq
    %v3433 = vshrl.u32 %v3432, 7
    %v3434 = vsub.s32 %v3431, %v3433
    %v3435 = vrot.slane %v3421, %v3434
    %v3436 = vcombine.low %v3428, %v3435
    %v3437 = vcombine.low %v3384, %v3386
    %v3438 = vcombine.low %v3388, %v3390
    %v3440 = vunpack.c.l.s4 1983009808
    %v3441 = vunpack.c.0.s8 %v3440
    %v3442 = vlaneseq
    %v3443 = vshrl.u32 %v3442, 7
    %v3444 = vsub.s32 %v3441, %v3443
    %v3445 = vrot.slane %v3437, %v3444
    %v3447 = vunpack.c.l.s4 1983009808
    %v3448 = vunpack.c.0.s8 %v3447
    %v3449 = vlaneseq
    %v3450 = vshrl.u32 %v3449, 7
    %v3451 = vsub.s32 %v3448, %v3450
    %v3452 = vrot.slane %v3438, %v3451
    %v3453 = vcombine.low %v3445, %v3452
    %s3457 = scalar_lea.vmem %s9, 24
    %3458 = vst [vmem:[%s3457] sm:$0xff] %v3419
    %3459 = vst [vmem:[%s3457 + $0x8] sm:$0xff] %v3436
    %3460 = vst [vmem:[%s3457 + $0x10] sm:$0xff] %v3453
    %v3473 = vcombine.low %v2150, %v2152
    %v3474 = vcombine.low %v2199, %v2201
    %v3476 = vunpack.c.l.s4 1983009808
    %v3477 = vunpack.c.0.s8 %v3476
    %v3478 = vlaneseq
    %v3479 = vshrl.u32 %v3478, 7
    %v3480 = vsub.s32 %v3477, %v3479
    %v3481 = vrot.slane %v3473, %v3480
    %v3483 = vunpack.c.l.s4 1983009808
    %v3484 = vunpack.c.0.s8 %v3483
    %v3485 = vlaneseq
    %v3486 = vshrl.u32 %v3485, 7
    %v3487 = vsub.s32 %v3484, %v3486
    %v3488 = vrot.slane %v3474, %v3487
    %v3489 = vcombine.high %v3481, %v3488
    %v3490 = vcombine.low %v2248, %v2250
    %v3491 = vcombine.low %v2297, %v2299
    %v3493 = vunpack.c.l.s4 1983009808
    %v3494 = vunpack.c.0.s8 %v3493
    %v3495 = vlaneseq
    %v3496 = vshrl.u32 %v3495, 7
    %v3497 = vsub.s32 %v3494, %v3496
    %v3498 = vrot.slane %v3490, %v3497
    %v3500 = vunpack.c.l.s4 1983009808
    %v3501 = vunpack.c.0.s8 %v3500
    %v3502 = vlaneseq
    %v3503 = vshrl.u32 %v3502, 7
    %v3504 = vsub.s32 %v3501, %v3503
    %v3505 = vrot.slane %v3491, %v3504
    %v3506 = vcombine.high %v3498, %v3505
    %v3507 = vcombine.low %v2346, %v2348
    %v3508 = vcombine.low %v2395, %v2397
    %v3510 = vunpack.c.l.s4 1983009808
    %v3511 = vunpack.c.0.s8 %v3510
    %v3512 = vlaneseq
    %v3513 = vshrl.u32 %v3512, 7
    %v3514 = vsub.s32 %v3511, %v3513
    %v3515 = vrot.slane %v3507, %v3514
    %v3517 = vunpack.c.l.s4 1983009808
    %v3518 = vunpack.c.0.s8 %v3517
    %v3519 = vlaneseq
    %v3520 = vshrl.u32 %v3519, 7
    %v3521 = vsub.s32 %v3518, %v3520
    %v3522 = vrot.slane %v3508, %v3521
    %v3523 = vcombine.high %v3515, %v3522
    %s3527 = scalar_lea.vmem %s10, 24
    %3528 = vst [vmem:[%s3527] sm:$0xff] %v3489
    %3529 = vst [vmem:[%s3527 + $0x8] sm:$0xff] %v3506
    %3530 = vst [vmem:[%s3527 + $0x10] sm:$0xff] %v3523
    %v3531 = vmul.f32 %v1362, %v1362
    %v3532 = vmul.f32 %v1364, %v1364
    %v3533 = vmul.f32 %v1411, %v1411
    %v3534 = vmul.f32 %v1413, %v1413
    %v3539 = vrot.slane %v3531, 4
    %v3540 = vrot.slane %v3532, 4
    %v3541 = vrot.slane %v3533, 4
    %v3542 = vrot.slane %v3534, 4
    %v3547 = vsel %vm2704, %v3539, 0.0
    %v3548 = vsel %vm2704, %v3540, 0.0
    %v3549 = vadd.f32 %v3547, %v3548
    %v3550 = vsel %vm2704, %v3541, 0.0
    %v3551 = vadd.f32 %v3549, %v3550
    %v3552 = vsel %vm2704, %v3542, 0.0
    %v3553 = vadd.f32 %v3551, %v3552
    %3554 = vadd.xlane.f32.xlu0 %v3553
    %v3555 = vpop.xlane.xlu0 %3554
    %v3556 = vrot.slane %v3555, 4
    %v3557 = vadd.f32 %v3555, %v3556
    %v3558 = vrot.slane %v3557, 2
    %v3559 = vadd.f32 %v3557, %v3558
    %v3560 = vrot.slane %v3559, 1
    %v3561 = vadd.f32 %v3559, %v3560
    %s3562 = vtos %v3561
    %v3563 = vstv %s3562
    %v3564 = vrsqrt.pop %v3563
    %v3565 = vmul.f32 %v3563, %v3564
    %vm3566 = vcmp.eq.f32.partialorder %v3563, inf
    %v3567 = vsel %vm3566, %v3563, %v3565
    %vm3568 = vcmp.eq.f32.partialorder %v3563, 0.0
    %v3569 = vand.u32 %v3563, 2147483648
    %v3570 = vsel %vm3568, %v3569, %v3567
    %s3571 = vtos %v3570
    %s3572 = smax.f32 %s3571, 1e-12
    %v3573 = vstv %s3572
    %v3574 = vrcp.pop %v3573
    %s3575 = vtos %v3574
    %v3576 = vstv %s3575
    %v3577 = vmul.f32 %v1362, %v3576
    %v3578 = vmul.f32 %v1364, %v3576
    %v3579 = vmul.f32 %v1411, %v3576
    %v3580 = vmul.f32 %v1413, %v3576
    %v3581 = vmul.f32 %v1460, %v1460
    %v3582 = vmul.f32 %v1462, %v1462
    %v3583 = vmul.f32 %v1509, %v1509
    %v3584 = vmul.f32 %v1511, %v1511
    %v3589 = vrot.slane %v3581, 4
    %v3590 = vrot.slane %v3582, 4
    %v3591 = vrot.slane %v3583, 4
    %v3592 = vrot.slane %v3584, 4
    %v3597 = vsel %vm2704, %v3589, 0.0
    %v3598 = vsel %vm2704, %v3590, 0.0
    %v3599 = vadd.f32 %v3597, %v3598
    %v3600 = vsel %vm2704, %v3591, 0.0
    %v3601 = vadd.f32 %v3599, %v3600
    %v3602 = vsel %vm2704, %v3592, 0.0
    %v3603 = vadd.f32 %v3601, %v3602
    %3604 = vadd.xlane.f32.xlu0 %v3603
    %v3605 = vpop.xlane.xlu0 %3604
    %v3606 = vrot.slane %v3605, 4
    %v3607 = vadd.f32 %v3605, %v3606
    %v3608 = vrot.slane %v3607, 2
    %v3609 = vadd.f32 %v3607, %v3608
    %v3610 = vrot.slane %v3609, 1
    %v3611 = vadd.f32 %v3609, %v3610
    %s3612 = vtos %v3611
    %v3613 = vstv %s3612
    %v3614 = vrsqrt.pop %v3613
    %v3615 = vmul.f32 %v3613, %v3614
    %vm3616 = vcmp.eq.f32.partialorder %v3613, inf
    %v3617 = vsel %vm3616, %v3613, %v3615
    %vm3618 = vcmp.eq.f32.partialorder %v3613, 0.0
    %v3619 = vand.u32 %v3613, 2147483648
    %v3620 = vsel %vm3618, %v3619, %v3617
    %s3621 = vtos %v3620
    %s3622 = smax.f32 %s3621, 1e-12
    %v3623 = vstv %s3622
    %v3624 = vrcp.pop %v3623
    %s3625 = vtos %v3624
    %v3626 = vstv %s3625
    %v3627 = vmul.f32 %v1460, %v3626
    %v3628 = vmul.f32 %v1462, %v3626
    %v3629 = vmul.f32 %v1509, %v3626
    %v3630 = vmul.f32 %v1511, %v3626
    %v3631 = vmul.f32 %v1558, %v1558
    %v3632 = vmul.f32 %v1560, %v1560
    %v3633 = vmul.f32 %v1607, %v1607
    %v3634 = vmul.f32 %v1609, %v1609
    %v3639 = vrot.slane %v3631, 4
    %v3640 = vrot.slane %v3632, 4
    %v3641 = vrot.slane %v3633, 4
    %v3642 = vrot.slane %v3634, 4
    %v3647 = vsel %vm2704, %v3639, 0.0
    %v3648 = vsel %vm2704, %v3640, 0.0
    %v3649 = vadd.f32 %v3647, %v3648
    %v3650 = vsel %vm2704, %v3641, 0.0
    %v3651 = vadd.f32 %v3649, %v3650
    %v3652 = vsel %vm2704, %v3642, 0.0
    %v3653 = vadd.f32 %v3651, %v3652
    %3654 = vadd.xlane.f32.xlu0 %v3653
    %v3655 = vpop.xlane.xlu0 %3654
    %v3656 = vrot.slane %v3655, 4
    %v3657 = vadd.f32 %v3655, %v3656
    %v3658 = vrot.slane %v3657, 2
    %v3659 = vadd.f32 %v3657, %v3658
    %v3660 = vrot.slane %v3659, 1
    %v3661 = vadd.f32 %v3659, %v3660
    %s3662 = vtos %v3661
    %v3663 = vstv %s3662
    %v3664 = vrsqrt.pop %v3663
    %v3665 = vmul.f32 %v3663, %v3664
    %vm3666 = vcmp.eq.f32.partialorder %v3663, inf
    %v3667 = vsel %vm3666, %v3663, %v3665
    %vm3668 = vcmp.eq.f32.partialorder %v3663, 0.0
    %v3669 = vand.u32 %v3663, 2147483648
    %v3670 = vsel %vm3668, %v3669, %v3667
    %s3671 = vtos %v3670
    %s3672 = smax.f32 %s3671, 1e-12
    %v3673 = vstv %s3672
    %v3674 = vrcp.pop %v3673
    %s3675 = vtos %v3674
    %v3676 = vstv %s3675
    %v3677 = vmul.f32 %v1558, %v3676
    %v3678 = vmul.f32 %v1560, %v3676
    %v3679 = vmul.f32 %v1607, %v3676
    %v3680 = vmul.f32 %v1609, %v3676
    %v3681 = vmul.f32 %v1656, %v1656
    %v3682 = vmul.f32 %v1658, %v1658
    %v3683 = vmul.f32 %v1705, %v1705
    %v3684 = vmul.f32 %v1707, %v1707
    %v3689 = vrot.slane %v3681, 4
    %v3690 = vrot.slane %v3682, 4
    %v3691 = vrot.slane %v3683, 4
    %v3692 = vrot.slane %v3684, 4
    %v3697 = vsel %vm2704, %v3689, 0.0
    %v3698 = vsel %vm2704, %v3690, 0.0
    %v3699 = vadd.f32 %v3697, %v3698
    %v3700 = vsel %vm2704, %v3691, 0.0
    %v3701 = vadd.f32 %v3699, %v3700
    %v3702 = vsel %vm2704, %v3692, 0.0
    %v3703 = vadd.f32 %v3701, %v3702
    %3704 = vadd.xlane.f32.xlu0 %v3703
    %v3705 = vpop.xlane.xlu0 %3704
    %v3706 = vrot.slane %v3705, 4
    %v3707 = vadd.f32 %v3705, %v3706
    %v3708 = vrot.slane %v3707, 2
    %v3709 = vadd.f32 %v3707, %v3708
    %v3710 = vrot.slane %v3709, 1
    %v3711 = vadd.f32 %v3709, %v3710
    %s3712 = vtos %v3711
    %v3713 = vstv %s3712
    %v3714 = vrsqrt.pop %v3713
    %v3715 = vmul.f32 %v3713, %v3714
    %vm3716 = vcmp.eq.f32.partialorder %v3713, inf
    %v3717 = vsel %vm3716, %v3713, %v3715
    %vm3718 = vcmp.eq.f32.partialorder %v3713, 0.0
    %v3719 = vand.u32 %v3713, 2147483648
    %v3720 = vsel %vm3718, %v3719, %v3717
    %s3721 = vtos %v3720
    %s3722 = smax.f32 %s3721, 1e-12
    %v3723 = vstv %s3722
    %v3724 = vrcp.pop %v3723
    %s3725 = vtos %v3724
    %v3726 = vstv %s3725
    %v3727 = vmul.f32 %v1656, %v3726
    %v3728 = vmul.f32 %v1658, %v3726
    %v3729 = vmul.f32 %v1705, %v3726
    %v3730 = vmul.f32 %v1707, %v3726
    %v3731 = vstv %s3245
    %v3732 = vmul.f32 %v3731, %v3577
    %v3733 = vmul.f32 %v3731, %v3578
    %v3734 = vmul.f32 %v3731, %v3579
    %v3735 = vmul.f32 %v3731, %v3580
    %v3736 = vstv %s3246
    %v3737 = vmul.f32 %v3736, %v3627
    %v3738 = vmul.f32 %v3736, %v3628
    %v3739 = vmul.f32 %v3736, %v3629
    %v3740 = vmul.f32 %v3736, %v3630
    %v3741 = vsub.f32 %v3732, %v3737
    %v3742 = vsub.f32 %v3733, %v3738
    %v3743 = vsub.f32 %v3734, %v3739
    %v3744 = vsub.f32 %v3735, %v3740
    %v3745 = vstv %s3247
    %v3746 = vmul.f32 %v3745, %v3677
    %v3747 = vmul.f32 %v3745, %v3678
    %v3748 = vmul.f32 %v3745, %v3679
    %v3749 = vmul.f32 %v3745, %v3680
    %v3750 = vsub.f32 %v3741, %v3746
    %v3751 = vsub.f32 %v3742, %v3747
    %v3752 = vsub.f32 %v3743, %v3748
    %v3753 = vsub.f32 %v3744, %v3749
    %v3754 = vstv %s3248
    %v3755 = vmul.f32 %v3754, %v3727
    %v3756 = vmul.f32 %v3754, %v3728
    %v3757 = vmul.f32 %v3754, %v3729
    %v3758 = vmul.f32 %v3754, %v3730
    %v3759 = vsub.f32 %v3750, %v3755
    %v3760 = vsub.f32 %v3751, %v3756
    %v3761 = vsub.f32 %v3752, %v3757
    %v3762 = vsub.f32 %v3753, %v3758
    %v3767 = vcombine.high %v3759, %v3760
    %v3768 = vcombine.high %v3761, %v3762
    %v3770 = vunpack.c.l.s4 1983009808
    %v3771 = vunpack.c.0.s8 %v3770
    %v3772 = vlaneseq
    %v3773 = vshrl.u32 %v3772, 7
    %v3774 = vsub.s32 %v3771, %v3773
    %v3775 = vrot.slane %v3767, %v3774
    %v3777 = vunpack.c.l.s4 1983009808
    %v3778 = vunpack.c.0.s8 %v3777
    %v3779 = vlaneseq
    %v3780 = vshrl.u32 %v3779, 7
    %v3781 = vsub.s32 %v3778, %v3780
    %v3782 = vrot.slane %v3768, %v3781
    %v3783 = vcombine.low %v3775, %v3782
    %s3785 = scalar_lea.vmem %s7, 32
    %3786 = vst [vmem:[%s3785] sm:$0xff] %v3783
    %v3787 = vmul.f32 %v3731, %v3627
    %v3788 = vmul.f32 %v3731, %v3628
    %v3789 = vmul.f32 %v3731, %v3629
    %v3790 = vmul.f32 %v3731, %v3630
    %v3791 = vmul.f32 %v3736, %v3577
    %v3792 = vmul.f32 %v3736, %v3578
    %v3793 = vmul.f32 %v3736, %v3579
    %v3794 = vmul.f32 %v3736, %v3580
    %v3795 = vadd.f32 %v3787, %v3791
    %v3796 = vadd.f32 %v3788, %v3792
    %v3797 = vadd.f32 %v3789, %v3793
    %v3798 = vadd.f32 %v3790, %v3794
    %v3799 = vmul.f32 %v3745, %v3727
    %v3800 = vmul.f32 %v3745, %v3728
    %v3801 = vmul.f32 %v3745, %v3729
    %v3802 = vmul.f32 %v3745, %v3730
    %v3803 = vadd.f32 %v3795, %v3799
    %v3804 = vadd.f32 %v3796, %v3800
    %v3805 = vadd.f32 %v3797, %v3801
    %v3806 = vadd.f32 %v3798, %v3802
    %v3807 = vmul.f32 %v3754, %v3677
    %v3808 = vmul.f32 %v3754, %v3678
    %v3809 = vmul.f32 %v3754, %v3679
    %v3810 = vmul.f32 %v3754, %v3680
    %v3811 = vsub.f32 %v3803, %v3807
    %v3812 = vsub.f32 %v3804, %v3808
    %v3813 = vsub.f32 %v3805, %v3809
    %v3814 = vsub.f32 %v3806, %v3810
    %v3819 = vcombine.high %v3811, %v3812
    %v3820 = vcombine.high %v3813, %v3814
    %v3822 = vunpack.c.l.s4 1983009808
    %v3823 = vunpack.c.0.s8 %v3822
    %v3824 = vlaneseq
    %v3825 = vshrl.u32 %v3824, 7
    %v3826 = vsub.s32 %v3823, %v3825
    %v3827 = vrot.slane %v3819, %v3826
    %v3829 = vunpack.c.l.s4 1983009808
    %v3830 = vunpack.c.0.s8 %v3829
    %v3831 = vlaneseq
    %v3832 = vshrl.u32 %v3831, 7
    %v3833 = vsub.s32 %v3830, %v3832
    %v3834 = vrot.slane %v3820, %v3833
    %v3835 = vcombine.low %v3827, %v3834
    %3837 = vst [vmem:[%s3785 + $0x8] sm:$0xff] %v3835
    %v3838 = vmul.f32 %v3731, %v3677
    %v3839 = vmul.f32 %v3731, %v3678
    %v3840 = vmul.f32 %v3731, %v3679
    %v3841 = vmul.f32 %v3731, %v3680
    %v3842 = vmul.f32 %v3736, %v3727
    %v3843 = vmul.f32 %v3736, %v3728
    %v3844 = vmul.f32 %v3736, %v3729
    %v3845 = vmul.f32 %v3736, %v3730
    %v3846 = vsub.f32 %v3838, %v3842
    %v3847 = vsub.f32 %v3839, %v3843
    %v3848 = vsub.f32 %v3840, %v3844
    %v3849 = vsub.f32 %v3841, %v3845
    %v3850 = vmul.f32 %v3745, %v3577
    %v3851 = vmul.f32 %v3745, %v3578
    %v3852 = vmul.f32 %v3745, %v3579
    %v3853 = vmul.f32 %v3745, %v3580
    %v3854 = vadd.f32 %v3846, %v3850
    %v3855 = vadd.f32 %v3847, %v3851
    %v3856 = vadd.f32 %v3848, %v3852
    %v3857 = vadd.f32 %v3849, %v3853
    %v3858 = vmul.f32 %v3754, %v3627
    %v3859 = vmul.f32 %v3754, %v3628
    %v3860 = vmul.f32 %v3754, %v3629
    %v3861 = vmul.f32 %v3754, %v3630
    %v3862 = vadd.f32 %v3854, %v3858
    %v3863 = vadd.f32 %v3855, %v3859
    %v3864 = vadd.f32 %v3856, %v3860
    %v3865 = vadd.f32 %v3857, %v3861
    %v3870 = vcombine.high %v3862, %v3863
    %v3871 = vcombine.high %v3864, %v3865
    %v3873 = vunpack.c.l.s4 1983009808
    %v3874 = vunpack.c.0.s8 %v3873
    %v3875 = vlaneseq
    %v3876 = vshrl.u32 %v3875, 7
    %v3877 = vsub.s32 %v3874, %v3876
    %v3878 = vrot.slane %v3870, %v3877
    %v3880 = vunpack.c.l.s4 1983009808
    %v3881 = vunpack.c.0.s8 %v3880
    %v3882 = vlaneseq
    %v3883 = vshrl.u32 %v3882, 7
    %v3884 = vsub.s32 %v3881, %v3883
    %v3885 = vrot.slane %v3871, %v3884
    %v3886 = vcombine.low %v3878, %v3885
    %3888 = vst [vmem:[%s3785 + $0x10] sm:$0xff] %v3886
    %v3889 = vmul.f32 %v3731, %v3727
    %v3890 = vmul.f32 %v3731, %v3728
    %v3891 = vmul.f32 %v3731, %v3729
    %v3892 = vmul.f32 %v3731, %v3730
    %v3893 = vmul.f32 %v3736, %v3677
    %v3894 = vmul.f32 %v3736, %v3678
    %v3895 = vmul.f32 %v3736, %v3679
    %v3896 = vmul.f32 %v3736, %v3680
    %v3897 = vadd.f32 %v3889, %v3893
    %v3898 = vadd.f32 %v3890, %v3894
    %v3899 = vadd.f32 %v3891, %v3895
    %v3900 = vadd.f32 %v3892, %v3896
    %v3901 = vmul.f32 %v3745, %v3627
    %v3902 = vmul.f32 %v3745, %v3628
    %v3903 = vmul.f32 %v3745, %v3629
    %v3904 = vmul.f32 %v3745, %v3630
    %v3905 = vsub.f32 %v3897, %v3901
    %v3906 = vsub.f32 %v3898, %v3902
    %v3907 = vsub.f32 %v3899, %v3903
    %v3908 = vsub.f32 %v3900, %v3904
    %v3909 = vmul.f32 %v3754, %v3577
    %v3910 = vmul.f32 %v3754, %v3578
    %v3911 = vmul.f32 %v3754, %v3579
    %v3912 = vmul.f32 %v3754, %v3580
    %v3913 = vadd.f32 %v3905, %v3909
    %v3914 = vadd.f32 %v3906, %v3910
    %v3915 = vadd.f32 %v3907, %v3911
    %v3916 = vadd.f32 %v3908, %v3912
    %v3921 = vcombine.high %v3913, %v3914
    %v3922 = vcombine.high %v3915, %v3916
    %v3924 = vunpack.c.l.s4 1983009808
    %v3925 = vunpack.c.0.s8 %v3924
    %v3926 = vlaneseq
    %v3927 = vshrl.u32 %v3926, 7
    %v3928 = vsub.s32 %v3925, %v3927
    %v3929 = vrot.slane %v3921, %v3928
    %v3931 = vunpack.c.l.s4 1983009808
    %v3932 = vunpack.c.0.s8 %v3931
    %v3933 = vlaneseq
    %v3934 = vshrl.u32 %v3933, 7
    %v3935 = vsub.s32 %v3932, %v3934
    %v3936 = vrot.slane %v3922, %v3935
    %v3937 = vcombine.low %v3929, %v3936
    %3939 = vst [vmem:[%s3785 + $0x18] sm:$0xff] %v3937
    %s3940 = scalar_lea.vmem %s4, 24
    %v3941 = vld [vmem:[%s3940] sm:$0xff]
    %v3942 = vld [vmem:[%s3940 + $0x8] sm:$0xff]
    %v3943 = vld [vmem:[%s3940 + $0x10] sm:$0xff]
    %v3944 = vstv %s3240
    %v3945 = vadd.f32 %v3941, %v3944
    %v3946 = vstv %s3241
    %v3947 = vadd.f32 %v3942, %v3946
    %v3948 = vstv %s3242
    %v3949 = vadd.f32 %v3943, %v3948
    %v3950 = vstv %s3243
    %v3951 = vmul.f32 %v3949, %v3950
    %v3952 = vsub.f32 %v3945, %v3951
    %v3953 = vstv %s3244
    %v3954 = vmul.f32 %v3949, %v3953
    %v3955 = vsub.f32 %v3947, %v3954
    %s3956 = sld [smem:[#allocation2 + $0x89]]
    %v3957 = vstv %s3956
    %v3958 = vmul.f32 %v3952, %v3957
    %s3959 = sld [smem:[#allocation2 + $0x8d]]
    %v3960 = vstv %s3959
    %v3961 = vmul.f32 %v3955, %v3960
    %v3962 = vadd.f32 %v3958, %v3961
    %s3963 = sld [smem:[#allocation2 + $0x91]]
    %v3964 = vstv %s3963
    %v3965 = vmul.f32 %v3949, %v3964
    %v3966 = vadd.f32 %v3962, %v3965
    %s3967 = sld [smem:[#allocation2 + $0x95]]
    %v3968 = vstv %s3967
    %v3969 = vadd.f32 %v3966, %v3968
    %s3970 = sld [smem:[#allocation2 + $0x8a]]
    %v3971 = vstv %s3970
    %v3972 = vmul.f32 %v3952, %v3971
    %s3973 = sld [smem:[#allocation2 + $0x8e]]
    %v3974 = vstv %s3973
    %v3975 = vmul.f32 %v3955, %v3974
    %v3976 = vadd.f32 %v3972, %v3975
    %s3977 = sld [smem:[#allocation2 + $0x92]]
    %v3978 = vstv %s3977
    %v3979 = vmul.f32 %v3949, %v3978
    %v3980 = vadd.f32 %v3976, %v3979
    %s3981 = sld [smem:[#allocation2 + $0x96]]
    %v3982 = vstv %s3981
    %v3983 = vadd.f32 %v3980, %v3982
    %s3984 = sld [smem:[#allocation2 + $0x8b]]
    %v3985 = vstv %s3984
    %v3986 = vmul.f32 %v3952, %v3985
    %s3987 = sld [smem:[#allocation2 + $0x8f]]
    %v3988 = vstv %s3987
    %v3989 = vmul.f32 %v3955, %v3988
    %v3990 = vadd.f32 %v3986, %v3989
    %s3991 = sld [smem:[#allocation2 + $0x93]]
    %v3992 = vstv %s3991
    %v3993 = vmul.f32 %v3949, %v3992
    %v3994 = vadd.f32 %v3990, %v3993
    %s3995 = sld [smem:[#allocation2 + $0x97]]
    %v3996 = vstv %s3995
    %v3997 = vadd.f32 %v3994, %v3996
    %s3998 = scalar_lea.vmem %s12, 24
    %3999 = vst [vmem:[%s3998] sm:$0xff] %v3969
    %4000 = vst [vmem:[%s3998 + $0x8] sm:$0xff] %v3983
    %4001 = vst [vmem:[%s3998 + $0x10] sm:$0xff] %v3997
    %v4002 = vadd.f32 %v3969, %v3489
    %s4003 = scalar_lea.vmem %s11, 24
    %4004 = vst [vmem:[%s4003] sm:$0xff] %v4002
    %v4005 = vadd.f32 %v3983, %v3506
    %4006 = vst [vmem:[%s4003 + $0x8] sm:$0xff] %v4005
    %v4007 = vadd.f32 %v3997, %v3523
    %4008 = vst [vmem:[%s4003 + $0x10] sm:$0xff] %v4007
    %s4009 = scalar_lea.vmem %s5, 4
    %v4010 = vld [vmem:[%s4009] sm:$0x7]
    %v4011 = vadd.f32 %v4010, %v3944
    %v4012 = vadd.f32 %v4010, %v3946
    %v4013 = vadd.f32 %v4010, %v3948
    %v4014 = vmul.f32 %v4013, %v3950
    %v4016 = vrot.slane %v4014, 2
    %v4018 = vsub.f32 %v4011, %v4016
    %v4019 = vmul.f32 %v4013, %v3953
    %v4021 = vrot.slane %v4019, 1
    %v4023 = vsub.f32 %v4012, %v4021
    %s4024 = sld [smem:[#allocation2 + $0x89]]
    %v4025 = vstv %s4024
    %v4026 = vmul.f32 %v4018, %v4025
    %s4027 = sld [smem:[#allocation2 + $0x8d]]
    %v4028 = vstv %s4027
    %v4029 = vmul.f32 %v4023, %v4028
    %v4031 = vrot.slane %v4029, 1
    %v4033 = vadd.f32 %v4026, %v4031
    %s4034 = sld [smem:[#allocation2 + $0x91]]
    %v4035 = vstv %s4034
    %v4036 = vmul.f32 %v4013, %v4035
    %v4038 = vrot.slane %v4036, 2
    %v4040 = vadd.f32 %v4033, %v4038
    %s4041 = sld [smem:[#allocation2 + $0x95]]
    %v4042 = vstv %s4041
    %v4043 = vadd.f32 %v4040, %v4042
    %s4044 = sld [smem:[#allocation2 + $0x8a]]
    %v4045 = vstv %s4044
    %v4046 = vmul.f32 %v4018, %v4045
    %s4047 = sld [smem:[#allocation2 + $0x8e]]
    %v4048 = vstv %s4047
    %v4049 = vmul.f32 %v4023, %v4048
    %v4051 = vrot.slane %v4049, 1
    %v4053 = vadd.f32 %v4046, %v4051
    %s4054 = sld [smem:[#allocation2 + $0x92]]
    %v4055 = vstv %s4054
    %v4056 = vmul.f32 %v4013, %v4055
    %v4058 = vrot.slane %v4056, 2
    %v4060 = vadd.f32 %v4053, %v4058
    %s4061 = sld [smem:[#allocation2 + $0x96]]
    %v4062 = vstv %s4061
    %v4063 = vadd.f32 %v4060, %v4062
    %s4064 = sld [smem:[#allocation2 + $0x8b]]
    %v4065 = vstv %s4064
    %v4066 = vmul.f32 %v4018, %v4065
    %s4067 = sld [smem:[#allocation2 + $0x8f]]
    %v4068 = vstv %s4067
    %v4069 = vmul.f32 %v4023, %v4068
    %v4071 = vrot.slane %v4069, 1
    %v4073 = vadd.f32 %v4066, %v4071
    %s4074 = sld [smem:[#allocation2 + $0x93]]
    %v4075 = vstv %s4074
    %v4076 = vmul.f32 %v4013, %v4075
    %v4078 = vrot.slane %v4076, 2
    %v4080 = vadd.f32 %v4073, %v4078
    %s4081 = sld [smem:[#allocation2 + $0x97]]
    %v4082 = vstv %s4081
    %v4083 = vadd.f32 %v4080, %v4082
    %s4084 = scalar_lea.vmem %s13, 4
    %4085 = vst [vmem:[%s4084] sm:$0x1] %v4043
    %4086 = vst [vmem:[%s4084 + $0x1] sm:$0x1] %v4063
    %4087 = vst [vmem:[%s4084 + $0x2] sm:$0x1] %v4083
    // Predicated region
    $region30: #{gaussian_hamer_predictor_forward.3} parent=1 // pred_check
      _
    $region31: #{gaussian_hamer_predictor_forward.3} parent=1 // pred_check_branch
      %4089 = sbr.rel (0) target = $region33
    $region32: #{gaussian_hamer_predictor_forward.3} parent=1 // pred_region
      _
    $region33: #{gaussian_hamer_predictor_forward.3} parent=1 // pred_fallthru
      _
    // Predicated region
    $region34: #{gaussian_hamer_predictor_forward.3} parent=1 // pred_check
      _
    $region35: #{gaussian_hamer_predictor_forward.3} parent=1 // pred_check_branch
      %4091 = sbr.rel (0) target = $region37
    $region36: #{gaussian_hamer_predictor_forward.3} parent=1 // pred_region
      _
    $region37: #{gaussian_hamer_predictor_forward.3} parent=1 // pred_fallthru
      _
    // Predicated region
    $region38: #{gaussian_hamer_predictor_forward.3} parent=1 // pred_check
      _
    $region39: #{gaussian_hamer_predictor_forward.3} parent=1 // pred_check_branch
      %4093 = sbr.rel (0) target = $region41
    $region40: #{gaussian_hamer_predictor_forward.3} parent=1 // pred_region
      _
    $region41: #{gaussian_hamer_predictor_forward.3} parent=1 // pred_fallthru
      _
    // Predicated region
    $region42: #{gaussian_hamer_predictor_forward.3} parent=1 // pred_check
      _
    $region43: #{gaussian_hamer_predictor_forward.3} parent=1 // pred_check_branch
      %4095 = sbr.rel (0) target = $region45
    $region44: #{gaussian_hamer_predictor_forward.3} parent=1 // pred_region
      _
    $region45: #{gaussian_hamer_predictor_forward.3} parent=1 // pred_fallthru
      _
    // Predicated region
    $region46: #{gaussian_hamer_predictor_forward.3} parent=1 // pred_check
      _
    $region47: #{gaussian_hamer_predictor_forward.3} parent=1 // pred_check_branch
      %4097 = sbr.rel (0) target = $region49
    $region48: #{gaussian_hamer_predictor_forward.3} parent=1 // pred_region
      _
    $region49: #{gaussian_hamer_predictor_forward.3} parent=1 // pred_fallthru
      _
    // Predicated region
    $region50: #{gaussian_hamer_predictor_forward.3} parent=1 // pred_check
      _
    $region51: #{gaussian_hamer_predictor_forward.3} parent=1 // pred_check_branch
      %4099 = sbr.rel (0) target = $region53
    $region52: #{gaussian_hamer_predictor_forward.3} parent=1 // pred_region
      _
    $region53: #{gaussian_hamer_predictor_forward.3} parent=1 // pred_fallthru
      _
    // Predicated region
    $region54: #{gaussian_hamer_predictor_forward.3} parent=1 // pred_check
      _
    $region55: #{gaussian_hamer_predictor_forward.3} parent=1 // pred_check_branch
      %4101 = sbr.rel (0) target = $region57
    $region56: #{gaussian_hamer_predictor_forward.3} parent=1 // pred_region
      _
    $region57: #{gaussian_hamer_predictor_forward.3} parent=1 // pred_fallthru
      _
    // Predicated region
    $region58: #{gaussian_hamer_predictor_forward.3} parent=1 // pred_check
      _
    $region59: #{gaussian_hamer_predictor_forward.3} parent=1 // pred_check_branch
      %4103 = sbr.rel (0) target = $region61
    $region60: #{gaussian_hamer_predictor_forward.3} parent=1 // pred_region
      _
    $region61: #{gaussian_hamer_predictor_forward.3} parent=1 // pred_fallthru
      _
    // Predicated region
    $region62: #{gaussian_hamer_predictor_forward.3} parent=1 // pred_check
      _
    $region63: #{gaussian_hamer_predictor_forward.3} parent=1 // pred_check_branch
      %4105 = sbr.rel (0) target = $region65
    $region64: #{gaussian_hamer_predictor_forward.3} parent=1 // pred_region
      _
    $region65: #{gaussian_hamer_predictor_forward.3} parent=1 // pred_fallthru
      _
    // Predicated region
    $region66: #{gaussian_hamer_predictor_forward.3} parent=1 // pred_check
      _
    $region67: #{gaussian_hamer_predictor_forward.3} parent=1 // pred_check_branch
      %4107 = sbr.rel (0) target = $region69
    $region68: #{gaussian_hamer_predictor_forward.3} parent=1 // pred_region
      _
    $region69: #{gaussian_hamer_predictor_forward.3} parent=1 // pred_fallthru
      _
    // Predicated region
    $region70: #{gaussian_hamer_predictor_forward.3} parent=1 // pred_check
      _
    $region71: #{gaussian_hamer_predictor_forward.3} parent=1 // pred_check_branch
      %4109 = sbr.rel (0) target = $region73
    $region72: #{gaussian_hamer_predictor_forward.3} parent=1 // pred_region
      _
    $region73: #{gaussian_hamer_predictor_forward.3} parent=1 // pred_fallthru
      _
    // Predicated region
    $region74: #{gaussian_hamer_predictor_forward.3} parent=1 // pred_check
      _
    $region75: #{gaussian_hamer_predictor_forward.3} parent=1 // pred_check_branch
      %4111 = sbr.rel (0) target = $region77
    $region76: #{gaussian_hamer_predictor_forward.3} parent=1 // pred_region
      _
    $region77: #{gaussian_hamer_predictor_forward.3} parent=1 // pred_fallthru
      _
    // Predicated region
    $region78: #{gaussian_hamer_predictor_forward.3} parent=1 // pred_check
      _
    $region79: #{gaussian_hamer_predictor_forward.3} parent=1 // pred_check_branch
      %4113 = sbr.rel (0) target = $region81
    $region80: #{gaussian_hamer_predictor_forward.3} parent=1 // pred_region
      _
    $region81: #{gaussian_hamer_predictor_forward.3} parent=1 // pred_fallthru
      _
    // Predicated region
    $region82: #{gaussian_hamer_predictor_forward.3} parent=1 // pred_check
      _
    $region83: #{gaussian_hamer_predictor_forward.3} parent=1 // pred_check_branch
      %4115 = sbr.rel (0) target = $region85
    $region84: #{gaussian_hamer_predictor_forward.3} parent=1 // pred_region
      _
    $region85: #{gaussian_hamer_predictor_forward.3} parent=1 // pred_fallthru
      _
    // Predicated region
    $region86: #{gaussian_hamer_predictor_forward.3} parent=1 // pred_check
      _
    $region87: #{gaussian_hamer_predictor_forward.3} parent=1 // pred_check_branch
      %4117 = sbr.rel (0) target = $region89
    $region88: #{gaussian_hamer_predictor_forward.3} parent=1 // pred_region
      _
    $region89: #{gaussian_hamer_predictor_forward.3} parent=1 // pred_fallthru
      _
    // Predicated region
    $region90: #{gaussian_hamer_predictor_forward.3} parent=1 // pred_check
      _
    $region91: #{gaussian_hamer_predictor_forward.3} parent=1 // pred_check_branch
      %4119 = sbr.rel (0) target = $region93
    $region92: #{gaussian_hamer_predictor_forward.3} parent=1 // pred_region
      _
    $region93: #{gaussian_hamer_predictor_forward.3} parent=1 // pred_fallthru
      _
    %4120 = vsyncpa [#allocation3], 1

</llo_original>
